<compile_context>
chip_gen: v5e
topology: v5e:2x2
jax: 0.10.0
libtpu: 0.0.40
codegen_flags: <defaults>
</compile_context>

<pallas_src>
import functools

import jax
import jax.numpy as jnp
from jax import lax
from jax.experimental import pallas as pl
from jax.experimental.pallas import tpu as pltpu

_EPS = 1e-5          # BatchNorm2d default eps
_N_BLOCKS = 3


# ----------------------------------- fused kernel -----------------------------------

def _gated_stgcn_kernel(*refs, K, Kt, N, cout):
    """Whole network (3 x ST_BLOCK_4 + head) on one batch tile, layout (T, bb, N, C)."""
    x_ref, l_ref = refs[0], refs[1]
    blk_refs = refs[2:2 + 6 * _N_BLOCKS]
    hw_ref, hb_ref = refs[2 + 6 * _N_BLOCKS], refs[3 + 6 * _N_BLOCKS]
    o_ref = refs[4 + 6 * _N_BLOCKS]

    x = x_ref[...]                                   # (T, bb, N, Cin) bf16
    T, bb = x.shape[0], x.shape[1]
    G = T * bb                                       # batch dim of the node contraction
    R = G * N                                        # matmul M dim (all rows at once)

    # Chebyshev stack [T_0; ...; T_{K-1}] broadcast ONCE, reused by all three blocks.
    lstack_b = jnp.broadcast_to(l_ref[...][None], (G, K * N, N))        # bf16

    def tconv(h, w_ref, b_ref):
        """Gated temporal conv: Conv2d kernel (1, Kt), 'same' zero padding, GLU gate."""
        h = h.astype(jnp.bfloat16)
        Tq, bq, Nq, Cq = h.shape
        co = w_ref.shape[1] // 2
        pad_lo = (Kt - 1) // 2
        pad_hi = Kt - 1 - pad_lo
        parts = []
        if pad_lo:
            parts.append(jnp.zeros((pad_lo, bq, Nq, Cq), h.dtype))
        parts.append(h)
        if pad_hi:
            parts.append(jnp.zeros((pad_hi, bq, Nq, Cq), h.dtype))
        hp = jnp.concatenate(parts, axis=0) if len(parts) > 1 else h    # pad once (leading dim)
        taps = [hp[kt:kt + Tq] for kt in range(Kt)]                     # leading-dim windows
        xc = jnp.concatenate(taps, axis=-1).reshape(Tq * bq * Nq, Kt * Cq)
        y = jnp.dot(xc, w_ref[...], preferred_element_type=jnp.float32) + b_ref[...]
        out = y[:, :co] * jax.nn.sigmoid(y[:, co:])                     # GLU, f32 epilogue
        return out.reshape(Tq, bq, Nq, co)                              # f32

    def gconv(h, wg_ref, bg_ref):
        """relu( sum_k T_k(L) @ h @ W_k + b ): one batched node matmul + one channel-mix matmul."""
        hg = h.astype(jnp.bfloat16).reshape(G, N, cout)
        z = jnp.einsum('gkm,gmc->gkc', lstack_b, hg,
                       preferred_element_type=jnp.float32)              # (G, K*N, cout) f32
        # Keep z in f32: only ONE bf16 rounding between the two back-to-back matmuls.
        zcat = jnp.concatenate(
            [z[:, k * N:(k + 1) * N, :].reshape(R, cout) for k in range(K)], axis=-1)
        q = jnp.dot(zcat, wg_ref[...].astype(jnp.float32),
                    preferred_element_type=jnp.float32) + bg_ref[...]
        return jnp.maximum(q, 0.0).reshape(T, bb, N, cout)              # f32

    h = x
    for blk in range(_N_BLOCKS):
        w1, b1, wg, bg, w2, b2 = blk_refs[6 * blk:6 * blk + 6]
        h = tconv(gconv(tconv(h, w1, b1), wg, bg), w2, b2)

    # Head: Conv2d(d_model, 12, kernel=(1, T)) -> squeeze -> permute == one (bb*N, T*cout)
    # matmul; lanes ordered (t, c) to match head_w's row order.
    h3 = h.astype(jnp.bfloat16)                                         # (T, bb, N, cout)
    hcat = jnp.concatenate([h3[t].reshape(bb * N, cout) for t in range(T)], axis=-1)
    out = jnp.dot(hcat, hw_ref[...], preferred_element_type=jnp.float32) + hb_ref[...]
    o_ref[...] = out.reshape(bb, N, 12)


# ----------------------------------- wrapper -----------------------------------

def _cheb_stack(adj, K):
    """Vertical stack [T_0; T_1; ...; T_{K-1}] of Chebyshev polynomials -> (K*N, N). One-off."""
    N = adj.shape[0]
    adj = adj.astype(jnp.float32)
    t_prev = jnp.eye(N, dtype=jnp.float32)
    mats = [t_prev]
    if K > 1:
        t_cur = adj
        mats.append(t_cur)
        for _ in range(2, K):
            t_next = 2.0 * (adj @ t_cur) - t_prev
            mats.append(t_next)
            t_prev, t_cur = t_cur, t_next
    return jnp.concatenate(mats, axis=0)


def gated_stgcn_forward(x_w, x_d, x_r, supports, params, *, K, Kt):
    # x_w, x_d are unused by the PyTorch forward (only x_r feeds the network).
    del x_w, x_d
    B, C_in, N, T = x_r.shape
    blocks = params["blocks"]
    cout = blocks[0]["wg"].shape[1]
    bf16 = jnp.bfloat16

    # BatchNorm2d(c_in, affine=False), training mode: biased per-channel batch statistics.
    # Tiny XLA reduction fused into the input transpose; everything else runs in ONE kernel.
    x = x_r.astype(jnp.float32)
    mean = jnp.mean(x, axis=(0, 2, 3), keepdims=True)
    var = jnp.mean((x - mean) ** 2, axis=(0, 2, 3), keepdims=True)
    xn = (x - mean) * lax.rsqrt(var + _EPS)
    xk = jnp.transpose(xn, (3, 0, 2, 1)).astype(bf16)        # kernel layout (T, B, N, Cin)

    lstack = _cheb_stack(supports, K).astype(bf16)           # (K*N, N)

    # Batch tiling: fold the batch into the matmul M dim on 1-TensorCore chips (v5e/v6e);
    # keep a parallel batch grid only where it buys a second core (v7x).
    try:
        kind = jax.devices()[0].device_kind.lower()
    except Exception:                                        # pragma: no cover
        kind = ""
    multi_tc = "v7" in kind
    bb = 1 if (multi_tc and B > 1) else B                    # TODO(synk): if B==1 on v7x one TC idles
    grid = (B // bb,)

    inputs = [xk, lstack]
    in_specs = [pl.BlockSpec((T, bb, N, C_in), lambda b: (0, b, 0, 0)),
                pl.BlockSpec((K * N, N), lambda b: (0, 0))]
    for blk in blocks:
        inputs += [blk["w1"].astype(bf16), blk["b1"],
                   blk["wg"].astype(bf16), blk["bg"],
                   blk["w2"].astype(bf16), blk["b2"]]
        in_specs += [pl.BlockSpec(tuple(blk[name].shape), lambda b: (0, 0))
                     for name in ("w1", "b1", "wg", "bg", "w2", "b2")]
    inputs += [params["head_w"].astype(bf16), params["head_b"]]
    in_specs += [pl.BlockSpec(tuple(params["head_w"].shape), lambda b: (0, 0)),
                 pl.BlockSpec(tuple(params["head_b"].shape), lambda b: (0, 0))]

    out_shape = jax.ShapeDtypeStruct((B, N, 12), jnp.float32)
    out_specs = pl.BlockSpec((bb, N, 12), lambda b: (b, 0, 0))

    # Advisory cost estimate so XLA schedules the surrounding glue sensibly.
    rows = B * N * T
    flops = 0
    for blk in blocks:
        cin_b = blk["w1"].shape[0] // Kt
        flops += 2 * rows * (Kt * cin_b) * (2 * cout)        # temporal conv 1
        flops += 2 * B * T * (K * N) * N * cout              # Chebyshev node contraction
        flops += 2 * rows * (K * cout) * cout                # channel mix
        flops += 2 * rows * (Kt * cout) * (2 * cout)         # temporal conv 2
    flops += 2 * B * N * (T * cout) * 12                     # head
    bytes_accessed = int(sum(int(a.size) * a.dtype.itemsize for a in inputs) + B * N * 12 * 4)

    kernel = functools.partial(_gated_stgcn_kernel, K=K, Kt=Kt, N=N, cout=cout)
    out = pl.pallas_call(
        kernel,
        out_shape=out_shape,
        grid=grid,
        in_specs=in_specs,
        out_specs=out_specs,
        compiler_params=pltpu.CompilerParams(dimension_semantics=("parallel",)),
        cost_estimate=pl.CostEstimate(flops=int(flops),
                                      transcendentals=int(6 * rows * cout),
                                      bytes_accessed=bytes_accessed),
    )(*inputs)
    return out, supports, supports


# ------------------------------ plain-JAX reference ------------------------------

def reference_forward(x_r, supports, params, *, K, Kt):
    B, C_in, N, T = x_r.shape
    x = jnp.transpose(x_r, (0, 2, 3, 1)).astype(jnp.float32)   # (B, N, T, C)
    mean = jnp.mean(x, axis=(0, 1, 2), keepdims=True)
    var = jnp.mean((x - mean) ** 2, axis=(0, 1, 2), keepdims=True)
    x = (x - mean) * lax.rsqrt(var + _EPS)
    lstack = _cheb_stack(supports, K)                          # (K*N, N) f32

    def tconv(h, w, b):
        Bq, Nq, Tq, Cq = h.shape
        co = w.shape[1] // 2
        pad = (Kt - 1) // 2
        hp = jnp.pad(h, ((0, 0), (0, 0), (pad, Kt - 1 - pad), (0, 0)))
        cols = jnp.concatenate([hp[:, :, kt:kt + Tq, :] for kt in range(Kt)], axis=-1)
        y = cols.reshape(Bq * Nq * Tq, Kt * Cq) @ w + b
        return (y[:, :co] * jax.nn.sigmoid(y[:, co:])).reshape(Bq, Nq, Tq, co)

    def cheb(h, wg, bg):
        Bq, Nq, Tq, Cq = h.shape
        co = wg.shape[1]
        acc = jnp.zeros((Bq, Nq, Tq, co), jnp.float32)
        for k in range(K):
            Lk = lstack[k * Nq:(k + 1) * Nq, :]
            zk = jnp.einsum('nm,bmtc->bntc', Lk, h)
            acc = acc + jnp.einsum('bntc,co->bnto', zk, wg[k * Cq:(k + 1) * Cq, :])
        return jnp.maximum(acc + bg.reshape(1, 1, 1, co), 0.0)

    h = x
    for p in params["blocks"]:
        h = tconv(h, p["w1"], p["b1"])
        h = cheb(h, p["wg"], p["bg"])
        h = tconv(h, p["w2"], p["b2"])
    Bq, Nq, Tq, Cq = h.shape
    y = h.reshape(Bq * Nq, Tq * Cq) @ params["head_w"] + params["head_b"]
    return y.reshape(Bq, Nq, 12)


# ------------------------------ parameter init ------------------------------

def init_params(key, c_in, d_model, K, Kt, recent):
    scale = 0.1

    def dense(k, shape):
        return scale * jax.random.normal(k, shape, dtype=jnp.float32)

    keys = iter(jax.random.split(key, 64))
    blocks = []
    for cin in (c_in, d_model, d_model):
        blocks.append({
            "w1": dense(next(keys), (Kt * cin, 2 * d_model)),     # packed [filter | gate]
            "b1": dense(next(keys), (1, 2 * d_model)),
            "wg": dense(next(keys), (K * d_model, d_model)),      # Chebyshev 1x1 conv, rows (k, c)
            "bg": dense(next(keys), (1, d_model)),
            "w2": dense(next(keys), (Kt * d_model, 2 * d_model)),
            "b2": dense(next(keys), (1, 2 * d_model)),
        })
    return {
        "blocks": blocks,
        "head_w": dense(next(keys), (recent * d_model, 12)),      # rows ordered (t, c)
        "head_b": dense(next(keys), (1, 12)),
    }


# ------------------------------------ main ------------------------------------

if __name__ == "__main__":
    B, c_in, num_nodes = 2, 4, 16
    d_model = 32
    week, day, recent = 0, 0, 8        # tem_size = week + day + recent = 8 (only x_r is used)
    K, Kt = 3, 3

    key = jax.random.PRNGKey(0)
    k_x, k_a, k_p = jax.random.split(key, 3)

    x_r = jax.random.normal(k_x, (B, c_in, num_nodes, recent), dtype=jnp.float32)
    adj = jax.random.uniform(k_a, (num_nodes, num_nodes), dtype=jnp.float32)
    supports = adj / jnp.sum(adj, axis=1, keepdims=True)   # row-normalized -> bounded Cheb polys

    params = init_params(k_p, c_in, d_model, K, Kt, recent)

    fwd = jax.jit(functools.partial(gated_stgcn_forward, K=K, Kt=Kt))
    out, s1, s2 = fwd(None, None, x_r, supports, params)
    out = jax.block_until_ready(out)

    assert out.shape == (B, num_nodes, 12), out.shape
    assert s1.shape == (num_nodes, num_nodes)
    assert bool(jnp.all(jnp.isfinite(out)))

    # Correctness check against a pure-JAX f32 reference (kernel runs bf16 matmuls, so use a
    # loose max-relative criterion).
    ref = reference_forward(x_r, supports, params, K=K, Kt=Kt)
    rel_err = float(jnp.max(jnp.abs(out - ref)) / (jnp.max(jnp.abs(ref)) + 1e-6))
    assert rel_err < 0.1, f"kernel/reference mismatch: rel_err={rel_err}"

    print("KERNEL_OK")
</pallas_src>

<mosaic_0001>
module attributes {stable_mosaic.version = 11 : i64} {
  func.func @_gated_stgcn_kernel(%arg0: i32, %arg1: memref<8x2x16x4xbf16, #tpu.memory_space<vmem>>, %arg2: memref<48x16xbf16, #tpu.memory_space<vmem>>, %arg3: memref<12x64xbf16, #tpu.memory_space<vmem>>, %arg4: memref<1x64xf32, #tpu.memory_space<vmem>>, %arg5: memref<96x32xbf16, #tpu.memory_space<vmem>>, %arg6: memref<1x32xf32, #tpu.memory_space<vmem>>, %arg7: memref<96x64xbf16, #tpu.memory_space<vmem>>, %arg8: memref<1x64xf32, #tpu.memory_space<vmem>>, %arg9: memref<96x64xbf16, #tpu.memory_space<vmem>>, %arg10: memref<1x64xf32, #tpu.memory_space<vmem>>, %arg11: memref<96x32xbf16, #tpu.memory_space<vmem>>, %arg12: memref<1x32xf32, #tpu.memory_space<vmem>>, %arg13: memref<96x64xbf16, #tpu.memory_space<vmem>>, %arg14: memref<1x64xf32, #tpu.memory_space<vmem>>, %arg15: memref<96x64xbf16, #tpu.memory_space<vmem>>, %arg16: memref<1x64xf32, #tpu.memory_space<vmem>>, %arg17: memref<96x32xbf16, #tpu.memory_space<vmem>>, %arg18: memref<1x32xf32, #tpu.memory_space<vmem>>, %arg19: memref<96x64xbf16, #tpu.memory_space<vmem>>, %arg20: memref<1x64xf32, #tpu.memory_space<vmem>>, %arg21: memref<256x12xbf16, #tpu.memory_space<vmem>>, %arg22: memref<1x12xf32, #tpu.memory_space<vmem>>, %arg23: memref<2x16x12xf32, #tpu.memory_space<vmem>>) attributes {dimension_semantics = [#tpu.dimension_semantics<parallel>], iteration_bounds = array<i64: 1>, scalar_prefetch = 0 : i64, scratch_operands = 0 : i64, tpu.core_type = #tpu.core_type<tc>, window_params = [{transform_indices = @transform_0, window_bounds = array<i64: 8, 2, 16, 4>}, {pipeline_mode = #tpu.pipeline_mode<synchronous>, transform_indices = @transform_1, window_bounds = array<i64: 48, 16>}, {pipeline_mode = #tpu.pipeline_mode<synchronous>, transform_indices = @transform_2, window_bounds = array<i64: 12, 64>}, {pipeline_mode = #tpu.pipeline_mode<synchronous>, transform_indices = @transform_3, window_bounds = array<i64: 1, 64>}, {pipeline_mode = #tpu.pipeline_mode<synchronous>, transform_indices = @transform_4, window_bounds = array<i64: 96, 32>}, {pipeline_mode = #tpu.pipeline_mode<synchronous>, transform_indices = @transform_5, window_bounds = array<i64: 1, 32>}, {pipeline_mode = #tpu.pipeline_mode<synchronous>, transform_indices = @transform_6, window_bounds = array<i64: 96, 64>}, {pipeline_mode = #tpu.pipeline_mode<synchronous>, transform_indices = @transform_7, window_bounds = array<i64: 1, 64>}, {pipeline_mode = #tpu.pipeline_mode<synchronous>, transform_indices = @transform_8, window_bounds = array<i64: 96, 64>}, {pipeline_mode = #tpu.pipeline_mode<synchronous>, transform_indices = @transform_9, window_bounds = array<i64: 1, 64>}, {pipeline_mode = #tpu.pipeline_mode<synchronous>, transform_indices = @transform_10, window_bounds = array<i64: 96, 32>}, {pipeline_mode = #tpu.pipeline_mode<synchronous>, transform_indices = @transform_11, window_bounds = array<i64: 1, 32>}, {pipeline_mode = #tpu.pipeline_mode<synchronous>, transform_indices = @transform_12, window_bounds = array<i64: 96, 64>}, {pipeline_mode = #tpu.pipeline_mode<synchronous>, transform_indices = @transform_13, window_bounds = array<i64: 1, 64>}, {pipeline_mode = #tpu.pipeline_mode<synchronous>, transform_indices = @transform_14, window_bounds = array<i64: 96, 64>}, {pipeline_mode = #tpu.pipeline_mode<synchronous>, transform_indices = @transform_15, window_bounds = array<i64: 1, 64>}, {pipeline_mode = #tpu.pipeline_mode<synchronous>, transform_indices = @transform_16, window_bounds = array<i64: 96, 32>}, {pipeline_mode = #tpu.pipeline_mode<synchronous>, transform_indices = @transform_17, window_bounds = array<i64: 1, 32>}, {pipeline_mode = #tpu.pipeline_mode<synchronous>, transform_indices = @transform_18, window_bounds = array<i64: 96, 64>}, {pipeline_mode = #tpu.pipeline_mode<synchronous>, transform_indices = @transform_19, window_bounds = array<i64: 1, 64>}, {pipeline_mode = #tpu.pipeline_mode<synchronous>, transform_indices = @transform_20, window_bounds = array<i64: 256, 12>}, {pipeline_mode = #tpu.pipeline_mode<synchronous>, transform_indices = @transform_21, window_bounds = array<i64: 1, 12>}, {transform_indices = @transform_22, window_bounds = array<i64: 2, 16, 12>}]} {
    %c0 = arith.constant 0 : index
    %c0_0 = arith.constant 0 : index
    %c0_1 = arith.constant 0 : index
    %c0_2 = arith.constant 0 : index
    %0 = vector.load %arg1[%c0, %c0_0, %c0_1, %c0_2] : memref<8x2x16x4xbf16, #tpu.memory_space<vmem>>, vector<8x2x16x4xbf16>
    %c0_3 = arith.constant 0 : index
    %c0_4 = arith.constant 0 : index
    %1 = vector.load %arg2[%c0_3, %c0_4] : memref<48x16xbf16, #tpu.memory_space<vmem>>, vector<48x16xbf16>
    %2 = vector.shape_cast %1 : vector<48x16xbf16> to vector<1x48x16xbf16>
    %3 = vector.shape_cast %2 : vector<1x48x16xbf16> to vector<1x48x16xbf16>
    %4 = vector.broadcast %3 : vector<1x48x16xbf16> to vector<16x48x16xbf16>
    %cst = arith.constant 0.000000e+00 : bf16
    %5 = vector.broadcast %cst : bf16 to vector<1x2x16x4xbf16>
    %cst_5 = arith.constant 0.000000e+00 : bf16
    %6 = vector.broadcast %cst_5 : bf16 to vector<1x2x16x4xbf16>
    %7 = tpu.concatenate %5, %0, %6 in 0 : vector<1x2x16x4xbf16>, vector<8x2x16x4xbf16>, vector<1x2x16x4xbf16> -> vector<10x2x16x4xbf16>
    %8 = vector.extract_strided_slice %7 {offsets = [0, 0, 0, 0], sizes = [8, 2, 16, 4], strides = [1, 1, 1, 1]} : vector<10x2x16x4xbf16> to vector<8x2x16x4xbf16>
    %9 = vector.extract_strided_slice %7 {offsets = [1, 0, 0, 0], sizes = [8, 2, 16, 4], strides = [1, 1, 1, 1]} : vector<10x2x16x4xbf16> to vector<8x2x16x4xbf16>
    %10 = vector.extract_strided_slice %7 {offsets = [2, 0, 0, 0], sizes = [8, 2, 16, 4], strides = [1, 1, 1, 1]} : vector<10x2x16x4xbf16> to vector<8x2x16x4xbf16>
    %11 = tpu.concatenate %8, %9, %10 in 3 : vector<8x2x16x4xbf16>, vector<8x2x16x4xbf16>, vector<8x2x16x4xbf16> -> vector<8x2x16x12xbf16>
    %12 = vector.shape_cast %11 : vector<8x2x16x12xbf16> to vector<256x12xbf16>
    %c0_6 = arith.constant 0 : index
    %c0_7 = arith.constant 0 : index
    %13 = vector.load %arg3[%c0_6, %c0_7] : memref<12x64xbf16, #tpu.memory_space<vmem>>, vector<12x64xbf16>
    %cst_8 = arith.constant dense<0.000000e+00> : vector<256x64xf32>
    %14 = tpu.matmul %12, %13, %cst_8 {dimension_numbers = #tpu.dot_dimension_numbers<[1], [0], [0], [1], [0, 0, 1, 1], [], []>} : vector<256x12xbf16>, vector<12x64xbf16>, vector<256x64xf32> -> vector<256x64xf32>
    %c0_9 = arith.constant 0 : index
    %c0_10 = arith.constant 0 : index
    %15 = vector.load %arg4[%c0_9, %c0_10] : memref<1x64xf32, #tpu.memory_space<vmem>>, vector<1x64xf32>
    %16 = vector.broadcast %15 : vector<1x64xf32> to vector<256x64xf32>
    %17 = arith.addf %14, %16 : vector<256x64xf32>
    %18 = vector.extract_strided_slice %17 {offsets = [0, 0], sizes = [256, 32], strides = [1, 1]} : vector<256x64xf32> to vector<256x32xf32>
    %19 = vector.extract_strided_slice %17 {offsets = [0, 32], sizes = [256, 32], strides = [1, 1]} : vector<256x64xf32> to vector<256x32xf32>
    %20 = arith.negf %19 : vector<256x32xf32>
    %21 = math.exp %20 : vector<256x32xf32>
    %cst_11 = arith.constant 1.000000e+00 : f32
    %22 = vector.broadcast %cst_11 : f32 to vector<256x32xf32>
    %23 = arith.addf %22, %21 : vector<256x32xf32>
    %24 = arith.divf %22, %23 : vector<256x32xf32>
    %25 = arith.mulf %18, %24 : vector<256x32xf32>
    %26 = vector.shape_cast %25 : vector<256x32xf32> to vector<8x2x16x32xf32>
    %27 = arith.truncf %26 : vector<8x2x16x32xf32> to vector<8x2x16x32xbf16>
    %28 = vector.shape_cast %27 : vector<8x2x16x32xbf16> to vector<16x16x32xbf16>
    "tpu.trace_start"() <{level = 10 : i32, message = "gkm,gmc->gkc"}> : () -> ()
    %cst_12 = arith.constant dense<0.000000e+00> : vector<16x48x32xf32>
    %29 = tpu.matmul %4, %28, %cst_12 {dimension_numbers = #tpu.dot_dimension_numbers<[2], [1], [1], [2], [0, 0, 0, 1, 1, 2], [0], [0]>} : vector<16x48x16xbf16>, vector<16x16x32xbf16>, vector<16x48x32xf32> -> vector<16x48x32xf32>
    "tpu.trace_stop"() : () -> ()
    %30 = vector.extract_strided_slice %29 {offsets = [0, 0, 0], sizes = [16, 16, 32], strides = [1, 1, 1]} : vector<16x48x32xf32> to vector<16x16x32xf32>
    %31 = vector.shape_cast %30 : vector<16x16x32xf32> to vector<256x32xf32>
    %32 = vector.extract_strided_slice %29 {offsets = [0, 16, 0], sizes = [16, 16, 32], strides = [1, 1, 1]} : vector<16x48x32xf32> to vector<16x16x32xf32>
    %33 = vector.shape_cast %32 : vector<16x16x32xf32> to vector<256x32xf32>
    %34 = vector.extract_strided_slice %29 {offsets = [0, 32, 0], sizes = [16, 16, 32], strides = [1, 1, 1]} : vector<16x48x32xf32> to vector<16x16x32xf32>
    %35 = vector.shape_cast %34 : vector<16x16x32xf32> to vector<256x32xf32>
    %36 = tpu.concatenate %31, %33, %35 in 1 : vector<256x32xf32>, vector<256x32xf32>, vector<256x32xf32> -> vector<256x96xf32>
    %c0_13 = arith.constant 0 : index
    %c0_14 = arith.constant 0 : index
    %37 = vector.load %arg5[%c0_13, %c0_14] : memref<96x32xbf16, #tpu.memory_space<vmem>>, vector<96x32xbf16>
    %38 = arith.extf %37 : vector<96x32xbf16> to vector<96x32xf32>
    %cst_15 = arith.constant dense<0.000000e+00> : vector<256x32xf32>
    %39 = tpu.matmul %36, %38, %cst_15 {dimension_numbers = #tpu.dot_dimension_numbers<[1], [0], [0], [1], [0, 0, 1, 1], [], []>} : vector<256x96xf32>, vector<96x32xf32>, vector<256x32xf32> -> vector<256x32xf32>
    %c0_16 = arith.constant 0 : index
    %c0_17 = arith.constant 0 : index
    %40 = vector.load %arg6[%c0_16, %c0_17] : memref<1x32xf32, #tpu.memory_space<vmem>>, vector<1x32xf32>
    %41 = vector.broadcast %40 : vector<1x32xf32> to vector<256x32xf32>
    %42 = arith.addf %39, %41 : vector<256x32xf32>
    %cst_18 = arith.constant 0.000000e+00 : f32
    %43 = vector.broadcast %cst_18 : f32 to vector<256x32xf32>
    %44 = arith.maximumf %42, %43 : vector<256x32xf32>
    %45 = vector.shape_cast %44 : vector<256x32xf32> to vector<8x2x16x32xf32>
    %46 = arith.truncf %45 : vector<8x2x16x32xf32> to vector<8x2x16x32xbf16>
    %cst_19 = arith.constant 0.000000e+00 : bf16
    %47 = vector.broadcast %cst_19 : bf16 to vector<1x2x16x32xbf16>
    %cst_20 = arith.constant 0.000000e+00 : bf16
    %48 = vector.broadcast %cst_20 : bf16 to vector<1x2x16x32xbf16>
    %49 = tpu.concatenate %47, %46, %48 in 0 : vector<1x2x16x32xbf16>, vector<8x2x16x32xbf16>, vector<1x2x16x32xbf16> -> vector<10x2x16x32xbf16>
    %50 = vector.extract_strided_slice %49 {offsets = [0, 0, 0, 0], sizes = [8, 2, 16, 32], strides = [1, 1, 1, 1]} : vector<10x2x16x32xbf16> to vector<8x2x16x32xbf16>
    %51 = vector.extract_strided_slice %49 {offsets = [1, 0, 0, 0], sizes = [8, 2, 16, 32], strides = [1, 1, 1, 1]} : vector<10x2x16x32xbf16> to vector<8x2x16x32xbf16>
    %52 = vector.extract_strided_slice %49 {offsets = [2, 0, 0, 0], sizes = [8, 2, 16, 32], strides = [1, 1, 1, 1]} : vector<10x2x16x32xbf16> to vector<8x2x16x32xbf16>
    %53 = tpu.concatenate %50, %51, %52 in 3 : vector<8x2x16x32xbf16>, vector<8x2x16x32xbf16>, vector<8x2x16x32xbf16> -> vector<8x2x16x96xbf16>
    %54 = vector.shape_cast %53 : vector<8x2x16x96xbf16> to vector<256x96xbf16>
    %c0_21 = arith.constant 0 : index
    %c0_22 = arith.constant 0 : index
    %55 = vector.load %arg7[%c0_21, %c0_22] : memref<96x64xbf16, #tpu.memory_space<vmem>>, vector<96x64xbf16>
    %cst_23 = arith.constant dense<0.000000e+00> : vector<256x64xf32>
    %56 = tpu.matmul %54, %55, %cst_23 {dimension_numbers = #tpu.dot_dimension_numbers<[1], [0], [0], [1], [0, 0, 1, 1], [], []>} : vector<256x96xbf16>, vector<96x64xbf16>, vector<256x64xf32> -> vector<256x64xf32>
    %c0_24 = arith.constant 0 : index
    %c0_25 = arith.constant 0 : index
    %57 = vector.load %arg8[%c0_24, %c0_25] : memref<1x64xf32, #tpu.memory_space<vmem>>, vector<1x64xf32>
    %58 = vector.broadcast %57 : vector<1x64xf32> to vector<256x64xf32>
    %59 = arith.addf %56, %58 : vector<256x64xf32>
    %60 = vector.extract_strided_slice %59 {offsets = [0, 0], sizes = [256, 32], strides = [1, 1]} : vector<256x64xf32> to vector<256x32xf32>
    %61 = vector.extract_strided_slice %59 {offsets = [0, 32], sizes = [256, 32], strides = [1, 1]} : vector<256x64xf32> to vector<256x32xf32>
    %62 = arith.negf %61 : vector<256x32xf32>
    %63 = math.exp %62 : vector<256x32xf32>
    %cst_26 = arith.constant 1.000000e+00 : f32
    %64 = vector.broadcast %cst_26 : f32 to vector<256x32xf32>
    %65 = arith.addf %64, %63 : vector<256x32xf32>
    %66 = arith.divf %64, %65 : vector<256x32xf32>
    %67 = arith.mulf %60, %66 : vector<256x32xf32>
    %68 = vector.shape_cast %67 : vector<256x32xf32> to vector<8x2x16x32xf32>
    %69 = arith.truncf %68 : vector<8x2x16x32xf32> to vector<8x2x16x32xbf16>
    %cst_27 = arith.constant 0.000000e+00 : bf16
    %70 = vector.broadcast %cst_27 : bf16 to vector<1x2x16x32xbf16>
    %cst_28 = arith.constant 0.000000e+00 : bf16
    %71 = vector.broadcast %cst_28 : bf16 to vector<1x2x16x32xbf16>
    %72 = tpu.concatenate %70, %69, %71 in 0 : vector<1x2x16x32xbf16>, vector<8x2x16x32xbf16>, vector<1x2x16x32xbf16> -> vector<10x2x16x32xbf16>
    %73 = vector.extract_strided_slice %72 {offsets = [0, 0, 0, 0], sizes = [8, 2, 16, 32], strides = [1, 1, 1, 1]} : vector<10x2x16x32xbf16> to vector<8x2x16x32xbf16>
    %74 = vector.extract_strided_slice %72 {offsets = [1, 0, 0, 0], sizes = [8, 2, 16, 32], strides = [1, 1, 1, 1]} : vector<10x2x16x32xbf16> to vector<8x2x16x32xbf16>
    %75 = vector.extract_strided_slice %72 {offsets = [2, 0, 0, 0], sizes = [8, 2, 16, 32], strides = [1, 1, 1, 1]} : vector<10x2x16x32xbf16> to vector<8x2x16x32xbf16>
    %76 = tpu.concatenate %73, %74, %75 in 3 : vector<8x2x16x32xbf16>, vector<8x2x16x32xbf16>, vector<8x2x16x32xbf16> -> vector<8x2x16x96xbf16>
    %77 = vector.shape_cast %76 : vector<8x2x16x96xbf16> to vector<256x96xbf16>
    %c0_29 = arith.constant 0 : index
    %c0_30 = arith.constant 0 : index
    %78 = vector.load %arg9[%c0_29, %c0_30] : memref<96x64xbf16, #tpu.memory_space<vmem>>, vector<96x64xbf16>
    %cst_31 = arith.constant dense<0.000000e+00> : vector<256x64xf32>
    %79 = tpu.matmul %77, %78, %cst_31 {dimension_numbers = #tpu.dot_dimension_numbers<[1], [0], [0], [1], [0, 0, 1, 1], [], []>} : vector<256x96xbf16>, vector<96x64xbf16>, vector<256x64xf32> -> vector<256x64xf32>
    %c0_32 = arith.constant 0 : index
    %c0_33 = arith.constant 0 : index
    %80 = vector.load %arg10[%c0_32, %c0_33] : memref<1x64xf32, #tpu.memory_space<vmem>>, vector<1x64xf32>
    %81 = vector.broadcast %80 : vector<1x64xf32> to vector<256x64xf32>
    %82 = arith.addf %79, %81 : vector<256x64xf32>
    %83 = vector.extract_strided_slice %82 {offsets = [0, 0], sizes = [256, 32], strides = [1, 1]} : vector<256x64xf32> to vector<256x32xf32>
    %84 = vector.extract_strided_slice %82 {offsets = [0, 32], sizes = [256, 32], strides = [1, 1]} : vector<256x64xf32> to vector<256x32xf32>
    %85 = arith.negf %84 : vector<256x32xf32>
    %86 = math.exp %85 : vector<256x32xf32>
    %cst_34 = arith.constant 1.000000e+00 : f32
    %87 = vector.broadcast %cst_34 : f32 to vector<256x32xf32>
    %88 = arith.addf %87, %86 : vector<256x32xf32>
    %89 = arith.divf %87, %88 : vector<256x32xf32>
    %90 = arith.mulf %83, %89 : vector<256x32xf32>
    %91 = vector.shape_cast %90 : vector<256x32xf32> to vector<8x2x16x32xf32>
    %92 = arith.truncf %91 : vector<8x2x16x32xf32> to vector<8x2x16x32xbf16>
    %93 = vector.shape_cast %92 : vector<8x2x16x32xbf16> to vector<16x16x32xbf16>
    "tpu.trace_start"() <{level = 10 : i32, message = "gkm,gmc->gkc"}> : () -> ()
    %cst_35 = arith.constant dense<0.000000e+00> : vector<16x48x32xf32>
    %94 = tpu.matmul %4, %93, %cst_35 {dimension_numbers = #tpu.dot_dimension_numbers<[2], [1], [1], [2], [0, 0, 0, 1, 1, 2], [0], [0]>} : vector<16x48x16xbf16>, vector<16x16x32xbf16>, vector<16x48x32xf32> -> vector<16x48x32xf32>
    "tpu.trace_stop"() : () -> ()
    %95 = vector.extract_strided_slice %94 {offsets = [0, 0, 0], sizes = [16, 16, 32], strides = [1, 1, 1]} : vector<16x48x32xf32> to vector<16x16x32xf32>
    %96 = vector.shape_cast %95 : vector<16x16x32xf32> to vector<256x32xf32>
    %97 = vector.extract_strided_slice %94 {offsets = [0, 16, 0], sizes = [16, 16, 32], strides = [1, 1, 1]} : vector<16x48x32xf32> to vector<16x16x32xf32>
    %98 = vector.shape_cast %97 : vector<16x16x32xf32> to vector<256x32xf32>
    %99 = vector.extract_strided_slice %94 {offsets = [0, 32, 0], sizes = [16, 16, 32], strides = [1, 1, 1]} : vector<16x48x32xf32> to vector<16x16x32xf32>
    %100 = vector.shape_cast %99 : vector<16x16x32xf32> to vector<256x32xf32>
    %101 = tpu.concatenate %96, %98, %100 in 1 : vector<256x32xf32>, vector<256x32xf32>, vector<256x32xf32> -> vector<256x96xf32>
    %c0_36 = arith.constant 0 : index
    %c0_37 = arith.constant 0 : index
    %102 = vector.load %arg11[%c0_36, %c0_37] : memref<96x32xbf16, #tpu.memory_space<vmem>>, vector<96x32xbf16>
    %103 = arith.extf %102 : vector<96x32xbf16> to vector<96x32xf32>
    %cst_38 = arith.constant dense<0.000000e+00> : vector<256x32xf32>
    %104 = tpu.matmul %101, %103, %cst_38 {dimension_numbers = #tpu.dot_dimension_numbers<[1], [0], [0], [1], [0, 0, 1, 1], [], []>} : vector<256x96xf32>, vector<96x32xf32>, vector<256x32xf32> -> vector<256x32xf32>
    %c0_39 = arith.constant 0 : index
    %c0_40 = arith.constant 0 : index
    %105 = vector.load %arg12[%c0_39, %c0_40] : memref<1x32xf32, #tpu.memory_space<vmem>>, vector<1x32xf32>
    %106 = vector.broadcast %105 : vector<1x32xf32> to vector<256x32xf32>
    %107 = arith.addf %104, %106 : vector<256x32xf32>
    %cst_41 = arith.constant 0.000000e+00 : f32
    %108 = vector.broadcast %cst_41 : f32 to vector<256x32xf32>
    %109 = arith.maximumf %107, %108 : vector<256x32xf32>
    %110 = vector.shape_cast %109 : vector<256x32xf32> to vector<8x2x16x32xf32>
    %111 = arith.truncf %110 : vector<8x2x16x32xf32> to vector<8x2x16x32xbf16>
    %cst_42 = arith.constant 0.000000e+00 : bf16
    %112 = vector.broadcast %cst_42 : bf16 to vector<1x2x16x32xbf16>
    %cst_43 = arith.constant 0.000000e+00 : bf16
    %113 = vector.broadcast %cst_43 : bf16 to vector<1x2x16x32xbf16>
    %114 = tpu.concatenate %112, %111, %113 in 0 : vector<1x2x16x32xbf16>, vector<8x2x16x32xbf16>, vector<1x2x16x32xbf16> -> vector<10x2x16x32xbf16>
    %115 = vector.extract_strided_slice %114 {offsets = [0, 0, 0, 0], sizes = [8, 2, 16, 32], strides = [1, 1, 1, 1]} : vector<10x2x16x32xbf16> to vector<8x2x16x32xbf16>
    %116 = vector.extract_strided_slice %114 {offsets = [1, 0, 0, 0], sizes = [8, 2, 16, 32], strides = [1, 1, 1, 1]} : vector<10x2x16x32xbf16> to vector<8x2x16x32xbf16>
    %117 = vector.extract_strided_slice %114 {offsets = [2, 0, 0, 0], sizes = [8, 2, 16, 32], strides = [1, 1, 1, 1]} : vector<10x2x16x32xbf16> to vector<8x2x16x32xbf16>
    %118 = tpu.concatenate %115, %116, %117 in 3 : vector<8x2x16x32xbf16>, vector<8x2x16x32xbf16>, vector<8x2x16x32xbf16> -> vector<8x2x16x96xbf16>
    %119 = vector.shape_cast %118 : vector<8x2x16x96xbf16> to vector<256x96xbf16>
    %c0_44 = arith.constant 0 : index
    %c0_45 = arith.constant 0 : index
    %120 = vector.load %arg13[%c0_44, %c0_45] : memref<96x64xbf16, #tpu.memory_space<vmem>>, vector<96x64xbf16>
    %cst_46 = arith.constant dense<0.000000e+00> : vector<256x64xf32>
    %121 = tpu.matmul %119, %120, %cst_46 {dimension_numbers = #tpu.dot_dimension_numbers<[1], [0], [0], [1], [0, 0, 1, 1], [], []>} : vector<256x96xbf16>, vector<96x64xbf16>, vector<256x64xf32> -> vector<256x64xf32>
    %c0_47 = arith.constant 0 : index
    %c0_48 = arith.constant 0 : index
    %122 = vector.load %arg14[%c0_47, %c0_48] : memref<1x64xf32, #tpu.memory_space<vmem>>, vector<1x64xf32>
    %123 = vector.broadcast %122 : vector<1x64xf32> to vector<256x64xf32>
    %124 = arith.addf %121, %123 : vector<256x64xf32>
    %125 = vector.extract_strided_slice %124 {offsets = [0, 0], sizes = [256, 32], strides = [1, 1]} : vector<256x64xf32> to vector<256x32xf32>
    %126 = vector.extract_strided_slice %124 {offsets = [0, 32], sizes = [256, 32], strides = [1, 1]} : vector<256x64xf32> to vector<256x32xf32>
    %127 = arith.negf %126 : vector<256x32xf32>
    %128 = math.exp %127 : vector<256x32xf32>
    %cst_49 = arith.constant 1.000000e+00 : f32
    %129 = vector.broadcast %cst_49 : f32 to vector<256x32xf32>
    %130 = arith.addf %129, %128 : vector<256x32xf32>
    %131 = arith.divf %129, %130 : vector<256x32xf32>
    %132 = arith.mulf %125, %131 : vector<256x32xf32>
    %133 = vector.shape_cast %132 : vector<256x32xf32> to vector<8x2x16x32xf32>
    %134 = arith.truncf %133 : vector<8x2x16x32xf32> to vector<8x2x16x32xbf16>
    %cst_50 = arith.constant 0.000000e+00 : bf16
    %135 = vector.broadcast %cst_50 : bf16 to vector<1x2x16x32xbf16>
    %cst_51 = arith.constant 0.000000e+00 : bf16
    %136 = vector.broadcast %cst_51 : bf16 to vector<1x2x16x32xbf16>
    %137 = tpu.concatenate %135, %134, %136 in 0 : vector<1x2x16x32xbf16>, vector<8x2x16x32xbf16>, vector<1x2x16x32xbf16> -> vector<10x2x16x32xbf16>
    %138 = vector.extract_strided_slice %137 {offsets = [0, 0, 0, 0], sizes = [8, 2, 16, 32], strides = [1, 1, 1, 1]} : vector<10x2x16x32xbf16> to vector<8x2x16x32xbf16>
    %139 = vector.extract_strided_slice %137 {offsets = [1, 0, 0, 0], sizes = [8, 2, 16, 32], strides = [1, 1, 1, 1]} : vector<10x2x16x32xbf16> to vector<8x2x16x32xbf16>
    %140 = vector.extract_strided_slice %137 {offsets = [2, 0, 0, 0], sizes = [8, 2, 16, 32], strides = [1, 1, 1, 1]} : vector<10x2x16x32xbf16> to vector<8x2x16x32xbf16>
    %141 = tpu.concatenate %138, %139, %140 in 3 : vector<8x2x16x32xbf16>, vector<8x2x16x32xbf16>, vector<8x2x16x32xbf16> -> vector<8x2x16x96xbf16>
    %142 = vector.shape_cast %141 : vector<8x2x16x96xbf16> to vector<256x96xbf16>
    %c0_52 = arith.constant 0 : index
    %c0_53 = arith.constant 0 : index
    %143 = vector.load %arg15[%c0_52, %c0_53] : memref<96x64xbf16, #tpu.memory_space<vmem>>, vector<96x64xbf16>
    %cst_54 = arith.constant dense<0.000000e+00> : vector<256x64xf32>
    %144 = tpu.matmul %142, %143, %cst_54 {dimension_numbers = #tpu.dot_dimension_numbers<[1], [0], [0], [1], [0, 0, 1, 1], [], []>} : vector<256x96xbf16>, vector<96x64xbf16>, vector<256x64xf32> -> vector<256x64xf32>
    %c0_55 = arith.constant 0 : index
    %c0_56 = arith.constant 0 : index
    %145 = vector.load %arg16[%c0_55, %c0_56] : memref<1x64xf32, #tpu.memory_space<vmem>>, vector<1x64xf32>
    %146 = vector.broadcast %145 : vector<1x64xf32> to vector<256x64xf32>
    %147 = arith.addf %144, %146 : vector<256x64xf32>
    %148 = vector.extract_strided_slice %147 {offsets = [0, 0], sizes = [256, 32], strides = [1, 1]} : vector<256x64xf32> to vector<256x32xf32>
    %149 = vector.extract_strided_slice %147 {offsets = [0, 32], sizes = [256, 32], strides = [1, 1]} : vector<256x64xf32> to vector<256x32xf32>
    %150 = arith.negf %149 : vector<256x32xf32>
    %151 = math.exp %150 : vector<256x32xf32>
    %cst_57 = arith.constant 1.000000e+00 : f32
    %152 = vector.broadcast %cst_57 : f32 to vector<256x32xf32>
    %153 = arith.addf %152, %151 : vector<256x32xf32>
    %154 = arith.divf %152, %153 : vector<256x32xf32>
    %155 = arith.mulf %148, %154 : vector<256x32xf32>
    %156 = vector.shape_cast %155 : vector<256x32xf32> to vector<8x2x16x32xf32>
    %157 = arith.truncf %156 : vector<8x2x16x32xf32> to vector<8x2x16x32xbf16>
    %158 = vector.shape_cast %157 : vector<8x2x16x32xbf16> to vector<16x16x32xbf16>
    "tpu.trace_start"() <{level = 10 : i32, message = "gkm,gmc->gkc"}> : () -> ()
    %cst_58 = arith.constant dense<0.000000e+00> : vector<16x48x32xf32>
    %159 = tpu.matmul %4, %158, %cst_58 {dimension_numbers = #tpu.dot_dimension_numbers<[2], [1], [1], [2], [0, 0, 0, 1, 1, 2], [0], [0]>} : vector<16x48x16xbf16>, vector<16x16x32xbf16>, vector<16x48x32xf32> -> vector<16x48x32xf32>
    "tpu.trace_stop"() : () -> ()
    %160 = vector.extract_strided_slice %159 {offsets = [0, 0, 0], sizes = [16, 16, 32], strides = [1, 1, 1]} : vector<16x48x32xf32> to vector<16x16x32xf32>
    %161 = vector.shape_cast %160 : vector<16x16x32xf32> to vector<256x32xf32>
    %162 = vector.extract_strided_slice %159 {offsets = [0, 16, 0], sizes = [16, 16, 32], strides = [1, 1, 1]} : vector<16x48x32xf32> to vector<16x16x32xf32>
    %163 = vector.shape_cast %162 : vector<16x16x32xf32> to vector<256x32xf32>
    %164 = vector.extract_strided_slice %159 {offsets = [0, 32, 0], sizes = [16, 16, 32], strides = [1, 1, 1]} : vector<16x48x32xf32> to vector<16x16x32xf32>
    %165 = vector.shape_cast %164 : vector<16x16x32xf32> to vector<256x32xf32>
    %166 = tpu.concatenate %161, %163, %165 in 1 : vector<256x32xf32>, vector<256x32xf32>, vector<256x32xf32> -> vector<256x96xf32>
    %c0_59 = arith.constant 0 : index
    %c0_60 = arith.constant 0 : index
    %167 = vector.load %arg17[%c0_59, %c0_60] : memref<96x32xbf16, #tpu.memory_space<vmem>>, vector<96x32xbf16>
    %168 = arith.extf %167 : vector<96x32xbf16> to vector<96x32xf32>
    %cst_61 = arith.constant dense<0.000000e+00> : vector<256x32xf32>
    %169 = tpu.matmul %166, %168, %cst_61 {dimension_numbers = #tpu.dot_dimension_numbers<[1], [0], [0], [1], [0, 0, 1, 1], [], []>} : vector<256x96xf32>, vector<96x32xf32>, vector<256x32xf32> -> vector<256x32xf32>
    %c0_62 = arith.constant 0 : index
    %c0_63 = arith.constant 0 : index
    %170 = vector.load %arg18[%c0_62, %c0_63] : memref<1x32xf32, #tpu.memory_space<vmem>>, vector<1x32xf32>
    %171 = vector.broadcast %170 : vector<1x32xf32> to vector<256x32xf32>
    %172 = arith.addf %169, %171 : vector<256x32xf32>
    %cst_64 = arith.constant 0.000000e+00 : f32
    %173 = vector.broadcast %cst_64 : f32 to vector<256x32xf32>
    %174 = arith.maximumf %172, %173 : vector<256x32xf32>
    %175 = vector.shape_cast %174 : vector<256x32xf32> to vector<8x2x16x32xf32>
    %176 = arith.truncf %175 : vector<8x2x16x32xf32> to vector<8x2x16x32xbf16>
    %cst_65 = arith.constant 0.000000e+00 : bf16
    %177 = vector.broadcast %cst_65 : bf16 to vector<1x2x16x32xbf16>
    %cst_66 = arith.constant 0.000000e+00 : bf16
    %178 = vector.broadcast %cst_66 : bf16 to vector<1x2x16x32xbf16>
    %179 = tpu.concatenate %177, %176, %178 in 0 : vector<1x2x16x32xbf16>, vector<8x2x16x32xbf16>, vector<1x2x16x32xbf16> -> vector<10x2x16x32xbf16>
    %180 = vector.extract_strided_slice %179 {offsets = [0, 0, 0, 0], sizes = [8, 2, 16, 32], strides = [1, 1, 1, 1]} : vector<10x2x16x32xbf16> to vector<8x2x16x32xbf16>
    %181 = vector.extract_strided_slice %179 {offsets = [1, 0, 0, 0], sizes = [8, 2, 16, 32], strides = [1, 1, 1, 1]} : vector<10x2x16x32xbf16> to vector<8x2x16x32xbf16>
    %182 = vector.extract_strided_slice %179 {offsets = [2, 0, 0, 0], sizes = [8, 2, 16, 32], strides = [1, 1, 1, 1]} : vector<10x2x16x32xbf16> to vector<8x2x16x32xbf16>
    %183 = tpu.concatenate %180, %181, %182 in 3 : vector<8x2x16x32xbf16>, vector<8x2x16x32xbf16>, vector<8x2x16x32xbf16> -> vector<8x2x16x96xbf16>
    %184 = vector.shape_cast %183 : vector<8x2x16x96xbf16> to vector<256x96xbf16>
    %c0_67 = arith.constant 0 : index
    %c0_68 = arith.constant 0 : index
    %185 = vector.load %arg19[%c0_67, %c0_68] : memref<96x64xbf16, #tpu.memory_space<vmem>>, vector<96x64xbf16>
    %cst_69 = arith.constant dense<0.000000e+00> : vector<256x64xf32>
    %186 = tpu.matmul %184, %185, %cst_69 {dimension_numbers = #tpu.dot_dimension_numbers<[1], [0], [0], [1], [0, 0, 1, 1], [], []>} : vector<256x96xbf16>, vector<96x64xbf16>, vector<256x64xf32> -> vector<256x64xf32>
    %c0_70 = arith.constant 0 : index
    %c0_71 = arith.constant 0 : index
    %187 = vector.load %arg20[%c0_70, %c0_71] : memref<1x64xf32, #tpu.memory_space<vmem>>, vector<1x64xf32>
    %188 = vector.broadcast %187 : vector<1x64xf32> to vector<256x64xf32>
    %189 = arith.addf %186, %188 : vector<256x64xf32>
    %190 = vector.extract_strided_slice %189 {offsets = [0, 0], sizes = [256, 32], strides = [1, 1]} : vector<256x64xf32> to vector<256x32xf32>
    %191 = vector.extract_strided_slice %189 {offsets = [0, 32], sizes = [256, 32], strides = [1, 1]} : vector<256x64xf32> to vector<256x32xf32>
    %192 = arith.negf %191 : vector<256x32xf32>
    %193 = math.exp %192 : vector<256x32xf32>
    %cst_72 = arith.constant 1.000000e+00 : f32
    %194 = vector.broadcast %cst_72 : f32 to vector<256x32xf32>
    %195 = arith.addf %194, %193 : vector<256x32xf32>
    %196 = arith.divf %194, %195 : vector<256x32xf32>
    %197 = arith.mulf %190, %196 : vector<256x32xf32>
    %198 = vector.shape_cast %197 : vector<256x32xf32> to vector<8x2x16x32xf32>
    %199 = arith.truncf %198 : vector<8x2x16x32xf32> to vector<8x2x16x32xbf16>
    %200 = vector.extract_strided_slice %199 {offsets = [0, 0, 0, 0], sizes = [1, 2, 16, 32], strides = [1, 1, 1, 1]} : vector<8x2x16x32xbf16> to vector<1x2x16x32xbf16>
    %201 = vector.shape_cast %200 : vector<1x2x16x32xbf16> to vector<2x16x32xbf16>
    %202 = vector.shape_cast %201 : vector<2x16x32xbf16> to vector<32x32xbf16>
    %203 = vector.extract_strided_slice %199 {offsets = [1, 0, 0, 0], sizes = [1, 2, 16, 32], strides = [1, 1, 1, 1]} : vector<8x2x16x32xbf16> to vector<1x2x16x32xbf16>
    %204 = vector.shape_cast %203 : vector<1x2x16x32xbf16> to vector<2x16x32xbf16>
    %205 = vector.shape_cast %204 : vector<2x16x32xbf16> to vector<32x32xbf16>
    %206 = vector.extract_strided_slice %199 {offsets = [2, 0, 0, 0], sizes = [1, 2, 16, 32], strides = [1, 1, 1, 1]} : vector<8x2x16x32xbf16> to vector<1x2x16x32xbf16>
    %207 = vector.shape_cast %206 : vector<1x2x16x32xbf16> to vector<2x16x32xbf16>
    %208 = vector.shape_cast %207 : vector<2x16x32xbf16> to vector<32x32xbf16>
    %209 = vector.extract_strided_slice %199 {offsets = [3, 0, 0, 0], sizes = [1, 2, 16, 32], strides = [1, 1, 1, 1]} : vector<8x2x16x32xbf16> to vector<1x2x16x32xbf16>
    %210 = vector.shape_cast %209 : vector<1x2x16x32xbf16> to vector<2x16x32xbf16>
    %211 = vector.shape_cast %210 : vector<2x16x32xbf16> to vector<32x32xbf16>
    %212 = vector.extract_strided_slice %199 {offsets = [4, 0, 0, 0], sizes = [1, 2, 16, 32], strides = [1, 1, 1, 1]} : vector<8x2x16x32xbf16> to vector<1x2x16x32xbf16>
    %213 = vector.shape_cast %212 : vector<1x2x16x32xbf16> to vector<2x16x32xbf16>
    %214 = vector.shape_cast %213 : vector<2x16x32xbf16> to vector<32x32xbf16>
    %215 = vector.extract_strided_slice %199 {offsets = [5, 0, 0, 0], sizes = [1, 2, 16, 32], strides = [1, 1, 1, 1]} : vector<8x2x16x32xbf16> to vector<1x2x16x32xbf16>
    %216 = vector.shape_cast %215 : vector<1x2x16x32xbf16> to vector<2x16x32xbf16>
    %217 = vector.shape_cast %216 : vector<2x16x32xbf16> to vector<32x32xbf16>
    %218 = vector.extract_strided_slice %199 {offsets = [6, 0, 0, 0], sizes = [1, 2, 16, 32], strides = [1, 1, 1, 1]} : vector<8x2x16x32xbf16> to vector<1x2x16x32xbf16>
    %219 = vector.shape_cast %218 : vector<1x2x16x32xbf16> to vector<2x16x32xbf16>
    %220 = vector.shape_cast %219 : vector<2x16x32xbf16> to vector<32x32xbf16>
    %221 = vector.extract_strided_slice %199 {offsets = [7, 0, 0, 0], sizes = [1, 2, 16, 32], strides = [1, 1, 1, 1]} : vector<8x2x16x32xbf16> to vector<1x2x16x32xbf16>
    %222 = vector.shape_cast %221 : vector<1x2x16x32xbf16> to vector<2x16x32xbf16>
    %223 = vector.shape_cast %222 : vector<2x16x32xbf16> to vector<32x32xbf16>
    %224 = tpu.concatenate %202, %205, %208, %211, %214, %217, %220, %223 in 1 : vector<32x32xbf16>, vector<32x32xbf16>, vector<32x32xbf16>, vector<32x32xbf16>, vector<32x32xbf16>, vector<32x32xbf16>, vector<32x32xbf16>, vector<32x32xbf16> -> vector<32x256xbf16>
    %c0_73 = arith.constant 0 : index
    %c0_74 = arith.constant 0 : index
    %225 = vector.load %arg21[%c0_73, %c0_74] : memref<256x12xbf16, #tpu.memory_space<vmem>>, vector<256x12xbf16>
    %cst_75 = arith.constant dense<0.000000e+00> : vector<32x12xf32>
    %226 = tpu.matmul %224, %225, %cst_75 {dimension_numbers = #tpu.dot_dimension_numbers<[1], [0], [0], [1], [0, 0, 1, 1], [], []>} : vector<32x256xbf16>, vector<256x12xbf16>, vector<32x12xf32> -> vector<32x12xf32>
    %c0_76 = arith.constant 0 : index
    %c0_77 = arith.constant 0 : index
    %227 = vector.load %arg22[%c0_76, %c0_77] : memref<1x12xf32, #tpu.memory_space<vmem>>, vector<1x12xf32>
    %228 = vector.broadcast %227 : vector<1x12xf32> to vector<32x12xf32>
    %229 = arith.addf %226, %228 : vector<32x12xf32>
    %230 = vector.shape_cast %229 : vector<32x12xf32> to vector<2x16x12xf32>
    %c0_78 = arith.constant 0 : index
    %c0_79 = arith.constant 0 : index
    %c0_80 = arith.constant 0 : index
    %231 = vector.load %arg23[%c0_78, %c0_79, %c0_80] : memref<2x16x12xf32, #tpu.memory_space<vmem>>, vector<2x16x12xf32>
    tpu.vector_store %arg23[%c0_78, %c0_79, %c0_80], %230 {strides = array<i32>} : memref<2x16x12xf32, #tpu.memory_space<vmem>>, vector<2x16x12xf32>,
    return
  }
  func.func @transform_0(%arg0: i32) -> (i32, i32, i32, i32) {
    %c0_i32 = arith.constant 0 : i32
    %c0_i32_0 = arith.constant 0 : i32
    %c0_i32_1 = arith.constant 0 : i32
    %c0_i32_2 = arith.constant 0 : i32
    return %c0_i32, %arg0, %c0_i32_0, %c0_i32_1 : i32, i32, i32, i32
  }
  func.func @transform_1(%arg0: i32) -> (i32, i32) {
    %c0_i32 = arith.constant 0 : i32
    %c0_i32_0 = arith.constant 0 : i32
    %c0_i32_1 = arith.constant 0 : i32
    return %c0_i32, %c0_i32_0 : i32, i32
  }
  func.func @transform_2(%arg0: i32) -> (i32, i32) {
    %c0_i32 = arith.constant 0 : i32
    %c0_i32_0 = arith.constant 0 : i32
    %c0_i32_1 = arith.constant 0 : i32
    return %c0_i32, %c0_i32_0 : i32, i32
  }
  func.func @transform_3(%arg0: i32) -> (i32, i32) {
    %c0_i32 = arith.constant 0 : i32
    %c0_i32_0 = arith.constant 0 : i32
    %c0_i32_1 = arith.constant 0 : i32
    return %c0_i32, %c0_i32_0 : i32, i32
  }
  func.func @transform_4(%arg0: i32) -> (i32, i32) {
    %c0_i32 = arith.constant 0 : i32
    %c0_i32_0 = arith.constant 0 : i32
    %c0_i32_1 = arith.constant 0 : i32
    return %c0_i32, %c0_i32_0 : i32, i32
  }
  func.func @transform_5(%arg0: i32) -> (i32, i32) {
    %c0_i32 = arith.constant 0 : i32
    %c0_i32_0 = arith.constant 0 : i32
    %c0_i32_1 = arith.constant 0 : i32
    return %c0_i32, %c0_i32_0 : i32, i32
  }
  func.func @transform_6(%arg0: i32) -> (i32, i32) {
    %c0_i32 = arith.constant 0 : i32
    %c0_i32_0 = arith.constant 0 : i32
    %c0_i32_1 = arith.constant 0 : i32
    return %c0_i32, %c0_i32_0 : i32, i32
  }
  func.func @transform_7(%arg0: i32) -> (i32, i32) {
    %c0_i32 = arith.constant 0 : i32
    %c0_i32_0 = arith.constant 0 : i32
    %c0_i32_1 = arith.constant 0 : i32
    return %c0_i32, %c0_i32_0 : i32, i32
  }
  func.func @transform_8(%arg0: i32) -> (i32, i32) {
    %c0_i32 = arith.constant 0 : i32
    %c0_i32_0 = arith.constant 0 : i32
    %c0_i32_1 = arith.constant 0 : i32
    return %c0_i32, %c0_i32_0 : i32, i32
  }
  func.func @transform_9(%arg0: i32) -> (i32, i32) {
    %c0_i32 = arith.constant 0 : i32
    %c0_i32_0 = arith.constant 0 : i32
    %c0_i32_1 = arith.constant 0 : i32
    return %c0_i32, %c0_i32_0 : i32, i32
  }
  func.func @transform_10(%arg0: i32) -> (i32, i32) {
    %c0_i32 = arith.constant 0 : i32
    %c0_i32_0 = arith.constant 0 : i32
    %c0_i32_1 = arith.constant 0 : i32
    return %c0_i32, %c0_i32_0 : i32, i32
  }
  func.func @transform_11(%arg0: i32) -> (i32, i32) {
    %c0_i32 = arith.constant 0 : i32
    %c0_i32_0 = arith.constant 0 : i32
    %c0_i32_1 = arith.constant 0 : i32
    return %c0_i32, %c0_i32_0 : i32, i32
  }
  func.func @transform_12(%arg0: i32) -> (i32, i32) {
    %c0_i32 = arith.constant 0 : i32
    %c0_i32_0 = arith.constant 0 : i32
    %c0_i32_1 = arith.constant 0 : i32
    return %c0_i32, %c0_i32_0 : i32, i32
  }
  func.func @transform_13(%arg0: i32) -> (i32, i32) {
    %c0_i32 = arith.constant 0 : i32
    %c0_i32_0 = arith.constant 0 : i32
    %c0_i32_1 = arith.constant 0 : i32
    return %c0_i32, %c0_i32_0 : i32, i32
  }
  func.func @transform_14(%arg0: i32) -> (i32, i32) {
    %c0_i32 = arith.constant 0 : i32
    %c0_i32_0 = arith.constant 0 : i32
    %c0_i32_1 = arith.constant 0 : i32
    return %c0_i32, %c0_i32_0 : i32, i32
  }
  func.func @transform_15(%arg0: i32) -> (i32, i32) {
    %c0_i32 = arith.constant 0 : i32
    %c0_i32_0 = arith.constant 0 : i32
    %c0_i32_1 = arith.constant 0 : i32
    return %c0_i32, %c0_i32_0 : i32, i32
  }
  func.func @transform_16(%arg0: i32) -> (i32, i32) {
    %c0_i32 = arith.constant 0 : i32
    %c0_i32_0 = arith.constant 0 : i32
    %c0_i32_1 = arith.constant 0 : i32
    return %c0_i32, %c0_i32_0 : i32, i32
  }
  func.func @transform_17(%arg0: i32) -> (i32, i32) {
    %c0_i32 = arith.constant 0 : i32
    %c0_i32_0 = arith.constant 0 : i32
    %c0_i32_1 = arith.constant 0 : i32
    return %c0_i32, %c0_i32_0 : i32, i32
  }
  func.func @transform_18(%arg0: i32) -> (i32, i32) {
    %c0_i32 = arith.constant 0 : i32
    %c0_i32_0 = arith.constant 0 : i32
    %c0_i32_1 = arith.constant 0 : i32
    return %c0_i32, %c0_i32_0 : i32, i32
  }
  func.func @transform_19(%arg0: i32) -> (i32, i32) {
    %c0_i32 = arith.constant 0 : i32
    %c0_i32_0 = arith.constant 0 : i32
    %c0_i32_1 = arith.constant 0 : i32
    return %c0_i32, %c0_i32_0 : i32, i32
  }
  func.func @transform_20(%arg0: i32) -> (i32, i32) {
    %c0_i32 = arith.constant 0 : i32
    %c0_i32_0 = arith.constant 0 : i32
    %c0_i32_1 = arith.constant 0 : i32
    return %c0_i32, %c0_i32_0 : i32, i32
  }
  func.func @transform_21(%arg0: i32) -> (i32, i32) {
    %c0_i32 = arith.constant 0 : i32
    %c0_i32_0 = arith.constant 0 : i32
    %c0_i32_1 = arith.constant 0 : i32
    return %c0_i32, %c0_i32_0 : i32, i32
  }
  func.func @transform_22(%arg0: i32) -> (i32, i32, i32) {
    %c0_i32 = arith.constant 0 : i32
    %c0_i32_0 = arith.constant 0 : i32
    %c0_i32_1 = arith.constant 0 : i32
    return %arg0, %c0_i32, %c0_i32_0 : i32, i32, i32
  }
}

</mosaic_0001>

<llo_original>
// kernel: gated_stgcn_forward.1
$region0: #{gated_stgcn_forward.1}
  #allocation0 [shape = 'u32[]', space=smem, size = 0x4, offset = 0x4, fixed_abs, tag = 'smem constant byte address 0x4 - core index']
  #allocation1 [shape = 'u32[72,128]{1,0:T(1,128)}', space=vmem, size = 0x9000, scoped, tag = 'internal scratch']
  %s0 = inlined_call_operand.vmem [shape: bf16[8,2,16,4], index: 0, kind: input, shape index: {}]
  %s1 = inlined_call_operand.vmem [shape: bf16[48,16], index: 1, kind: input, shape index: {}]
  %s2 = inlined_call_operand.vmem [shape: bf16[12,64], index: 2, kind: input, shape index: {}]
  %s3 = inlined_call_operand.vmem [shape: f32[1,64], index: 3, kind: input, shape index: {}]
  %s4 = inlined_call_operand.vmem [shape: bf16[96,32], index: 4, kind: input, shape index: {}]
  %s5 = inlined_call_operand.vmem [shape: f32[1,32], index: 5, kind: input, shape index: {}]
  %s6 = inlined_call_operand.vmem [shape: bf16[96,64], index: 6, kind: input, shape index: {}]
  %s7 = inlined_call_operand.vmem [shape: f32[1,64], index: 7, kind: input, shape index: {}]
  %s8 = inlined_call_operand.vmem [shape: bf16[96,64], index: 8, kind: input, shape index: {}]
  %s9 = inlined_call_operand.vmem [shape: f32[1,64], index: 9, kind: input, shape index: {}]
  %s10 = inlined_call_operand.vmem [shape: bf16[96,32], index: 10, kind: input, shape index: {}]
  %s11 = inlined_call_operand.vmem [shape: f32[1,32], index: 11, kind: input, shape index: {}]
  %s12 = inlined_call_operand.vmem [shape: bf16[96,64], index: 12, kind: input, shape index: {}]
  %s13 = inlined_call_operand.vmem [shape: f32[1,64], index: 13, kind: input, shape index: {}]
  %s14 = inlined_call_operand.vmem [shape: bf16[96,64], index: 14, kind: input, shape index: {}]
  %s15 = inlined_call_operand.vmem [shape: f32[1,64], index: 15, kind: input, shape index: {}]
  %s16 = inlined_call_operand.vmem [shape: bf16[96,32], index: 16, kind: input, shape index: {}]
  %s17 = inlined_call_operand.vmem [shape: f32[1,32], index: 17, kind: input, shape index: {}]
  %s18 = inlined_call_operand.vmem [shape: bf16[96,64], index: 18, kind: input, shape index: {}]
  %s19 = inlined_call_operand.vmem [shape: f32[1,64], index: 19, kind: input, shape index: {}]
  %s20 = inlined_call_operand.vmem [shape: bf16[256,12], index: 20, kind: input, shape index: {}]
  %s21 = inlined_call_operand.vmem [shape: f32[1,12], index: 21, kind: input, shape index: {}]
  %s22 = inlined_call_operand.vmem [shape: f32[2,16,12], index: 22, kind: output, shape index: {}]
  %s23 = sld [smem:[#allocation0]]
  $region98: #{gated_stgcn_forward.1} parent=0
    _
  %s25 = ssub.s32 1, %s23
  %s26 = scalar_select 0, %s25, %s23
  // Predicated region
  $region2: #{gated_stgcn_forward.1} parent=0 // pred_check
    _
  $region3: #{gated_stgcn_forward.1} parent=0 // pred_check_branch
    %28 = sbr.rel (0) target = $region5
  $region4: #{gated_stgcn_forward.1} parent=0 // pred_region
    _
  $region5: #{gated_stgcn_forward.1} parent=0 // pred_fallthru
    _
  // Predicated region
  $region6: #{gated_stgcn_forward.1} parent=0 // pred_check
    _
  $region7: #{gated_stgcn_forward.1} parent=0 // pred_check_branch
    %30 = sbr.rel (0) target = $region9
  $region8: #{gated_stgcn_forward.1} parent=0 // pred_region
    _
  $region9: #{gated_stgcn_forward.1} parent=0 // pred_fallthru
    _
  // Predicated region
  $region10: #{gated_stgcn_forward.1} parent=0 // pred_check
    _
  $region11: #{gated_stgcn_forward.1} parent=0 // pred_check_branch
    %32 = sbr.rel (0) target = $region13
  $region12: #{gated_stgcn_forward.1} parent=0 // pred_region
    _
  $region13: #{gated_stgcn_forward.1} parent=0 // pred_fallthru
    _
  // Predicated region
  $region14: #{gated_stgcn_forward.1} parent=0 // pred_check
    _
  $region15: #{gated_stgcn_forward.1} parent=0 // pred_check_branch
    %34 = sbr.rel (0) target = $region17
  $region16: #{gated_stgcn_forward.1} parent=0 // pred_region
    _
  $region17: #{gated_stgcn_forward.1} parent=0 // pred_fallthru
    _
  // Predicated region
  $region18: #{gated_stgcn_forward.1} parent=0 // pred_check
    _
  $region19: #{gated_stgcn_forward.1} parent=0 // pred_check_branch
    %36 = sbr.rel (0) target = $region21
  $region20: #{gated_stgcn_forward.1} parent=0 // pred_region
    _
  $region21: #{gated_stgcn_forward.1} parent=0 // pred_fallthru
    _
  // Predicated region
  $region22: #{gated_stgcn_forward.1} parent=0 // pred_check
    _
  $region23: #{gated_stgcn_forward.1} parent=0 // pred_check_branch
    %38 = sbr.rel (0) target = $region25
  $region24: #{gated_stgcn_forward.1} parent=0 // pred_region
    _
  $region25: #{gated_stgcn_forward.1} parent=0 // pred_fallthru
    _
  // Predicated region
  $region26: #{gated_stgcn_forward.1} parent=0 // pred_check
    _
  $region27: #{gated_stgcn_forward.1} parent=0 // pred_check_branch
    %40 = sbr.rel (0) target = $region29
  $region28: #{gated_stgcn_forward.1} parent=0 // pred_region
    _
  $region29: #{gated_stgcn_forward.1} parent=0 // pred_fallthru
    _
  // Predicated region
  $region30: #{gated_stgcn_forward.1} parent=0 // pred_check
    _
  $region31: #{gated_stgcn_forward.1} parent=0 // pred_check_branch
    %42 = sbr.rel (0) target = $region33
  $region32: #{gated_stgcn_forward.1} parent=0 // pred_region
    _
  $region33: #{gated_stgcn_forward.1} parent=0 // pred_fallthru
    _
  // Predicated region
  $region34: #{gated_stgcn_forward.1} parent=0 // pred_check
    _
  $region35: #{gated_stgcn_forward.1} parent=0 // pred_check_branch
    %44 = sbr.rel (0) target = $region37
  $region36: #{gated_stgcn_forward.1} parent=0 // pred_region
    _
  $region37: #{gated_stgcn_forward.1} parent=0 // pred_fallthru
    _
  // Predicated region
  $region38: #{gated_stgcn_forward.1} parent=0 // pred_check
    _
  $region39: #{gated_stgcn_forward.1} parent=0 // pred_check_branch
    %46 = sbr.rel (0) target = $region41
  $region40: #{gated_stgcn_forward.1} parent=0 // pred_region
    _
  $region41: #{gated_stgcn_forward.1} parent=0 // pred_fallthru
    _
  // Predicated region
  $region42: #{gated_stgcn_forward.1} parent=0 // pred_check
    _
  $region43: #{gated_stgcn_forward.1} parent=0 // pred_check_branch
    %48 = sbr.rel (0) target = $region45
  $region44: #{gated_stgcn_forward.1} parent=0 // pred_region
    _
  $region45: #{gated_stgcn_forward.1} parent=0 // pred_fallthru
    _
  // Predicated region
  $region46: #{gated_stgcn_forward.1} parent=0 // pred_check
    _
  $region47: #{gated_stgcn_forward.1} parent=0 // pred_check_branch
    %50 = sbr.rel (0) target = $region49
  $region48: #{gated_stgcn_forward.1} parent=0 // pred_region
    _
  $region49: #{gated_stgcn_forward.1} parent=0 // pred_fallthru
    _
  // Predicated region
  $region50: #{gated_stgcn_forward.1} parent=0 // pred_check
    _
  $region51: #{gated_stgcn_forward.1} parent=0 // pred_check_branch
    %52 = sbr.rel (0) target = $region53
  $region52: #{gated_stgcn_forward.1} parent=0 // pred_region
    _
  $region53: #{gated_stgcn_forward.1} parent=0 // pred_fallthru
    _
  // Predicated region
  $region54: #{gated_stgcn_forward.1} parent=0 // pred_check
    _
  $region55: #{gated_stgcn_forward.1} parent=0 // pred_check_branch
    %54 = sbr.rel (0) target = $region57
  $region56: #{gated_stgcn_forward.1} parent=0 // pred_region
    _
  $region57: #{gated_stgcn_forward.1} parent=0 // pred_fallthru
    _
  // Predicated region
  $region58: #{gated_stgcn_forward.1} parent=0 // pred_check
    _
  $region59: #{gated_stgcn_forward.1} parent=0 // pred_check_branch
    %56 = sbr.rel (0) target = $region61
  $region60: #{gated_stgcn_forward.1} parent=0 // pred_region
    _
  $region61: #{gated_stgcn_forward.1} parent=0 // pred_fallthru
    _
  // Predicated region
  $region62: #{gated_stgcn_forward.1} parent=0 // pred_check
    _
  $region63: #{gated_stgcn_forward.1} parent=0 // pred_check_branch
    %58 = sbr.rel (0) target = $region65
  $region64: #{gated_stgcn_forward.1} parent=0 // pred_region
    _
  $region65: #{gated_stgcn_forward.1} parent=0 // pred_fallthru
    _
  // Predicated region
  $region66: #{gated_stgcn_forward.1} parent=0 // pred_check
    _
  $region67: #{gated_stgcn_forward.1} parent=0 // pred_check_branch
    %60 = sbr.rel (0) target = $region69
  $region68: #{gated_stgcn_forward.1} parent=0 // pred_region
    _
  $region69: #{gated_stgcn_forward.1} parent=0 // pred_fallthru
    _
  // Predicated region
  $region70: #{gated_stgcn_forward.1} parent=0 // pred_check
    _
  $region71: #{gated_stgcn_forward.1} parent=0 // pred_check_branch
    %62 = sbr.rel (0) target = $region73
  $region72: #{gated_stgcn_forward.1} parent=0 // pred_region
    _
  $region73: #{gated_stgcn_forward.1} parent=0 // pred_fallthru
    _
  // Predicated region
  $region74: #{gated_stgcn_forward.1} parent=0 // pred_check
    _
  $region75: #{gated_stgcn_forward.1} parent=0 // pred_check_branch
    %64 = sbr.rel (0) target = $region77
  $region76: #{gated_stgcn_forward.1} parent=0 // pred_region
    _
  $region77: #{gated_stgcn_forward.1} parent=0 // pred_fallthru
    _
  // Predicated region
  $region78: #{gated_stgcn_forward.1} parent=0 // pred_check
    _
  $region79: #{gated_stgcn_forward.1} parent=0 // pred_check_branch
    %66 = sbr.rel (0) target = $region81
  $region80: #{gated_stgcn_forward.1} parent=0 // pred_region
    _
  $region81: #{gated_stgcn_forward.1} parent=0 // pred_fallthru
    _
  // Predicated region
  $region82: #{gated_stgcn_forward.1} parent=0 // pred_check
    _
  $region83: #{gated_stgcn_forward.1} parent=0 // pred_check_branch
    %68 = sbr.rel (0) target = $region85
  $region84: #{gated_stgcn_forward.1} parent=0 // pred_region
    _
  $region85: #{gated_stgcn_forward.1} parent=0 // pred_fallthru
    _
  // Predicated region
  $region86: #{gated_stgcn_forward.1} parent=0 // pred_check
    _
  $region87: #{gated_stgcn_forward.1} parent=0 // pred_check_branch
    %70 = sbr.rel (0) target = $region89
  $region88: #{gated_stgcn_forward.1} parent=0 // pred_region
    _
  $region89: #{gated_stgcn_forward.1} parent=0 // pred_fallthru
    _
  %v72 = vld [vmem:[%s0] sm:$0xf]
  %v73 = vld [vmem:[%s0 + $0x4] sm:$0xf]
  %v74 = vld [vmem:[%s0 + $0x8] sm:$0xf]
  %v75 = vld [vmem:[%s0 + $0xc] sm:$0xf]
  %v76 = vld [vmem:[%s0 + $0x10] sm:$0xf]
  %v77 = vld [vmem:[%s0 + $0x14] sm:$0xf]
  %v78 = vld [vmem:[%s0 + $0x18] sm:$0xf]
  %v79 = vld [vmem:[%s0 + $0x1c] sm:$0xf]
  %v80 = vld [vmem:[%s0 + $0x20] sm:$0xf]
  %v81 = vld [vmem:[%s0 + $0x24] sm:$0xf]
  %v82 = vld [vmem:[%s0 + $0x28] sm:$0xf]
  %v83 = vld [vmem:[%s0 + $0x2c] sm:$0xf]
  %v84 = vld [vmem:[%s0 + $0x30] sm:$0xf]
  %v85 = vld [vmem:[%s0 + $0x34] sm:$0xf]
  %v86 = vld [vmem:[%s0 + $0x38] sm:$0xf]
  %v87 = vld [vmem:[%s0 + $0x3c] sm:$0xf]
  %v88 = vld [vmem:[%s0 + $0x40] sm:$0xf]
  %v89 = vld [vmem:[%s0 + $0x44] sm:$0xf]
  %v90 = vld [vmem:[%s0 + $0x48] sm:$0xf]
  %v91 = vld [vmem:[%s0 + $0x4c] sm:$0xf]
  %v92 = vld [vmem:[%s0 + $0x50] sm:$0xf]
  %v93 = vld [vmem:[%s0 + $0x54] sm:$0xf]
  %v94 = vld [vmem:[%s0 + $0x58] sm:$0xf]
  %v95 = vld [vmem:[%s0 + $0x5c] sm:$0xf]
  %v96 = vld [vmem:[%s0 + $0x60] sm:$0xf]
  %v97 = vld [vmem:[%s0 + $0x64] sm:$0xf]
  %v98 = vld [vmem:[%s0 + $0x68] sm:$0xf]
  %v99 = vld [vmem:[%s0 + $0x6c] sm:$0xf]
  %v100 = vld [vmem:[%s0 + $0x70] sm:$0xf]
  %v101 = vld [vmem:[%s0 + $0x74] sm:$0xf]
  %v102 = vld [vmem:[%s0 + $0x78] sm:$0xf]
  %v103 = vld [vmem:[%s0 + $0x7c] sm:$0xf]
  %v104 = vld [vmem:[%s1] sm:$0xf]
  %v105 = vld [vmem:[%s1 + $0x4] sm:$0xf]
  %v106 = vld [vmem:[%s1 + $0x8] sm:$0xf]
  %v107 = vld [vmem:[%s1 + $0xc] sm:$0xf]
  %v108 = vld [vmem:[%s1 + $0x10] sm:$0xf]
  %v109 = vld [vmem:[%s1 + $0x14] sm:$0xf]
  %v142 = vunpack.c.l.b16 %v72
  %v143 = vunpack.c.l.b16 %v73
  %v144 = vunpack.c.l.b16 %v74
  %v145 = vunpack.c.l.b16 %v75
  %v146 = vunpack.c.l.b16 %v76
  %v147 = vunpack.c.l.b16 %v77
  %v148 = vunpack.c.l.b16 %v78
  %v149 = vunpack.c.l.b16 %v79
  %v150 = vunpack.c.l.b16 %v80
  %v151 = vunpack.c.l.b16 %v81
  %v152 = vunpack.c.l.b16 %v82
  %v153 = vunpack.c.l.b16 %v83
  %v154 = vunpack.c.l.b16 %v84
  %v155 = vunpack.c.l.b16 %v85
  %v156 = vunpack.c.l.b16 %v86
  %v157 = vunpack.c.l.b16 %v87
  %v158 = vunpack.c.l.b16 %v88
  %v159 = vunpack.c.l.b16 %v89
  %v160 = vunpack.c.l.b16 %v90
  %v161 = vunpack.c.l.b16 %v91
  %v162 = vunpack.c.l.b16 %v92
  %v163 = vunpack.c.l.b16 %v93
  %v164 = vunpack.c.l.b16 %v94
  %v165 = vunpack.c.l.b16 %v95
  %v166 = vunpack.c.l.b16 %v96
  %v167 = vunpack.c.l.b16 %v97
  %v168 = vunpack.c.l.b16 %v98
  %v169 = vunpack.c.l.b16 %v99
  %v170 = vunpack.c.l.b16 %v100
  %v171 = vunpack.c.l.b16 %v101
  %v172 = vunpack.c.l.b16 %v102
  %v173 = vunpack.c.l.b16 %v103
  %v174 = vpack.c.b16 %v143, %v142
  %v175 = vpack.c.b16 %v145, %v144
  %v176 = vpack.c.b16 %v147, %v146
  %v177 = vpack.c.b16 %v149, %v148
  %v178 = vpack.c.b16 %v151, %v150
  %v179 = vpack.c.b16 %v153, %v152
  %v180 = vpack.c.b16 %v155, %v154
  %v181 = vpack.c.b16 %v157, %v156
  %v182 = vpack.c.b16 %v159, %v158
  %v183 = vpack.c.b16 %v161, %v160
  %v184 = vpack.c.b16 %v163, %v162
  %v185 = vpack.c.b16 %v165, %v164
  %v186 = vpack.c.b16 %v167, %v166
  %v187 = vpack.c.b16 %v169, %v168
  %v188 = vpack.c.b16 %v171, %v170
  %v189 = vpack.c.b16 %v173, %v172
  %190 = vrot.lane.b32.xlu0 %v174, 4
  %v191 = vpop.permute.xlu0 %190
  %192 = vrot.lane.b32.xlu0 %v175, 4
  %v193 = vpop.permute.xlu0 %192
  %194 = vrot.lane.b32.xlu0 %v176, 4
  %v195 = vpop.permute.xlu0 %194
  %196 = vrot.lane.b32.xlu0 %v177, 4
  %v197 = vpop.permute.xlu0 %196
  %198 = vrot.lane.b32.xlu0 %v178, 4
  %v199 = vpop.permute.xlu0 %198
  %200 = vrot.lane.b32.xlu0 %v179, 4
  %v201 = vpop.permute.xlu0 %200
  %202 = vrot.lane.b32.xlu0 %v180, 4
  %v203 = vpop.permute.xlu0 %202
  %204 = vrot.lane.b32.xlu0 %v181, 4
  %v205 = vpop.permute.xlu0 %204
  %206 = vrot.lane.b32.xlu0 %v182, 4
  %v207 = vpop.permute.xlu0 %206
  %208 = vrot.lane.b32.xlu0 %v183, 4
  %v209 = vpop.permute.xlu0 %208
  %210 = vrot.lane.b32.xlu0 %v184, 4
  %v211 = vpop.permute.xlu0 %210
  %212 = vrot.lane.b32.xlu0 %v185, 4
  %v213 = vpop.permute.xlu0 %212
  %214 = vrot.lane.b32.xlu0 %v186, 4
  %v215 = vpop.permute.xlu0 %214
  %216 = vrot.lane.b32.xlu0 %v187, 4
  %v217 = vpop.permute.xlu0 %216
  %218 = vrot.lane.b32.xlu0 %v188, 4
  %v219 = vpop.permute.xlu0 %218
  %220 = vrot.lane.b32.xlu0 %v189, 4
  %v221 = vpop.permute.xlu0 %220
  %223 = vrot.lane.b32.xlu0 %v176, 8
  %v224 = vpop.permute.xlu0 %223
  %225 = vrot.lane.b32.xlu0 %v177, 8
  %v226 = vpop.permute.xlu0 %225
  %227 = vrot.lane.b32.xlu0 %v178, 8
  %v228 = vpop.permute.xlu0 %227
  %229 = vrot.lane.b32.xlu0 %v179, 8
  %v230 = vpop.permute.xlu0 %229
  %231 = vrot.lane.b32.xlu0 %v180, 8
  %v232 = vpop.permute.xlu0 %231
  %233 = vrot.lane.b32.xlu0 %v181, 8
  %v234 = vpop.permute.xlu0 %233
  %235 = vrot.lane.b32.xlu0 %v182, 8
  %v236 = vpop.permute.xlu0 %235
  %237 = vrot.lane.b32.xlu0 %v183, 8
  %v238 = vpop.permute.xlu0 %237
  %239 = vrot.lane.b32.xlu0 %v184, 8
  %v240 = vpop.permute.xlu0 %239
  %241 = vrot.lane.b32.xlu0 %v185, 8
  %v242 = vpop.permute.xlu0 %241
  %243 = vrot.lane.b32.xlu0 %v186, 8
  %v244 = vpop.permute.xlu0 %243
  %245 = vrot.lane.b32.xlu0 %v187, 8
  %v246 = vpop.permute.xlu0 %245
  %247 = vrot.lane.b32.xlu0 %v188, 8
  %v248 = vpop.permute.xlu0 %247
  %249 = vrot.lane.b32.xlu0 %v189, 8
  %v250 = vpop.permute.xlu0 %249
  %251 = vrot.lane.b32.xlu0 0, 8
  %v252 = vpop.permute.xlu0 %251
  %vm253 = vcmask 31744
  %v256 = vsel %vm253, 0, %v191
  %v258 = vsel %vm253, 0, %v193
  %v261 = vsel %vm253, %v174, %v195
  %v264 = vsel %vm253, %v175, %v197
  %v267 = vsel %vm253, %v176, %v199
  %v270 = vsel %vm253, %v177, %v201
  %v273 = vsel %vm253, %v178, %v203
  %v276 = vsel %vm253, %v179, %v205
  %v279 = vsel %vm253, %v180, %v207
  %v282 = vsel %vm253, %v181, %v209
  %v285 = vsel %vm253, %v182, %v211
  %v288 = vsel %vm253, %v183, %v213
  %v291 = vsel %vm253, %v184, %v215
  %v294 = vsel %vm253, %v185, %v217
  %v297 = vsel %vm253, %v186, %v219
  %v300 = vsel %vm253, %v187, %v221
  %vm301 = vcmask 64512
  %v303 = vsel %vm301, %v256, %v224
  %v305 = vsel %vm301, %v258, %v226
  %v307 = vsel %vm301, %v261, %v228
  %v309 = vsel %vm301, %v264, %v230
  %v311 = vsel %vm301, %v267, %v232
  %v313 = vsel %vm301, %v270, %v234
  %v315 = vsel %vm301, %v273, %v236
  %v317 = vsel %vm301, %v276, %v238
  %v319 = vsel %vm301, %v279, %v240
  %v321 = vsel %vm301, %v282, %v242
  %v323 = vsel %vm301, %v285, %v244
  %v325 = vsel %vm301, %v288, %v246
  %v327 = vsel %vm301, %v291, %v248
  %v329 = vsel %vm301, %v294, %v250
  %v331 = vsel %vm301, %v297, %v252
  %v332 = vsel %vm301, %v300, %v252
  %v333 = vld [vmem:[%s2] sm:$0xf]
  %v334 = vld [vmem:[%s2 + $0x4] sm:$0x3]
  %v335 = vld [vmem:[%s3] sm:$0x1]
  %v337 = vperm.slane %v335, 0
  %v341 = vunpack.c.l.b16 %v333
  %v342 = vunpack.c.l.b16 %v334
  %v343 = vpack.c.b16 %v342, %v341
  %vm344 = vcmask 97280
  %v345 = vsel %vm344, %v303, 0
  %v347 = vsel %vm344, %v305, 0
  %v349 = vsel %vm344, %v307, 0
  %v351 = vsel %vm344, %v309, 0
  %v353 = vsel %vm344, %v311, 0
  %v355 = vsel %vm344, %v313, 0
  %v357 = vsel %vm344, %v315, 0
  %v359 = vsel %vm344, %v317, 0
  %v361 = vsel %vm344, %v319, 0
  %v363 = vsel %vm344, %v321, 0
  %v365 = vsel %vm344, %v323, 0
  %v367 = vsel %vm344, %v325, 0
  %v369 = vsel %vm344, %v327, 0
  %v371 = vsel %vm344, %v329, 0
  %v373 = vsel %vm344, %v331, 0
  %v375 = vsel %vm344, %v332, 0
  %vm377 = vcmask 1045504
  %v379 = vsel %vm377, %v343, 0
  %381 = vmatpush.bf16.msra.mxu0 0
  %382 = vmatpush.bf16.msra.mxu0 0
  %383 = vmatpush.bf16.msra.mxu0 0
  %384 = vmatpush.bf16.msra.mxu0 0
  %385 = vmatpush.bf16.msra.mxu0 0
  %386 = vmatpush.bf16.msra.mxu0 0
  %387 = vmatpush.bf16.msra.mxu0 0
  %388 = vmatpush.bf16.msra.mxu0 %v379
  %389 = vmatmul.bf16.gmra.mxu0 %v345
  %v390 = vpop.f32.mrf.mxu0
  %v391 = vadd.f32 %v337, %v390
  %v392 = vpop.f32.mrf.mxu0
  %v393 = vadd.f32 %v337, %v392
  %394 = vmatmul.bf16.gmra.mxu0 %v347
  %v395 = vpop.f32.mrf.mxu0
  %v396 = vadd.f32 %v337, %v395
  %v397 = vpop.f32.mrf.mxu0
  %v398 = vadd.f32 %v337, %v397
  %399 = vmatmul.bf16.gmra.mxu0 %v349
  %v400 = vpop.f32.mrf.mxu0
  %v401 = vadd.f32 %v337, %v400
  %v402 = vpop.f32.mrf.mxu0
  %v403 = vadd.f32 %v337, %v402
  %404 = vmatmul.bf16.gmra.mxu0 %v351
  %v405 = vpop.f32.mrf.mxu0
  %v406 = vadd.f32 %v337, %v405
  %v407 = vpop.f32.mrf.mxu0
  %v408 = vadd.f32 %v337, %v407
  %409 = vmatmul.bf16.gmra.mxu0 %v353
  %v410 = vpop.f32.mrf.mxu0
  %v411 = vadd.f32 %v337, %v410
  %v412 = vpop.f32.mrf.mxu0
  %v413 = vadd.f32 %v337, %v412
  %414 = vmatmul.bf16.gmra.mxu0 %v355
  %v415 = vpop.f32.mrf.mxu0
  %v416 = vadd.f32 %v337, %v415
  %v417 = vpop.f32.mrf.mxu0
  %v418 = vadd.f32 %v337, %v417
  %419 = vmatmul.bf16.gmra.mxu0 %v357
  %v420 = vpop.f32.mrf.mxu0
  %v421 = vadd.f32 %v337, %v420
  %v422 = vpop.f32.mrf.mxu0
  %v423 = vadd.f32 %v337, %v422
  %424 = vmatmul.bf16.gmra.mxu0 %v359
  %v425 = vpop.f32.mrf.mxu0
  %v426 = vadd.f32 %v337, %v425
  %v427 = vpop.f32.mrf.mxu0
  %v428 = vadd.f32 %v337, %v427
  %429 = vmatmul.bf16.gmra.mxu0 %v361
  %v430 = vpop.f32.mrf.mxu0
  %v431 = vadd.f32 %v337, %v430
  %v432 = vpop.f32.mrf.mxu0
  %v433 = vadd.f32 %v337, %v432
  %434 = vmatmul.bf16.gmra.mxu0 %v363
  %v435 = vpop.f32.mrf.mxu0
  %v436 = vadd.f32 %v337, %v435
  %v437 = vpop.f32.mrf.mxu0
  %v438 = vadd.f32 %v337, %v437
  %439 = vmatmul.bf16.gmra.mxu0 %v365
  %v440 = vpop.f32.mrf.mxu0
  %v441 = vadd.f32 %v337, %v440
  %v442 = vpop.f32.mrf.mxu0
  %v443 = vadd.f32 %v337, %v442
  %444 = vmatmul.bf16.gmra.mxu0 %v367
  %v445 = vpop.f32.mrf.mxu0
  %v446 = vadd.f32 %v337, %v445
  %v447 = vpop.f32.mrf.mxu0
  %v448 = vadd.f32 %v337, %v447
  %449 = vmatmul.bf16.gmra.mxu0 %v369
  %v450 = vpop.f32.mrf.mxu0
  %v451 = vadd.f32 %v337, %v450
  %v452 = vpop.f32.mrf.mxu0
  %v453 = vadd.f32 %v337, %v452
  %454 = vmatmul.bf16.gmra.mxu0 %v371
  %v455 = vpop.f32.mrf.mxu0
  %v456 = vadd.f32 %v337, %v455
  %v457 = vpop.f32.mrf.mxu0
  %v458 = vadd.f32 %v337, %v457
  %459 = vmatmul.bf16.gmra.mxu0 %v373
  %v460 = vpop.f32.mrf.mxu0
  %v461 = vadd.f32 %v337, %v460
  %v462 = vpop.f32.mrf.mxu0
  %v463 = vadd.f32 %v337, %v462
  %464 = vmatmul.bf16.gmra.mxu0 %v375
  %v465 = vpop.f32.mrf.mxu0
  %v466 = vadd.f32 %v337, %v465
  %v467 = vpop.f32.mrf.mxu0
  %v468 = vadd.f32 %v337, %v467
  %469 = vdwg.mxu0
  %v470 = vxor.u32 %v391, 2147483648
  %v471 = vxor.u32 %v393, 2147483648
  %v472 = vxor.u32 %v396, 2147483648
  %v473 = vxor.u32 %v398, 2147483648
  %v474 = vxor.u32 %v401, 2147483648
  %v475 = vxor.u32 %v403, 2147483648
  %v476 = vxor.u32 %v406, 2147483648
  %v477 = vxor.u32 %v408, 2147483648
  %v478 = vxor.u32 %v411, 2147483648
  %v479 = vxor.u32 %v413, 2147483648
  %v480 = vxor.u32 %v416, 2147483648
  %v481 = vxor.u32 %v418, 2147483648
  %v482 = vxor.u32 %v421, 2147483648
  %v483 = vxor.u32 %v423, 2147483648
  %v484 = vxor.u32 %v426, 2147483648
  %v485 = vxor.u32 %v428, 2147483648
  %v486 = vxor.u32 %v431, 2147483648
  %v487 = vxor.u32 %v433, 2147483648
  %v488 = vxor.u32 %v436, 2147483648
  %v489 = vxor.u32 %v438, 2147483648
  %v490 = vxor.u32 %v441, 2147483648
  %v491 = vxor.u32 %v443, 2147483648
  %v492 = vxor.u32 %v446, 2147483648
  %v493 = vxor.u32 %v448, 2147483648
  %v494 = vxor.u32 %v451, 2147483648
  %v495 = vxor.u32 %v453, 2147483648
  %v496 = vxor.u32 %v456, 2147483648
  %v497 = vxor.u32 %v458, 2147483648
  %v498 = vxor.u32 %v461, 2147483648
  %v499 = vxor.u32 %v463, 2147483648
  %v500 = vxor.u32 %v466, 2147483648
  %v501 = vxor.u32 %v468, 2147483648
  %v502 = vmul.f32 %v470, 1.442695
  %v503 = vpow.pop %v502
  %v504 = vmul.f32 %v471, 1.442695
  %v505 = vpow.pop %v504
  %v506 = vmul.f32 %v472, 1.442695
  %v507 = vpow.pop %v506
  %v508 = vmul.f32 %v473, 1.442695
  %v509 = vpow.pop %v508
  %v510 = vmul.f32 %v474, 1.442695
  %v511 = vpow.pop %v510
  %v512 = vmul.f32 %v475, 1.442695
  %v513 = vpow.pop %v512
  %v514 = vmul.f32 %v476, 1.442695
  %v515 = vpow.pop %v514
  %v516 = vmul.f32 %v477, 1.442695
  %v517 = vpow.pop %v516
  %v518 = vmul.f32 %v478, 1.442695
  %v519 = vpow.pop %v518
  %v520 = vmul.f32 %v479, 1.442695
  %v521 = vpow.pop %v520
  %v522 = vmul.f32 %v480, 1.442695
  %v523 = vpow.pop %v522
  %v524 = vmul.f32 %v481, 1.442695
  %v525 = vpow.pop %v524
  %v526 = vmul.f32 %v482, 1.442695
  %v527 = vpow.pop %v526
  %v528 = vmul.f32 %v483, 1.442695
  %v529 = vpow.pop %v528
  %v530 = vmul.f32 %v484, 1.442695
  %v531 = vpow.pop %v530
  %v532 = vmul.f32 %v485, 1.442695
  %v533 = vpow.pop %v532
  %v534 = vmul.f32 %v486, 1.442695
  %v535 = vpow.pop %v534
  %v536 = vmul.f32 %v487, 1.442695
  %v537 = vpow.pop %v536
  %v538 = vmul.f32 %v488, 1.442695
  %v539 = vpow.pop %v538
  %v540 = vmul.f32 %v489, 1.442695
  %v541 = vpow.pop %v540
  %v542 = vmul.f32 %v490, 1.442695
  %v543 = vpow.pop %v542
  %v544 = vmul.f32 %v491, 1.442695
  %v545 = vpow.pop %v544
  %v546 = vmul.f32 %v492, 1.442695
  %v547 = vpow.pop %v546
  %v548 = vmul.f32 %v493, 1.442695
  %v549 = vpow.pop %v548
  %v550 = vmul.f32 %v494, 1.442695
  %v551 = vpow.pop %v550
  %v552 = vmul.f32 %v495, 1.442695
  %v553 = vpow.pop %v552
  %v554 = vmul.f32 %v496, 1.442695
  %v555 = vpow.pop %v554
  %v556 = vmul.f32 %v497, 1.442695
  %v557 = vpow.pop %v556
  %v558 = vmul.f32 %v498, 1.442695
  %v559 = vpow.pop %v558
  %v560 = vmul.f32 %v499, 1.442695
  %v561 = vpow.pop %v560
  %v562 = vmul.f32 %v500, 1.442695
  %v563 = vpow.pop %v562
  %v564 = vmul.f32 %v501, 1.442695
  %v565 = vpow.pop %v564
  %v566 = vadd.f32 %v503, 1.0
  %v567 = vadd.f32 %v505, 1.0
  %v568 = vadd.f32 %v507, 1.0
  %v569 = vadd.f32 %v509, 1.0
  %v570 = vadd.f32 %v511, 1.0
  %v571 = vadd.f32 %v513, 1.0
  %v572 = vadd.f32 %v515, 1.0
  %v573 = vadd.f32 %v517, 1.0
  %v574 = vadd.f32 %v519, 1.0
  %v575 = vadd.f32 %v521, 1.0
  %v576 = vadd.f32 %v523, 1.0
  %v577 = vadd.f32 %v525, 1.0
  %v578 = vadd.f32 %v527, 1.0
  %v579 = vadd.f32 %v529, 1.0
  %v580 = vadd.f32 %v531, 1.0
  %v581 = vadd.f32 %v533, 1.0
  %v582 = vadd.f32 %v535, 1.0
  %v583 = vadd.f32 %v537, 1.0
  %v584 = vadd.f32 %v539, 1.0
  %v585 = vadd.f32 %v541, 1.0
  %v586 = vadd.f32 %v543, 1.0
  %v587 = vadd.f32 %v545, 1.0
  %v588 = vadd.f32 %v547, 1.0
  %v589 = vadd.f32 %v549, 1.0
  %v590 = vadd.f32 %v551, 1.0
  %v591 = vadd.f32 %v553, 1.0
  %v592 = vadd.f32 %v555, 1.0
  %v593 = vadd.f32 %v557, 1.0
  %v594 = vadd.f32 %v559, 1.0
  %v595 = vadd.f32 %v561, 1.0
  %v596 = vadd.f32 %v563, 1.0
  %v597 = vadd.f32 %v565, 1.0
  %v598 = vrcp.pop %v566
  %v599 = vmul.f32 %v566, %v598
  %v600 = vsub.f32 1.0, %v599
  %v601 = vmul.f32 %v598, %v600
  %v602 = vadd.f32 %v598, %v601
  %vm603 = vweird.f32 %v566
  %vm604 = vweird.f32 %v598
  %vm605 = vmor %vm603, %vm604
  %v606 = vsel %vm605, %v598, %v602
  %v607 = vand.u32 2147483647, %v566
  %vm608 = vcmp.eq.f32.partialorder %v607, 8.507059e+37
  %v609 = vand.u32 %v566, 2147483648
  %v610 = vor.u32 1.1754944e-38, %v609
  %v611 = vsel %vm608, %v610, %v606
  %v612 = vmul.f32 1.0, %v611
  %v613 = vrcp.pop %v567
  %v614 = vmul.f32 %v567, %v613
  %v615 = vsub.f32 1.0, %v614
  %v616 = vmul.f32 %v613, %v615
  %v617 = vadd.f32 %v613, %v616
  %vm618 = vweird.f32 %v567
  %vm619 = vweird.f32 %v613
  %vm620 = vmor %vm618, %vm619
  %v621 = vsel %vm620, %v613, %v617
  %v622 = vand.u32 2147483647, %v567
  %vm623 = vcmp.eq.f32.partialorder %v622, 8.507059e+37
  %v624 = vand.u32 %v567, 2147483648
  %v625 = vor.u32 1.1754944e-38, %v624
  %v626 = vsel %vm623, %v625, %v621
  %v627 = vmul.f32 1.0, %v626
  %v628 = vrcp.pop %v568
  %v629 = vmul.f32 %v568, %v628
  %v630 = vsub.f32 1.0, %v629
  %v631 = vmul.f32 %v628, %v630
  %v632 = vadd.f32 %v628, %v631
  %vm633 = vweird.f32 %v568
  %vm634 = vweird.f32 %v628
  %vm635 = vmor %vm633, %vm634
  %v636 = vsel %vm635, %v628, %v632
  %v637 = vand.u32 2147483647, %v568
  %vm638 = vcmp.eq.f32.partialorder %v637, 8.507059e+37
  %v639 = vand.u32 %v568, 2147483648
  %v640 = vor.u32 1.1754944e-38, %v639
  %v641 = vsel %vm638, %v640, %v636
  %v642 = vmul.f32 1.0, %v641
  %v643 = vrcp.pop %v569
  %v644 = vmul.f32 %v569, %v643
  %v645 = vsub.f32 1.0, %v644
  %v646 = vmul.f32 %v643, %v645
  %v647 = vadd.f32 %v643, %v646
  %vm648 = vweird.f32 %v569
  %vm649 = vweird.f32 %v643
  %vm650 = vmor %vm648, %vm649
  %v651 = vsel %vm650, %v643, %v647
  %v652 = vand.u32 2147483647, %v569
  %vm653 = vcmp.eq.f32.partialorder %v652, 8.507059e+37
  %v654 = vand.u32 %v569, 2147483648
  %v655 = vor.u32 1.1754944e-38, %v654
  %v656 = vsel %vm653, %v655, %v651
  %v657 = vmul.f32 1.0, %v656
  %v658 = vrcp.pop %v570
  %v659 = vmul.f32 %v570, %v658
  %v660 = vsub.f32 1.0, %v659
  %v661 = vmul.f32 %v658, %v660
  %v662 = vadd.f32 %v658, %v661
  %vm663 = vweird.f32 %v570
  %vm664 = vweird.f32 %v658
  %vm665 = vmor %vm663, %vm664
  %v666 = vsel %vm665, %v658, %v662
  %v667 = vand.u32 2147483647, %v570
  %vm668 = vcmp.eq.f32.partialorder %v667, 8.507059e+37
  %v669 = vand.u32 %v570, 2147483648
  %v670 = vor.u32 1.1754944e-38, %v669
  %v671 = vsel %vm668, %v670, %v666
  %v672 = vmul.f32 1.0, %v671
  %v673 = vrcp.pop %v571
  %v674 = vmul.f32 %v571, %v673
  %v675 = vsub.f32 1.0, %v674
  %v676 = vmul.f32 %v673, %v675
  %v677 = vadd.f32 %v673, %v676
  %vm678 = vweird.f32 %v571
  %vm679 = vweird.f32 %v673
  %vm680 = vmor %vm678, %vm679
  %v681 = vsel %vm680, %v673, %v677
  %v682 = vand.u32 2147483647, %v571
  %vm683 = vcmp.eq.f32.partialorder %v682, 8.507059e+37
  %v684 = vand.u32 %v571, 2147483648
  %v685 = vor.u32 1.1754944e-38, %v684
  %v686 = vsel %vm683, %v685, %v681
  %v687 = vmul.f32 1.0, %v686
  %v688 = vrcp.pop %v572
  %v689 = vmul.f32 %v572, %v688
  %v690 = vsub.f32 1.0, %v689
  %v691 = vmul.f32 %v688, %v690
  %v692 = vadd.f32 %v688, %v691
  %vm693 = vweird.f32 %v572
  %vm694 = vweird.f32 %v688
  %vm695 = vmor %vm693, %vm694
  %v696 = vsel %vm695, %v688, %v692
  %v697 = vand.u32 2147483647, %v572
  %vm698 = vcmp.eq.f32.partialorder %v697, 8.507059e+37
  %v699 = vand.u32 %v572, 2147483648
  %v700 = vor.u32 1.1754944e-38, %v699
  %v701 = vsel %vm698, %v700, %v696
  %v702 = vmul.f32 1.0, %v701
  %v703 = vrcp.pop %v573
  %v704 = vmul.f32 %v573, %v703
  %v705 = vsub.f32 1.0, %v704
  %v706 = vmul.f32 %v703, %v705
  %v707 = vadd.f32 %v703, %v706
  %vm708 = vweird.f32 %v573
  %vm709 = vweird.f32 %v703
  %vm710 = vmor %vm708, %vm709
  %v711 = vsel %vm710, %v703, %v707
  %v712 = vand.u32 2147483647, %v573
  %vm713 = vcmp.eq.f32.partialorder %v712, 8.507059e+37
  %v714 = vand.u32 %v573, 2147483648
  %v715 = vor.u32 1.1754944e-38, %v714
  %v716 = vsel %vm713, %v715, %v711
  %v717 = vmul.f32 1.0, %v716
  %v718 = vrcp.pop %v574
  %v719 = vmul.f32 %v574, %v718
  %v720 = vsub.f32 1.0, %v719
  %v721 = vmul.f32 %v718, %v720
  %v722 = vadd.f32 %v718, %v721
  %vm723 = vweird.f32 %v574
  %vm724 = vweird.f32 %v718
  %vm725 = vmor %vm723, %vm724
  %v726 = vsel %vm725, %v718, %v722
  %v727 = vand.u32 2147483647, %v574
  %vm728 = vcmp.eq.f32.partialorder %v727, 8.507059e+37
  %v729 = vand.u32 %v574, 2147483648
  %v730 = vor.u32 1.1754944e-38, %v729
  %v731 = vsel %vm728, %v730, %v726
  %v732 = vmul.f32 1.0, %v731
  %v733 = vrcp.pop %v575
  %v734 = vmul.f32 %v575, %v733
  %v735 = vsub.f32 1.0, %v734
  %v736 = vmul.f32 %v733, %v735
  %v737 = vadd.f32 %v733, %v736
  %vm738 = vweird.f32 %v575
  %vm739 = vweird.f32 %v733
  %vm740 = vmor %vm738, %vm739
  %v741 = vsel %vm740, %v733, %v737
  %v742 = vand.u32 2147483647, %v575
  %vm743 = vcmp.eq.f32.partialorder %v742, 8.507059e+37
  %v744 = vand.u32 %v575, 2147483648
  %v745 = vor.u32 1.1754944e-38, %v744
  %v746 = vsel %vm743, %v745, %v741
  %v747 = vmul.f32 1.0, %v746
  %v748 = vrcp.pop %v576
  %v749 = vmul.f32 %v576, %v748
  %v750 = vsub.f32 1.0, %v749
  %v751 = vmul.f32 %v748, %v750
  %v752 = vadd.f32 %v748, %v751
  %vm753 = vweird.f32 %v576
  %vm754 = vweird.f32 %v748
  %vm755 = vmor %vm753, %vm754
  %v756 = vsel %vm755, %v748, %v752
  %v757 = vand.u32 2147483647, %v576
  %vm758 = vcmp.eq.f32.partialorder %v757, 8.507059e+37
  %v759 = vand.u32 %v576, 2147483648
  %v760 = vor.u32 1.1754944e-38, %v759
  %v761 = vsel %vm758, %v760, %v756
  %v762 = vmul.f32 1.0, %v761
  %v763 = vrcp.pop %v577
  %v764 = vmul.f32 %v577, %v763
  %v765 = vsub.f32 1.0, %v764
  %v766 = vmul.f32 %v763, %v765
  %v767 = vadd.f32 %v763, %v766
  %vm768 = vweird.f32 %v577
  %vm769 = vweird.f32 %v763
  %vm770 = vmor %vm768, %vm769
  %v771 = vsel %vm770, %v763, %v767
  %v772 = vand.u32 2147483647, %v577
  %vm773 = vcmp.eq.f32.partialorder %v772, 8.507059e+37
  %v774 = vand.u32 %v577, 2147483648
  %v775 = vor.u32 1.1754944e-38, %v774
  %v776 = vsel %vm773, %v775, %v771
  %v777 = vmul.f32 1.0, %v776
  %v778 = vrcp.pop %v578
  %v779 = vmul.f32 %v578, %v778
  %v780 = vsub.f32 1.0, %v779
  %v781 = vmul.f32 %v778, %v780
  %v782 = vadd.f32 %v778, %v781
  %vm783 = vweird.f32 %v578
  %vm784 = vweird.f32 %v778
  %vm785 = vmor %vm783, %vm784
  %v786 = vsel %vm785, %v778, %v782
  %v787 = vand.u32 2147483647, %v578
  %vm788 = vcmp.eq.f32.partialorder %v787, 8.507059e+37
  %v789 = vand.u32 %v578, 2147483648
  %v790 = vor.u32 1.1754944e-38, %v789
  %v791 = vsel %vm788, %v790, %v786
  %v792 = vmul.f32 1.0, %v791
  %v793 = vrcp.pop %v579
  %v794 = vmul.f32 %v579, %v793
  %v795 = vsub.f32 1.0, %v794
  %v796 = vmul.f32 %v793, %v795
  %v797 = vadd.f32 %v793, %v796
  %vm798 = vweird.f32 %v579
  %vm799 = vweird.f32 %v793
  %vm800 = vmor %vm798, %vm799
  %v801 = vsel %vm800, %v793, %v797
  %v802 = vand.u32 2147483647, %v579
  %vm803 = vcmp.eq.f32.partialorder %v802, 8.507059e+37
  %v804 = vand.u32 %v579, 2147483648
  %v805 = vor.u32 1.1754944e-38, %v804
  %v806 = vsel %vm803, %v805, %v801
  %v807 = vmul.f32 1.0, %v806
  %v808 = vrcp.pop %v580
  %v809 = vmul.f32 %v580, %v808
  %v810 = vsub.f32 1.0, %v809
  %v811 = vmul.f32 %v808, %v810
  %v812 = vadd.f32 %v808, %v811
  %vm813 = vweird.f32 %v580
  %vm814 = vweird.f32 %v808
  %vm815 = vmor %vm813, %vm814
  %v816 = vsel %vm815, %v808, %v812
  %v817 = vand.u32 2147483647, %v580
  %vm818 = vcmp.eq.f32.partialorder %v817, 8.507059e+37
  %v819 = vand.u32 %v580, 2147483648
  %v820 = vor.u32 1.1754944e-38, %v819
  %v821 = vsel %vm818, %v820, %v816
  %v822 = vmul.f32 1.0, %v821
  %v823 = vrcp.pop %v581
  %v824 = vmul.f32 %v581, %v823
  %v825 = vsub.f32 1.0, %v824
  %v826 = vmul.f32 %v823, %v825
  %v827 = vadd.f32 %v823, %v826
  %vm828 = vweird.f32 %v581
  %vm829 = vweird.f32 %v823
  %vm830 = vmor %vm828, %vm829
  %v831 = vsel %vm830, %v823, %v827
  %v832 = vand.u32 2147483647, %v581
  %vm833 = vcmp.eq.f32.partialorder %v832, 8.507059e+37
  %v834 = vand.u32 %v581, 2147483648
  %v835 = vor.u32 1.1754944e-38, %v834
  %v836 = vsel %vm833, %v835, %v831
  %v837 = vmul.f32 1.0, %v836
  %v838 = vrcp.pop %v582
  %v839 = vmul.f32 %v582, %v838
  %v840 = vsub.f32 1.0, %v839
  %v841 = vmul.f32 %v838, %v840
  %v842 = vadd.f32 %v838, %v841
  %vm843 = vweird.f32 %v582
  %vm844 = vweird.f32 %v838
  %vm845 = vmor %vm843, %vm844
  %v846 = vsel %vm845, %v838, %v842
  %v847 = vand.u32 2147483647, %v582
  %vm848 = vcmp.eq.f32.partialorder %v847, 8.507059e+37
  %v849 = vand.u32 %v582, 2147483648
  %v850 = vor.u32 1.1754944e-38, %v849
  %v851 = vsel %vm848, %v850, %v846
  %v852 = vmul.f32 1.0, %v851
  %v853 = vrcp.pop %v583
  %v854 = vmul.f32 %v583, %v853
  %v855 = vsub.f32 1.0, %v854
  %v856 = vmul.f32 %v853, %v855
  %v857 = vadd.f32 %v853, %v856
  %vm858 = vweird.f32 %v583
  %vm859 = vweird.f32 %v853
  %vm860 = vmor %vm858, %vm859
  %v861 = vsel %vm860, %v853, %v857
  %v862 = vand.u32 2147483647, %v583
  %vm863 = vcmp.eq.f32.partialorder %v862, 8.507059e+37
  %v864 = vand.u32 %v583, 2147483648
  %v865 = vor.u32 1.1754944e-38, %v864
  %v866 = vsel %vm863, %v865, %v861
  %v867 = vmul.f32 1.0, %v866
  %v868 = vrcp.pop %v584
  %v869 = vmul.f32 %v584, %v868
  %v870 = vsub.f32 1.0, %v869
  %v871 = vmul.f32 %v868, %v870
  %v872 = vadd.f32 %v868, %v871
  %vm873 = vweird.f32 %v584
  %vm874 = vweird.f32 %v868
  %vm875 = vmor %vm873, %vm874
  %v876 = vsel %vm875, %v868, %v872
  %v877 = vand.u32 2147483647, %v584
  %vm878 = vcmp.eq.f32.partialorder %v877, 8.507059e+37
  %v879 = vand.u32 %v584, 2147483648
  %v880 = vor.u32 1.1754944e-38, %v879
  %v881 = vsel %vm878, %v880, %v876
  %v882 = vmul.f32 1.0, %v881
  %v883 = vrcp.pop %v585
  %v884 = vmul.f32 %v585, %v883
  %v885 = vsub.f32 1.0, %v884
  %v886 = vmul.f32 %v883, %v885
  %v887 = vadd.f32 %v883, %v886
  %vm888 = vweird.f32 %v585
  %vm889 = vweird.f32 %v883
  %vm890 = vmor %vm888, %vm889
  %v891 = vsel %vm890, %v883, %v887
  %v892 = vand.u32 2147483647, %v585
  %vm893 = vcmp.eq.f32.partialorder %v892, 8.507059e+37
  %v894 = vand.u32 %v585, 2147483648
  %v895 = vor.u32 1.1754944e-38, %v894
  %v896 = vsel %vm893, %v895, %v891
  %v897 = vmul.f32 1.0, %v896
  %v898 = vrcp.pop %v586
  %v899 = vmul.f32 %v586, %v898
  %v900 = vsub.f32 1.0, %v899
  %v901 = vmul.f32 %v898, %v900
  %v902 = vadd.f32 %v898, %v901
  %vm903 = vweird.f32 %v586
  %vm904 = vweird.f32 %v898
  %vm905 = vmor %vm903, %vm904
  %v906 = vsel %vm905, %v898, %v902
  %v907 = vand.u32 2147483647, %v586
  %vm908 = vcmp.eq.f32.partialorder %v907, 8.507059e+37
  %v909 = vand.u32 %v586, 2147483648
  %v910 = vor.u32 1.1754944e-38, %v909
  %v911 = vsel %vm908, %v910, %v906
  %v912 = vmul.f32 1.0, %v911
  %v913 = vrcp.pop %v587
  %v914 = vmul.f32 %v587, %v913
  %v915 = vsub.f32 1.0, %v914
  %v916 = vmul.f32 %v913, %v915
  %v917 = vadd.f32 %v913, %v916
  %vm918 = vweird.f32 %v587
  %vm919 = vweird.f32 %v913
  %vm920 = vmor %vm918, %vm919
  %v921 = vsel %vm920, %v913, %v917
  %v922 = vand.u32 2147483647, %v587
  %vm923 = vcmp.eq.f32.partialorder %v922, 8.507059e+37
  %v924 = vand.u32 %v587, 2147483648
  %v925 = vor.u32 1.1754944e-38, %v924
  %v926 = vsel %vm923, %v925, %v921
  %v927 = vmul.f32 1.0, %v926
  %v928 = vrcp.pop %v588
  %v929 = vmul.f32 %v588, %v928
  %v930 = vsub.f32 1.0, %v929
  %v931 = vmul.f32 %v928, %v930
  %v932 = vadd.f32 %v928, %v931
  %vm933 = vweird.f32 %v588
  %vm934 = vweird.f32 %v928
  %vm935 = vmor %vm933, %vm934
  %v936 = vsel %vm935, %v928, %v932
  %v937 = vand.u32 2147483647, %v588
  %vm938 = vcmp.eq.f32.partialorder %v937, 8.507059e+37
  %v939 = vand.u32 %v588, 2147483648
  %v940 = vor.u32 1.1754944e-38, %v939
  %v941 = vsel %vm938, %v940, %v936
  %v942 = vmul.f32 1.0, %v941
  %v943 = vrcp.pop %v589
  %v944 = vmul.f32 %v589, %v943
  %v945 = vsub.f32 1.0, %v944
  %v946 = vmul.f32 %v943, %v945
  %v947 = vadd.f32 %v943, %v946
  %vm948 = vweird.f32 %v589
  %vm949 = vweird.f32 %v943
  %vm950 = vmor %vm948, %vm949
  %v951 = vsel %vm950, %v943, %v947
  %v952 = vand.u32 2147483647, %v589
  %vm953 = vcmp.eq.f32.partialorder %v952, 8.507059e+37
  %v954 = vand.u32 %v589, 2147483648
  %v955 = vor.u32 1.1754944e-38, %v954
  %v956 = vsel %vm953, %v955, %v951
  %v957 = vmul.f32 1.0, %v956
  %v958 = vrcp.pop %v590
  %v959 = vmul.f32 %v590, %v958
  %v960 = vsub.f32 1.0, %v959
  %v961 = vmul.f32 %v958, %v960
  %v962 = vadd.f32 %v958, %v961
  %vm963 = vweird.f32 %v590
  %vm964 = vweird.f32 %v958
  %vm965 = vmor %vm963, %vm964
  %v966 = vsel %vm965, %v958, %v962
  %v967 = vand.u32 2147483647, %v590
  %vm968 = vcmp.eq.f32.partialorder %v967, 8.507059e+37
  %v969 = vand.u32 %v590, 2147483648
  %v970 = vor.u32 1.1754944e-38, %v969
  %v971 = vsel %vm968, %v970, %v966
  %v972 = vmul.f32 1.0, %v971
  %v973 = vrcp.pop %v591
  %v974 = vmul.f32 %v591, %v973
  %v975 = vsub.f32 1.0, %v974
  %v976 = vmul.f32 %v973, %v975
  %v977 = vadd.f32 %v973, %v976
  %vm978 = vweird.f32 %v591
  %vm979 = vweird.f32 %v973
  %vm980 = vmor %vm978, %vm979
  %v981 = vsel %vm980, %v973, %v977
  %v982 = vand.u32 2147483647, %v591
  %vm983 = vcmp.eq.f32.partialorder %v982, 8.507059e+37
  %v984 = vand.u32 %v591, 2147483648
  %v985 = vor.u32 1.1754944e-38, %v984
  %v986 = vsel %vm983, %v985, %v981
  %v987 = vmul.f32 1.0, %v986
  %v988 = vrcp.pop %v592
  %v989 = vmul.f32 %v592, %v988
  %v990 = vsub.f32 1.0, %v989
  %v991 = vmul.f32 %v988, %v990
  %v992 = vadd.f32 %v988, %v991
  %vm993 = vweird.f32 %v592
  %vm994 = vweird.f32 %v988
  %vm995 = vmor %vm993, %vm994
  %v996 = vsel %vm995, %v988, %v992
  %v997 = vand.u32 2147483647, %v592
  %vm998 = vcmp.eq.f32.partialorder %v997, 8.507059e+37
  %v999 = vand.u32 %v592, 2147483648
  %v1000 = vor.u32 1.1754944e-38, %v999
  %v1001 = vsel %vm998, %v1000, %v996
  %v1002 = vmul.f32 1.0, %v1001
  %v1003 = vrcp.pop %v593
  %v1004 = vmul.f32 %v593, %v1003
  %v1005 = vsub.f32 1.0, %v1004
  %v1006 = vmul.f32 %v1003, %v1005
  %v1007 = vadd.f32 %v1003, %v1006
  %vm1008 = vweird.f32 %v593
  %vm1009 = vweird.f32 %v1003
  %vm1010 = vmor %vm1008, %vm1009
  %v1011 = vsel %vm1010, %v1003, %v1007
  %v1012 = vand.u32 2147483647, %v593
  %vm1013 = vcmp.eq.f32.partialorder %v1012, 8.507059e+37
  %v1014 = vand.u32 %v593, 2147483648
  %v1015 = vor.u32 1.1754944e-38, %v1014
  %v1016 = vsel %vm1013, %v1015, %v1011
  %v1017 = vmul.f32 1.0, %v1016
  %v1018 = vrcp.pop %v594
  %v1019 = vmul.f32 %v594, %v1018
  %v1020 = vsub.f32 1.0, %v1019
  %v1021 = vmul.f32 %v1018, %v1020
  %v1022 = vadd.f32 %v1018, %v1021
  %vm1023 = vweird.f32 %v594
  %vm1024 = vweird.f32 %v1018
  %vm1025 = vmor %vm1023, %vm1024
  %v1026 = vsel %vm1025, %v1018, %v1022
  %v1027 = vand.u32 2147483647, %v594
  %vm1028 = vcmp.eq.f32.partialorder %v1027, 8.507059e+37
  %v1029 = vand.u32 %v594, 2147483648
  %v1030 = vor.u32 1.1754944e-38, %v1029
  %v1031 = vsel %vm1028, %v1030, %v1026
  %v1032 = vmul.f32 1.0, %v1031
  %v1033 = vrcp.pop %v595
  %v1034 = vmul.f32 %v595, %v1033
  %v1035 = vsub.f32 1.0, %v1034
  %v1036 = vmul.f32 %v1033, %v1035
  %v1037 = vadd.f32 %v1033, %v1036
  %vm1038 = vweird.f32 %v595
  %vm1039 = vweird.f32 %v1033
  %vm1040 = vmor %vm1038, %vm1039
  %v1041 = vsel %vm1040, %v1033, %v1037
  %v1042 = vand.u32 2147483647, %v595
  %vm1043 = vcmp.eq.f32.partialorder %v1042, 8.507059e+37
  %v1044 = vand.u32 %v595, 2147483648
  %v1045 = vor.u32 1.1754944e-38, %v1044
  %v1046 = vsel %vm1043, %v1045, %v1041
  %v1047 = vmul.f32 1.0, %v1046
  %v1048 = vrcp.pop %v596
  %v1049 = vmul.f32 %v596, %v1048
  %v1050 = vsub.f32 1.0, %v1049
  %v1051 = vmul.f32 %v1048, %v1050
  %v1052 = vadd.f32 %v1048, %v1051
  %vm1053 = vweird.f32 %v596
  %vm1054 = vweird.f32 %v1048
  %vm1055 = vmor %vm1053, %vm1054
  %v1056 = vsel %vm1055, %v1048, %v1052
  %v1057 = vand.u32 2147483647, %v596
  %vm1058 = vcmp.eq.f32.partialorder %v1057, 8.507059e+37
  %v1059 = vand.u32 %v596, 2147483648
  %v1060 = vor.u32 1.1754944e-38, %v1059
  %v1061 = vsel %vm1058, %v1060, %v1056
  %v1062 = vmul.f32 1.0, %v1061
  %v1063 = vrcp.pop %v597
  %v1064 = vmul.f32 %v597, %v1063
  %v1065 = vsub.f32 1.0, %v1064
  %v1066 = vmul.f32 %v1063, %v1065
  %v1067 = vadd.f32 %v1063, %v1066
  %vm1068 = vweird.f32 %v597
  %vm1069 = vweird.f32 %v1063
  %vm1070 = vmor %vm1068, %vm1069
  %v1071 = vsel %vm1070, %v1063, %v1067
  %v1072 = vand.u32 2147483647, %v597
  %vm1073 = vcmp.eq.f32.partialorder %v1072, 8.507059e+37
  %v1074 = vand.u32 %v597, 2147483648
  %v1075 = vor.u32 1.1754944e-38, %v1074
  %v1076 = vsel %vm1073, %v1075, %v1071
  %v1077 = vmul.f32 1.0, %v1076
  %1110 = vrot.lane.b32.xlu0 %v612, 96
  %v1111 = vpop.permute.xlu0 %1110
  %1112 = vrot.lane.b32.xlu0 %v627, 96
  %v1113 = vpop.permute.xlu0 %1112
  %1114 = vrot.lane.b32.xlu0 %v642, 96
  %v1115 = vpop.permute.xlu0 %1114
  %1116 = vrot.lane.b32.xlu0 %v657, 96
  %v1117 = vpop.permute.xlu0 %1116
  %1118 = vrot.lane.b32.xlu0 %v672, 96
  %v1119 = vpop.permute.xlu0 %1118
  %1120 = vrot.lane.b32.xlu0 %v687, 96
  %v1121 = vpop.permute.xlu0 %1120
  %1122 = vrot.lane.b32.xlu0 %v702, 96
  %v1123 = vpop.permute.xlu0 %1122
  %1124 = vrot.lane.b32.xlu0 %v717, 96
  %v1125 = vpop.permute.xlu0 %1124
  %1126 = vrot.lane.b32.xlu0 %v732, 96
  %v1127 = vpop.permute.xlu0 %1126
  %1128 = vrot.lane.b32.xlu0 %v747, 96
  %v1129 = vpop.permute.xlu0 %1128
  %1130 = vrot.lane.b32.xlu0 %v762, 96
  %v1131 = vpop.permute.xlu0 %1130
  %1132 = vrot.lane.b32.xlu0 %v777, 96
  %v1133 = vpop.permute.xlu0 %1132
  %1134 = vrot.lane.b32.xlu0 %v792, 96
  %v1135 = vpop.permute.xlu0 %1134
  %1136 = vrot.lane.b32.xlu0 %v807, 96
  %v1137 = vpop.permute.xlu0 %1136
  %1138 = vrot.lane.b32.xlu0 %v822, 96
  %v1139 = vpop.permute.xlu0 %1138
  %1140 = vrot.lane.b32.xlu0 %v837, 96
  %v1141 = vpop.permute.xlu0 %1140
  %1142 = vrot.lane.b32.xlu0 %v852, 96
  %v1143 = vpop.permute.xlu0 %1142
  %1144 = vrot.lane.b32.xlu0 %v867, 96
  %v1145 = vpop.permute.xlu0 %1144
  %1146 = vrot.lane.b32.xlu0 %v882, 96
  %v1147 = vpop.permute.xlu0 %1146
  %1148 = vrot.lane.b32.xlu0 %v897, 96
  %v1149 = vpop.permute.xlu0 %1148
  %1150 = vrot.lane.b32.xlu0 %v912, 96
  %v1151 = vpop.permute.xlu0 %1150
  %1152 = vrot.lane.b32.xlu0 %v927, 96
  %v1153 = vpop.permute.xlu0 %1152
  %1154 = vrot.lane.b32.xlu0 %v942, 96
  %v1155 = vpop.permute.xlu0 %1154
  %1156 = vrot.lane.b32.xlu0 %v957, 96
  %v1157 = vpop.permute.xlu0 %1156
  %1158 = vrot.lane.b32.xlu0 %v972, 96
  %v1159 = vpop.permute.xlu0 %1158
  %1160 = vrot.lane.b32.xlu0 %v987, 96
  %v1161 = vpop.permute.xlu0 %1160
  %1162 = vrot.lane.b32.xlu0 %v1002, 96
  %v1163 = vpop.permute.xlu0 %1162
  %1164 = vrot.lane.b32.xlu0 %v1017, 96
  %v1165 = vpop.permute.xlu0 %1164
  %1166 = vrot.lane.b32.xlu0 %v1032, 96
  %v1167 = vpop.permute.xlu0 %1166
  %1168 = vrot.lane.b32.xlu0 %v1047, 96
  %v1169 = vpop.permute.xlu0 %1168
  %1170 = vrot.lane.b32.xlu0 %v1062, 96
  %v1171 = vpop.permute.xlu0 %1170
  %1172 = vrot.lane.b32.xlu0 %v1077, 96
  %v1173 = vpop.permute.xlu0 %1172
  %v1206 = vmul.f32 %v391, %v1111
  %v1207 = vmul.f32 %v393, %v1113
  %v1208 = vmul.f32 %v396, %v1115
  %v1209 = vmul.f32 %v398, %v1117
  %v1210 = vmul.f32 %v401, %v1119
  %v1211 = vmul.f32 %v403, %v1121
  %v1212 = vmul.f32 %v406, %v1123
  %v1213 = vmul.f32 %v408, %v1125
  %v1214 = vmul.f32 %v411, %v1127
  %v1215 = vmul.f32 %v413, %v1129
  %v1216 = vmul.f32 %v416, %v1131
  %v1217 = vmul.f32 %v418, %v1133
  %v1218 = vmul.f32 %v421, %v1135
  %v1219 = vmul.f32 %v423, %v1137
  %v1220 = vmul.f32 %v426, %v1139
  %v1221 = vmul.f32 %v428, %v1141
  %v1222 = vmul.f32 %v431, %v1143
  %v1223 = vmul.f32 %v433, %v1145
  %v1224 = vmul.f32 %v436, %v1147
  %v1225 = vmul.f32 %v438, %v1149
  %v1226 = vmul.f32 %v441, %v1151
  %v1227 = vmul.f32 %v443, %v1153
  %v1228 = vmul.f32 %v446, %v1155
  %v1229 = vmul.f32 %v448, %v1157
  %v1230 = vmul.f32 %v451, %v1159
  %v1231 = vmul.f32 %v453, %v1161
  %v1232 = vmul.f32 %v456, %v1163
  %v1233 = vmul.f32 %v458, %v1165
  %v1234 = vmul.f32 %v461, %v1167
  %v1235 = vmul.f32 %v463, %v1169
  %v1236 = vmul.f32 %v466, %v1171
  %v1237 = vmul.f32 %v468, %v1173
  %v1238 = vpack.c.bf16 %v1206, %v1206
  %v1239 = vpack.c.bf16 %v1207, %v1207
  %v1240 = vpack.c.bf16 %v1208, %v1208
  %v1241 = vpack.c.bf16 %v1209, %v1209
  %v1242 = vpack.c.bf16 %v1210, %v1210
  %v1243 = vpack.c.bf16 %v1211, %v1211
  %v1244 = vpack.c.bf16 %v1212, %v1212
  %v1245 = vpack.c.bf16 %v1213, %v1213
  %v1246 = vpack.c.bf16 %v1214, %v1214
  %v1247 = vpack.c.bf16 %v1215, %v1215
  %v1248 = vpack.c.bf16 %v1216, %v1216
  %v1249 = vpack.c.bf16 %v1217, %v1217
  %v1250 = vpack.c.bf16 %v1218, %v1218
  %v1251 = vpack.c.bf16 %v1219, %v1219
  %v1252 = vpack.c.bf16 %v1220, %v1220
  %v1253 = vpack.c.bf16 %v1221, %v1221
  %v1254 = vpack.c.bf16 %v1222, %v1222
  %v1255 = vpack.c.bf16 %v1223, %v1223
  %v1256 = vpack.c.bf16 %v1224, %v1224
  %v1257 = vpack.c.bf16 %v1225, %v1225
  %v1258 = vpack.c.bf16 %v1226, %v1226
  %v1259 = vpack.c.bf16 %v1227, %v1227
  %v1260 = vpack.c.bf16 %v1228, %v1228
  %v1261 = vpack.c.bf16 %v1229, %v1229
  %v1262 = vpack.c.bf16 %v1230, %v1230
  %v1263 = vpack.c.bf16 %v1231, %v1231
  %v1264 = vpack.c.bf16 %v1232, %v1232
  %v1265 = vpack.c.bf16 %v1233, %v1233
  %v1266 = vpack.c.bf16 %v1234, %v1234
  %v1267 = vpack.c.bf16 %v1235, %v1235
  %v1268 = vpack.c.bf16 %v1236, %v1236
  %v1269 = vpack.c.bf16 %v1237, %v1237
  %v1276 = vunpack.c.l.b16 %v104
  %v1277 = vunpack.c.l.b16 %v105
  %v1278 = vunpack.c.l.b16 %v106
  %v1279 = vunpack.c.l.b16 %v107
  %v1280 = vunpack.c.l.b16 %v108
  %v1281 = vunpack.c.l.b16 %v109
  %v1282 = vpack.c.b16 %v1277, %v1276
  %v1283 = vpack.c.b16 %v1279, %v1278
  %v1284 = vpack.c.b16 %v1281, %v1280
  %v1287 = vunpack.c.l.b16 %v1238
  %v1288 = vunpack.c.l.b16 %v1239
  %v1289 = vpack.c.b16 %v1288, %v1287
  %vm1291 = vcmask 130048
  %v1293 = vsel %vm1291, %v1282, 0
  %v1296 = vsel %vm1291, %v1283, 0
  %v1299 = vsel %vm1291, %v1284, 0
  %1301 = vmatpush.bf16.msra.mxu0 0
  %1302 = vmatpush.bf16.msra.mxu0 0
  %1303 = vmatpush.bf16.msra.mxu0 0
  %1304 = vmatpush.bf16.msra.mxu0 0
  %1305 = vmatpush.bf16.msra.mxu0 0
  %1306 = vmatpush.bf16.msra.mxu0 0
  %1307 = vmatpush.bf16.msra.mxu0 0
  %1308 = vmatpush.bf16.msra.mxu0 %v1289
  %1309 = vmatmul.bf16.gmra.mxu0 %v1293
  %v1310 = vpop.f32.mrf.mxu0
  %v1311 = vadd.f32 0.0, %v1310
  %v1312 = vpop.f32.mrf.mxu0
  %v1313 = vadd.f32 0.0, %v1312
  %1314 = vmatmul.bf16.gmra.mxu0 %v1296
  %v1315 = vpop.f32.mrf.mxu0
  %v1316 = vadd.f32 0.0, %v1315
  %v1317 = vpop.f32.mrf.mxu0
  %v1318 = vadd.f32 0.0, %v1317
  %1319 = vmatmul.bf16.gmra.mxu0 %v1299
  %v1320 = vpop.f32.mrf.mxu0
  %v1321 = vadd.f32 0.0, %v1320
  %v1322 = vpop.f32.mrf.mxu0
  %v1323 = vadd.f32 0.0, %v1322
  %1324 = vdwg.mxu0
  %v1327 = vunpack.c.l.b16 %v1240
  %v1328 = vunpack.c.l.b16 %v1241
  %v1329 = vpack.c.b16 %v1328, %v1327
  %1331 = vmatpush.bf16.msra.mxu0 0
  %1332 = vmatpush.bf16.msra.mxu0 0
  %1333 = vmatpush.bf16.msra.mxu0 0
  %1334 = vmatpush.bf16.msra.mxu0 0
  %1335 = vmatpush.bf16.msra.mxu0 0
  %1336 = vmatpush.bf16.msra.mxu0 0
  %1337 = vmatpush.bf16.msra.mxu0 0
  %1338 = vmatpush.bf16.msra.mxu0 %v1329
  %1339 = vmatmul.bf16.gmra.mxu0 %v1293
  %v1340 = vpop.f32.mrf.mxu0
  %v1341 = vadd.f32 0.0, %v1340
  %v1342 = vpop.f32.mrf.mxu0
  %v1343 = vadd.f32 0.0, %v1342
  %1344 = vmatmul.bf16.gmra.mxu0 %v1296
  %v1345 = vpop.f32.mrf.mxu0
  %v1346 = vadd.f32 0.0, %v1345
  %v1347 = vpop.f32.mrf.mxu0
  %v1348 = vadd.f32 0.0, %v1347
  %1349 = vmatmul.bf16.gmra.mxu0 %v1299
  %v1350 = vpop.f32.mrf.mxu0
  %v1351 = vadd.f32 0.0, %v1350
  %v1352 = vpop.f32.mrf.mxu0
  %v1353 = vadd.f32 0.0, %v1352
  %1354 = vdwg.mxu0
  %v1357 = vunpack.c.l.b16 %v1242
  %v1358 = vunpack.c.l.b16 %v1243
  %v1359 = vpack.c.b16 %v1358, %v1357
  %1361 = vmatpush.bf16.msra.mxu0 0
  %1362 = vmatpush.bf16.msra.mxu0 0
  %1363 = vmatpush.bf16.msra.mxu0 0
  %1364 = vmatpush.bf16.msra.mxu0 0
  %1365 = vmatpush.bf16.msra.mxu0 0
  %1366 = vmatpush.bf16.msra.mxu0 0
  %1367 = vmatpush.bf16.msra.mxu0 0
  %1368 = vmatpush.bf16.msra.mxu0 %v1359
  %1369 = vmatmul.bf16.gmra.mxu0 %v1293
  %v1370 = vpop.f32.mrf.mxu0
  %v1371 = vadd.f32 0.0, %v1370
  %v1372 = vpop.f32.mrf.mxu0
  %v1373 = vadd.f32 0.0, %v1372
  %1374 = vmatmul.bf16.gmra.mxu0 %v1296
  %v1375 = vpop.f32.mrf.mxu0
  %v1376 = vadd.f32 0.0, %v1375
  %v1377 = vpop.f32.mrf.mxu0
  %v1378 = vadd.f32 0.0, %v1377
  %1379 = vmatmul.bf16.gmra.mxu0 %v1299
  %v1380 = vpop.f32.mrf.mxu0
  %v1381 = vadd.f32 0.0, %v1380
  %v1382 = vpop.f32.mrf.mxu0
  %v1383 = vadd.f32 0.0, %v1382
  %1384 = vdwg.mxu0
  %v1387 = vunpack.c.l.b16 %v1244
  %v1388 = vunpack.c.l.b16 %v1245
  %v1389 = vpack.c.b16 %v1388, %v1387
  %1391 = vmatpush.bf16.msra.mxu0 0
  %1392 = vmatpush.bf16.msra.mxu0 0
  %1393 = vmatpush.bf16.msra.mxu0 0
  %1394 = vmatpush.bf16.msra.mxu0 0
  %1395 = vmatpush.bf16.msra.mxu0 0
  %1396 = vmatpush.bf16.msra.mxu0 0
  %1397 = vmatpush.bf16.msra.mxu0 0
  %1398 = vmatpush.bf16.msra.mxu0 %v1389
  %1399 = vmatmul.bf16.gmra.mxu0 %v1293
  %v1400 = vpop.f32.mrf.mxu0
  %v1401 = vadd.f32 0.0, %v1400
  %v1402 = vpop.f32.mrf.mxu0
  %v1403 = vadd.f32 0.0, %v1402
  %1404 = vmatmul.bf16.gmra.mxu0 %v1296
  %v1405 = vpop.f32.mrf.mxu0
  %v1406 = vadd.f32 0.0, %v1405
  %v1407 = vpop.f32.mrf.mxu0
  %v1408 = vadd.f32 0.0, %v1407
  %1409 = vmatmul.bf16.gmra.mxu0 %v1299
  %v1410 = vpop.f32.mrf.mxu0
  %v1411 = vadd.f32 0.0, %v1410
  %v1412 = vpop.f32.mrf.mxu0
  %v1413 = vadd.f32 0.0, %v1412
  %1414 = vdwg.mxu0
  %v1417 = vunpack.c.l.b16 %v1246
  %v1418 = vunpack.c.l.b16 %v1247
  %v1419 = vpack.c.b16 %v1418, %v1417
  %1421 = vmatpush.bf16.msra.mxu0 0
  %1422 = vmatpush.bf16.msra.mxu0 0
  %1423 = vmatpush.bf16.msra.mxu0 0
  %1424 = vmatpush.bf16.msra.mxu0 0
  %1425 = vmatpush.bf16.msra.mxu0 0
  %1426 = vmatpush.bf16.msra.mxu0 0
  %1427 = vmatpush.bf16.msra.mxu0 0
  %1428 = vmatpush.bf16.msra.mxu0 %v1419
  %1429 = vmatmul.bf16.gmra.mxu0 %v1293
  %v1430 = vpop.f32.mrf.mxu0
  %v1431 = vadd.f32 0.0, %v1430
  %v1432 = vpop.f32.mrf.mxu0
  %v1433 = vadd.f32 0.0, %v1432
  %1434 = vmatmul.bf16.gmra.mxu0 %v1296
  %v1435 = vpop.f32.mrf.mxu0
  %v1436 = vadd.f32 0.0, %v1435
  %v1437 = vpop.f32.mrf.mxu0
  %v1438 = vadd.f32 0.0, %v1437
  %1439 = vmatmul.bf16.gmra.mxu0 %v1299
  %v1440 = vpop.f32.mrf.mxu0
  %v1441 = vadd.f32 0.0, %v1440
  %v1442 = vpop.f32.mrf.mxu0
  %v1443 = vadd.f32 0.0, %v1442
  %1444 = vdwg.mxu0
  %v1447 = vunpack.c.l.b16 %v1248
  %v1448 = vunpack.c.l.b16 %v1249
  %v1449 = vpack.c.b16 %v1448, %v1447
  %1451 = vmatpush.bf16.msra.mxu0 0
  %1452 = vmatpush.bf16.msra.mxu0 0
  %1453 = vmatpush.bf16.msra.mxu0 0
  %1454 = vmatpush.bf16.msra.mxu0 0
  %1455 = vmatpush.bf16.msra.mxu0 0
  %1456 = vmatpush.bf16.msra.mxu0 0
  %1457 = vmatpush.bf16.msra.mxu0 0
  %1458 = vmatpush.bf16.msra.mxu0 %v1449
  %1459 = vmatmul.bf16.gmra.mxu0 %v1293
  %v1460 = vpop.f32.mrf.mxu0
  %v1461 = vadd.f32 0.0, %v1460
  %v1462 = vpop.f32.mrf.mxu0
  %v1463 = vadd.f32 0.0, %v1462
  %1464 = vmatmul.bf16.gmra.mxu0 %v1296
  %v1465 = vpop.f32.mrf.mxu0
  %v1466 = vadd.f32 0.0, %v1465
  %v1467 = vpop.f32.mrf.mxu0
  %v1468 = vadd.f32 0.0, %v1467
  %1469 = vmatmul.bf16.gmra.mxu0 %v1299
  %v1470 = vpop.f32.mrf.mxu0
  %v1471 = vadd.f32 0.0, %v1470
  %v1472 = vpop.f32.mrf.mxu0
  %v1473 = vadd.f32 0.0, %v1472
  %1474 = vdwg.mxu0
  %v1477 = vunpack.c.l.b16 %v1250
  %v1478 = vunpack.c.l.b16 %v1251
  %v1479 = vpack.c.b16 %v1478, %v1477
  %1481 = vmatpush.bf16.msra.mxu0 0
  %1482 = vmatpush.bf16.msra.mxu0 0
  %1483 = vmatpush.bf16.msra.mxu0 0
  %1484 = vmatpush.bf16.msra.mxu0 0
  %1485 = vmatpush.bf16.msra.mxu0 0
  %1486 = vmatpush.bf16.msra.mxu0 0
  %1487 = vmatpush.bf16.msra.mxu0 0
  %1488 = vmatpush.bf16.msra.mxu0 %v1479
  %1489 = vmatmul.bf16.gmra.mxu0 %v1293
  %v1490 = vpop.f32.mrf.mxu0
  %v1491 = vadd.f32 0.0, %v1490
  %v1492 = vpop.f32.mrf.mxu0
  %v1493 = vadd.f32 0.0, %v1492
  %1494 = vmatmul.bf16.gmra.mxu0 %v1296
  %v1495 = vpop.f32.mrf.mxu0
  %v1496 = vadd.f32 0.0, %v1495
  %v1497 = vpop.f32.mrf.mxu0
  %v1498 = vadd.f32 0.0, %v1497
  %1499 = vmatmul.bf16.gmra.mxu0 %v1299
  %v1500 = vpop.f32.mrf.mxu0
  %v1501 = vadd.f32 0.0, %v1500
  %v1502 = vpop.f32.mrf.mxu0
  %v1503 = vadd.f32 0.0, %v1502
  %1504 = vdwg.mxu0
  %v1507 = vunpack.c.l.b16 %v1252
  %v1508 = vunpack.c.l.b16 %v1253
  %v1509 = vpack.c.b16 %v1508, %v1507
  %1511 = vmatpush.bf16.msra.mxu0 0
  %1512 = vmatpush.bf16.msra.mxu0 0
  %1513 = vmatpush.bf16.msra.mxu0 0
  %1514 = vmatpush.bf16.msra.mxu0 0
  %1515 = vmatpush.bf16.msra.mxu0 0
  %1516 = vmatpush.bf16.msra.mxu0 0
  %1517 = vmatpush.bf16.msra.mxu0 0
  %1518 = vmatpush.bf16.msra.mxu0 %v1509
  %1519 = vmatmul.bf16.gmra.mxu0 %v1293
  %v1520 = vpop.f32.mrf.mxu0
  %v1521 = vadd.f32 0.0, %v1520
  %v1522 = vpop.f32.mrf.mxu0
  %v1523 = vadd.f32 0.0, %v1522
  %1524 = vmatmul.bf16.gmra.mxu0 %v1296
  %v1525 = vpop.f32.mrf.mxu0
  %v1526 = vadd.f32 0.0, %v1525
  %v1527 = vpop.f32.mrf.mxu0
  %v1528 = vadd.f32 0.0, %v1527
  %1529 = vmatmul.bf16.gmra.mxu0 %v1299
  %v1530 = vpop.f32.mrf.mxu0
  %v1531 = vadd.f32 0.0, %v1530
  %v1532 = vpop.f32.mrf.mxu0
  %v1533 = vadd.f32 0.0, %v1532
  %1534 = vdwg.mxu0
  %v1537 = vunpack.c.l.b16 %v1254
  %v1538 = vunpack.c.l.b16 %v1255
  %v1539 = vpack.c.b16 %v1538, %v1537
  %1541 = vmatpush.bf16.msra.mxu0 0
  %1542 = vmatpush.bf16.msra.mxu0 0
  %1543 = vmatpush.bf16.msra.mxu0 0
  %1544 = vmatpush.bf16.msra.mxu0 0
  %1545 = vmatpush.bf16.msra.mxu0 0
  %1546 = vmatpush.bf16.msra.mxu0 0
  %1547 = vmatpush.bf16.msra.mxu0 0
  %1548 = vmatpush.bf16.msra.mxu0 %v1539
  %1549 = vmatmul.bf16.gmra.mxu0 %v1293
  %v1550 = vpop.f32.mrf.mxu0
  %v1551 = vadd.f32 0.0, %v1550
  %v1552 = vpop.f32.mrf.mxu0
  %v1553 = vadd.f32 0.0, %v1552
  %1554 = vmatmul.bf16.gmra.mxu0 %v1296
  %v1555 = vpop.f32.mrf.mxu0
  %v1556 = vadd.f32 0.0, %v1555
  %v1557 = vpop.f32.mrf.mxu0
  %v1558 = vadd.f32 0.0, %v1557
  %1559 = vmatmul.bf16.gmra.mxu0 %v1299
  %v1560 = vpop.f32.mrf.mxu0
  %v1561 = vadd.f32 0.0, %v1560
  %v1562 = vpop.f32.mrf.mxu0
  %v1563 = vadd.f32 0.0, %v1562
  %1564 = vdwg.mxu0
  %v1567 = vunpack.c.l.b16 %v1256
  %v1568 = vunpack.c.l.b16 %v1257
  %v1569 = vpack.c.b16 %v1568, %v1567
  %1571 = vmatpush.bf16.msra.mxu0 0
  %1572 = vmatpush.bf16.msra.mxu0 0
  %1573 = vmatpush.bf16.msra.mxu0 0
  %1574 = vmatpush.bf16.msra.mxu0 0
  %1575 = vmatpush.bf16.msra.mxu0 0
  %1576 = vmatpush.bf16.msra.mxu0 0
  %1577 = vmatpush.bf16.msra.mxu0 0
  %1578 = vmatpush.bf16.msra.mxu0 %v1569
  %1579 = vmatmul.bf16.gmra.mxu0 %v1293
  %v1580 = vpop.f32.mrf.mxu0
  %v1581 = vadd.f32 0.0, %v1580
  %v1582 = vpop.f32.mrf.mxu0
  %v1583 = vadd.f32 0.0, %v1582
  %1584 = vmatmul.bf16.gmra.mxu0 %v1296
  %v1585 = vpop.f32.mrf.mxu0
  %v1586 = vadd.f32 0.0, %v1585
  %v1587 = vpop.f32.mrf.mxu0
  %v1588 = vadd.f32 0.0, %v1587
  %1589 = vmatmul.bf16.gmra.mxu0 %v1299
  %v1590 = vpop.f32.mrf.mxu0
  %v1591 = vadd.f32 0.0, %v1590
  %v1592 = vpop.f32.mrf.mxu0
  %v1593 = vadd.f32 0.0, %v1592
  %1594 = vdwg.mxu0
  %v1597 = vunpack.c.l.b16 %v1258
  %v1598 = vunpack.c.l.b16 %v1259
  %v1599 = vpack.c.b16 %v1598, %v1597
  %1601 = vmatpush.bf16.msra.mxu0 0
  %1602 = vmatpush.bf16.msra.mxu0 0
  %1603 = vmatpush.bf16.msra.mxu0 0
  %1604 = vmatpush.bf16.msra.mxu0 0
  %1605 = vmatpush.bf16.msra.mxu0 0
  %1606 = vmatpush.bf16.msra.mxu0 0
  %1607 = vmatpush.bf16.msra.mxu0 0
  %1608 = vmatpush.bf16.msra.mxu0 %v1599
  %1609 = vmatmul.bf16.gmra.mxu0 %v1293
  %v1610 = vpop.f32.mrf.mxu0
  %v1611 = vadd.f32 0.0, %v1610
  %v1612 = vpop.f32.mrf.mxu0
  %v1613 = vadd.f32 0.0, %v1612
  %1614 = vmatmul.bf16.gmra.mxu0 %v1296
  %v1615 = vpop.f32.mrf.mxu0
  %v1616 = vadd.f32 0.0, %v1615
  %v1617 = vpop.f32.mrf.mxu0
  %v1618 = vadd.f32 0.0, %v1617
  %1619 = vmatmul.bf16.gmra.mxu0 %v1299
  %v1620 = vpop.f32.mrf.mxu0
  %v1621 = vadd.f32 0.0, %v1620
  %v1622 = vpop.f32.mrf.mxu0
  %v1623 = vadd.f32 0.0, %v1622
  %1624 = vdwg.mxu0
  %v1627 = vunpack.c.l.b16 %v1260
  %v1628 = vunpack.c.l.b16 %v1261
  %v1629 = vpack.c.b16 %v1628, %v1627
  %1631 = vmatpush.bf16.msra.mxu0 0
  %1632 = vmatpush.bf16.msra.mxu0 0
  %1633 = vmatpush.bf16.msra.mxu0 0
  %1634 = vmatpush.bf16.msra.mxu0 0
  %1635 = vmatpush.bf16.msra.mxu0 0
  %1636 = vmatpush.bf16.msra.mxu0 0
  %1637 = vmatpush.bf16.msra.mxu0 0
  %1638 = vmatpush.bf16.msra.mxu0 %v1629
  %1639 = vmatmul.bf16.gmra.mxu0 %v1293
  %v1640 = vpop.f32.mrf.mxu0
  %v1641 = vadd.f32 0.0, %v1640
  %v1642 = vpop.f32.mrf.mxu0
  %v1643 = vadd.f32 0.0, %v1642
  %1644 = vmatmul.bf16.gmra.mxu0 %v1296
  %v1645 = vpop.f32.mrf.mxu0
  %v1646 = vadd.f32 0.0, %v1645
  %v1647 = vpop.f32.mrf.mxu0
  %v1648 = vadd.f32 0.0, %v1647
  %1649 = vmatmul.bf16.gmra.mxu0 %v1299
  %v1650 = vpop.f32.mrf.mxu0
  %v1651 = vadd.f32 0.0, %v1650
  %v1652 = vpop.f32.mrf.mxu0
  %v1653 = vadd.f32 0.0, %v1652
  %1654 = vdwg.mxu0
  %v1657 = vunpack.c.l.b16 %v1262
  %v1658 = vunpack.c.l.b16 %v1263
  %v1659 = vpack.c.b16 %v1658, %v1657
  %1661 = vmatpush.bf16.msra.mxu0 0
  %1662 = vmatpush.bf16.msra.mxu0 0
  %1663 = vmatpush.bf16.msra.mxu0 0
  %1664 = vmatpush.bf16.msra.mxu0 0
  %1665 = vmatpush.bf16.msra.mxu0 0
  %1666 = vmatpush.bf16.msra.mxu0 0
  %1667 = vmatpush.bf16.msra.mxu0 0
  %1668 = vmatpush.bf16.msra.mxu0 %v1659
  %1669 = vmatmul.bf16.gmra.mxu0 %v1293
  %v1670 = vpop.f32.mrf.mxu0
  %v1671 = vadd.f32 0.0, %v1670
  %v1672 = vpop.f32.mrf.mxu0
  %v1673 = vadd.f32 0.0, %v1672
  %1674 = vmatmul.bf16.gmra.mxu0 %v1296
  %v1675 = vpop.f32.mrf.mxu0
  %v1676 = vadd.f32 0.0, %v1675
  %v1677 = vpop.f32.mrf.mxu0
  %v1678 = vadd.f32 0.0, %v1677
  %1679 = vmatmul.bf16.gmra.mxu0 %v1299
  %v1680 = vpop.f32.mrf.mxu0
  %v1681 = vadd.f32 0.0, %v1680
  %v1682 = vpop.f32.mrf.mxu0
  %v1683 = vadd.f32 0.0, %v1682
  %1684 = vdwg.mxu0
  %v1687 = vunpack.c.l.b16 %v1264
  %v1688 = vunpack.c.l.b16 %v1265
  %v1689 = vpack.c.b16 %v1688, %v1687
  %1691 = vmatpush.bf16.msra.mxu0 0
  %1692 = vmatpush.bf16.msra.mxu0 0
  %1693 = vmatpush.bf16.msra.mxu0 0
  %1694 = vmatpush.bf16.msra.mxu0 0
  %1695 = vmatpush.bf16.msra.mxu0 0
  %1696 = vmatpush.bf16.msra.mxu0 0
  %1697 = vmatpush.bf16.msra.mxu0 0
  %1698 = vmatpush.bf16.msra.mxu0 %v1689
  %1699 = vmatmul.bf16.gmra.mxu0 %v1293
  %v1700 = vpop.f32.mrf.mxu0
  %v1701 = vadd.f32 0.0, %v1700
  %v1702 = vpop.f32.mrf.mxu0
  %v1703 = vadd.f32 0.0, %v1702
  %1704 = vmatmul.bf16.gmra.mxu0 %v1296
  %v1705 = vpop.f32.mrf.mxu0
  %v1706 = vadd.f32 0.0, %v1705
  %v1707 = vpop.f32.mrf.mxu0
  %v1708 = vadd.f32 0.0, %v1707
  %1709 = vmatmul.bf16.gmra.mxu0 %v1299
  %v1710 = vpop.f32.mrf.mxu0
  %v1711 = vadd.f32 0.0, %v1710
  %v1712 = vpop.f32.mrf.mxu0
  %v1713 = vadd.f32 0.0, %v1712
  %1714 = vdwg.mxu0
  %v1717 = vunpack.c.l.b16 %v1266
  %v1718 = vunpack.c.l.b16 %v1267
  %v1719 = vpack.c.b16 %v1718, %v1717
  %1721 = vmatpush.bf16.msra.mxu0 0
  %1722 = vmatpush.bf16.msra.mxu0 0
  %1723 = vmatpush.bf16.msra.mxu0 0
  %1724 = vmatpush.bf16.msra.mxu0 0
  %1725 = vmatpush.bf16.msra.mxu0 0
  %1726 = vmatpush.bf16.msra.mxu0 0
  %1727 = vmatpush.bf16.msra.mxu0 0
  %1728 = vmatpush.bf16.msra.mxu0 %v1719
  %1729 = vmatmul.bf16.gmra.mxu0 %v1293
  %v1730 = vpop.f32.mrf.mxu0
  %v1731 = vadd.f32 0.0, %v1730
  %v1732 = vpop.f32.mrf.mxu0
  %v1733 = vadd.f32 0.0, %v1732
  %1734 = vmatmul.bf16.gmra.mxu0 %v1296
  %v1735 = vpop.f32.mrf.mxu0
  %v1736 = vadd.f32 0.0, %v1735
  %v1737 = vpop.f32.mrf.mxu0
  %v1738 = vadd.f32 0.0, %v1737
  %1739 = vmatmul.bf16.gmra.mxu0 %v1299
  %v1740 = vpop.f32.mrf.mxu0
  %v1741 = vadd.f32 0.0, %v1740
  %v1742 = vpop.f32.mrf.mxu0
  %v1743 = vadd.f32 0.0, %v1742
  %1744 = vdwg.mxu0
  %v1747 = vunpack.c.l.b16 %v1268
  %v1748 = vunpack.c.l.b16 %v1269
  %v1749 = vpack.c.b16 %v1748, %v1747
  %1751 = vmatpush.bf16.msra.mxu0 0
  %1752 = vmatpush.bf16.msra.mxu0 0
  %1753 = vmatpush.bf16.msra.mxu0 0
  %1754 = vmatpush.bf16.msra.mxu0 0
  %1755 = vmatpush.bf16.msra.mxu0 0
  %1756 = vmatpush.bf16.msra.mxu0 0
  %1757 = vmatpush.bf16.msra.mxu0 0
  %1758 = vmatpush.bf16.msra.mxu0 %v1749
  %1759 = vmatmul.bf16.gmra.mxu0 %v1293
  %v1760 = vpop.f32.mrf.mxu0
  %v1761 = vadd.f32 0.0, %v1760
  %v1762 = vpop.f32.mrf.mxu0
  %v1763 = vadd.f32 0.0, %v1762
  %1764 = vmatmul.bf16.gmra.mxu0 %v1296
  %v1765 = vpop.f32.mrf.mxu0
  %v1766 = vadd.f32 0.0, %v1765
  %v1767 = vpop.f32.mrf.mxu0
  %v1768 = vadd.f32 0.0, %v1767
  %1769 = vmatmul.bf16.gmra.mxu0 %v1299
  %v1770 = vpop.f32.mrf.mxu0
  %v1771 = vadd.f32 0.0, %v1770
  %v1772 = vpop.f32.mrf.mxu0
  %v1773 = vadd.f32 0.0, %v1772
  %1774 = vdwg.mxu0
  %1807 = vrot.lane.b32.xlu0 %v1316, 32
  %v1808 = vpop.permute.xlu0 %1807
  %1809 = vrot.lane.b32.xlu0 %v1318, 32
  %v1810 = vpop.permute.xlu0 %1809
  %1811 = vrot.lane.b32.xlu0 %v1346, 32
  %v1812 = vpop.permute.xlu0 %1811
  %1813 = vrot.lane.b32.xlu0 %v1348, 32
  %v1814 = vpop.permute.xlu0 %1813
  %1815 = vrot.lane.b32.xlu0 %v1376, 32
  %v1816 = vpop.permute.xlu0 %1815
  %1817 = vrot.lane.b32.xlu0 %v1378, 32
  %v1818 = vpop.permute.xlu0 %1817
  %1819 = vrot.lane.b32.xlu0 %v1406, 32
  %v1820 = vpop.permute.xlu0 %1819
  %1821 = vrot.lane.b32.xlu0 %v1408, 32
  %v1822 = vpop.permute.xlu0 %1821
  %1823 = vrot.lane.b32.xlu0 %v1436, 32
  %v1824 = vpop.permute.xlu0 %1823
  %1825 = vrot.lane.b32.xlu0 %v1438, 32
  %v1826 = vpop.permute.xlu0 %1825
  %1827 = vrot.lane.b32.xlu0 %v1466, 32
  %v1828 = vpop.permute.xlu0 %1827
  %1829 = vrot.lane.b32.xlu0 %v1468, 32
  %v1830 = vpop.permute.xlu0 %1829
  %1831 = vrot.lane.b32.xlu0 %v1496, 32
  %v1832 = vpop.permute.xlu0 %1831
  %1833 = vrot.lane.b32.xlu0 %v1498, 32
  %v1834 = vpop.permute.xlu0 %1833
  %1835 = vrot.lane.b32.xlu0 %v1526, 32
  %v1836 = vpop.permute.xlu0 %1835
  %1837 = vrot.lane.b32.xlu0 %v1528, 32
  %v1838 = vpop.permute.xlu0 %1837
  %1839 = vrot.lane.b32.xlu0 %v1556, 32
  %v1840 = vpop.permute.xlu0 %1839
  %1841 = vrot.lane.b32.xlu0 %v1558, 32
  %v1842 = vpop.permute.xlu0 %1841
  %1843 = vrot.lane.b32.xlu0 %v1586, 32
  %v1844 = vpop.permute.xlu0 %1843
  %1845 = vrot.lane.b32.xlu0 %v1588, 32
  %v1846 = vpop.permute.xlu0 %1845
  %1847 = vrot.lane.b32.xlu0 %v1616, 32
  %v1848 = vpop.permute.xlu0 %1847
  %1849 = vrot.lane.b32.xlu0 %v1618, 32
  %v1850 = vpop.permute.xlu0 %1849
  %1851 = vrot.lane.b32.xlu0 %v1646, 32
  %v1852 = vpop.permute.xlu0 %1851
  %1853 = vrot.lane.b32.xlu0 %v1648, 32
  %v1854 = vpop.permute.xlu0 %1853
  %1855 = vrot.lane.b32.xlu0 %v1676, 32
  %v1856 = vpop.permute.xlu0 %1855
  %1857 = vrot.lane.b32.xlu0 %v1678, 32
  %v1858 = vpop.permute.xlu0 %1857
  %1859 = vrot.lane.b32.xlu0 %v1706, 32
  %v1860 = vpop.permute.xlu0 %1859
  %1861 = vrot.lane.b32.xlu0 %v1708, 32
  %v1862 = vpop.permute.xlu0 %1861
  %1863 = vrot.lane.b32.xlu0 %v1736, 32
  %v1864 = vpop.permute.xlu0 %1863
  %1865 = vrot.lane.b32.xlu0 %v1738, 32
  %v1866 = vpop.permute.xlu0 %1865
  %1867 = vrot.lane.b32.xlu0 %v1766, 32
  %v1868 = vpop.permute.xlu0 %1867
  %1869 = vrot.lane.b32.xlu0 %v1768, 32
  %v1870 = vpop.permute.xlu0 %1869
  %1935 = vrot.lane.b32.xlu0 %v1321, 64
  %v1936 = vpop.permute.xlu0 %1935
  %1937 = vrot.lane.b32.xlu0 %v1323, 64
  %v1938 = vpop.permute.xlu0 %1937
  %1939 = vrot.lane.b32.xlu0 %v1351, 64
  %v1940 = vpop.permute.xlu0 %1939
  %1941 = vrot.lane.b32.xlu0 %v1353, 64
  %v1942 = vpop.permute.xlu0 %1941
  %1943 = vrot.lane.b32.xlu0 %v1381, 64
  %v1944 = vpop.permute.xlu0 %1943
  %1945 = vrot.lane.b32.xlu0 %v1383, 64
  %v1946 = vpop.permute.xlu0 %1945
  %1947 = vrot.lane.b32.xlu0 %v1411, 64
  %v1948 = vpop.permute.xlu0 %1947
  %1949 = vrot.lane.b32.xlu0 %v1413, 64
  %v1950 = vpop.permute.xlu0 %1949
  %1951 = vrot.lane.b32.xlu0 %v1441, 64
  %v1952 = vpop.permute.xlu0 %1951
  %1953 = vrot.lane.b32.xlu0 %v1443, 64
  %v1954 = vpop.permute.xlu0 %1953
  %1955 = vrot.lane.b32.xlu0 %v1471, 64
  %v1956 = vpop.permute.xlu0 %1955
  %1957 = vrot.lane.b32.xlu0 %v1473, 64
  %v1958 = vpop.permute.xlu0 %1957
  %1959 = vrot.lane.b32.xlu0 %v1501, 64
  %v1960 = vpop.permute.xlu0 %1959
  %1961 = vrot.lane.b32.xlu0 %v1503, 64
  %v1962 = vpop.permute.xlu0 %1961
  %1963 = vrot.lane.b32.xlu0 %v1531, 64
  %v1964 = vpop.permute.xlu0 %1963
  %1965 = vrot.lane.b32.xlu0 %v1533, 64
  %v1966 = vpop.permute.xlu0 %1965
  %1967 = vrot.lane.b32.xlu0 %v1561, 64
  %v1968 = vpop.permute.xlu0 %1967
  %1969 = vrot.lane.b32.xlu0 %v1563, 64
  %v1970 = vpop.permute.xlu0 %1969
  %1971 = vrot.lane.b32.xlu0 %v1591, 64
  %v1972 = vpop.permute.xlu0 %1971
  %1973 = vrot.lane.b32.xlu0 %v1593, 64
  %v1974 = vpop.permute.xlu0 %1973
  %1975 = vrot.lane.b32.xlu0 %v1621, 64
  %v1976 = vpop.permute.xlu0 %1975
  %1977 = vrot.lane.b32.xlu0 %v1623, 64
  %v1978 = vpop.permute.xlu0 %1977
  %1979 = vrot.lane.b32.xlu0 %v1651, 64
  %v1980 = vpop.permute.xlu0 %1979
  %1981 = vrot.lane.b32.xlu0 %v1653, 64
  %v1982 = vpop.permute.xlu0 %1981
  %1983 = vrot.lane.b32.xlu0 %v1681, 64
  %v1984 = vpop.permute.xlu0 %1983
  %1985 = vrot.lane.b32.xlu0 %v1683, 64
  %v1986 = vpop.permute.xlu0 %1985
  %1987 = vrot.lane.b32.xlu0 %v1711, 64
  %v1988 = vpop.permute.xlu0 %1987
  %1989 = vrot.lane.b32.xlu0 %v1713, 64
  %v1990 = vpop.permute.xlu0 %1989
  %1991 = vrot.lane.b32.xlu0 %v1741, 64
  %v1992 = vpop.permute.xlu0 %1991
  %1993 = vrot.lane.b32.xlu0 %v1743, 64
  %v1994 = vpop.permute.xlu0 %1993
  %1995 = vrot.lane.b32.xlu0 %v1771, 64
  %v1996 = vpop.permute.xlu0 %1995
  %1997 = vrot.lane.b32.xlu0 %v1773, 64
  %v1998 = vpop.permute.xlu0 %1997
  %vm2031 = vcmask 261120
  %v2032 = vsel %vm2031, %v1311, %v1808
  %v2033 = vsel %vm2031, %v1313, %v1810
  %v2034 = vsel %vm2031, %v1341, %v1812
  %v2035 = vsel %vm2031, %v1343, %v1814
  %v2036 = vsel %vm2031, %v1371, %v1816
  %v2037 = vsel %vm2031, %v1373, %v1818
  %v2038 = vsel %vm2031, %v1401, %v1820
  %v2039 = vsel %vm2031, %v1403, %v1822
  %v2040 = vsel %vm2031, %v1431, %v1824
  %v2041 = vsel %vm2031, %v1433, %v1826
  %v2042 = vsel %vm2031, %v1461, %v1828
  %v2043 = vsel %vm2031, %v1463, %v1830
  %v2044 = vsel %vm2031, %v1491, %v1832
  %v2045 = vsel %vm2031, %v1493, %v1834
  %v2046 = vsel %vm2031, %v1521, %v1836
  %v2047 = vsel %vm2031, %v1523, %v1838
  %v2048 = vsel %vm2031, %v1551, %v1840
  %v2049 = vsel %vm2031, %v1553, %v1842
  %v2050 = vsel %vm2031, %v1581, %v1844
  %v2051 = vsel %vm2031, %v1583, %v1846
  %v2052 = vsel %vm2031, %v1611, %v1848
  %v2053 = vsel %vm2031, %v1613, %v1850
  %v2054 = vsel %vm2031, %v1641, %v1852
  %v2055 = vsel %vm2031, %v1643, %v1854
  %v2056 = vsel %vm2031, %v1671, %v1856
  %v2057 = vsel %vm2031, %v1673, %v1858
  %v2058 = vsel %vm2031, %v1701, %v1860
  %v2059 = vsel %vm2031, %v1703, %v1862
  %v2060 = vsel %vm2031, %v1731, %v1864
  %v2061 = vsel %vm2031, %v1733, %v1866
  %v2062 = vsel %vm2031, %v1761, %v1868
  %v2063 = vsel %vm2031, %v1763, %v1870
  %vm2064 = vcmask 523264
  %v2065 = vsel %vm2064, %v2032, %v1936
  %v2066 = vsel %vm2064, %v2033, %v1938
  %v2067 = vsel %vm2064, %v2034, %v1940
  %v2068 = vsel %vm2064, %v2035, %v1942
  %v2069 = vsel %vm2064, %v2036, %v1944
  %v2070 = vsel %vm2064, %v2037, %v1946
  %v2071 = vsel %vm2064, %v2038, %v1948
  %v2072 = vsel %vm2064, %v2039, %v1950
  %v2073 = vsel %vm2064, %v2040, %v1952
  %v2074 = vsel %vm2064, %v2041, %v1954
  %v2075 = vsel %vm2064, %v2042, %v1956
  %v2076 = vsel %vm2064, %v2043, %v1958
  %v2077 = vsel %vm2064, %v2044, %v1960
  %v2078 = vsel %vm2064, %v2045, %v1962
  %v2079 = vsel %vm2064, %v2046, %v1964
  %v2080 = vsel %vm2064, %v2047, %v1966
  %v2081 = vsel %vm2064, %v2048, %v1968
  %v2082 = vsel %vm2064, %v2049, %v1970
  %v2083 = vsel %vm2064, %v2050, %v1972
  %v2084 = vsel %vm2064, %v2051, %v1974
  %v2085 = vsel %vm2064, %v2052, %v1976
  %v2086 = vsel %vm2064, %v2053, %v1978
  %v2087 = vsel %vm2064, %v2054, %v1980
  %v2088 = vsel %vm2064, %v2055, %v1982
  %v2089 = vsel %vm2064, %v2056, %v1984
  %v2090 = vsel %vm2064, %v2057, %v1986
  %v2091 = vsel %vm2064, %v2058, %v1988
  %v2092 = vsel %vm2064, %v2059, %v1990
  %v2093 = vsel %vm2064, %v2060, %v1992
  %v2094 = vsel %vm2064, %v2061, %v1994
  %v2095 = vsel %vm2064, %v2062, %v1996
  %v2096 = vsel %vm2064, %v2063, %v1998
  %v2097 = vld [vmem:[%s4] sm:$0xf]
  %v2098 = vld [vmem:[%s4 + $0x4] sm:$0xf]
  %v2099 = vld [vmem:[%s4 + $0x8] sm:$0xf]
  %v2100 = vld [vmem:[%s4 + $0xc] sm:$0xf]
  %v2101 = vld [vmem:[%s4 + $0x10] sm:$0xf]
  %v2102 = vld [vmem:[%s4 + $0x14] sm:$0xf]
  %v2103 = vld [vmem:[%s4 + $0x18] sm:$0xf]
  %v2104 = vld [vmem:[%s4 + $0x1c] sm:$0xf]
  %v2105 = vld [vmem:[%s4 + $0x20] sm:$0xf]
  %v2106 = vld [vmem:[%s4 + $0x24] sm:$0xf]
  %v2107 = vld [vmem:[%s4 + $0x28] sm:$0xf]
  %v2108 = vld [vmem:[%s4 + $0x2c] sm:$0xf]
  %v2109 = vunpack.c.l.bf16 %v2097
  %v2110 = vunpack.c.l.bf16 %v2098
  %v2111 = vunpack.c.l.bf16 %v2099
  %v2112 = vunpack.c.l.bf16 %v2100
  %v2113 = vunpack.c.l.bf16 %v2101
  %v2114 = vunpack.c.l.bf16 %v2102
  %v2115 = vunpack.c.l.bf16 %v2103
  %v2116 = vunpack.c.l.bf16 %v2104
  %v2117 = vunpack.c.l.bf16 %v2105
  %v2118 = vunpack.c.l.bf16 %v2106
  %v2119 = vunpack.c.l.bf16 %v2107
  %v2120 = vunpack.c.l.bf16 %v2108
  %v2121 = vld [vmem:[%s5] sm:$0x1]
  %v2123 = vperm.slane %v2121, 0
  %vm2125 = vcmask 785408
  %v2127 = vsel %vm2125, %v2065, 0
  %v2130 = vsel %vm2125, %v2066, 0
  %v2133 = vsel %vm2125, %v2067, 0
  %v2136 = vsel %vm2125, %v2068, 0
  %v2139 = vsel %vm2125, %v2069, 0
  %v2142 = vsel %vm2125, %v2070, 0
  %v2145 = vsel %vm2125, %v2071, 0
  %v2148 = vsel %vm2125, %v2072, 0
  %v2151 = vsel %vm2125, %v2073, 0
  %v2154 = vsel %vm2125, %v2074, 0
  %v2157 = vsel %vm2125, %v2075, 0
  %v2160 = vsel %vm2125, %v2076, 0
  %v2163 = vsel %vm2125, %v2077, 0
  %v2166 = vsel %vm2125, %v2078, 0
  %v2169 = vsel %vm2125, %v2079, 0
  %v2172 = vsel %vm2125, %v2080, 0
  %v2175 = vsel %vm2125, %v2081, 0
  %v2178 = vsel %vm2125, %v2082, 0
  %v2181 = vsel %vm2125, %v2083, 0
  %v2184 = vsel %vm2125, %v2084, 0
  %v2187 = vsel %vm2125, %v2085, 0
  %v2190 = vsel %vm2125, %v2086, 0
  %v2193 = vsel %vm2125, %v2087, 0
  %v2196 = vsel %vm2125, %v2088, 0
  %v2199 = vsel %vm2125, %v2089, 0
  %v2202 = vsel %vm2125, %v2090, 0
  %v2205 = vsel %vm2125, %v2091, 0
  %v2208 = vsel %vm2125, %v2092, 0
  %v2211 = vsel %vm2125, %v2093, 0
  %v2214 = vsel %vm2125, %v2094, 0
  %v2217 = vsel %vm2125, %v2095, 0
  %v2220 = vsel %vm2125, %v2096, 0
  %2222 = vmatpush.msra.mxu0 0.0
  %2223 = vmatpush.msra.mxu0 0.0
  %2224 = vmatpush.msra.mxu0 0.0
  %2225 = vmatpush.msra.mxu0 0.0
  %2226 = vmatpush.msra.mxu0 %v2120
  %2227 = vmatpush.msra.mxu0 %v2119
  %2228 = vmatpush.msra.mxu0 %v2118
  %2229 = vmatpush.msra.mxu0 %v2117
  %2230 = vmatpush.msra.mxu0 %v2116
  %2231 = vmatpush.msra.mxu0 %v2115
  %2232 = vmatpush.msra.mxu0 %v2114
  %2233 = vmatpush.msra.mxu0 %v2113
  %2234 = vmatpush.msra.mxu0 %v2112
  %2235 = vmatpush.msra.mxu0 %v2111
  %2236 = vmatpush.msra.mxu0 %v2110
  %2237 = vmatpush.msra.mxu0 %v2109
  %2238 = vmatmul.f32.gmra.mxu0 %v2127
  %v2239 = vpop.f32.mrf.mxu0
  %v2240 = vadd.f32 %v2123, %v2239
  %2241 = vmatmul.f32.gmra.mxu0 %v2130
  %v2242 = vpop.f32.mrf.mxu0
  %v2243 = vadd.f32 %v2123, %v2242
  %2244 = vmatmul.f32.gmra.mxu0 %v2133
  %v2245 = vpop.f32.mrf.mxu0
  %v2246 = vadd.f32 %v2123, %v2245
  %2247 = vmatmul.f32.gmra.mxu0 %v2136
  %v2248 = vpop.f32.mrf.mxu0
  %v2249 = vadd.f32 %v2123, %v2248
  %2250 = vmatmul.f32.gmra.mxu0 %v2139
  %v2251 = vpop.f32.mrf.mxu0
  %v2252 = vadd.f32 %v2123, %v2251
  %2253 = vmatmul.f32.gmra.mxu0 %v2142
  %v2254 = vpop.f32.mrf.mxu0
  %v2255 = vadd.f32 %v2123, %v2254
  %2256 = vmatmul.f32.gmra.mxu0 %v2145
  %v2257 = vpop.f32.mrf.mxu0
  %v2258 = vadd.f32 %v2123, %v2257
  %2259 = vmatmul.f32.gmra.mxu0 %v2148
  %v2260 = vpop.f32.mrf.mxu0
  %v2261 = vadd.f32 %v2123, %v2260
  %2262 = vmatmul.f32.gmra.mxu0 %v2151
  %v2263 = vpop.f32.mrf.mxu0
  %v2264 = vadd.f32 %v2123, %v2263
  %2265 = vmatmul.f32.gmra.mxu0 %v2154
  %v2266 = vpop.f32.mrf.mxu0
  %v2267 = vadd.f32 %v2123, %v2266
  %2268 = vmatmul.f32.gmra.mxu0 %v2157
  %v2269 = vpop.f32.mrf.mxu0
  %v2270 = vadd.f32 %v2123, %v2269
  %2271 = vmatmul.f32.gmra.mxu0 %v2160
  %v2272 = vpop.f32.mrf.mxu0
  %v2273 = vadd.f32 %v2123, %v2272
  %2274 = vmatmul.f32.gmra.mxu0 %v2163
  %v2275 = vpop.f32.mrf.mxu0
  %v2276 = vadd.f32 %v2123, %v2275
  %2277 = vmatmul.f32.gmra.mxu0 %v2166
  %v2278 = vpop.f32.mrf.mxu0
  %v2279 = vadd.f32 %v2123, %v2278
  %2280 = vmatmul.f32.gmra.mxu0 %v2169
  %v2281 = vpop.f32.mrf.mxu0
  %v2282 = vadd.f32 %v2123, %v2281
  %2283 = vmatmul.f32.gmra.mxu0 %v2172
  %v2284 = vpop.f32.mrf.mxu0
  %v2285 = vadd.f32 %v2123, %v2284
  %2286 = vmatmul.f32.gmra.mxu0 %v2175
  %v2287 = vpop.f32.mrf.mxu0
  %v2288 = vadd.f32 %v2123, %v2287
  %2289 = vmatmul.f32.gmra.mxu0 %v2178
  %v2290 = vpop.f32.mrf.mxu0
  %v2291 = vadd.f32 %v2123, %v2290
  %2292 = vmatmul.f32.gmra.mxu0 %v2181
  %v2293 = vpop.f32.mrf.mxu0
  %v2294 = vadd.f32 %v2123, %v2293
  %2295 = vmatmul.f32.gmra.mxu0 %v2184
  %v2296 = vpop.f32.mrf.mxu0
  %v2297 = vadd.f32 %v2123, %v2296
  %2298 = vmatmul.f32.gmra.mxu0 %v2187
  %v2299 = vpop.f32.mrf.mxu0
  %v2300 = vadd.f32 %v2123, %v2299
  %2301 = vmatmul.f32.gmra.mxu0 %v2190
  %v2302 = vpop.f32.mrf.mxu0
  %v2303 = vadd.f32 %v2123, %v2302
  %2304 = vmatmul.f32.gmra.mxu0 %v2193
  %v2305 = vpop.f32.mrf.mxu0
  %v2306 = vadd.f32 %v2123, %v2305
  %2307 = vmatmul.f32.gmra.mxu0 %v2196
  %v2308 = vpop.f32.mrf.mxu0
  %v2309 = vadd.f32 %v2123, %v2308
  %2310 = vmatmul.f32.gmra.mxu0 %v2199
  %v2311 = vpop.f32.mrf.mxu0
  %v2312 = vadd.f32 %v2123, %v2311
  %2313 = vmatmul.f32.gmra.mxu0 %v2202
  %v2314 = vpop.f32.mrf.mxu0
  %v2315 = vadd.f32 %v2123, %v2314
  %2316 = vmatmul.f32.gmra.mxu0 %v2205
  %v2317 = vpop.f32.mrf.mxu0
  %v2318 = vadd.f32 %v2123, %v2317
  %2319 = vmatmul.f32.gmra.mxu0 %v2208
  %v2320 = vpop.f32.mrf.mxu0
  %v2321 = vadd.f32 %v2123, %v2320
  %2322 = vmatmul.f32.gmra.mxu0 %v2211
  %v2323 = vpop.f32.mrf.mxu0
  %v2324 = vadd.f32 %v2123, %v2323
  %2325 = vmatmul.f32.gmra.mxu0 %v2214
  %v2326 = vpop.f32.mrf.mxu0
  %v2327 = vadd.f32 %v2123, %v2326
  %2328 = vmatmul.f32.gmra.mxu0 %v2217
  %v2329 = vpop.f32.mrf.mxu0
  %v2330 = vadd.f32 %v2123, %v2329
  %2331 = vmatmul.f32.gmra.mxu0 %v2220
  %v2332 = vpop.f32.mrf.mxu0
  %v2333 = vadd.f32 %v2123, %v2332
  %2334 = vdwg.mxu0
  %v2335 = vmax.f32 %v2240, 0.0
  %v2336 = vmax.f32 %v2243, 0.0
  %v2337 = vmax.f32 %v2246, 0.0
  %v2338 = vmax.f32 %v2249, 0.0
  %v2339 = vmax.f32 %v2252, 0.0
  %v2340 = vmax.f32 %v2255, 0.0
  %v2341 = vmax.f32 %v2258, 0.0
  %v2342 = vmax.f32 %v2261, 0.0
  %v2343 = vmax.f32 %v2264, 0.0
  %v2344 = vmax.f32 %v2267, 0.0
  %v2345 = vmax.f32 %v2270, 0.0
  %v2346 = vmax.f32 %v2273, 0.0
  %v2347 = vmax.f32 %v2276, 0.0
  %v2348 = vmax.f32 %v2279, 0.0
  %v2349 = vmax.f32 %v2282, 0.0
  %v2350 = vmax.f32 %v2285, 0.0
  %v2351 = vmax.f32 %v2288, 0.0
  %v2352 = vmax.f32 %v2291, 0.0
  %v2353 = vmax.f32 %v2294, 0.0
  %v2354 = vmax.f32 %v2297, 0.0
  %v2355 = vmax.f32 %v2300, 0.0
  %v2356 = vmax.f32 %v2303, 0.0
  %v2357 = vmax.f32 %v2306, 0.0
  %v2358 = vmax.f32 %v2309, 0.0
  %v2359 = vmax.f32 %v2312, 0.0
  %v2360 = vmax.f32 %v2315, 0.0
  %v2361 = vmax.f32 %v2318, 0.0
  %v2362 = vmax.f32 %v2321, 0.0
  %v2363 = vmax.f32 %v2324, 0.0
  %v2364 = vmax.f32 %v2327, 0.0
  %v2365 = vmax.f32 %v2330, 0.0
  %v2366 = vmax.f32 %v2333, 0.0
  %v2367 = vpack.c.bf16 %v2335, %v2335
  %v2368 = vpack.c.bf16 %v2336, %v2336
  %v2369 = vpack.c.bf16 %v2337, %v2337
  %v2370 = vpack.c.bf16 %v2338, %v2338
  %v2371 = vpack.c.bf16 %v2339, %v2339
  %v2372 = vpack.c.bf16 %v2340, %v2340
  %v2373 = vpack.c.bf16 %v2341, %v2341
  %v2374 = vpack.c.bf16 %v2342, %v2342
  %v2375 = vpack.c.bf16 %v2343, %v2343
  %v2376 = vpack.c.bf16 %v2344, %v2344
  %v2377 = vpack.c.bf16 %v2345, %v2345
  %v2378 = vpack.c.bf16 %v2346, %v2346
  %v2379 = vpack.c.bf16 %v2347, %v2347
  %v2380 = vpack.c.bf16 %v2348, %v2348
  %v2381 = vpack.c.bf16 %v2349, %v2349
  %v2382 = vpack.c.bf16 %v2350, %v2350
  %v2383 = vpack.c.bf16 %v2351, %v2351
  %v2384 = vpack.c.bf16 %v2352, %v2352
  %v2385 = vpack.c.bf16 %v2353, %v2353
  %v2386 = vpack.c.bf16 %v2354, %v2354
  %v2387 = vpack.c.bf16 %v2355, %v2355
  %v2388 = vpack.c.bf16 %v2356, %v2356
  %v2389 = vpack.c.bf16 %v2357, %v2357
  %v2390 = vpack.c.bf16 %v2358, %v2358
  %v2391 = vpack.c.bf16 %v2359, %v2359
  %v2392 = vpack.c.bf16 %v2360, %v2360
  %v2393 = vpack.c.bf16 %v2361, %v2361
  %v2394 = vpack.c.bf16 %v2362, %v2362
  %v2395 = vpack.c.bf16 %v2363, %v2363
  %v2396 = vpack.c.bf16 %v2364, %v2364
  %v2397 = vpack.c.bf16 %v2365, %v2365
  %v2398 = vpack.c.bf16 %v2366, %v2366
  %v2431 = vunpack.c.l.b16 %v2367
  %v2432 = vunpack.c.l.b16 %v2368
  %v2433 = vunpack.c.l.b16 %v2369
  %v2434 = vunpack.c.l.b16 %v2370
  %v2435 = vunpack.c.l.b16 %v2371
  %v2436 = vunpack.c.l.b16 %v2372
  %v2437 = vunpack.c.l.b16 %v2373
  %v2438 = vunpack.c.l.b16 %v2374
  %v2439 = vunpack.c.l.b16 %v2375
  %v2440 = vunpack.c.l.b16 %v2376
  %v2441 = vunpack.c.l.b16 %v2377
  %v2442 = vunpack.c.l.b16 %v2378
  %v2443 = vunpack.c.l.b16 %v2379
  %v2444 = vunpack.c.l.b16 %v2380
  %v2445 = vunpack.c.l.b16 %v2381
  %v2446 = vunpack.c.l.b16 %v2382
  %v2447 = vunpack.c.l.b16 %v2383
  %v2448 = vunpack.c.l.b16 %v2384
  %v2449 = vunpack.c.l.b16 %v2385
  %v2450 = vunpack.c.l.b16 %v2386
  %v2451 = vunpack.c.l.b16 %v2387
  %v2452 = vunpack.c.l.b16 %v2388
  %v2453 = vunpack.c.l.b16 %v2389
  %v2454 = vunpack.c.l.b16 %v2390
  %v2455 = vunpack.c.l.b16 %v2391
  %v2456 = vunpack.c.l.b16 %v2392
  %v2457 = vunpack.c.l.b16 %v2393
  %v2458 = vunpack.c.l.b16 %v2394
  %v2459 = vunpack.c.l.b16 %v2395
  %v2460 = vunpack.c.l.b16 %v2396
  %v2461 = vunpack.c.l.b16 %v2397
  %v2462 = vunpack.c.l.b16 %v2398
  %v2463 = vpack.c.b16 %v2432, %v2431
  %v2464 = vpack.c.b16 %v2434, %v2433
  %v2465 = vpack.c.b16 %v2436, %v2435
  %v2466 = vpack.c.b16 %v2438, %v2437
  %v2467 = vpack.c.b16 %v2440, %v2439
  %v2468 = vpack.c.b16 %v2442, %v2441
  %v2469 = vpack.c.b16 %v2444, %v2443
  %v2470 = vpack.c.b16 %v2446, %v2445
  %v2471 = vpack.c.b16 %v2448, %v2447
  %v2472 = vpack.c.b16 %v2450, %v2449
  %v2473 = vpack.c.b16 %v2452, %v2451
  %v2474 = vpack.c.b16 %v2454, %v2453
  %v2475 = vpack.c.b16 %v2456, %v2455
  %v2476 = vpack.c.b16 %v2458, %v2457
  %v2477 = vpack.c.b16 %v2460, %v2459
  %v2478 = vpack.c.b16 %v2462, %v2461
  %2479 = vrot.lane.b32.xlu0 %v2463, 32
  %v2480 = vpop.permute.xlu0 %2479
  %2481 = vrot.lane.b32.xlu0 %v2464, 32
  %v2482 = vpop.permute.xlu0 %2481
  %2483 = vrot.lane.b32.xlu0 %v2465, 32
  %v2484 = vpop.permute.xlu0 %2483
  %2485 = vrot.lane.b32.xlu0 %v2466, 32
  %v2486 = vpop.permute.xlu0 %2485
  %2487 = vrot.lane.b32.xlu0 %v2467, 32
  %v2488 = vpop.permute.xlu0 %2487
  %2489 = vrot.lane.b32.xlu0 %v2468, 32
  %v2490 = vpop.permute.xlu0 %2489
  %2491 = vrot.lane.b32.xlu0 %v2469, 32
  %v2492 = vpop.permute.xlu0 %2491
  %2493 = vrot.lane.b32.xlu0 %v2470, 32
  %v2494 = vpop.permute.xlu0 %2493
  %2495 = vrot.lane.b32.xlu0 %v2471, 32
  %v2496 = vpop.permute.xlu0 %2495
  %2497 = vrot.lane.b32.xlu0 %v2472, 32
  %v2498 = vpop.permute.xlu0 %2497
  %2499 = vrot.lane.b32.xlu0 %v2473, 32
  %v2500 = vpop.permute.xlu0 %2499
  %2501 = vrot.lane.b32.xlu0 %v2474, 32
  %v2502 = vpop.permute.xlu0 %2501
  %2503 = vrot.lane.b32.xlu0 %v2475, 32
  %v2504 = vpop.permute.xlu0 %2503
  %2505 = vrot.lane.b32.xlu0 %v2476, 32
  %v2506 = vpop.permute.xlu0 %2505
  %2507 = vrot.lane.b32.xlu0 %v2477, 32
  %v2508 = vpop.permute.xlu0 %2507
  %2509 = vrot.lane.b32.xlu0 %v2478, 32
  %v2510 = vpop.permute.xlu0 %2509
  %2511 = vrot.lane.b32.xlu0 %v2465, 64
  %v2512 = vpop.permute.xlu0 %2511
  %2513 = vrot.lane.b32.xlu0 %v2466, 64
  %v2514 = vpop.permute.xlu0 %2513
  %2515 = vrot.lane.b32.xlu0 %v2467, 64
  %v2516 = vpop.permute.xlu0 %2515
  %2517 = vrot.lane.b32.xlu0 %v2468, 64
  %v2518 = vpop.permute.xlu0 %2517
  %2519 = vrot.lane.b32.xlu0 %v2469, 64
  %v2520 = vpop.permute.xlu0 %2519
  %2521 = vrot.lane.b32.xlu0 %v2470, 64
  %v2522 = vpop.permute.xlu0 %2521
  %2523 = vrot.lane.b32.xlu0 %v2471, 64
  %v2524 = vpop.permute.xlu0 %2523
  %2525 = vrot.lane.b32.xlu0 %v2472, 64
  %v2526 = vpop.permute.xlu0 %2525
  %2527 = vrot.lane.b32.xlu0 %v2473, 64
  %v2528 = vpop.permute.xlu0 %2527
  %2529 = vrot.lane.b32.xlu0 %v2474, 64
  %v2530 = vpop.permute.xlu0 %2529
  %2531 = vrot.lane.b32.xlu0 %v2475, 64
  %v2532 = vpop.permute.xlu0 %2531
  %2533 = vrot.lane.b32.xlu0 %v2476, 64
  %v2534 = vpop.permute.xlu0 %2533
  %2535 = vrot.lane.b32.xlu0 %v2477, 64
  %v2536 = vpop.permute.xlu0 %2535
  %2537 = vrot.lane.b32.xlu0 %v2478, 64
  %v2538 = vpop.permute.xlu0 %2537
  %2539 = vrot.lane.b32.xlu0 0, 64
  %v2540 = vpop.permute.xlu0 %2539
  %v2542 = vsel %vm2031, 0, %v2480
  %v2544 = vsel %vm2031, 0, %v2482
  %v2547 = vsel %vm2031, %v2463, %v2484
  %v2550 = vsel %vm2031, %v2464, %v2486
  %v2553 = vsel %vm2031, %v2465, %v2488
  %v2556 = vsel %vm2031, %v2466, %v2490
  %v2559 = vsel %vm2031, %v2467, %v2492
  %v2562 = vsel %vm2031, %v2468, %v2494
  %v2565 = vsel %vm2031, %v2469, %v2496
  %v2568 = vsel %vm2031, %v2470, %v2498
  %v2571 = vsel %vm2031, %v2471, %v2500
  %v2574 = vsel %vm2031, %v2472, %v2502
  %v2577 = vsel %vm2031, %v2473, %v2504
  %v2580 = vsel %vm2031, %v2474, %v2506
  %v2583 = vsel %vm2031, %v2475, %v2508
  %v2586 = vsel %vm2031, %v2476, %v2510
  %v2588 = vsel %vm2064, %v2542, %v2512
  %v2590 = vsel %vm2064, %v2544, %v2514
  %v2592 = vsel %vm2064, %v2547, %v2516
  %v2594 = vsel %vm2064, %v2550, %v2518
  %v2596 = vsel %vm2064, %v2553, %v2520
  %v2598 = vsel %vm2064, %v2556, %v2522
  %v2600 = vsel %vm2064, %v2559, %v2524
  %v2602 = vsel %vm2064, %v2562, %v2526
  %v2604 = vsel %vm2064, %v2565, %v2528
  %v2606 = vsel %vm2064, %v2568, %v2530
  %v2608 = vsel %vm2064, %v2571, %v2532
  %v2610 = vsel %vm2064, %v2574, %v2534
  %v2612 = vsel %vm2064, %v2577, %v2536
  %v2614 = vsel %vm2064, %v2580, %v2538
  %v2616 = vsel %vm2064, %v2583, %v2540
  %v2617 = vsel %vm2064, %v2586, %v2540
  %v2618 = vld [vmem:[%s6] sm:$0xf]
  %v2619 = vld [vmem:[%s6 + $0x4] sm:$0xf]
  %v2620 = vld [vmem:[%s6 + $0x8] sm:$0xf]
  %v2621 = vld [vmem:[%s6 + $0xc] sm:$0xf]
  %v2622 = vld [vmem:[%s6 + $0x10] sm:$0xf]
  %v2623 = vld [vmem:[%s6 + $0x14] sm:$0xf]
  %v2624 = vld [vmem:[%s6 + $0x18] sm:$0xf]
  %v2625 = vld [vmem:[%s6 + $0x1c] sm:$0xf]
  %v2626 = vld [vmem:[%s6 + $0x20] sm:$0xf]
  %v2627 = vld [vmem:[%s6 + $0x24] sm:$0xf]
  %v2628 = vld [vmem:[%s6 + $0x28] sm:$0xf]
  %v2629 = vld [vmem:[%s6 + $0x2c] sm:$0xf]
  %v2630 = vld [vmem:[%s7] sm:$0x1]
  %v2632 = vperm.slane %v2630, 0
  %v2646 = vunpack.c.l.b16 %v2618
  %v2647 = vunpack.c.l.b16 %v2619
  %v2648 = vunpack.c.l.b16 %v2620
  %v2649 = vunpack.c.l.b16 %v2621
  %v2650 = vunpack.c.l.b16 %v2622
  %v2651 = vunpack.c.l.b16 %v2623
  %v2652 = vunpack.c.l.b16 %v2624
  %v2653 = vunpack.c.l.b16 %v2625
  %v2654 = vunpack.c.l.b16 %v2626
  %v2655 = vunpack.c.l.b16 %v2627
  %v2656 = vunpack.c.l.b16 %v2628
  %v2657 = vunpack.c.l.b16 %v2629
  %v2658 = vpack.c.b16 %v2647, %v2646
  %v2659 = vpack.c.b16 %v2649, %v2648
  %v2660 = vpack.c.b16 %v2651, %v2650
  %v2661 = vpack.c.b16 %v2653, %v2652
  %v2662 = vpack.c.b16 %v2655, %v2654
  %v2663 = vpack.c.b16 %v2657, %v2656
  %v2670 = vsel %vm2125, %v2588, 0
  %v2672 = vsel %vm2125, %v2590, 0
  %v2674 = vsel %vm2125, %v2592, 0
  %v2676 = vsel %vm2125, %v2594, 0
  %v2678 = vsel %vm2125, %v2596, 0
  %v2680 = vsel %vm2125, %v2598, 0
  %v2682 = vsel %vm2125, %v2600, 0
  %v2684 = vsel %vm2125, %v2602, 0
  %v2686 = vsel %vm2125, %v2604, 0
  %v2688 = vsel %vm2125, %v2606, 0
  %v2690 = vsel %vm2125, %v2608, 0
  %v2692 = vsel %vm2125, %v2610, 0
  %v2694 = vsel %vm2125, %v2612, 0
  %v2696 = vsel %vm2125, %v2614, 0
  %v2698 = vsel %vm2125, %v2616, 0
  %v2700 = vsel %vm2125, %v2617, 0
  %2702 = vmatpush.bf16.msra.mxu0 0
  %2703 = vmatpush.bf16.msra.mxu0 0
  %2704 = vmatpush.bf16.msra.mxu0 %v2663
  %2705 = vmatpush.bf16.msra.mxu0 %v2662
  %2706 = vmatpush.bf16.msra.mxu0 %v2661
  %2707 = vmatpush.bf16.msra.mxu0 %v2660
  %2708 = vmatpush.bf16.msra.mxu0 %v2659
  %2709 = vmatpush.bf16.msra.mxu0 %v2658
  %2710 = vmatmul.bf16.gmra.mxu0 %v2670
  %v2711 = vpop.f32.mrf.mxu0
  %v2712 = vadd.f32 %v2632, %v2711
  %v2713 = vpop.f32.mrf.mxu0
  %v2714 = vadd.f32 %v2632, %v2713
  %2715 = vmatmul.bf16.gmra.mxu0 %v2672
  %v2716 = vpop.f32.mrf.mxu0
  %v2717 = vadd.f32 %v2632, %v2716
  %v2718 = vpop.f32.mrf.mxu0
  %v2719 = vadd.f32 %v2632, %v2718
  %2720 = vmatmul.bf16.gmra.mxu0 %v2674
  %v2721 = vpop.f32.mrf.mxu0
  %v2722 = vadd.f32 %v2632, %v2721
  %v2723 = vpop.f32.mrf.mxu0
  %v2724 = vadd.f32 %v2632, %v2723
  %2725 = vmatmul.bf16.gmra.mxu0 %v2676
  %v2726 = vpop.f32.mrf.mxu0
  %v2727 = vadd.f32 %v2632, %v2726
  %v2728 = vpop.f32.mrf.mxu0
  %v2729 = vadd.f32 %v2632, %v2728
  %2730 = vmatmul.bf16.gmra.mxu0 %v2678
  %v2731 = vpop.f32.mrf.mxu0
  %v2732 = vadd.f32 %v2632, %v2731
  %v2733 = vpop.f32.mrf.mxu0
  %v2734 = vadd.f32 %v2632, %v2733
  %2735 = vmatmul.bf16.gmra.mxu0 %v2680
  %v2736 = vpop.f32.mrf.mxu0
  %v2737 = vadd.f32 %v2632, %v2736
  %v2738 = vpop.f32.mrf.mxu0
  %v2739 = vadd.f32 %v2632, %v2738
  %2740 = vmatmul.bf16.gmra.mxu0 %v2682
  %v2741 = vpop.f32.mrf.mxu0
  %v2742 = vadd.f32 %v2632, %v2741
  %v2743 = vpop.f32.mrf.mxu0
  %v2744 = vadd.f32 %v2632, %v2743
  %2745 = vmatmul.bf16.gmra.mxu0 %v2684
  %v2746 = vpop.f32.mrf.mxu0
  %v2747 = vadd.f32 %v2632, %v2746
  %v2748 = vpop.f32.mrf.mxu0
  %v2749 = vadd.f32 %v2632, %v2748
  %2750 = vmatmul.bf16.gmra.mxu0 %v2686
  %v2751 = vpop.f32.mrf.mxu0
  %v2752 = vadd.f32 %v2632, %v2751
  %v2753 = vpop.f32.mrf.mxu0
  %v2754 = vadd.f32 %v2632, %v2753
  %2755 = vmatmul.bf16.gmra.mxu0 %v2688
  %v2756 = vpop.f32.mrf.mxu0
  %v2757 = vadd.f32 %v2632, %v2756
  %v2758 = vpop.f32.mrf.mxu0
  %v2759 = vadd.f32 %v2632, %v2758
  %2760 = vmatmul.bf16.gmra.mxu0 %v2690
  %v2761 = vpop.f32.mrf.mxu0
  %v2762 = vadd.f32 %v2632, %v2761
  %v2763 = vpop.f32.mrf.mxu0
  %v2764 = vadd.f32 %v2632, %v2763
  %2765 = vmatmul.bf16.gmra.mxu0 %v2692
  %v2766 = vpop.f32.mrf.mxu0
  %v2767 = vadd.f32 %v2632, %v2766
  %v2768 = vpop.f32.mrf.mxu0
  %v2769 = vadd.f32 %v2632, %v2768
  %2770 = vmatmul.bf16.gmra.mxu0 %v2694
  %v2771 = vpop.f32.mrf.mxu0
  %v2772 = vadd.f32 %v2632, %v2771
  %v2773 = vpop.f32.mrf.mxu0
  %v2774 = vadd.f32 %v2632, %v2773
  %2775 = vmatmul.bf16.gmra.mxu0 %v2696
  %v2776 = vpop.f32.mrf.mxu0
  %v2777 = vadd.f32 %v2632, %v2776
  %v2778 = vpop.f32.mrf.mxu0
  %v2779 = vadd.f32 %v2632, %v2778
  %2780 = vmatmul.bf16.gmra.mxu0 %v2698
  %v2781 = vpop.f32.mrf.mxu0
  %v2782 = vadd.f32 %v2632, %v2781
  %v2783 = vpop.f32.mrf.mxu0
  %v2784 = vadd.f32 %v2632, %v2783
  %2785 = vmatmul.bf16.gmra.mxu0 %v2700
  %v2786 = vpop.f32.mrf.mxu0
  %v2787 = vadd.f32 %v2632, %v2786
  %v2788 = vpop.f32.mrf.mxu0
  %v2789 = vadd.f32 %v2632, %v2788
  %2790 = vdwg.mxu0
  %v2791 = vxor.u32 %v2712, 2147483648
  %v2792 = vxor.u32 %v2714, 2147483648
  %v2793 = vxor.u32 %v2717, 2147483648
  %v2794 = vxor.u32 %v2719, 2147483648
  %v2795 = vxor.u32 %v2722, 2147483648
  %v2796 = vxor.u32 %v2724, 2147483648
  %v2797 = vxor.u32 %v2727, 2147483648
  %v2798 = vxor.u32 %v2729, 2147483648
  %v2799 = vxor.u32 %v2732, 2147483648
  %v2800 = vxor.u32 %v2734, 2147483648
  %v2801 = vxor.u32 %v2737, 2147483648
  %v2802 = vxor.u32 %v2739, 2147483648
  %v2803 = vxor.u32 %v2742, 2147483648
  %v2804 = vxor.u32 %v2744, 2147483648
  %v2805 = vxor.u32 %v2747, 2147483648
  %v2806 = vxor.u32 %v2749, 2147483648
  %v2807 = vxor.u32 %v2752, 2147483648
  %v2808 = vxor.u32 %v2754, 2147483648
  %v2809 = vxor.u32 %v2757, 2147483648
  %v2810 = vxor.u32 %v2759, 2147483648
  %v2811 = vxor.u32 %v2762, 2147483648
  %v2812 = vxor.u32 %v2764, 2147483648
  %v2813 = vxor.u32 %v2767, 2147483648
  %v2814 = vxor.u32 %v2769, 2147483648
  %v2815 = vxor.u32 %v2772, 2147483648
  %v2816 = vxor.u32 %v2774, 2147483648
  %v2817 = vxor.u32 %v2777, 2147483648
  %v2818 = vxor.u32 %v2779, 2147483648
  %v2819 = vxor.u32 %v2782, 2147483648
  %v2820 = vxor.u32 %v2784, 2147483648
  %v2821 = vxor.u32 %v2787, 2147483648
  %v2822 = vxor.u32 %v2789, 2147483648
  %v2823 = vmul.f32 %v2791, 1.442695
  %v2824 = vpow.pop %v2823
  %v2825 = vmul.f32 %v2792, 1.442695
  %v2826 = vpow.pop %v2825
  %v2827 = vmul.f32 %v2793, 1.442695
  %v2828 = vpow.pop %v2827
  %v2829 = vmul.f32 %v2794, 1.442695
  %v2830 = vpow.pop %v2829
  %v2831 = vmul.f32 %v2795, 1.442695
  %v2832 = vpow.pop %v2831
  %v2833 = vmul.f32 %v2796, 1.442695
  %v2834 = vpow.pop %v2833
  %v2835 = vmul.f32 %v2797, 1.442695
  %v2836 = vpow.pop %v2835
  %v2837 = vmul.f32 %v2798, 1.442695
  %v2838 = vpow.pop %v2837
  %v2839 = vmul.f32 %v2799, 1.442695
  %v2840 = vpow.pop %v2839
  %v2841 = vmul.f32 %v2800, 1.442695
  %v2842 = vpow.pop %v2841
  %v2843 = vmul.f32 %v2801, 1.442695
  %v2844 = vpow.pop %v2843
  %v2845 = vmul.f32 %v2802, 1.442695
  %v2846 = vpow.pop %v2845
  %v2847 = vmul.f32 %v2803, 1.442695
  %v2848 = vpow.pop %v2847
  %v2849 = vmul.f32 %v2804, 1.442695
  %v2850 = vpow.pop %v2849
  %v2851 = vmul.f32 %v2805, 1.442695
  %v2852 = vpow.pop %v2851
  %v2853 = vmul.f32 %v2806, 1.442695
  %v2854 = vpow.pop %v2853
  %v2855 = vmul.f32 %v2807, 1.442695
  %v2856 = vpow.pop %v2855
  %v2857 = vmul.f32 %v2808, 1.442695
  %v2858 = vpow.pop %v2857
  %v2859 = vmul.f32 %v2809, 1.442695
  %v2860 = vpow.pop %v2859
  %v2861 = vmul.f32 %v2810, 1.442695
  %v2862 = vpow.pop %v2861
  %v2863 = vmul.f32 %v2811, 1.442695
  %v2864 = vpow.pop %v2863
  %v2865 = vmul.f32 %v2812, 1.442695
  %v2866 = vpow.pop %v2865
  %v2867 = vmul.f32 %v2813, 1.442695
  %v2868 = vpow.pop %v2867
  %v2869 = vmul.f32 %v2814, 1.442695
  %v2870 = vpow.pop %v2869
  %v2871 = vmul.f32 %v2815, 1.442695
  %v2872 = vpow.pop %v2871
  %v2873 = vmul.f32 %v2816, 1.442695
  %v2874 = vpow.pop %v2873
  %v2875 = vmul.f32 %v2817, 1.442695
  %v2876 = vpow.pop %v2875
  %v2877 = vmul.f32 %v2818, 1.442695
  %v2878 = vpow.pop %v2877
  %v2879 = vmul.f32 %v2819, 1.442695
  %v2880 = vpow.pop %v2879
  %v2881 = vmul.f32 %v2820, 1.442695
  %v2882 = vpow.pop %v2881
  %v2883 = vmul.f32 %v2821, 1.442695
  %v2884 = vpow.pop %v2883
  %v2885 = vmul.f32 %v2822, 1.442695
  %v2886 = vpow.pop %v2885
  %v2887 = vadd.f32 %v2824, 1.0
  %v2888 = vadd.f32 %v2826, 1.0
  %v2889 = vadd.f32 %v2828, 1.0
  %v2890 = vadd.f32 %v2830, 1.0
  %v2891 = vadd.f32 %v2832, 1.0
  %v2892 = vadd.f32 %v2834, 1.0
  %v2893 = vadd.f32 %v2836, 1.0
  %v2894 = vadd.f32 %v2838, 1.0
  %v2895 = vadd.f32 %v2840, 1.0
  %v2896 = vadd.f32 %v2842, 1.0
  %v2897 = vadd.f32 %v2844, 1.0
  %v2898 = vadd.f32 %v2846, 1.0
  %v2899 = vadd.f32 %v2848, 1.0
  %v2900 = vadd.f32 %v2850, 1.0
  %v2901 = vadd.f32 %v2852, 1.0
  %v2902 = vadd.f32 %v2854, 1.0
  %v2903 = vadd.f32 %v2856, 1.0
  %v2904 = vadd.f32 %v2858, 1.0
  %v2905 = vadd.f32 %v2860, 1.0
  %v2906 = vadd.f32 %v2862, 1.0
  %v2907 = vadd.f32 %v2864, 1.0
  %v2908 = vadd.f32 %v2866, 1.0
  %v2909 = vadd.f32 %v2868, 1.0
  %v2910 = vadd.f32 %v2870, 1.0
  %v2911 = vadd.f32 %v2872, 1.0
  %v2912 = vadd.f32 %v2874, 1.0
  %v2913 = vadd.f32 %v2876, 1.0
  %v2914 = vadd.f32 %v2878, 1.0
  %v2915 = vadd.f32 %v2880, 1.0
  %v2916 = vadd.f32 %v2882, 1.0
  %v2917 = vadd.f32 %v2884, 1.0
  %v2918 = vadd.f32 %v2886, 1.0
  %v2919 = vrcp.pop %v2887
  %v2920 = vmul.f32 %v2887, %v2919
  %v2921 = vsub.f32 1.0, %v2920
  %v2922 = vmul.f32 %v2919, %v2921
  %v2923 = vadd.f32 %v2919, %v2922
  %vm2924 = vweird.f32 %v2887
  %vm2925 = vweird.f32 %v2919
  %vm2926 = vmor %vm2924, %vm2925
  %v2927 = vsel %vm2926, %v2919, %v2923
  %v2928 = vand.u32 2147483647, %v2887
  %vm2929 = vcmp.eq.f32.partialorder %v2928, 8.507059e+37
  %v2930 = vand.u32 %v2887, 2147483648
  %v2931 = vor.u32 1.1754944e-38, %v2930
  %v2932 = vsel %vm2929, %v2931, %v2927
  %v2933 = vmul.f32 1.0, %v2932
  %v2934 = vrcp.pop %v2888
  %v2935 = vmul.f32 %v2888, %v2934
  %v2936 = vsub.f32 1.0, %v2935
  %v2937 = vmul.f32 %v2934, %v2936
  %v2938 = vadd.f32 %v2934, %v2937
  %vm2939 = vweird.f32 %v2888
  %vm2940 = vweird.f32 %v2934
  %vm2941 = vmor %vm2939, %vm2940
  %v2942 = vsel %vm2941, %v2934, %v2938
  %v2943 = vand.u32 2147483647, %v2888
  %vm2944 = vcmp.eq.f32.partialorder %v2943, 8.507059e+37
  %v2945 = vand.u32 %v2888, 2147483648
  %v2946 = vor.u32 1.1754944e-38, %v2945
  %v2947 = vsel %vm2944, %v2946, %v2942
  %v2948 = vmul.f32 1.0, %v2947
  %v2949 = vrcp.pop %v2889
  %v2950 = vmul.f32 %v2889, %v2949
  %v2951 = vsub.f32 1.0, %v2950
  %v2952 = vmul.f32 %v2949, %v2951
  %v2953 = vadd.f32 %v2949, %v2952
  %vm2954 = vweird.f32 %v2889
  %vm2955 = vweird.f32 %v2949
  %vm2956 = vmor %vm2954, %vm2955
  %v2957 = vsel %vm2956, %v2949, %v2953
  %v2958 = vand.u32 2147483647, %v2889
  %vm2959 = vcmp.eq.f32.partialorder %v2958, 8.507059e+37
  %v2960 = vand.u32 %v2889, 2147483648
  %v2961 = vor.u32 1.1754944e-38, %v2960
  %v2962 = vsel %vm2959, %v2961, %v2957
  %v2963 = vmul.f32 1.0, %v2962
  %v2964 = vrcp.pop %v2890
  %v2965 = vmul.f32 %v2890, %v2964
  %v2966 = vsub.f32 1.0, %v2965
  %v2967 = vmul.f32 %v2964, %v2966
  %v2968 = vadd.f32 %v2964, %v2967
  %vm2969 = vweird.f32 %v2890
  %vm2970 = vweird.f32 %v2964
  %vm2971 = vmor %vm2969, %vm2970
  %v2972 = vsel %vm2971, %v2964, %v2968
  %v2973 = vand.u32 2147483647, %v2890
  %vm2974 = vcmp.eq.f32.partialorder %v2973, 8.507059e+37
  %v2975 = vand.u32 %v2890, 2147483648
  %v2976 = vor.u32 1.1754944e-38, %v2975
  %v2977 = vsel %vm2974, %v2976, %v2972
  %v2978 = vmul.f32 1.0, %v2977
  %v2979 = vrcp.pop %v2891
  %v2980 = vmul.f32 %v2891, %v2979
  %v2981 = vsub.f32 1.0, %v2980
  %v2982 = vmul.f32 %v2979, %v2981
  %v2983 = vadd.f32 %v2979, %v2982
  %vm2984 = vweird.f32 %v2891
  %vm2985 = vweird.f32 %v2979
  %vm2986 = vmor %vm2984, %vm2985
  %v2987 = vsel %vm2986, %v2979, %v2983
  %v2988 = vand.u32 2147483647, %v2891
  %vm2989 = vcmp.eq.f32.partialorder %v2988, 8.507059e+37
  %v2990 = vand.u32 %v2891, 2147483648
  %v2991 = vor.u32 1.1754944e-38, %v2990
  %v2992 = vsel %vm2989, %v2991, %v2987
  %v2993 = vmul.f32 1.0, %v2992
  %v2994 = vrcp.pop %v2892
  %v2995 = vmul.f32 %v2892, %v2994
  %v2996 = vsub.f32 1.0, %v2995
  %v2997 = vmul.f32 %v2994, %v2996
  %v2998 = vadd.f32 %v2994, %v2997
  %vm2999 = vweird.f32 %v2892
  %vm3000 = vweird.f32 %v2994
  %vm3001 = vmor %vm2999, %vm3000
  %v3002 = vsel %vm3001, %v2994, %v2998
  %v3003 = vand.u32 2147483647, %v2892
  %vm3004 = vcmp.eq.f32.partialorder %v3003, 8.507059e+37
  %v3005 = vand.u32 %v2892, 2147483648
  %v3006 = vor.u32 1.1754944e-38, %v3005
  %v3007 = vsel %vm3004, %v3006, %v3002
  %v3008 = vmul.f32 1.0, %v3007
  %v3009 = vrcp.pop %v2893
  %v3010 = vmul.f32 %v2893, %v3009
  %v3011 = vsub.f32 1.0, %v3010
  %v3012 = vmul.f32 %v3009, %v3011
  %v3013 = vadd.f32 %v3009, %v3012
  %vm3014 = vweird.f32 %v2893
  %vm3015 = vweird.f32 %v3009
  %vm3016 = vmor %vm3014, %vm3015
  %v3017 = vsel %vm3016, %v3009, %v3013
  %v3018 = vand.u32 2147483647, %v2893
  %vm3019 = vcmp.eq.f32.partialorder %v3018, 8.507059e+37
  %v3020 = vand.u32 %v2893, 2147483648
  %v3021 = vor.u32 1.1754944e-38, %v3020
  %v3022 = vsel %vm3019, %v3021, %v3017
  %v3023 = vmul.f32 1.0, %v3022
  %v3024 = vrcp.pop %v2894
  %v3025 = vmul.f32 %v2894, %v3024
  %v3026 = vsub.f32 1.0, %v3025
  %v3027 = vmul.f32 %v3024, %v3026
  %v3028 = vadd.f32 %v3024, %v3027
  %vm3029 = vweird.f32 %v2894
  %vm3030 = vweird.f32 %v3024
  %vm3031 = vmor %vm3029, %vm3030
  %v3032 = vsel %vm3031, %v3024, %v3028
  %v3033 = vand.u32 2147483647, %v2894
  %vm3034 = vcmp.eq.f32.partialorder %v3033, 8.507059e+37
  %v3035 = vand.u32 %v2894, 2147483648
  %v3036 = vor.u32 1.1754944e-38, %v3035
  %v3037 = vsel %vm3034, %v3036, %v3032
  %v3038 = vmul.f32 1.0, %v3037
  %v3039 = vrcp.pop %v2895
  %v3040 = vmul.f32 %v2895, %v3039
  %v3041 = vsub.f32 1.0, %v3040
  %v3042 = vmul.f32 %v3039, %v3041
  %v3043 = vadd.f32 %v3039, %v3042
  %vm3044 = vweird.f32 %v2895
  %vm3045 = vweird.f32 %v3039
  %vm3046 = vmor %vm3044, %vm3045
  %v3047 = vsel %vm3046, %v3039, %v3043
  %v3048 = vand.u32 2147483647, %v2895
  %vm3049 = vcmp.eq.f32.partialorder %v3048, 8.507059e+37
  %v3050 = vand.u32 %v2895, 2147483648
  %v3051 = vor.u32 1.1754944e-38, %v3050
  %v3052 = vsel %vm3049, %v3051, %v3047
  %v3053 = vmul.f32 1.0, %v3052
  %v3054 = vrcp.pop %v2896
  %v3055 = vmul.f32 %v2896, %v3054
  %v3056 = vsub.f32 1.0, %v3055
  %v3057 = vmul.f32 %v3054, %v3056
  %v3058 = vadd.f32 %v3054, %v3057
  %vm3059 = vweird.f32 %v2896
  %vm3060 = vweird.f32 %v3054
  %vm3061 = vmor %vm3059, %vm3060
  %v3062 = vsel %vm3061, %v3054, %v3058
  %v3063 = vand.u32 2147483647, %v2896
  %vm3064 = vcmp.eq.f32.partialorder %v3063, 8.507059e+37
  %v3065 = vand.u32 %v2896, 2147483648
  %v3066 = vor.u32 1.1754944e-38, %v3065
  %v3067 = vsel %vm3064, %v3066, %v3062
  %v3068 = vmul.f32 1.0, %v3067
  %v3069 = vrcp.pop %v2897
  %v3070 = vmul.f32 %v2897, %v3069
  %v3071 = vsub.f32 1.0, %v3070
  %v3072 = vmul.f32 %v3069, %v3071
  %v3073 = vadd.f32 %v3069, %v3072
  %vm3074 = vweird.f32 %v2897
  %vm3075 = vweird.f32 %v3069
  %vm3076 = vmor %vm3074, %vm3075
  %v3077 = vsel %vm3076, %v3069, %v3073
  %v3078 = vand.u32 2147483647, %v2897
  %vm3079 = vcmp.eq.f32.partialorder %v3078, 8.507059e+37
  %v3080 = vand.u32 %v2897, 2147483648
  %v3081 = vor.u32 1.1754944e-38, %v3080
  %v3082 = vsel %vm3079, %v3081, %v3077
  %v3083 = vmul.f32 1.0, %v3082
  %v3084 = vrcp.pop %v2898
  %v3085 = vmul.f32 %v2898, %v3084
  %v3086 = vsub.f32 1.0, %v3085
  %v3087 = vmul.f32 %v3084, %v3086
  %v3088 = vadd.f32 %v3084, %v3087
  %vm3089 = vweird.f32 %v2898
  %vm3090 = vweird.f32 %v3084
  %vm3091 = vmor %vm3089, %vm3090
  %v3092 = vsel %vm3091, %v3084, %v3088
  %v3093 = vand.u32 2147483647, %v2898
  %vm3094 = vcmp.eq.f32.partialorder %v3093, 8.507059e+37
  %v3095 = vand.u32 %v2898, 2147483648
  %v3096 = vor.u32 1.1754944e-38, %v3095
  %v3097 = vsel %vm3094, %v3096, %v3092
  %v3098 = vmul.f32 1.0, %v3097
  %v3099 = vrcp.pop %v2899
  %v3100 = vmul.f32 %v2899, %v3099
  %v3101 = vsub.f32 1.0, %v3100
  %v3102 = vmul.f32 %v3099, %v3101
  %v3103 = vadd.f32 %v3099, %v3102
  %vm3104 = vweird.f32 %v2899
  %vm3105 = vweird.f32 %v3099
  %vm3106 = vmor %vm3104, %vm3105
  %v3107 = vsel %vm3106, %v3099, %v3103
  %v3108 = vand.u32 2147483647, %v2899
  %vm3109 = vcmp.eq.f32.partialorder %v3108, 8.507059e+37
  %v3110 = vand.u32 %v2899, 2147483648
  %v3111 = vor.u32 1.1754944e-38, %v3110
  %v3112 = vsel %vm3109, %v3111, %v3107
  %v3113 = vmul.f32 1.0, %v3112
  %v3114 = vrcp.pop %v2900
  %v3115 = vmul.f32 %v2900, %v3114
  %v3116 = vsub.f32 1.0, %v3115
  %v3117 = vmul.f32 %v3114, %v3116
  %v3118 = vadd.f32 %v3114, %v3117
  %vm3119 = vweird.f32 %v2900
  %vm3120 = vweird.f32 %v3114
  %vm3121 = vmor %vm3119, %vm3120
  %v3122 = vsel %vm3121, %v3114, %v3118
  %v3123 = vand.u32 2147483647, %v2900
  %vm3124 = vcmp.eq.f32.partialorder %v3123, 8.507059e+37
  %v3125 = vand.u32 %v2900, 2147483648
  %v3126 = vor.u32 1.1754944e-38, %v3125
  %v3127 = vsel %vm3124, %v3126, %v3122
  %v3128 = vmul.f32 1.0, %v3127
  %v3129 = vrcp.pop %v2901
  %v3130 = vmul.f32 %v2901, %v3129
  %v3131 = vsub.f32 1.0, %v3130
  %v3132 = vmul.f32 %v3129, %v3131
  %v3133 = vadd.f32 %v3129, %v3132
  %vm3134 = vweird.f32 %v2901
  %vm3135 = vweird.f32 %v3129
  %vm3136 = vmor %vm3134, %vm3135
  %v3137 = vsel %vm3136, %v3129, %v3133
  %v3138 = vand.u32 2147483647, %v2901
  %vm3139 = vcmp.eq.f32.partialorder %v3138, 8.507059e+37
  %v3140 = vand.u32 %v2901, 2147483648
  %v3141 = vor.u32 1.1754944e-38, %v3140
  %v3142 = vsel %vm3139, %v3141, %v3137
  %v3143 = vmul.f32 1.0, %v3142
  %v3144 = vrcp.pop %v2902
  %v3145 = vmul.f32 %v2902, %v3144
  %v3146 = vsub.f32 1.0, %v3145
  %v3147 = vmul.f32 %v3144, %v3146
  %v3148 = vadd.f32 %v3144, %v3147
  %vm3149 = vweird.f32 %v2902
  %vm3150 = vweird.f32 %v3144
  %vm3151 = vmor %vm3149, %vm3150
  %v3152 = vsel %vm3151, %v3144, %v3148
  %v3153 = vand.u32 2147483647, %v2902
  %vm3154 = vcmp.eq.f32.partialorder %v3153, 8.507059e+37
  %v3155 = vand.u32 %v2902, 2147483648
  %v3156 = vor.u32 1.1754944e-38, %v3155
  %v3157 = vsel %vm3154, %v3156, %v3152
  %v3158 = vmul.f32 1.0, %v3157
  %v3159 = vrcp.pop %v2903
  %v3160 = vmul.f32 %v2903, %v3159
  %v3161 = vsub.f32 1.0, %v3160
  %v3162 = vmul.f32 %v3159, %v3161
  %v3163 = vadd.f32 %v3159, %v3162
  %vm3164 = vweird.f32 %v2903
  %vm3165 = vweird.f32 %v3159
  %vm3166 = vmor %vm3164, %vm3165
  %v3167 = vsel %vm3166, %v3159, %v3163
  %v3168 = vand.u32 2147483647, %v2903
  %vm3169 = vcmp.eq.f32.partialorder %v3168, 8.507059e+37
  %v3170 = vand.u32 %v2903, 2147483648
  %v3171 = vor.u32 1.1754944e-38, %v3170
  %v3172 = vsel %vm3169, %v3171, %v3167
  %v3173 = vmul.f32 1.0, %v3172
  %v3174 = vrcp.pop %v2904
  %v3175 = vmul.f32 %v2904, %v3174
  %v3176 = vsub.f32 1.0, %v3175
  %v3177 = vmul.f32 %v3174, %v3176
  %v3178 = vadd.f32 %v3174, %v3177
  %vm3179 = vweird.f32 %v2904
  %vm3180 = vweird.f32 %v3174
  %vm3181 = vmor %vm3179, %vm3180
  %v3182 = vsel %vm3181, %v3174, %v3178
  %v3183 = vand.u32 2147483647, %v2904
  %vm3184 = vcmp.eq.f32.partialorder %v3183, 8.507059e+37
  %v3185 = vand.u32 %v2904, 2147483648
  %v3186 = vor.u32 1.1754944e-38, %v3185
  %v3187 = vsel %vm3184, %v3186, %v3182
  %v3188 = vmul.f32 1.0, %v3187
  %v3189 = vrcp.pop %v2905
  %v3190 = vmul.f32 %v2905, %v3189
  %v3191 = vsub.f32 1.0, %v3190
  %v3192 = vmul.f32 %v3189, %v3191
  %v3193 = vadd.f32 %v3189, %v3192
  %vm3194 = vweird.f32 %v2905
  %vm3195 = vweird.f32 %v3189
  %vm3196 = vmor %vm3194, %vm3195
  %v3197 = vsel %vm3196, %v3189, %v3193
  %v3198 = vand.u32 2147483647, %v2905
  %vm3199 = vcmp.eq.f32.partialorder %v3198, 8.507059e+37
  %v3200 = vand.u32 %v2905, 2147483648
  %v3201 = vor.u32 1.1754944e-38, %v3200
  %v3202 = vsel %vm3199, %v3201, %v3197
  %v3203 = vmul.f32 1.0, %v3202
  %v3204 = vrcp.pop %v2906
  %v3205 = vmul.f32 %v2906, %v3204
  %v3206 = vsub.f32 1.0, %v3205
  %v3207 = vmul.f32 %v3204, %v3206
  %v3208 = vadd.f32 %v3204, %v3207
  %vm3209 = vweird.f32 %v2906
  %vm3210 = vweird.f32 %v3204
  %vm3211 = vmor %vm3209, %vm3210
  %v3212 = vsel %vm3211, %v3204, %v3208
  %v3213 = vand.u32 2147483647, %v2906
  %vm3214 = vcmp.eq.f32.partialorder %v3213, 8.507059e+37
  %v3215 = vand.u32 %v2906, 2147483648
  %v3216 = vor.u32 1.1754944e-38, %v3215
  %v3217 = vsel %vm3214, %v3216, %v3212
  %v3218 = vmul.f32 1.0, %v3217
  %v3219 = vrcp.pop %v2907
  %v3220 = vmul.f32 %v2907, %v3219
  %v3221 = vsub.f32 1.0, %v3220
  %v3222 = vmul.f32 %v3219, %v3221
  %v3223 = vadd.f32 %v3219, %v3222
  %vm3224 = vweird.f32 %v2907
  %vm3225 = vweird.f32 %v3219
  %vm3226 = vmor %vm3224, %vm3225
  %v3227 = vsel %vm3226, %v3219, %v3223
  %v3228 = vand.u32 2147483647, %v2907
  %vm3229 = vcmp.eq.f32.partialorder %v3228, 8.507059e+37
  %v3230 = vand.u32 %v2907, 2147483648
  %v3231 = vor.u32 1.1754944e-38, %v3230
  %v3232 = vsel %vm3229, %v3231, %v3227
  %v3233 = vmul.f32 1.0, %v3232
  %v3234 = vrcp.pop %v2908
  %v3235 = vmul.f32 %v2908, %v3234
  %v3236 = vsub.f32 1.0, %v3235
  %v3237 = vmul.f32 %v3234, %v3236
  %v3238 = vadd.f32 %v3234, %v3237
  %vm3239 = vweird.f32 %v2908
  %vm3240 = vweird.f32 %v3234
  %vm3241 = vmor %vm3239, %vm3240
  %v3242 = vsel %vm3241, %v3234, %v3238
  %v3243 = vand.u32 2147483647, %v2908
  %vm3244 = vcmp.eq.f32.partialorder %v3243, 8.507059e+37
  %v3245 = vand.u32 %v2908, 2147483648
  %v3246 = vor.u32 1.1754944e-38, %v3245
  %v3247 = vsel %vm3244, %v3246, %v3242
  %v3248 = vmul.f32 1.0, %v3247
  %v3249 = vrcp.pop %v2909
  %v3250 = vmul.f32 %v2909, %v3249
  %v3251 = vsub.f32 1.0, %v3250
  %v3252 = vmul.f32 %v3249, %v3251
  %v3253 = vadd.f32 %v3249, %v3252
  %vm3254 = vweird.f32 %v2909
  %vm3255 = vweird.f32 %v3249
  %vm3256 = vmor %vm3254, %vm3255
  %v3257 = vsel %vm3256, %v3249, %v3253
  %v3258 = vand.u32 2147483647, %v2909
  %vm3259 = vcmp.eq.f32.partialorder %v3258, 8.507059e+37
  %v3260 = vand.u32 %v2909, 2147483648
  %v3261 = vor.u32 1.1754944e-38, %v3260
  %v3262 = vsel %vm3259, %v3261, %v3257
  %v3263 = vmul.f32 1.0, %v3262
  %v3264 = vrcp.pop %v2910
  %v3265 = vmul.f32 %v2910, %v3264
  %v3266 = vsub.f32 1.0, %v3265
  %v3267 = vmul.f32 %v3264, %v3266
  %v3268 = vadd.f32 %v3264, %v3267
  %vm3269 = vweird.f32 %v2910
  %vm3270 = vweird.f32 %v3264
  %vm3271 = vmor %vm3269, %vm3270
  %v3272 = vsel %vm3271, %v3264, %v3268
  %v3273 = vand.u32 2147483647, %v2910
  %vm3274 = vcmp.eq.f32.partialorder %v3273, 8.507059e+37
  %v3275 = vand.u32 %v2910, 2147483648
  %v3276 = vor.u32 1.1754944e-38, %v3275
  %v3277 = vsel %vm3274, %v3276, %v3272
  %v3278 = vmul.f32 1.0, %v3277
  %v3279 = vrcp.pop %v2911
  %v3280 = vmul.f32 %v2911, %v3279
  %v3281 = vsub.f32 1.0, %v3280
  %v3282 = vmul.f32 %v3279, %v3281
  %v3283 = vadd.f32 %v3279, %v3282
  %vm3284 = vweird.f32 %v2911
  %vm3285 = vweird.f32 %v3279
  %vm3286 = vmor %vm3284, %vm3285
  %v3287 = vsel %vm3286, %v3279, %v3283
  %v3288 = vand.u32 2147483647, %v2911
  %vm3289 = vcmp.eq.f32.partialorder %v3288, 8.507059e+37
  %v3290 = vand.u32 %v2911, 2147483648
  %v3291 = vor.u32 1.1754944e-38, %v3290
  %v3292 = vsel %vm3289, %v3291, %v3287
  %v3293 = vmul.f32 1.0, %v3292
  %v3294 = vrcp.pop %v2912
  %v3295 = vmul.f32 %v2912, %v3294
  %v3296 = vsub.f32 1.0, %v3295
  %v3297 = vmul.f32 %v3294, %v3296
  %v3298 = vadd.f32 %v3294, %v3297
  %vm3299 = vweird.f32 %v2912
  %vm3300 = vweird.f32 %v3294
  %vm3301 = vmor %vm3299, %vm3300
  %v3302 = vsel %vm3301, %v3294, %v3298
  %v3303 = vand.u32 2147483647, %v2912
  %vm3304 = vcmp.eq.f32.partialorder %v3303, 8.507059e+37
  %v3305 = vand.u32 %v2912, 2147483648
  %v3306 = vor.u32 1.1754944e-38, %v3305
  %v3307 = vsel %vm3304, %v3306, %v3302
  %v3308 = vmul.f32 1.0, %v3307
  %v3309 = vrcp.pop %v2913
  %v3310 = vmul.f32 %v2913, %v3309
  %v3311 = vsub.f32 1.0, %v3310
  %v3312 = vmul.f32 %v3309, %v3311
  %v3313 = vadd.f32 %v3309, %v3312
  %vm3314 = vweird.f32 %v2913
  %vm3315 = vweird.f32 %v3309
  %vm3316 = vmor %vm3314, %vm3315
  %v3317 = vsel %vm3316, %v3309, %v3313
  %v3318 = vand.u32 2147483647, %v2913
  %vm3319 = vcmp.eq.f32.partialorder %v3318, 8.507059e+37
  %v3320 = vand.u32 %v2913, 2147483648
  %v3321 = vor.u32 1.1754944e-38, %v3320
  %v3322 = vsel %vm3319, %v3321, %v3317
  %v3323 = vmul.f32 1.0, %v3322
  %v3324 = vrcp.pop %v2914
  %v3325 = vmul.f32 %v2914, %v3324
  %v3326 = vsub.f32 1.0, %v3325
  %v3327 = vmul.f32 %v3324, %v3326
  %v3328 = vadd.f32 %v3324, %v3327
  %vm3329 = vweird.f32 %v2914
  %vm3330 = vweird.f32 %v3324
  %vm3331 = vmor %vm3329, %vm3330
  %v3332 = vsel %vm3331, %v3324, %v3328
  %v3333 = vand.u32 2147483647, %v2914
  %vm3334 = vcmp.eq.f32.partialorder %v3333, 8.507059e+37
  %v3335 = vand.u32 %v2914, 2147483648
  %v3336 = vor.u32 1.1754944e-38, %v3335
  %v3337 = vsel %vm3334, %v3336, %v3332
  %v3338 = vmul.f32 1.0, %v3337
  %v3339 = vrcp.pop %v2915
  %v3340 = vmul.f32 %v2915, %v3339
  %v3341 = vsub.f32 1.0, %v3340
  %v3342 = vmul.f32 %v3339, %v3341
  %v3343 = vadd.f32 %v3339, %v3342
  %vm3344 = vweird.f32 %v2915
  %vm3345 = vweird.f32 %v3339
  %vm3346 = vmor %vm3344, %vm3345
  %v3347 = vsel %vm3346, %v3339, %v3343
  %v3348 = vand.u32 2147483647, %v2915
  %vm3349 = vcmp.eq.f32.partialorder %v3348, 8.507059e+37
  %v3350 = vand.u32 %v2915, 2147483648
  %v3351 = vor.u32 1.1754944e-38, %v3350
  %v3352 = vsel %vm3349, %v3351, %v3347
  %v3353 = vmul.f32 1.0, %v3352
  %v3354 = vrcp.pop %v2916
  %v3355 = vmul.f32 %v2916, %v3354
  %v3356 = vsub.f32 1.0, %v3355
  %v3357 = vmul.f32 %v3354, %v3356
  %v3358 = vadd.f32 %v3354, %v3357
  %vm3359 = vweird.f32 %v2916
  %vm3360 = vweird.f32 %v3354
  %vm3361 = vmor %vm3359, %vm3360
  %v3362 = vsel %vm3361, %v3354, %v3358
  %v3363 = vand.u32 2147483647, %v2916
  %vm3364 = vcmp.eq.f32.partialorder %v3363, 8.507059e+37
  %v3365 = vand.u32 %v2916, 2147483648
  %v3366 = vor.u32 1.1754944e-38, %v3365
  %v3367 = vsel %vm3364, %v3366, %v3362
  %v3368 = vmul.f32 1.0, %v3367
  %v3369 = vrcp.pop %v2917
  %v3370 = vmul.f32 %v2917, %v3369
  %v3371 = vsub.f32 1.0, %v3370
  %v3372 = vmul.f32 %v3369, %v3371
  %v3373 = vadd.f32 %v3369, %v3372
  %vm3374 = vweird.f32 %v2917
  %vm3375 = vweird.f32 %v3369
  %vm3376 = vmor %vm3374, %vm3375
  %v3377 = vsel %vm3376, %v3369, %v3373
  %v3378 = vand.u32 2147483647, %v2917
  %vm3379 = vcmp.eq.f32.partialorder %v3378, 8.507059e+37
  %v3380 = vand.u32 %v2917, 2147483648
  %v3381 = vor.u32 1.1754944e-38, %v3380
  %v3382 = vsel %vm3379, %v3381, %v3377
  %v3383 = vmul.f32 1.0, %v3382
  %v3384 = vrcp.pop %v2918
  %v3385 = vmul.f32 %v2918, %v3384
  %v3386 = vsub.f32 1.0, %v3385
  %v3387 = vmul.f32 %v3384, %v3386
  %v3388 = vadd.f32 %v3384, %v3387
  %vm3389 = vweird.f32 %v2918
  %vm3390 = vweird.f32 %v3384
  %vm3391 = vmor %vm3389, %vm3390
  %v3392 = vsel %vm3391, %v3384, %v3388
  %v3393 = vand.u32 2147483647, %v2918
  %vm3394 = vcmp.eq.f32.partialorder %v3393, 8.507059e+37
  %v3395 = vand.u32 %v2918, 2147483648
  %v3396 = vor.u32 1.1754944e-38, %v3395
  %v3397 = vsel %vm3394, %v3396, %v3392
  %v3398 = vmul.f32 1.0, %v3397
  %3431 = vrot.lane.b32.xlu0 %v2933, 96
  %v3432 = vpop.permute.xlu0 %3431
  %3433 = vrot.lane.b32.xlu0 %v2948, 96
  %v3434 = vpop.permute.xlu0 %3433
  %3435 = vrot.lane.b32.xlu0 %v2963, 96
  %v3436 = vpop.permute.xlu0 %3435
  %3437 = vrot.lane.b32.xlu0 %v2978, 96
  %v3438 = vpop.permute.xlu0 %3437
  %3439 = vrot.lane.b32.xlu0 %v2993, 96
  %v3440 = vpop.permute.xlu0 %3439
  %3441 = vrot.lane.b32.xlu0 %v3008, 96
  %v3442 = vpop.permute.xlu0 %3441
  %3443 = vrot.lane.b32.xlu0 %v3023, 96
  %v3444 = vpop.permute.xlu0 %3443
  %3445 = vrot.lane.b32.xlu0 %v3038, 96
  %v3446 = vpop.permute.xlu0 %3445
  %3447 = vrot.lane.b32.xlu0 %v3053, 96
  %v3448 = vpop.permute.xlu0 %3447
  %3449 = vrot.lane.b32.xlu0 %v3068, 96
  %v3450 = vpop.permute.xlu0 %3449
  %3451 = vrot.lane.b32.xlu0 %v3083, 96
  %v3452 = vpop.permute.xlu0 %3451
  %3453 = vrot.lane.b32.xlu0 %v3098, 96
  %v3454 = vpop.permute.xlu0 %3453
  %3455 = vrot.lane.b32.xlu0 %v3113, 96
  %v3456 = vpop.permute.xlu0 %3455
  %3457 = vrot.lane.b32.xlu0 %v3128, 96
  %v3458 = vpop.permute.xlu0 %3457
  %3459 = vrot.lane.b32.xlu0 %v3143, 96
  %v3460 = vpop.permute.xlu0 %3459
  %3461 = vrot.lane.b32.xlu0 %v3158, 96
  %v3462 = vpop.permute.xlu0 %3461
  %3463 = vrot.lane.b32.xlu0 %v3173, 96
  %v3464 = vpop.permute.xlu0 %3463
  %3465 = vrot.lane.b32.xlu0 %v3188, 96
  %v3466 = vpop.permute.xlu0 %3465
  %3467 = vrot.lane.b32.xlu0 %v3203, 96
  %v3468 = vpop.permute.xlu0 %3467
  %3469 = vrot.lane.b32.xlu0 %v3218, 96
  %v3470 = vpop.permute.xlu0 %3469
  %3471 = vrot.lane.b32.xlu0 %v3233, 96
  %v3472 = vpop.permute.xlu0 %3471
  %3473 = vrot.lane.b32.xlu0 %v3248, 96
  %v3474 = vpop.permute.xlu0 %3473
  %3475 = vrot.lane.b32.xlu0 %v3263, 96
  %v3476 = vpop.permute.xlu0 %3475
  %3477 = vrot.lane.b32.xlu0 %v3278, 96
  %v3478 = vpop.permute.xlu0 %3477
  %3479 = vrot.lane.b32.xlu0 %v3293, 96
  %v3480 = vpop.permute.xlu0 %3479
  %3481 = vrot.lane.b32.xlu0 %v3308, 96
  %v3482 = vpop.permute.xlu0 %3481
  %3483 = vrot.lane.b32.xlu0 %v3323, 96
  %v3484 = vpop.permute.xlu0 %3483
  %3485 = vrot.lane.b32.xlu0 %v3338, 96
  %v3486 = vpop.permute.xlu0 %3485
  %3487 = vrot.lane.b32.xlu0 %v3353, 96
  %v3488 = vpop.permute.xlu0 %3487
  %3489 = vrot.lane.b32.xlu0 %v3368, 96
  %v3490 = vpop.permute.xlu0 %3489
  %3491 = vrot.lane.b32.xlu0 %v3383, 96
  %v3492 = vpop.permute.xlu0 %3491
  %3493 = vrot.lane.b32.xlu0 %v3398, 96
  %v3494 = vpop.permute.xlu0 %3493
  %v3527 = vmul.f32 %v2712, %v3432
  %v3528 = vmul.f32 %v2714, %v3434
  %v3529 = vmul.f32 %v2717, %v3436
  %v3530 = vmul.f32 %v2719, %v3438
  %v3531 = vmul.f32 %v2722, %v3440
  %v3532 = vmul.f32 %v2724, %v3442
  %v3533 = vmul.f32 %v2727, %v3444
  %v3534 = vmul.f32 %v2729, %v3446
  %v3535 = vmul.f32 %v2732, %v3448
  %v3536 = vmul.f32 %v2734, %v3450
  %v3537 = vmul.f32 %v2737, %v3452
  %v3538 = vmul.f32 %v2739, %v3454
  %v3539 = vmul.f32 %v2742, %v3456
  %v3540 = vmul.f32 %v2744, %v3458
  %v3541 = vmul.f32 %v2747, %v3460
  %v3542 = vmul.f32 %v2749, %v3462
  %v3543 = vmul.f32 %v2752, %v3464
  %v3544 = vmul.f32 %v2754, %v3466
  %v3545 = vmul.f32 %v2757, %v3468
  %v3546 = vmul.f32 %v2759, %v3470
  %v3547 = vmul.f32 %v2762, %v3472
  %v3548 = vmul.f32 %v2764, %v3474
  %v3549 = vmul.f32 %v2767, %v3476
  %v3550 = vmul.f32 %v2769, %v3478
  %v3551 = vmul.f32 %v2772, %v3480
  %v3552 = vmul.f32 %v2774, %v3482
  %v3553 = vmul.f32 %v2777, %v3484
  %v3554 = vmul.f32 %v2779, %v3486
  %v3555 = vmul.f32 %v2782, %v3488
  %v3556 = vmul.f32 %v2784, %v3490
  %v3557 = vmul.f32 %v2787, %v3492
  %v3558 = vmul.f32 %v2789, %v3494
  %v3559 = vpack.c.bf16 %v3527, %v3527
  %v3560 = vpack.c.bf16 %v3528, %v3528
  %v3561 = vpack.c.bf16 %v3529, %v3529
  %v3562 = vpack.c.bf16 %v3530, %v3530
  %v3563 = vpack.c.bf16 %v3531, %v3531
  %v3564 = vpack.c.bf16 %v3532, %v3532
  %v3565 = vpack.c.bf16 %v3533, %v3533
  %v3566 = vpack.c.bf16 %v3534, %v3534
  %v3567 = vpack.c.bf16 %v3535, %v3535
  %v3568 = vpack.c.bf16 %v3536, %v3536
  %v3569 = vpack.c.bf16 %v3537, %v3537
  %v3570 = vpack.c.bf16 %v3538, %v3538
  %v3571 = vpack.c.bf16 %v3539, %v3539
  %v3572 = vpack.c.bf16 %v3540, %v3540
  %v3573 = vpack.c.bf16 %v3541, %v3541
  %v3574 = vpack.c.bf16 %v3542, %v3542
  %v3575 = vpack.c.bf16 %v3543, %v3543
  %v3576 = vpack.c.bf16 %v3544, %v3544
  %v3577 = vpack.c.bf16 %v3545, %v3545
  %v3578 = vpack.c.bf16 %v3546, %v3546
  %v3579 = vpack.c.bf16 %v3547, %v3547
  %v3580 = vpack.c.bf16 %v3548, %v3548
  %v3581 = vpack.c.bf16 %v3549, %v3549
  %v3582 = vpack.c.bf16 %v3550, %v3550
  %v3583 = vpack.c.bf16 %v3551, %v3551
  %v3584 = vpack.c.bf16 %v3552, %v3552
  %v3585 = vpack.c.bf16 %v3553, %v3553
  %v3586 = vpack.c.bf16 %v3554, %v3554
  %v3587 = vpack.c.bf16 %v3555, %v3555
  %v3588 = vpack.c.bf16 %v3556, %v3556
  %v3589 = vpack.c.bf16 %v3557, %v3557
  %v3590 = vpack.c.bf16 %v3558, %v3558
  %v3623 = vunpack.c.l.b16 %v3559
  %v3624 = vunpack.c.l.b16 %v3560
  %v3625 = vunpack.c.l.b16 %v3561
  %v3626 = vunpack.c.l.b16 %v3562
  %v3627 = vunpack.c.l.b16 %v3563
  %v3628 = vunpack.c.l.b16 %v3564
  %v3629 = vunpack.c.l.b16 %v3565
  %v3630 = vunpack.c.l.b16 %v3566
  %v3631 = vunpack.c.l.b16 %v3567
  %v3632 = vunpack.c.l.b16 %v3568
  %v3633 = vunpack.c.l.b16 %v3569
  %v3634 = vunpack.c.l.b16 %v3570
  %v3635 = vunpack.c.l.b16 %v3571
  %v3636 = vunpack.c.l.b16 %v3572
  %v3637 = vunpack.c.l.b16 %v3573
  %v3638 = vunpack.c.l.b16 %v3574
  %v3639 = vunpack.c.l.b16 %v3575
  %v3640 = vunpack.c.l.b16 %v3576
  %v3641 = vunpack.c.l.b16 %v3577
  %v3642 = vunpack.c.l.b16 %v3578
  %v3643 = vunpack.c.l.b16 %v3579
  %v3644 = vunpack.c.l.b16 %v3580
  %v3645 = vunpack.c.l.b16 %v3581
  %v3646 = vunpack.c.l.b16 %v3582
  %v3647 = vunpack.c.l.b16 %v3583
  %v3648 = vunpack.c.l.b16 %v3584
  %v3649 = vunpack.c.l.b16 %v3585
  %v3650 = vunpack.c.l.b16 %v3586
  %v3651 = vunpack.c.l.b16 %v3587
  %v3652 = vunpack.c.l.b16 %v3588
  %v3653 = vunpack.c.l.b16 %v3589
  %v3654 = vunpack.c.l.b16 %v3590
  %v3655 = vpack.c.b16 %v3624, %v3623
  %v3656 = vpack.c.b16 %v3626, %v3625
  %v3657 = vpack.c.b16 %v3628, %v3627
  %v3658 = vpack.c.b16 %v3630, %v3629
  %v3659 = vpack.c.b16 %v3632, %v3631
  %v3660 = vpack.c.b16 %v3634, %v3633
  %v3661 = vpack.c.b16 %v3636, %v3635
  %v3662 = vpack.c.b16 %v3638, %v3637
  %v3663 = vpack.c.b16 %v3640, %v3639
  %v3664 = vpack.c.b16 %v3642, %v3641
  %v3665 = vpack.c.b16 %v3644, %v3643
  %v3666 = vpack.c.b16 %v3646, %v3645
  %v3667 = vpack.c.b16 %v3648, %v3647
  %v3668 = vpack.c.b16 %v3650, %v3649
  %v3669 = vpack.c.b16 %v3652, %v3651
  %v3670 = vpack.c.b16 %v3654, %v3653
  %3671 = vrot.lane.b32.xlu0 %v3655, 32
  %v3672 = vpop.permute.xlu0 %3671
  %3673 = vrot.lane.b32.xlu0 %v3656, 32
  %v3674 = vpop.permute.xlu0 %3673
  %3675 = vrot.lane.b32.xlu0 %v3657, 32
  %v3676 = vpop.permute.xlu0 %3675
  %3677 = vrot.lane.b32.xlu0 %v3658, 32
  %v3678 = vpop.permute.xlu0 %3677
  %3679 = vrot.lane.b32.xlu0 %v3659, 32
  %v3680 = vpop.permute.xlu0 %3679
  %3681 = vrot.lane.b32.xlu0 %v3660, 32
  %v3682 = vpop.permute.xlu0 %3681
  %3683 = vrot.lane.b32.xlu0 %v3661, 32
  %v3684 = vpop.permute.xlu0 %3683
  %3685 = vrot.lane.b32.xlu0 %v3662, 32
  %v3686 = vpop.permute.xlu0 %3685
  %3687 = vrot.lane.b32.xlu0 %v3663, 32
  %v3688 = vpop.permute.xlu0 %3687
  %3689 = vrot.lane.b32.xlu0 %v3664, 32
  %v3690 = vpop.permute.xlu0 %3689
  %3691 = vrot.lane.b32.xlu0 %v3665, 32
  %v3692 = vpop.permute.xlu0 %3691
  %3693 = vrot.lane.b32.xlu0 %v3666, 32
  %v3694 = vpop.permute.xlu0 %3693
  %3695 = vrot.lane.b32.xlu0 %v3667, 32
  %v3696 = vpop.permute.xlu0 %3695
  %3697 = vrot.lane.b32.xlu0 %v3668, 32
  %v3698 = vpop.permute.xlu0 %3697
  %3699 = vrot.lane.b32.xlu0 %v3669, 32
  %v3700 = vpop.permute.xlu0 %3699
  %3701 = vrot.lane.b32.xlu0 %v3670, 32
  %v3702 = vpop.permute.xlu0 %3701
  %3703 = vrot.lane.b32.xlu0 %v3657, 64
  %v3704 = vpop.permute.xlu0 %3703
  %3705 = vrot.lane.b32.xlu0 %v3658, 64
  %v3706 = vpop.permute.xlu0 %3705
  %3707 = vrot.lane.b32.xlu0 %v3659, 64
  %v3708 = vpop.permute.xlu0 %3707
  %3709 = vrot.lane.b32.xlu0 %v3660, 64
  %v3710 = vpop.permute.xlu0 %3709
  %3711 = vrot.lane.b32.xlu0 %v3661, 64
  %v3712 = vpop.permute.xlu0 %3711
  %3713 = vrot.lane.b32.xlu0 %v3662, 64
  %v3714 = vpop.permute.xlu0 %3713
  %3715 = vrot.lane.b32.xlu0 %v3663, 64
  %v3716 = vpop.permute.xlu0 %3715
  %3717 = vrot.lane.b32.xlu0 %v3664, 64
  %v3718 = vpop.permute.xlu0 %3717
  %3719 = vrot.lane.b32.xlu0 %v3665, 64
  %v3720 = vpop.permute.xlu0 %3719
  %3721 = vrot.lane.b32.xlu0 %v3666, 64
  %v3722 = vpop.permute.xlu0 %3721
  %3723 = vrot.lane.b32.xlu0 %v3667, 64
  %v3724 = vpop.permute.xlu0 %3723
  %3725 = vrot.lane.b32.xlu0 %v3668, 64
  %v3726 = vpop.permute.xlu0 %3725
  %3727 = vrot.lane.b32.xlu0 %v3669, 64
  %v3728 = vpop.permute.xlu0 %3727
  %3729 = vrot.lane.b32.xlu0 %v3670, 64
  %v3730 = vpop.permute.xlu0 %3729
  %v3732 = vsel %vm2031, 0, %v3672
  %v3734 = vsel %vm2031, 0, %v3674
  %v3737 = vsel %vm2031, %v3655, %v3676
  %v3740 = vsel %vm2031, %v3656, %v3678
  %v3743 = vsel %vm2031, %v3657, %v3680
  %v3746 = vsel %vm2031, %v3658, %v3682
  %v3749 = vsel %vm2031, %v3659, %v3684
  %v3752 = vsel %vm2031, %v3660, %v3686
  %v3755 = vsel %vm2031, %v3661, %v3688
  %v3758 = vsel %vm2031, %v3662, %v3690
  %v3761 = vsel %vm2031, %v3663, %v3692
  %v3764 = vsel %vm2031, %v3664, %v3694
  %v3767 = vsel %vm2031, %v3665, %v3696
  %v3770 = vsel %vm2031, %v3666, %v3698
  %v3773 = vsel %vm2031, %v3667, %v3700
  %v3776 = vsel %vm2031, %v3668, %v3702
  %v3778 = vsel %vm2064, %v3732, %v3704
  %v3780 = vsel %vm2064, %v3734, %v3706
  %v3782 = vsel %vm2064, %v3737, %v3708
  %v3784 = vsel %vm2064, %v3740, %v3710
  %v3786 = vsel %vm2064, %v3743, %v3712
  %v3788 = vsel %vm2064, %v3746, %v3714
  %v3790 = vsel %vm2064, %v3749, %v3716
  %v3792 = vsel %vm2064, %v3752, %v3718
  %v3794 = vsel %vm2064, %v3755, %v3720
  %v3796 = vsel %vm2064, %v3758, %v3722
  %v3798 = vsel %vm2064, %v3761, %v3724
  %v3800 = vsel %vm2064, %v3764, %v3726
  %v3802 = vsel %vm2064, %v3767, %v3728
  %v3804 = vsel %vm2064, %v3770, %v3730
  %v3805 = vsel %vm2064, %v3773, %v2540
  %v3806 = vsel %vm2064, %v3776, %v2540
  %v3807 = vld [vmem:[%s8] sm:$0xf]
  %v3808 = vld [vmem:[%s8 + $0x4] sm:$0xf]
  %v3809 = vld [vmem:[%s8 + $0x8] sm:$0xf]
  %v3810 = vld [vmem:[%s8 + $0xc] sm:$0xf]
  %v3811 = vld [vmem:[%s8 + $0x10] sm:$0xf]
  %v3812 = vld [vmem:[%s8 + $0x14] sm:$0xf]
  %v3813 = vld [vmem:[%s8 + $0x18] sm:$0xf]
  %v3814 = vld [vmem:[%s8 + $0x1c] sm:$0xf]
  %v3815 = vld [vmem:[%s8 + $0x20] sm:$0xf]
  %v3816 = vld [vmem:[%s8 + $0x24] sm:$0xf]
  %v3817 = vld [vmem:[%s8 + $0x28] sm:$0xf]
  %v3818 = vld [vmem:[%s8 + $0x2c] sm:$0xf]
  %v3819 = vld [vmem:[%s9] sm:$0x1]
  %v3821 = vperm.slane %v3819, 0
  %v3835 = vunpack.c.l.b16 %v3807
  %v3836 = vunpack.c.l.b16 %v3808
  %v3837 = vunpack.c.l.b16 %v3809
  %v3838 = vunpack.c.l.b16 %v3810
  %v3839 = vunpack.c.l.b16 %v3811
  %v3840 = vunpack.c.l.b16 %v3812
  %v3841 = vunpack.c.l.b16 %v3813
  %v3842 = vunpack.c.l.b16 %v3814
  %v3843 = vunpack.c.l.b16 %v3815
  %v3844 = vunpack.c.l.b16 %v3816
  %v3845 = vunpack.c.l.b16 %v3817
  %v3846 = vunpack.c.l.b16 %v3818
  %v3847 = vpack.c.b16 %v3836, %v3835
  %v3848 = vpack.c.b16 %v3838, %v3837
  %v3849 = vpack.c.b16 %v3840, %v3839
  %v3850 = vpack.c.b16 %v3842, %v3841
  %v3851 = vpack.c.b16 %v3844, %v3843
  %v3852 = vpack.c.b16 %v3846, %v3845
  %v3859 = vsel %vm2125, %v3778, 0
  %v3861 = vsel %vm2125, %v3780, 0
  %v3863 = vsel %vm2125, %v3782, 0
  %v3865 = vsel %vm2125, %v3784, 0
  %v3867 = vsel %vm2125, %v3786, 0
  %v3869 = vsel %vm2125, %v3788, 0
  %v3871 = vsel %vm2125, %v3790, 0
  %v3873 = vsel %vm2125, %v3792, 0
  %v3875 = vsel %vm2125, %v3794, 0
  %v3877 = vsel %vm2125, %v3796, 0
  %v3879 = vsel %vm2125, %v3798, 0
  %v3881 = vsel %vm2125, %v3800, 0
  %v3883 = vsel %vm2125, %v3802, 0
  %v3885 = vsel %vm2125, %v3804, 0
  %v3887 = vsel %vm2125, %v3805, 0
  %v3889 = vsel %vm2125, %v3806, 0
  %3891 = vmatpush.bf16.msra.mxu0 0
  %3892 = vmatpush.bf16.msra.mxu0 0
  %3893 = vmatpush.bf16.msra.mxu0 %v3852
  %3894 = vmatpush.bf16.msra.mxu0 %v3851
  %3895 = vmatpush.bf16.msra.mxu0 %v3850
  %3896 = vmatpush.bf16.msra.mxu0 %v3849
  %3897 = vmatpush.bf16.msra.mxu0 %v3848
  %3898 = vmatpush.bf16.msra.mxu0 %v3847
  %3899 = vmatmul.bf16.gmra.mxu0 %v3859
  %v3900 = vpop.f32.mrf.mxu0
  %v3901 = vadd.f32 %v3821, %v3900
  %v3902 = vpop.f32.mrf.mxu0
  %v3903 = vadd.f32 %v3821, %v3902
  %3904 = vmatmul.bf16.gmra.mxu0 %v3861
  %v3905 = vpop.f32.mrf.mxu0
  %v3906 = vadd.f32 %v3821, %v3905
  %v3907 = vpop.f32.mrf.mxu0
  %v3908 = vadd.f32 %v3821, %v3907
  %3909 = vmatmul.bf16.gmra.mxu0 %v3863
  %v3910 = vpop.f32.mrf.mxu0
  %v3911 = vadd.f32 %v3821, %v3910
  %v3912 = vpop.f32.mrf.mxu0
  %v3913 = vadd.f32 %v3821, %v3912
  %3914 = vmatmul.bf16.gmra.mxu0 %v3865
  %v3915 = vpop.f32.mrf.mxu0
  %v3916 = vadd.f32 %v3821, %v3915
  %v3917 = vpop.f32.mrf.mxu0
  %v3918 = vadd.f32 %v3821, %v3917
  %3919 = vmatmul.bf16.gmra.mxu0 %v3867
  %v3920 = vpop.f32.mrf.mxu0
  %v3921 = vadd.f32 %v3821, %v3920
  %v3922 = vpop.f32.mrf.mxu0
  %v3923 = vadd.f32 %v3821, %v3922
  %3924 = vmatmul.bf16.gmra.mxu0 %v3869
  %v3925 = vpop.f32.mrf.mxu0
  %v3926 = vadd.f32 %v3821, %v3925
  %v3927 = vpop.f32.mrf.mxu0
  %v3928 = vadd.f32 %v3821, %v3927
  %3929 = vmatmul.bf16.gmra.mxu0 %v3871
  %v3930 = vpop.f32.mrf.mxu0
  %v3931 = vadd.f32 %v3821, %v3930
  %v3932 = vpop.f32.mrf.mxu0
  %v3933 = vadd.f32 %v3821, %v3932
  %3934 = vmatmul.bf16.gmra.mxu0 %v3873
  %v3935 = vpop.f32.mrf.mxu0
  %v3936 = vadd.f32 %v3821, %v3935
  %v3937 = vpop.f32.mrf.mxu0
  %v3938 = vadd.f32 %v3821, %v3937
  %3939 = vmatmul.bf16.gmra.mxu0 %v3875
  %v3940 = vpop.f32.mrf.mxu0
  %v3941 = vadd.f32 %v3821, %v3940
  %v3942 = vpop.f32.mrf.mxu0
  %v3943 = vadd.f32 %v3821, %v3942
  %3944 = vmatmul.bf16.gmra.mxu0 %v3877
  %v3945 = vpop.f32.mrf.mxu0
  %v3946 = vadd.f32 %v3821, %v3945
  %v3947 = vpop.f32.mrf.mxu0
  %v3948 = vadd.f32 %v3821, %v3947
  %3949 = vmatmul.bf16.gmra.mxu0 %v3879
  %v3950 = vpop.f32.mrf.mxu0
  %v3951 = vadd.f32 %v3821, %v3950
  %v3952 = vpop.f32.mrf.mxu0
  %v3953 = vadd.f32 %v3821, %v3952
  %3954 = vmatmul.bf16.gmra.mxu0 %v3881
  %v3955 = vpop.f32.mrf.mxu0
  %v3956 = vadd.f32 %v3821, %v3955
  %v3957 = vpop.f32.mrf.mxu0
  %v3958 = vadd.f32 %v3821, %v3957
  %3959 = vmatmul.bf16.gmra.mxu0 %v3883
  %v3960 = vpop.f32.mrf.mxu0
  %v3961 = vadd.f32 %v3821, %v3960
  %v3962 = vpop.f32.mrf.mxu0
  %v3963 = vadd.f32 %v3821, %v3962
  %3964 = vmatmul.bf16.gmra.mxu0 %v3885
  %v3965 = vpop.f32.mrf.mxu0
  %v3966 = vadd.f32 %v3821, %v3965
  %v3967 = vpop.f32.mrf.mxu0
  %v3968 = vadd.f32 %v3821, %v3967
  %3969 = vmatmul.bf16.gmra.mxu0 %v3887
  %v3970 = vpop.f32.mrf.mxu0
  %v3971 = vadd.f32 %v3821, %v3970
  %v3972 = vpop.f32.mrf.mxu0
  %v3973 = vadd.f32 %v3821, %v3972
  %3974 = vmatmul.bf16.gmra.mxu0 %v3889
  %v3975 = vpop.f32.mrf.mxu0
  %v3976 = vadd.f32 %v3821, %v3975
  %v3977 = vpop.f32.mrf.mxu0
  %v3978 = vadd.f32 %v3821, %v3977
  %3979 = vdwg.mxu0
  %v3980 = vxor.u32 %v3901, 2147483648
  %v3981 = vxor.u32 %v3903, 2147483648
  %v3982 = vxor.u32 %v3906, 2147483648
  %v3983 = vxor.u32 %v3908, 2147483648
  %v3984 = vxor.u32 %v3911, 2147483648
  %v3985 = vxor.u32 %v3913, 2147483648
  %v3986 = vxor.u32 %v3916, 2147483648
  %v3987 = vxor.u32 %v3918, 2147483648
  %v3988 = vxor.u32 %v3921, 2147483648
  %v3989 = vxor.u32 %v3923, 2147483648
  %v3990 = vxor.u32 %v3926, 2147483648
  %v3991 = vxor.u32 %v3928, 2147483648
  %v3992 = vxor.u32 %v3931, 2147483648
  %v3993 = vxor.u32 %v3933, 2147483648
  %v3994 = vxor.u32 %v3936, 2147483648
  %v3995 = vxor.u32 %v3938, 2147483648
  %v3996 = vxor.u32 %v3941, 2147483648
  %v3997 = vxor.u32 %v3943, 2147483648
  %v3998 = vxor.u32 %v3946, 2147483648
  %v3999 = vxor.u32 %v3948, 2147483648
  %v4000 = vxor.u32 %v3951, 2147483648
  %v4001 = vxor.u32 %v3953, 2147483648
  %v4002 = vxor.u32 %v3956, 2147483648
  %v4003 = vxor.u32 %v3958, 2147483648
  %v4004 = vxor.u32 %v3961, 2147483648
  %v4005 = vxor.u32 %v3963, 2147483648
  %v4006 = vxor.u32 %v3966, 2147483648
  %v4007 = vxor.u32 %v3968, 2147483648
  %v4008 = vxor.u32 %v3971, 2147483648
  %v4009 = vxor.u32 %v3973, 2147483648
  %v4010 = vxor.u32 %v3976, 2147483648
  %v4011 = vxor.u32 %v3978, 2147483648
  %v4012 = vmul.f32 %v3980, 1.442695
  %v4013 = vpow.pop %v4012
  %v4014 = vmul.f32 %v3981, 1.442695
  %v4015 = vpow.pop %v4014
  %v4016 = vmul.f32 %v3982, 1.442695
  %v4017 = vpow.pop %v4016
  %v4018 = vmul.f32 %v3983, 1.442695
  %v4019 = vpow.pop %v4018
  %v4020 = vmul.f32 %v3984, 1.442695
  %v4021 = vpow.pop %v4020
  %v4022 = vmul.f32 %v3985, 1.442695
  %v4023 = vpow.pop %v4022
  %v4024 = vmul.f32 %v3986, 1.442695
  %v4025 = vpow.pop %v4024
  %v4026 = vmul.f32 %v3987, 1.442695
  %v4027 = vpow.pop %v4026
  %v4028 = vmul.f32 %v3988, 1.442695
  %v4029 = vpow.pop %v4028
  %v4030 = vmul.f32 %v3989, 1.442695
  %v4031 = vpow.pop %v4030
  %v4032 = vmul.f32 %v3990, 1.442695
  %v4033 = vpow.pop %v4032
  %v4034 = vmul.f32 %v3991, 1.442695
  %v4035 = vpow.pop %v4034
  %v4036 = vmul.f32 %v3992, 1.442695
  %v4037 = vpow.pop %v4036
  %v4038 = vmul.f32 %v3993, 1.442695
  %v4039 = vpow.pop %v4038
  %v4040 = vmul.f32 %v3994, 1.442695
  %v4041 = vpow.pop %v4040
  %v4042 = vmul.f32 %v3995, 1.442695
  %v4043 = vpow.pop %v4042
  %v4044 = vmul.f32 %v3996, 1.442695
  %v4045 = vpow.pop %v4044
  %v4046 = vmul.f32 %v3997, 1.442695
  %v4047 = vpow.pop %v4046
  %v4048 = vmul.f32 %v3998, 1.442695
  %v4049 = vpow.pop %v4048
  %v4050 = vmul.f32 %v3999, 1.442695
  %v4051 = vpow.pop %v4050
  %v4052 = vmul.f32 %v4000, 1.442695
  %v4053 = vpow.pop %v4052
  %v4054 = vmul.f32 %v4001, 1.442695
  %v4055 = vpow.pop %v4054
  %v4056 = vmul.f32 %v4002, 1.442695
  %v4057 = vpow.pop %v4056
  %v4058 = vmul.f32 %v4003, 1.442695
  %v4059 = vpow.pop %v4058
  %v4060 = vmul.f32 %v4004, 1.442695
  %v4061 = vpow.pop %v4060
  %v4062 = vmul.f32 %v4005, 1.442695
  %v4063 = vpow.pop %v4062
  %v4064 = vmul.f32 %v4006, 1.442695
  %v4065 = vpow.pop %v4064
  %v4066 = vmul.f32 %v4007, 1.442695
  %v4067 = vpow.pop %v4066
  %v4068 = vmul.f32 %v4008, 1.442695
  %v4069 = vpow.pop %v4068
  %v4070 = vmul.f32 %v4009, 1.442695
  %v4071 = vpow.pop %v4070
  %v4072 = vmul.f32 %v4010, 1.442695
  %v4073 = vpow.pop %v4072
  %v4074 = vmul.f32 %v4011, 1.442695
  %v4075 = vpow.pop %v4074
  %v4076 = vadd.f32 %v4013, 1.0
  %v4077 = vadd.f32 %v4015, 1.0
  %v4078 = vadd.f32 %v4017, 1.0
  %v4079 = vadd.f32 %v4019, 1.0
  %v4080 = vadd.f32 %v4021, 1.0
  %v4081 = vadd.f32 %v4023, 1.0
  %v4082 = vadd.f32 %v4025, 1.0
  %v4083 = vadd.f32 %v4027, 1.0
  %v4084 = vadd.f32 %v4029, 1.0
  %v4085 = vadd.f32 %v4031, 1.0
  %v4086 = vadd.f32 %v4033, 1.0
  %v4087 = vadd.f32 %v4035, 1.0
  %v4088 = vadd.f32 %v4037, 1.0
  %v4089 = vadd.f32 %v4039, 1.0
  %v4090 = vadd.f32 %v4041, 1.0
  %v4091 = vadd.f32 %v4043, 1.0
  %v4092 = vadd.f32 %v4045, 1.0
  %v4093 = vadd.f32 %v4047, 1.0
  %v4094 = vadd.f32 %v4049, 1.0
  %v4095 = vadd.f32 %v4051, 1.0
  %v4096 = vadd.f32 %v4053, 1.0
  %v4097 = vadd.f32 %v4055, 1.0
  %v4098 = vadd.f32 %v4057, 1.0
  %v4099 = vadd.f32 %v4059, 1.0
  %v4100 = vadd.f32 %v4061, 1.0
  %v4101 = vadd.f32 %v4063, 1.0
  %v4102 = vadd.f32 %v4065, 1.0
  %v4103 = vadd.f32 %v4067, 1.0
  %v4104 = vadd.f32 %v4069, 1.0
  %v4105 = vadd.f32 %v4071, 1.0
  %v4106 = vadd.f32 %v4073, 1.0
  %v4107 = vadd.f32 %v4075, 1.0
  %v4108 = vrcp.pop %v4076
  %v4109 = vmul.f32 %v4076, %v4108
  %v4110 = vsub.f32 1.0, %v4109
  %v4111 = vmul.f32 %v4108, %v4110
  %v4112 = vadd.f32 %v4108, %v4111
  %vm4113 = vweird.f32 %v4076
  %vm4114 = vweird.f32 %v4108
  %vm4115 = vmor %vm4113, %vm4114
  %v4116 = vsel %vm4115, %v4108, %v4112
  %v4117 = vand.u32 2147483647, %v4076
  %vm4118 = vcmp.eq.f32.partialorder %v4117, 8.507059e+37
  %v4119 = vand.u32 %v4076, 2147483648
  %v4120 = vor.u32 1.1754944e-38, %v4119
  %v4121 = vsel %vm4118, %v4120, %v4116
  %v4122 = vmul.f32 1.0, %v4121
  %v4123 = vrcp.pop %v4077
  %v4124 = vmul.f32 %v4077, %v4123
  %v4125 = vsub.f32 1.0, %v4124
  %v4126 = vmul.f32 %v4123, %v4125
  %v4127 = vadd.f32 %v4123, %v4126
  %vm4128 = vweird.f32 %v4077
  %vm4129 = vweird.f32 %v4123
  %vm4130 = vmor %vm4128, %vm4129
  %v4131 = vsel %vm4130, %v4123, %v4127
  %v4132 = vand.u32 2147483647, %v4077
  %vm4133 = vcmp.eq.f32.partialorder %v4132, 8.507059e+37
  %v4134 = vand.u32 %v4077, 2147483648
  %v4135 = vor.u32 1.1754944e-38, %v4134
  %v4136 = vsel %vm4133, %v4135, %v4131
  %v4137 = vmul.f32 1.0, %v4136
  %v4138 = vrcp.pop %v4078
  %v4139 = vmul.f32 %v4078, %v4138
  %v4140 = vsub.f32 1.0, %v4139
  %v4141 = vmul.f32 %v4138, %v4140
  %v4142 = vadd.f32 %v4138, %v4141
  %vm4143 = vweird.f32 %v4078
  %vm4144 = vweird.f32 %v4138
  %vm4145 = vmor %vm4143, %vm4144
  %v4146 = vsel %vm4145, %v4138, %v4142
  %v4147 = vand.u32 2147483647, %v4078
  %vm4148 = vcmp.eq.f32.partialorder %v4147, 8.507059e+37
  %v4149 = vand.u32 %v4078, 2147483648
  %v4150 = vor.u32 1.1754944e-38, %v4149
  %v4151 = vsel %vm4148, %v4150, %v4146
  %v4152 = vmul.f32 1.0, %v4151
  %v4153 = vrcp.pop %v4079
  %v4154 = vmul.f32 %v4079, %v4153
  %v4155 = vsub.f32 1.0, %v4154
  %v4156 = vmul.f32 %v4153, %v4155
  %v4157 = vadd.f32 %v4153, %v4156
  %vm4158 = vweird.f32 %v4079
  %vm4159 = vweird.f32 %v4153
  %vm4160 = vmor %vm4158, %vm4159
  %v4161 = vsel %vm4160, %v4153, %v4157
  %v4162 = vand.u32 2147483647, %v4079
  %vm4163 = vcmp.eq.f32.partialorder %v4162, 8.507059e+37
  %v4164 = vand.u32 %v4079, 2147483648
  %v4165 = vor.u32 1.1754944e-38, %v4164
  %v4166 = vsel %vm4163, %v4165, %v4161
  %v4167 = vmul.f32 1.0, %v4166
  %v4168 = vrcp.pop %v4080
  %v4169 = vmul.f32 %v4080, %v4168
  %v4170 = vsub.f32 1.0, %v4169
  %v4171 = vmul.f32 %v4168, %v4170
  %v4172 = vadd.f32 %v4168, %v4171
  %vm4173 = vweird.f32 %v4080
  %vm4174 = vweird.f32 %v4168
  %vm4175 = vmor %vm4173, %vm4174
  %v4176 = vsel %vm4175, %v4168, %v4172
  %v4177 = vand.u32 2147483647, %v4080
  %vm4178 = vcmp.eq.f32.partialorder %v4177, 8.507059e+37
  %v4179 = vand.u32 %v4080, 2147483648
  %v4180 = vor.u32 1.1754944e-38, %v4179
  %v4181 = vsel %vm4178, %v4180, %v4176
  %v4182 = vmul.f32 1.0, %v4181
  %v4183 = vrcp.pop %v4081
  %v4184 = vmul.f32 %v4081, %v4183
  %v4185 = vsub.f32 1.0, %v4184
  %v4186 = vmul.f32 %v4183, %v4185
  %v4187 = vadd.f32 %v4183, %v4186
  %vm4188 = vweird.f32 %v4081
  %vm4189 = vweird.f32 %v4183
  %vm4190 = vmor %vm4188, %vm4189
  %v4191 = vsel %vm4190, %v4183, %v4187
  %v4192 = vand.u32 2147483647, %v4081
  %vm4193 = vcmp.eq.f32.partialorder %v4192, 8.507059e+37
  %v4194 = vand.u32 %v4081, 2147483648
  %v4195 = vor.u32 1.1754944e-38, %v4194
  %v4196 = vsel %vm4193, %v4195, %v4191
  %v4197 = vmul.f32 1.0, %v4196
  %v4198 = vrcp.pop %v4082
  %v4199 = vmul.f32 %v4082, %v4198
  %v4200 = vsub.f32 1.0, %v4199
  %v4201 = vmul.f32 %v4198, %v4200
  %v4202 = vadd.f32 %v4198, %v4201
  %vm4203 = vweird.f32 %v4082
  %vm4204 = vweird.f32 %v4198
  %vm4205 = vmor %vm4203, %vm4204
  %v4206 = vsel %vm4205, %v4198, %v4202
  %v4207 = vand.u32 2147483647, %v4082
  %vm4208 = vcmp.eq.f32.partialorder %v4207, 8.507059e+37
  %v4209 = vand.u32 %v4082, 2147483648
  %v4210 = vor.u32 1.1754944e-38, %v4209
  %v4211 = vsel %vm4208, %v4210, %v4206
  %v4212 = vmul.f32 1.0, %v4211
  %v4213 = vrcp.pop %v4083
  %v4214 = vmul.f32 %v4083, %v4213
  %v4215 = vsub.f32 1.0, %v4214
  %v4216 = vmul.f32 %v4213, %v4215
  %v4217 = vadd.f32 %v4213, %v4216
  %vm4218 = vweird.f32 %v4083
  %vm4219 = vweird.f32 %v4213
  %vm4220 = vmor %vm4218, %vm4219
  %v4221 = vsel %vm4220, %v4213, %v4217
  %v4222 = vand.u32 2147483647, %v4083
  %vm4223 = vcmp.eq.f32.partialorder %v4222, 8.507059e+37
  %v4224 = vand.u32 %v4083, 2147483648
  %v4225 = vor.u32 1.1754944e-38, %v4224
  %v4226 = vsel %vm4223, %v4225, %v4221
  %v4227 = vmul.f32 1.0, %v4226
  %v4228 = vrcp.pop %v4084
  %v4229 = vmul.f32 %v4084, %v4228
  %v4230 = vsub.f32 1.0, %v4229
  %v4231 = vmul.f32 %v4228, %v4230
  %v4232 = vadd.f32 %v4228, %v4231
  %vm4233 = vweird.f32 %v4084
  %vm4234 = vweird.f32 %v4228
  %vm4235 = vmor %vm4233, %vm4234
  %v4236 = vsel %vm4235, %v4228, %v4232
  %v4237 = vand.u32 2147483647, %v4084
  %vm4238 = vcmp.eq.f32.partialorder %v4237, 8.507059e+37
  %v4239 = vand.u32 %v4084, 2147483648
  %v4240 = vor.u32 1.1754944e-38, %v4239
  %v4241 = vsel %vm4238, %v4240, %v4236
  %v4242 = vmul.f32 1.0, %v4241
  %v4243 = vrcp.pop %v4085
  %v4244 = vmul.f32 %v4085, %v4243
  %v4245 = vsub.f32 1.0, %v4244
  %v4246 = vmul.f32 %v4243, %v4245
  %v4247 = vadd.f32 %v4243, %v4246
  %vm4248 = vweird.f32 %v4085
  %vm4249 = vweird.f32 %v4243
  %vm4250 = vmor %vm4248, %vm4249
  %v4251 = vsel %vm4250, %v4243, %v4247
  %v4252 = vand.u32 2147483647, %v4085
  %vm4253 = vcmp.eq.f32.partialorder %v4252, 8.507059e+37
  %v4254 = vand.u32 %v4085, 2147483648
  %v4255 = vor.u32 1.1754944e-38, %v4254
  %v4256 = vsel %vm4253, %v4255, %v4251
  %v4257 = vmul.f32 1.0, %v4256
  %v4258 = vrcp.pop %v4086
  %v4259 = vmul.f32 %v4086, %v4258
  %v4260 = vsub.f32 1.0, %v4259
  %v4261 = vmul.f32 %v4258, %v4260
  %v4262 = vadd.f32 %v4258, %v4261
  %vm4263 = vweird.f32 %v4086
  %vm4264 = vweird.f32 %v4258
  %vm4265 = vmor %vm4263, %vm4264
  %v4266 = vsel %vm4265, %v4258, %v4262
  %v4267 = vand.u32 2147483647, %v4086
  %vm4268 = vcmp.eq.f32.partialorder %v4267, 8.507059e+37
  %v4269 = vand.u32 %v4086, 2147483648
  %v4270 = vor.u32 1.1754944e-38, %v4269
  %v4271 = vsel %vm4268, %v4270, %v4266
  %v4272 = vmul.f32 1.0, %v4271
  %v4273 = vrcp.pop %v4087
  %v4274 = vmul.f32 %v4087, %v4273
  %v4275 = vsub.f32 1.0, %v4274
  %v4276 = vmul.f32 %v4273, %v4275
  %v4277 = vadd.f32 %v4273, %v4276
  %vm4278 = vweird.f32 %v4087
  %vm4279 = vweird.f32 %v4273
  %vm4280 = vmor %vm4278, %vm4279
  %v4281 = vsel %vm4280, %v4273, %v4277
  %v4282 = vand.u32 2147483647, %v4087
  %vm4283 = vcmp.eq.f32.partialorder %v4282, 8.507059e+37
  %v4284 = vand.u32 %v4087, 2147483648
  %v4285 = vor.u32 1.1754944e-38, %v4284
  %v4286 = vsel %vm4283, %v4285, %v4281
  %v4287 = vmul.f32 1.0, %v4286
  %v4288 = vrcp.pop %v4088
  %v4289 = vmul.f32 %v4088, %v4288
  %v4290 = vsub.f32 1.0, %v4289
  %v4291 = vmul.f32 %v4288, %v4290
  %v4292 = vadd.f32 %v4288, %v4291
  %vm4293 = vweird.f32 %v4088
  %vm4294 = vweird.f32 %v4288
  %vm4295 = vmor %vm4293, %vm4294
  %v4296 = vsel %vm4295, %v4288, %v4292
  %v4297 = vand.u32 2147483647, %v4088
  %vm4298 = vcmp.eq.f32.partialorder %v4297, 8.507059e+37
  %v4299 = vand.u32 %v4088, 2147483648
  %v4300 = vor.u32 1.1754944e-38, %v4299
  %v4301 = vsel %vm4298, %v4300, %v4296
  %v4302 = vmul.f32 1.0, %v4301
  %v4303 = vrcp.pop %v4089
  %v4304 = vmul.f32 %v4089, %v4303
  %v4305 = vsub.f32 1.0, %v4304
  %v4306 = vmul.f32 %v4303, %v4305
  %v4307 = vadd.f32 %v4303, %v4306
  %vm4308 = vweird.f32 %v4089
  %vm4309 = vweird.f32 %v4303
  %vm4310 = vmor %vm4308, %vm4309
  %v4311 = vsel %vm4310, %v4303, %v4307
  %v4312 = vand.u32 2147483647, %v4089
  %vm4313 = vcmp.eq.f32.partialorder %v4312, 8.507059e+37
  %v4314 = vand.u32 %v4089, 2147483648
  %v4315 = vor.u32 1.1754944e-38, %v4314
  %v4316 = vsel %vm4313, %v4315, %v4311
  %v4317 = vmul.f32 1.0, %v4316
  %v4318 = vrcp.pop %v4090
  %v4319 = vmul.f32 %v4090, %v4318
  %v4320 = vsub.f32 1.0, %v4319
  %v4321 = vmul.f32 %v4318, %v4320
  %v4322 = vadd.f32 %v4318, %v4321
  %vm4323 = vweird.f32 %v4090
  %vm4324 = vweird.f32 %v4318
  %vm4325 = vmor %vm4323, %vm4324
  %v4326 = vsel %vm4325, %v4318, %v4322
  %v4327 = vand.u32 2147483647, %v4090
  %vm4328 = vcmp.eq.f32.partialorder %v4327, 8.507059e+37
  %v4329 = vand.u32 %v4090, 2147483648
  %v4330 = vor.u32 1.1754944e-38, %v4329
  %v4331 = vsel %vm4328, %v4330, %v4326
  %v4332 = vmul.f32 1.0, %v4331
  %v4333 = vrcp.pop %v4091
  %v4334 = vmul.f32 %v4091, %v4333
  %v4335 = vsub.f32 1.0, %v4334
  %v4336 = vmul.f32 %v4333, %v4335
  %v4337 = vadd.f32 %v4333, %v4336
  %vm4338 = vweird.f32 %v4091
  %vm4339 = vweird.f32 %v4333
  %vm4340 = vmor %vm4338, %vm4339
  %v4341 = vsel %vm4340, %v4333, %v4337
  %v4342 = vand.u32 2147483647, %v4091
  %vm4343 = vcmp.eq.f32.partialorder %v4342, 8.507059e+37
  %v4344 = vand.u32 %v4091, 2147483648
  %v4345 = vor.u32 1.1754944e-38, %v4344
  %v4346 = vsel %vm4343, %v4345, %v4341
  %v4347 = vmul.f32 1.0, %v4346
  %v4348 = vrcp.pop %v4092
  %v4349 = vmul.f32 %v4092, %v4348
  %v4350 = vsub.f32 1.0, %v4349
  %v4351 = vmul.f32 %v4348, %v4350
  %v4352 = vadd.f32 %v4348, %v4351
  %vm4353 = vweird.f32 %v4092
  %vm4354 = vweird.f32 %v4348
  %vm4355 = vmor %vm4353, %vm4354
  %v4356 = vsel %vm4355, %v4348, %v4352
  %v4357 = vand.u32 2147483647, %v4092
  %vm4358 = vcmp.eq.f32.partialorder %v4357, 8.507059e+37
  %v4359 = vand.u32 %v4092, 2147483648
  %v4360 = vor.u32 1.1754944e-38, %v4359
  %v4361 = vsel %vm4358, %v4360, %v4356
  %v4362 = vmul.f32 1.0, %v4361
  %v4363 = vrcp.pop %v4093
  %v4364 = vmul.f32 %v4093, %v4363
  %v4365 = vsub.f32 1.0, %v4364
  %v4366 = vmul.f32 %v4363, %v4365
  %v4367 = vadd.f32 %v4363, %v4366
  %vm4368 = vweird.f32 %v4093
  %vm4369 = vweird.f32 %v4363
  %vm4370 = vmor %vm4368, %vm4369
  %v4371 = vsel %vm4370, %v4363, %v4367
  %v4372 = vand.u32 2147483647, %v4093
  %vm4373 = vcmp.eq.f32.partialorder %v4372, 8.507059e+37
  %v4374 = vand.u32 %v4093, 2147483648
  %v4375 = vor.u32 1.1754944e-38, %v4374
  %v4376 = vsel %vm4373, %v4375, %v4371
  %v4377 = vmul.f32 1.0, %v4376
  %v4378 = vrcp.pop %v4094
  %v4379 = vmul.f32 %v4094, %v4378
  %v4380 = vsub.f32 1.0, %v4379
  %v4381 = vmul.f32 %v4378, %v4380
  %v4382 = vadd.f32 %v4378, %v4381
  %vm4383 = vweird.f32 %v4094
  %vm4384 = vweird.f32 %v4378
  %vm4385 = vmor %vm4383, %vm4384
  %v4386 = vsel %vm4385, %v4378, %v4382
  %v4387 = vand.u32 2147483647, %v4094
  %vm4388 = vcmp.eq.f32.partialorder %v4387, 8.507059e+37
  %v4389 = vand.u32 %v4094, 2147483648
  %v4390 = vor.u32 1.1754944e-38, %v4389
  %v4391 = vsel %vm4388, %v4390, %v4386
  %v4392 = vmul.f32 1.0, %v4391
  %v4393 = vrcp.pop %v4095
  %v4394 = vmul.f32 %v4095, %v4393
  %v4395 = vsub.f32 1.0, %v4394
  %v4396 = vmul.f32 %v4393, %v4395
  %v4397 = vadd.f32 %v4393, %v4396
  %vm4398 = vweird.f32 %v4095
  %vm4399 = vweird.f32 %v4393
  %vm4400 = vmor %vm4398, %vm4399
  %v4401 = vsel %vm4400, %v4393, %v4397
  %v4402 = vand.u32 2147483647, %v4095
  %vm4403 = vcmp.eq.f32.partialorder %v4402, 8.507059e+37
  %v4404 = vand.u32 %v4095, 2147483648
  %v4405 = vor.u32 1.1754944e-38, %v4404
  %v4406 = vsel %vm4403, %v4405, %v4401
  %v4407 = vmul.f32 1.0, %v4406
  %v4408 = vrcp.pop %v4096
  %v4409 = vmul.f32 %v4096, %v4408
  %v4410 = vsub.f32 1.0, %v4409
  %v4411 = vmul.f32 %v4408, %v4410
  %v4412 = vadd.f32 %v4408, %v4411
  %vm4413 = vweird.f32 %v4096
  %vm4414 = vweird.f32 %v4408
  %vm4415 = vmor %vm4413, %vm4414
  %v4416 = vsel %vm4415, %v4408, %v4412
  %v4417 = vand.u32 2147483647, %v4096
  %vm4418 = vcmp.eq.f32.partialorder %v4417, 8.507059e+37
  %v4419 = vand.u32 %v4096, 2147483648
  %v4420 = vor.u32 1.1754944e-38, %v4419
  %v4421 = vsel %vm4418, %v4420, %v4416
  %v4422 = vmul.f32 1.0, %v4421
  %v4423 = vrcp.pop %v4097
  %v4424 = vmul.f32 %v4097, %v4423
  %v4425 = vsub.f32 1.0, %v4424
  %v4426 = vmul.f32 %v4423, %v4425
  %v4427 = vadd.f32 %v4423, %v4426
  %vm4428 = vweird.f32 %v4097
  %vm4429 = vweird.f32 %v4423
  %vm4430 = vmor %vm4428, %vm4429
  %v4431 = vsel %vm4430, %v4423, %v4427
  %v4432 = vand.u32 2147483647, %v4097
  %vm4433 = vcmp.eq.f32.partialorder %v4432, 8.507059e+37
  %v4434 = vand.u32 %v4097, 2147483648
  %v4435 = vor.u32 1.1754944e-38, %v4434
  %v4436 = vsel %vm4433, %v4435, %v4431
  %v4437 = vmul.f32 1.0, %v4436
  %v4438 = vrcp.pop %v4098
  %v4439 = vmul.f32 %v4098, %v4438
  %v4440 = vsub.f32 1.0, %v4439
  %v4441 = vmul.f32 %v4438, %v4440
  %v4442 = vadd.f32 %v4438, %v4441
  %vm4443 = vweird.f32 %v4098
  %vm4444 = vweird.f32 %v4438
  %vm4445 = vmor %vm4443, %vm4444
  %v4446 = vsel %vm4445, %v4438, %v4442
  %v4447 = vand.u32 2147483647, %v4098
  %vm4448 = vcmp.eq.f32.partialorder %v4447, 8.507059e+37
  %v4449 = vand.u32 %v4098, 2147483648
  %v4450 = vor.u32 1.1754944e-38, %v4449
  %v4451 = vsel %vm4448, %v4450, %v4446
  %v4452 = vmul.f32 1.0, %v4451
  %v4453 = vrcp.pop %v4099
  %v4454 = vmul.f32 %v4099, %v4453
  %v4455 = vsub.f32 1.0, %v4454
  %v4456 = vmul.f32 %v4453, %v4455
  %v4457 = vadd.f32 %v4453, %v4456
  %vm4458 = vweird.f32 %v4099
  %vm4459 = vweird.f32 %v4453
  %vm4460 = vmor %vm4458, %vm4459
  %v4461 = vsel %vm4460, %v4453, %v4457
  %v4462 = vand.u32 2147483647, %v4099
  %vm4463 = vcmp.eq.f32.partialorder %v4462, 8.507059e+37
  %v4464 = vand.u32 %v4099, 2147483648
  %v4465 = vor.u32 1.1754944e-38, %v4464
  %v4466 = vsel %vm4463, %v4465, %v4461
  %v4467 = vmul.f32 1.0, %v4466
  %v4468 = vrcp.pop %v4100
  %v4469 = vmul.f32 %v4100, %v4468
  %v4470 = vsub.f32 1.0, %v4469
  %v4471 = vmul.f32 %v4468, %v4470
  %v4472 = vadd.f32 %v4468, %v4471
  %vm4473 = vweird.f32 %v4100
  %vm4474 = vweird.f32 %v4468
  %vm4475 = vmor %vm4473, %vm4474
  %v4476 = vsel %vm4475, %v4468, %v4472
  %v4477 = vand.u32 2147483647, %v4100
  %vm4478 = vcmp.eq.f32.partialorder %v4477, 8.507059e+37
  %v4479 = vand.u32 %v4100, 2147483648
  %v4480 = vor.u32 1.1754944e-38, %v4479
  %v4481 = vsel %vm4478, %v4480, %v4476
  %v4482 = vmul.f32 1.0, %v4481
  %v4483 = vrcp.pop %v4101
  %v4484 = vmul.f32 %v4101, %v4483
  %v4485 = vsub.f32 1.0, %v4484
  %v4486 = vmul.f32 %v4483, %v4485
  %v4487 = vadd.f32 %v4483, %v4486
  %vm4488 = vweird.f32 %v4101
  %vm4489 = vweird.f32 %v4483
  %vm4490 = vmor %vm4488, %vm4489
  %v4491 = vsel %vm4490, %v4483, %v4487
  %v4492 = vand.u32 2147483647, %v4101
  %vm4493 = vcmp.eq.f32.partialorder %v4492, 8.507059e+37
  %v4494 = vand.u32 %v4101, 2147483648
  %v4495 = vor.u32 1.1754944e-38, %v4494
  %v4496 = vsel %vm4493, %v4495, %v4491
  %v4497 = vmul.f32 1.0, %v4496
  %v4498 = vrcp.pop %v4102
  %v4499 = vmul.f32 %v4102, %v4498
  %v4500 = vsub.f32 1.0, %v4499
  %v4501 = vmul.f32 %v4498, %v4500
  %v4502 = vadd.f32 %v4498, %v4501
  %vm4503 = vweird.f32 %v4102
  %vm4504 = vweird.f32 %v4498
  %vm4505 = vmor %vm4503, %vm4504
  %v4506 = vsel %vm4505, %v4498, %v4502
  %v4507 = vand.u32 2147483647, %v4102
  %vm4508 = vcmp.eq.f32.partialorder %v4507, 8.507059e+37
  %v4509 = vand.u32 %v4102, 2147483648
  %v4510 = vor.u32 1.1754944e-38, %v4509
  %v4511 = vsel %vm4508, %v4510, %v4506
  %v4512 = vmul.f32 1.0, %v4511
  %v4513 = vrcp.pop %v4103
  %v4514 = vmul.f32 %v4103, %v4513
  %v4515 = vsub.f32 1.0, %v4514
  %v4516 = vmul.f32 %v4513, %v4515
  %v4517 = vadd.f32 %v4513, %v4516
  %vm4518 = vweird.f32 %v4103
  %vm4519 = vweird.f32 %v4513
  %vm4520 = vmor %vm4518, %vm4519
  %v4521 = vsel %vm4520, %v4513, %v4517
  %v4522 = vand.u32 2147483647, %v4103
  %vm4523 = vcmp.eq.f32.partialorder %v4522, 8.507059e+37
  %v4524 = vand.u32 %v4103, 2147483648
  %v4525 = vor.u32 1.1754944e-38, %v4524
  %v4526 = vsel %vm4523, %v4525, %v4521
  %v4527 = vmul.f32 1.0, %v4526
  %v4528 = vrcp.pop %v4104
  %v4529 = vmul.f32 %v4104, %v4528
  %v4530 = vsub.f32 1.0, %v4529
  %v4531 = vmul.f32 %v4528, %v4530
  %v4532 = vadd.f32 %v4528, %v4531
  %vm4533 = vweird.f32 %v4104
  %vm4534 = vweird.f32 %v4528
  %vm4535 = vmor %vm4533, %vm4534
  %v4536 = vsel %vm4535, %v4528, %v4532
  %v4537 = vand.u32 2147483647, %v4104
  %vm4538 = vcmp.eq.f32.partialorder %v4537, 8.507059e+37
  %v4539 = vand.u32 %v4104, 2147483648
  %v4540 = vor.u32 1.1754944e-38, %v4539
  %v4541 = vsel %vm4538, %v4540, %v4536
  %v4542 = vmul.f32 1.0, %v4541
  %v4543 = vrcp.pop %v4105
  %v4544 = vmul.f32 %v4105, %v4543
  %v4545 = vsub.f32 1.0, %v4544
  %v4546 = vmul.f32 %v4543, %v4545
  %v4547 = vadd.f32 %v4543, %v4546
  %vm4548 = vweird.f32 %v4105
  %vm4549 = vweird.f32 %v4543
  %vm4550 = vmor %vm4548, %vm4549
  %v4551 = vsel %vm4550, %v4543, %v4547
  %v4552 = vand.u32 2147483647, %v4105
  %vm4553 = vcmp.eq.f32.partialorder %v4552, 8.507059e+37
  %v4554 = vand.u32 %v4105, 2147483648
  %v4555 = vor.u32 1.1754944e-38, %v4554
  %v4556 = vsel %vm4553, %v4555, %v4551
  %v4557 = vmul.f32 1.0, %v4556
  %v4558 = vrcp.pop %v4106
  %v4559 = vmul.f32 %v4106, %v4558
  %v4560 = vsub.f32 1.0, %v4559
  %v4561 = vmul.f32 %v4558, %v4560
  %v4562 = vadd.f32 %v4558, %v4561
  %vm4563 = vweird.f32 %v4106
  %vm4564 = vweird.f32 %v4558
  %vm4565 = vmor %vm4563, %vm4564
  %v4566 = vsel %vm4565, %v4558, %v4562
  %v4567 = vand.u32 2147483647, %v4106
  %vm4568 = vcmp.eq.f32.partialorder %v4567, 8.507059e+37
  %v4569 = vand.u32 %v4106, 2147483648
  %v4570 = vor.u32 1.1754944e-38, %v4569
  %v4571 = vsel %vm4568, %v4570, %v4566
  %v4572 = vmul.f32 1.0, %v4571
  %v4573 = vrcp.pop %v4107
  %v4574 = vmul.f32 %v4107, %v4573
  %v4575 = vsub.f32 1.0, %v4574
  %v4576 = vmul.f32 %v4573, %v4575
  %v4577 = vadd.f32 %v4573, %v4576
  %vm4578 = vweird.f32 %v4107
  %vm4579 = vweird.f32 %v4573
  %vm4580 = vmor %vm4578, %vm4579
  %v4581 = vsel %vm4580, %v4573, %v4577
  %v4582 = vand.u32 2147483647, %v4107
  %vm4583 = vcmp.eq.f32.partialorder %v4582, 8.507059e+37
  %v4584 = vand.u32 %v4107, 2147483648
  %v4585 = vor.u32 1.1754944e-38, %v4584
  %v4586 = vsel %vm4583, %v4585, %v4581
  %v4587 = vmul.f32 1.0, %v4586
  %4620 = vrot.lane.b32.xlu0 %v4122, 96
  %v4621 = vpop.permute.xlu0 %4620
  %4622 = vrot.lane.b32.xlu0 %v4137, 96
  %v4623 = vpop.permute.xlu0 %4622
  %4624 = vrot.lane.b32.xlu0 %v4152, 96
  %v4625 = vpop.permute.xlu0 %4624
  %4626 = vrot.lane.b32.xlu0 %v4167, 96
  %v4627 = vpop.permute.xlu0 %4626
  %4628 = vrot.lane.b32.xlu0 %v4182, 96
  %v4629 = vpop.permute.xlu0 %4628
  %4630 = vrot.lane.b32.xlu0 %v4197, 96
  %v4631 = vpop.permute.xlu0 %4630
  %4632 = vrot.lane.b32.xlu0 %v4212, 96
  %v4633 = vpop.permute.xlu0 %4632
  %4634 = vrot.lane.b32.xlu0 %v4227, 96
  %v4635 = vpop.permute.xlu0 %4634
  %4636 = vrot.lane.b32.xlu0 %v4242, 96
  %v4637 = vpop.permute.xlu0 %4636
  %4638 = vrot.lane.b32.xlu0 %v4257, 96
  %v4639 = vpop.permute.xlu0 %4638
  %4640 = vrot.lane.b32.xlu0 %v4272, 96
  %v4641 = vpop.permute.xlu0 %4640
  %4642 = vrot.lane.b32.xlu0 %v4287, 96
  %v4643 = vpop.permute.xlu0 %4642
  %4644 = vrot.lane.b32.xlu0 %v4302, 96
  %v4645 = vpop.permute.xlu0 %4644
  %4646 = vrot.lane.b32.xlu0 %v4317, 96
  %v4647 = vpop.permute.xlu0 %4646
  %4648 = vrot.lane.b32.xlu0 %v4332, 96
  %v4649 = vpop.permute.xlu0 %4648
  %4650 = vrot.lane.b32.xlu0 %v4347, 96
  %v4651 = vpop.permute.xlu0 %4650
  %4652 = vrot.lane.b32.xlu0 %v4362, 96
  %v4653 = vpop.permute.xlu0 %4652
  %4654 = vrot.lane.b32.xlu0 %v4377, 96
  %v4655 = vpop.permute.xlu0 %4654
  %4656 = vrot.lane.b32.xlu0 %v4392, 96
  %v4657 = vpop.permute.xlu0 %4656
  %4658 = vrot.lane.b32.xlu0 %v4407, 96
  %v4659 = vpop.permute.xlu0 %4658
  %4660 = vrot.lane.b32.xlu0 %v4422, 96
  %v4661 = vpop.permute.xlu0 %4660
  %4662 = vrot.lane.b32.xlu0 %v4437, 96
  %v4663 = vpop.permute.xlu0 %4662
  %4664 = vrot.lane.b32.xlu0 %v4452, 96
  %v4665 = vpop.permute.xlu0 %4664
  %4666 = vrot.lane.b32.xlu0 %v4467, 96
  %v4667 = vpop.permute.xlu0 %4666
  %4668 = vrot.lane.b32.xlu0 %v4482, 96
  %v4669 = vpop.permute.xlu0 %4668
  %4670 = vrot.lane.b32.xlu0 %v4497, 96
  %v4671 = vpop.permute.xlu0 %4670
  %4672 = vrot.lane.b32.xlu0 %v4512, 96
  %v4673 = vpop.permute.xlu0 %4672
  %4674 = vrot.lane.b32.xlu0 %v4527, 96
  %v4675 = vpop.permute.xlu0 %4674
  %4676 = vrot.lane.b32.xlu0 %v4542, 96
  %v4677 = vpop.permute.xlu0 %4676
  %4678 = vrot.lane.b32.xlu0 %v4557, 96
  %v4679 = vpop.permute.xlu0 %4678
  %4680 = vrot.lane.b32.xlu0 %v4572, 96
  %v4681 = vpop.permute.xlu0 %4680
  %4682 = vrot.lane.b32.xlu0 %v4587, 96
  %v4683 = vpop.permute.xlu0 %4682
  %v4716 = vmul.f32 %v3901, %v4621
  %v4717 = vmul.f32 %v3903, %v4623
  %v4718 = vmul.f32 %v3906, %v4625
  %v4719 = vmul.f32 %v3908, %v4627
  %v4720 = vmul.f32 %v3911, %v4629
  %v4721 = vmul.f32 %v3913, %v4631
  %v4722 = vmul.f32 %v3916, %v4633
  %v4723 = vmul.f32 %v3918, %v4635
  %v4724 = vmul.f32 %v3921, %v4637
  %v4725 = vmul.f32 %v3923, %v4639
  %v4726 = vmul.f32 %v3926, %v4641
  %v4727 = vmul.f32 %v3928, %v4643
  %v4728 = vmul.f32 %v3931, %v4645
  %v4729 = vmul.f32 %v3933, %v4647
  %v4730 = vmul.f32 %v3936, %v4649
  %v4731 = vmul.f32 %v3938, %v4651
  %v4732 = vmul.f32 %v3941, %v4653
  %v4733 = vmul.f32 %v3943, %v4655
  %v4734 = vmul.f32 %v3946, %v4657
  %v4735 = vmul.f32 %v3948, %v4659
  %v4736 = vmul.f32 %v3951, %v4661
  %v4737 = vmul.f32 %v3953, %v4663
  %v4738 = vmul.f32 %v3956, %v4665
  %v4739 = vmul.f32 %v3958, %v4667
  %v4740 = vmul.f32 %v3961, %v4669
  %v4741 = vmul.f32 %v3963, %v4671
  %v4742 = vmul.f32 %v3966, %v4673
  %v4743 = vmul.f32 %v3968, %v4675
  %v4744 = vmul.f32 %v3971, %v4677
  %v4745 = vmul.f32 %v3973, %v4679
  %v4746 = vmul.f32 %v3976, %v4681
  %v4747 = vmul.f32 %v3978, %v4683
  %v4748 = vpack.c.bf16 %v4716, %v4716
  %v4749 = vpack.c.bf16 %v4717, %v4717
  %v4750 = vpack.c.bf16 %v4718, %v4718
  %v4751 = vpack.c.bf16 %v4719, %v4719
  %v4752 = vpack.c.bf16 %v4720, %v4720
  %v4753 = vpack.c.bf16 %v4721, %v4721
  %v4754 = vpack.c.bf16 %v4722, %v4722
  %v4755 = vpack.c.bf16 %v4723, %v4723
  %v4756 = vpack.c.bf16 %v4724, %v4724
  %v4757 = vpack.c.bf16 %v4725, %v4725
  %v4758 = vpack.c.bf16 %v4726, %v4726
  %v4759 = vpack.c.bf16 %v4727, %v4727
  %v4760 = vpack.c.bf16 %v4728, %v4728
  %v4761 = vpack.c.bf16 %v4729, %v4729
  %v4762 = vpack.c.bf16 %v4730, %v4730
  %v4763 = vpack.c.bf16 %v4731, %v4731
  %v4764 = vpack.c.bf16 %v4732, %v4732
  %v4765 = vpack.c.bf16 %v4733, %v4733
  %v4766 = vpack.c.bf16 %v4734, %v4734
  %v4767 = vpack.c.bf16 %v4735, %v4735
  %v4768 = vpack.c.bf16 %v4736, %v4736
  %v4769 = vpack.c.bf16 %v4737, %v4737
  %v4770 = vpack.c.bf16 %v4738, %v4738
  %v4771 = vpack.c.bf16 %v4739, %v4739
  %v4772 = vpack.c.bf16 %v4740, %v4740
  %v4773 = vpack.c.bf16 %v4741, %v4741
  %v4774 = vpack.c.bf16 %v4742, %v4742
  %v4775 = vpack.c.bf16 %v4743, %v4743
  %v4776 = vpack.c.bf16 %v4744, %v4744
  %v4777 = vpack.c.bf16 %v4745, %v4745
  %v4778 = vpack.c.bf16 %v4746, %v4746
  %v4779 = vpack.c.bf16 %v4747, %v4747
  %v4782 = vunpack.c.l.b16 %v4748
  %v4783 = vunpack.c.l.b16 %v4749
  %v4784 = vpack.c.b16 %v4783, %v4782
  %4786 = vmatpush.bf16.msra.mxu0 0
  %4787 = vmatpush.bf16.msra.mxu0 0
  %4788 = vmatpush.bf16.msra.mxu0 0
  %4789 = vmatpush.bf16.msra.mxu0 0
  %4790 = vmatpush.bf16.msra.mxu0 0
  %4791 = vmatpush.bf16.msra.mxu0 0
  %4792 = vmatpush.bf16.msra.mxu0 0
  %4793 = vmatpush.bf16.msra.mxu0 %v4784
  %4794 = vmatmul.bf16.gmra.mxu0 %v1293
  %v4795 = vpop.f32.mrf.mxu0
  %v4796 = vadd.f32 0.0, %v4795
  %v4797 = vpop.f32.mrf.mxu0
  %v4798 = vadd.f32 0.0, %v4797
  %4799 = vmatmul.bf16.gmra.mxu0 %v1296
  %v4800 = vpop.f32.mrf.mxu0
  %v4801 = vadd.f32 0.0, %v4800
  %v4802 = vpop.f32.mrf.mxu0
  %v4803 = vadd.f32 0.0, %v4802
  %4804 = vmatmul.bf16.gmra.mxu0 %v1299
  %v4805 = vpop.f32.mrf.mxu0
  %v4806 = vadd.f32 0.0, %v4805
  %v4807 = vpop.f32.mrf.mxu0
  %v4808 = vadd.f32 0.0, %v4807
  %4809 = vdwg.mxu0
  %v4812 = vunpack.c.l.b16 %v4750
  %v4813 = vunpack.c.l.b16 %v4751
  %v4814 = vpack.c.b16 %v4813, %v4812
  %4816 = vmatpush.bf16.msra.mxu0 0
  %4817 = vmatpush.bf16.msra.mxu0 0
  %4818 = vmatpush.bf16.msra.mxu0 0
  %4819 = vmatpush.bf16.msra.mxu0 0
  %4820 = vmatpush.bf16.msra.mxu0 0
  %4821 = vmatpush.bf16.msra.mxu0 0
  %4822 = vmatpush.bf16.msra.mxu0 0
  %4823 = vmatpush.bf16.msra.mxu0 %v4814
  %4824 = vmatmul.bf16.gmra.mxu0 %v1293
  %v4825 = vpop.f32.mrf.mxu0
  %v4826 = vadd.f32 0.0, %v4825
  %v4827 = vpop.f32.mrf.mxu0
  %v4828 = vadd.f32 0.0, %v4827
  %4829 = vmatmul.bf16.gmra.mxu0 %v1296
  %v4830 = vpop.f32.mrf.mxu0
  %v4831 = vadd.f32 0.0, %v4830
  %v4832 = vpop.f32.mrf.mxu0
  %v4833 = vadd.f32 0.0, %v4832
  %4834 = vmatmul.bf16.gmra.mxu0 %v1299
  %v4835 = vpop.f32.mrf.mxu0
  %v4836 = vadd.f32 0.0, %v4835
  %v4837 = vpop.f32.mrf.mxu0
  %v4838 = vadd.f32 0.0, %v4837
  %4839 = vdwg.mxu0
  %v4842 = vunpack.c.l.b16 %v4752
  %v4843 = vunpack.c.l.b16 %v4753
  %v4844 = vpack.c.b16 %v4843, %v4842
  %4846 = vmatpush.bf16.msra.mxu0 0
  %4847 = vmatpush.bf16.msra.mxu0 0
  %4848 = vmatpush.bf16.msra.mxu0 0
  %4849 = vmatpush.bf16.msra.mxu0 0
  %4850 = vmatpush.bf16.msra.mxu0 0
  %4851 = vmatpush.bf16.msra.mxu0 0
  %4852 = vmatpush.bf16.msra.mxu0 0
  %4853 = vmatpush.bf16.msra.mxu0 %v4844
  %4854 = vmatmul.bf16.gmra.mxu0 %v1293
  %v4855 = vpop.f32.mrf.mxu0
  %v4856 = vadd.f32 0.0, %v4855
  %v4857 = vpop.f32.mrf.mxu0
  %v4858 = vadd.f32 0.0, %v4857
  %4859 = vmatmul.bf16.gmra.mxu0 %v1296
  %v4860 = vpop.f32.mrf.mxu0
  %v4861 = vadd.f32 0.0, %v4860
  %v4862 = vpop.f32.mrf.mxu0
  %v4863 = vadd.f32 0.0, %v4862
  %4864 = vmatmul.bf16.gmra.mxu0 %v1299
  %v4865 = vpop.f32.mrf.mxu0
  %v4866 = vadd.f32 0.0, %v4865
  %v4867 = vpop.f32.mrf.mxu0
  %v4868 = vadd.f32 0.0, %v4867
  %4869 = vdwg.mxu0
  %v4872 = vunpack.c.l.b16 %v4754
  %v4873 = vunpack.c.l.b16 %v4755
  %v4874 = vpack.c.b16 %v4873, %v4872
  %4876 = vmatpush.bf16.msra.mxu0 0
  %4877 = vmatpush.bf16.msra.mxu0 0
  %4878 = vmatpush.bf16.msra.mxu0 0
  %4879 = vmatpush.bf16.msra.mxu0 0
  %4880 = vmatpush.bf16.msra.mxu0 0
  %4881 = vmatpush.bf16.msra.mxu0 0
  %4882 = vmatpush.bf16.msra.mxu0 0
  %4883 = vmatpush.bf16.msra.mxu0 %v4874
  %4884 = vmatmul.bf16.gmra.mxu0 %v1293
  %v4885 = vpop.f32.mrf.mxu0
  %v4886 = vadd.f32 0.0, %v4885
  %v4887 = vpop.f32.mrf.mxu0
  %v4888 = vadd.f32 0.0, %v4887
  %4889 = vmatmul.bf16.gmra.mxu0 %v1296
  %v4890 = vpop.f32.mrf.mxu0
  %v4891 = vadd.f32 0.0, %v4890
  %v4892 = vpop.f32.mrf.mxu0
  %v4893 = vadd.f32 0.0, %v4892
  %4894 = vmatmul.bf16.gmra.mxu0 %v1299
  %v4895 = vpop.f32.mrf.mxu0
  %v4896 = vadd.f32 0.0, %v4895
  %v4897 = vpop.f32.mrf.mxu0
  %v4898 = vadd.f32 0.0, %v4897
  %4899 = vdwg.mxu0
  %v4902 = vunpack.c.l.b16 %v4756
  %v4903 = vunpack.c.l.b16 %v4757
  %v4904 = vpack.c.b16 %v4903, %v4902
  %4906 = vmatpush.bf16.msra.mxu0 0
  %4907 = vmatpush.bf16.msra.mxu0 0
  %4908 = vmatpush.bf16.msra.mxu0 0
  %4909 = vmatpush.bf16.msra.mxu0 0
  %4910 = vmatpush.bf16.msra.mxu0 0
  %4911 = vmatpush.bf16.msra.mxu0 0
  %4912 = vmatpush.bf16.msra.mxu0 0
  %4913 = vmatpush.bf16.msra.mxu0 %v4904
  %4914 = vmatmul.bf16.gmra.mxu0 %v1293
  %v4915 = vpop.f32.mrf.mxu0
  %v4916 = vadd.f32 0.0, %v4915
  %v4917 = vpop.f32.mrf.mxu0
  %v4918 = vadd.f32 0.0, %v4917
  %4919 = vmatmul.bf16.gmra.mxu0 %v1296
  %v4920 = vpop.f32.mrf.mxu0
  %v4921 = vadd.f32 0.0, %v4920
  %v4922 = vpop.f32.mrf.mxu0
  %v4923 = vadd.f32 0.0, %v4922
  %4924 = vmatmul.bf16.gmra.mxu0 %v1299
  %v4925 = vpop.f32.mrf.mxu0
  %v4926 = vadd.f32 0.0, %v4925
  %v4927 = vpop.f32.mrf.mxu0
  %v4928 = vadd.f32 0.0, %v4927
  %4929 = vdwg.mxu0
  %v4932 = vunpack.c.l.b16 %v4758
  %v4933 = vunpack.c.l.b16 %v4759
  %v4934 = vpack.c.b16 %v4933, %v4932
  %4936 = vmatpush.bf16.msra.mxu0 0
  %4937 = vmatpush.bf16.msra.mxu0 0
  %4938 = vmatpush.bf16.msra.mxu0 0
  %4939 = vmatpush.bf16.msra.mxu0 0
  %4940 = vmatpush.bf16.msra.mxu0 0
  %4941 = vmatpush.bf16.msra.mxu0 0
  %4942 = vmatpush.bf16.msra.mxu0 0
  %4943 = vmatpush.bf16.msra.mxu0 %v4934
  %4944 = vmatmul.bf16.gmra.mxu0 %v1293
  %v4945 = vpop.f32.mrf.mxu0
  %v4946 = vadd.f32 0.0, %v4945
  %v4947 = vpop.f32.mrf.mxu0
  %v4948 = vadd.f32 0.0, %v4947
  %4949 = vmatmul.bf16.gmra.mxu0 %v1296
  %v4950 = vpop.f32.mrf.mxu0
  %v4951 = vadd.f32 0.0, %v4950
  %v4952 = vpop.f32.mrf.mxu0
  %v4953 = vadd.f32 0.0, %v4952
  %4954 = vmatmul.bf16.gmra.mxu0 %v1299
  %v4955 = vpop.f32.mrf.mxu0
  %v4956 = vadd.f32 0.0, %v4955
  %v4957 = vpop.f32.mrf.mxu0
  %v4958 = vadd.f32 0.0, %v4957
  %4959 = vdwg.mxu0
  %v4962 = vunpack.c.l.b16 %v4760
  %v4963 = vunpack.c.l.b16 %v4761
  %v4964 = vpack.c.b16 %v4963, %v4962
  %4966 = vmatpush.bf16.msra.mxu0 0
  %4967 = vmatpush.bf16.msra.mxu0 0
  %4968 = vmatpush.bf16.msra.mxu0 0
  %4969 = vmatpush.bf16.msra.mxu0 0
  %4970 = vmatpush.bf16.msra.mxu0 0
  %4971 = vmatpush.bf16.msra.mxu0 0
  %4972 = vmatpush.bf16.msra.mxu0 0
  %4973 = vmatpush.bf16.msra.mxu0 %v4964
  %4974 = vmatmul.bf16.gmra.mxu0 %v1293
  %v4975 = vpop.f32.mrf.mxu0
  %v4976 = vadd.f32 0.0, %v4975
  %v4977 = vpop.f32.mrf.mxu0
  %v4978 = vadd.f32 0.0, %v4977
  %4979 = vmatmul.bf16.gmra.mxu0 %v1296
  %v4980 = vpop.f32.mrf.mxu0
  %v4981 = vadd.f32 0.0, %v4980
  %v4982 = vpop.f32.mrf.mxu0
  %v4983 = vadd.f32 0.0, %v4982
  %4984 = vmatmul.bf16.gmra.mxu0 %v1299
  %v4985 = vpop.f32.mrf.mxu0
  %v4986 = vadd.f32 0.0, %v4985
  %v4987 = vpop.f32.mrf.mxu0
  %v4988 = vadd.f32 0.0, %v4987
  %4989 = vdwg.mxu0
  %v4992 = vunpack.c.l.b16 %v4762
  %v4993 = vunpack.c.l.b16 %v4763
  %v4994 = vpack.c.b16 %v4993, %v4992
  %4996 = vmatpush.bf16.msra.mxu0 0
  %4997 = vmatpush.bf16.msra.mxu0 0
  %4998 = vmatpush.bf16.msra.mxu0 0
  %4999 = vmatpush.bf16.msra.mxu0 0
  %5000 = vmatpush.bf16.msra.mxu0 0
  %5001 = vmatpush.bf16.msra.mxu0 0
  %5002 = vmatpush.bf16.msra.mxu0 0
  %5003 = vmatpush.bf16.msra.mxu0 %v4994
  %5004 = vmatmul.bf16.gmra.mxu0 %v1293
  %v5005 = vpop.f32.mrf.mxu0
  %v5006 = vadd.f32 0.0, %v5005
  %v5007 = vpop.f32.mrf.mxu0
  %v5008 = vadd.f32 0.0, %v5007
  %5009 = vmatmul.bf16.gmra.mxu0 %v1296
  %v5010 = vpop.f32.mrf.mxu0
  %v5011 = vadd.f32 0.0, %v5010
  %v5012 = vpop.f32.mrf.mxu0
  %v5013 = vadd.f32 0.0, %v5012
  %5014 = vmatmul.bf16.gmra.mxu0 %v1299
  %v5015 = vpop.f32.mrf.mxu0
  %v5016 = vadd.f32 0.0, %v5015
  %v5017 = vpop.f32.mrf.mxu0
  %v5018 = vadd.f32 0.0, %v5017
  %5019 = vdwg.mxu0
  %v5022 = vunpack.c.l.b16 %v4764
  %v5023 = vunpack.c.l.b16 %v4765
  %v5024 = vpack.c.b16 %v5023, %v5022
  %5026 = vmatpush.bf16.msra.mxu0 0
  %5027 = vmatpush.bf16.msra.mxu0 0
  %5028 = vmatpush.bf16.msra.mxu0 0
  %5029 = vmatpush.bf16.msra.mxu0 0
  %5030 = vmatpush.bf16.msra.mxu0 0
  %5031 = vmatpush.bf16.msra.mxu0 0
  %5032 = vmatpush.bf16.msra.mxu0 0
  %5033 = vmatpush.bf16.msra.mxu0 %v5024
  %5034 = vmatmul.bf16.gmra.mxu0 %v1293
  %v5035 = vpop.f32.mrf.mxu0
  %v5036 = vadd.f32 0.0, %v5035
  %v5037 = vpop.f32.mrf.mxu0
  %v5038 = vadd.f32 0.0, %v5037
  %5039 = vmatmul.bf16.gmra.mxu0 %v1296
  %v5040 = vpop.f32.mrf.mxu0
  %v5041 = vadd.f32 0.0, %v5040
  %v5042 = vpop.f32.mrf.mxu0
  %v5043 = vadd.f32 0.0, %v5042
  %5044 = vmatmul.bf16.gmra.mxu0 %v1299
  %v5045 = vpop.f32.mrf.mxu0
  %v5046 = vadd.f32 0.0, %v5045
  %v5047 = vpop.f32.mrf.mxu0
  %v5048 = vadd.f32 0.0, %v5047
  %5049 = vdwg.mxu0
  %v5052 = vunpack.c.l.b16 %v4766
  %v5053 = vunpack.c.l.b16 %v4767
  %v5054 = vpack.c.b16 %v5053, %v5052
  %5056 = vmatpush.bf16.msra.mxu0 0
  %5057 = vmatpush.bf16.msra.mxu0 0
  %5058 = vmatpush.bf16.msra.mxu0 0
  %5059 = vmatpush.bf16.msra.mxu0 0
  %5060 = vmatpush.bf16.msra.mxu0 0
  %5061 = vmatpush.bf16.msra.mxu0 0
  %5062 = vmatpush.bf16.msra.mxu0 0
  %5063 = vmatpush.bf16.msra.mxu0 %v5054
  %5064 = vmatmul.bf16.gmra.mxu0 %v1293
  %v5065 = vpop.f32.mrf.mxu0
  %v5066 = vadd.f32 0.0, %v5065
  %v5067 = vpop.f32.mrf.mxu0
  %v5068 = vadd.f32 0.0, %v5067
  %5069 = vmatmul.bf16.gmra.mxu0 %v1296
  %v5070 = vpop.f32.mrf.mxu0
  %v5071 = vadd.f32 0.0, %v5070
  %v5072 = vpop.f32.mrf.mxu0
  %v5073 = vadd.f32 0.0, %v5072
  %5074 = vmatmul.bf16.gmra.mxu0 %v1299
  %v5075 = vpop.f32.mrf.mxu0
  %v5076 = vadd.f32 0.0, %v5075
  %v5077 = vpop.f32.mrf.mxu0
  %v5078 = vadd.f32 0.0, %v5077
  %5079 = vdwg.mxu0
  %v5082 = vunpack.c.l.b16 %v4768
  %v5083 = vunpack.c.l.b16 %v4769
  %v5084 = vpack.c.b16 %v5083, %v5082
  %5086 = vmatpush.bf16.msra.mxu0 0
  %5087 = vmatpush.bf16.msra.mxu0 0
  %5088 = vmatpush.bf16.msra.mxu0 0
  %5089 = vmatpush.bf16.msra.mxu0 0
  %5090 = vmatpush.bf16.msra.mxu0 0
  %5091 = vmatpush.bf16.msra.mxu0 0
  %5092 = vmatpush.bf16.msra.mxu0 0
  %5093 = vmatpush.bf16.msra.mxu0 %v5084
  %5094 = vmatmul.bf16.gmra.mxu0 %v1293
  %v5095 = vpop.f32.mrf.mxu0
  %v5096 = vadd.f32 0.0, %v5095
  %v5097 = vpop.f32.mrf.mxu0
  %v5098 = vadd.f32 0.0, %v5097
  %5099 = vmatmul.bf16.gmra.mxu0 %v1296
  %v5100 = vpop.f32.mrf.mxu0
  %v5101 = vadd.f32 0.0, %v5100
  %v5102 = vpop.f32.mrf.mxu0
  %v5103 = vadd.f32 0.0, %v5102
  %5104 = vmatmul.bf16.gmra.mxu0 %v1299
  %v5105 = vpop.f32.mrf.mxu0
  %v5106 = vadd.f32 0.0, %v5105
  %v5107 = vpop.f32.mrf.mxu0
  %v5108 = vadd.f32 0.0, %v5107
  %5109 = vdwg.mxu0
  %v5112 = vunpack.c.l.b16 %v4770
  %v5113 = vunpack.c.l.b16 %v4771
  %v5114 = vpack.c.b16 %v5113, %v5112
  %5116 = vmatpush.bf16.msra.mxu0 0
  %5117 = vmatpush.bf16.msra.mxu0 0
  %5118 = vmatpush.bf16.msra.mxu0 0
  %5119 = vmatpush.bf16.msra.mxu0 0
  %5120 = vmatpush.bf16.msra.mxu0 0
  %5121 = vmatpush.bf16.msra.mxu0 0
  %5122 = vmatpush.bf16.msra.mxu0 0
  %5123 = vmatpush.bf16.msra.mxu0 %v5114
  %5124 = vmatmul.bf16.gmra.mxu0 %v1293
  %v5125 = vpop.f32.mrf.mxu0
  %v5126 = vadd.f32 0.0, %v5125
  %v5127 = vpop.f32.mrf.mxu0
  %v5128 = vadd.f32 0.0, %v5127
  %5129 = vmatmul.bf16.gmra.mxu0 %v1296
  %v5130 = vpop.f32.mrf.mxu0
  %v5131 = vadd.f32 0.0, %v5130
  %v5132 = vpop.f32.mrf.mxu0
  %v5133 = vadd.f32 0.0, %v5132
  %5134 = vmatmul.bf16.gmra.mxu0 %v1299
  %v5135 = vpop.f32.mrf.mxu0
  %v5136 = vadd.f32 0.0, %v5135
  %v5137 = vpop.f32.mrf.mxu0
  %v5138 = vadd.f32 0.0, %v5137
  %5139 = vdwg.mxu0
  %v5142 = vunpack.c.l.b16 %v4772
  %v5143 = vunpack.c.l.b16 %v4773
  %v5144 = vpack.c.b16 %v5143, %v5142
  %5146 = vmatpush.bf16.msra.mxu0 0
  %5147 = vmatpush.bf16.msra.mxu0 0
  %5148 = vmatpush.bf16.msra.mxu0 0
  %5149 = vmatpush.bf16.msra.mxu0 0
  %5150 = vmatpush.bf16.msra.mxu0 0
  %5151 = vmatpush.bf16.msra.mxu0 0
  %5152 = vmatpush.bf16.msra.mxu0 0
  %5153 = vmatpush.bf16.msra.mxu0 %v5144
  %5154 = vmatmul.bf16.gmra.mxu0 %v1293
  %v5155 = vpop.f32.mrf.mxu0
  %v5156 = vadd.f32 0.0, %v5155
  %v5157 = vpop.f32.mrf.mxu0
  %v5158 = vadd.f32 0.0, %v5157
  %5159 = vmatmul.bf16.gmra.mxu0 %v1296
  %v5160 = vpop.f32.mrf.mxu0
  %v5161 = vadd.f32 0.0, %v5160
  %v5162 = vpop.f32.mrf.mxu0
  %v5163 = vadd.f32 0.0, %v5162
  %5164 = vmatmul.bf16.gmra.mxu0 %v1299
  %v5165 = vpop.f32.mrf.mxu0
  %v5166 = vadd.f32 0.0, %v5165
  %v5167 = vpop.f32.mrf.mxu0
  %v5168 = vadd.f32 0.0, %v5167
  %5169 = vdwg.mxu0
  %v5172 = vunpack.c.l.b16 %v4774
  %v5173 = vunpack.c.l.b16 %v4775
  %v5174 = vpack.c.b16 %v5173, %v5172
  %5176 = vmatpush.bf16.msra.mxu0 0
  %5177 = vmatpush.bf16.msra.mxu0 0
  %5178 = vmatpush.bf16.msra.mxu0 0
  %5179 = vmatpush.bf16.msra.mxu0 0
  %5180 = vmatpush.bf16.msra.mxu0 0
  %5181 = vmatpush.bf16.msra.mxu0 0
  %5182 = vmatpush.bf16.msra.mxu0 0
  %5183 = vmatpush.bf16.msra.mxu0 %v5174
  %5184 = vmatmul.bf16.gmra.mxu0 %v1293
  %v5185 = vpop.f32.mrf.mxu0
  %v5186 = vadd.f32 0.0, %v5185
  %v5187 = vpop.f32.mrf.mxu0
  %v5188 = vadd.f32 0.0, %v5187
  %5189 = vmatmul.bf16.gmra.mxu0 %v1296
  %v5190 = vpop.f32.mrf.mxu0
  %v5191 = vadd.f32 0.0, %v5190
  %v5192 = vpop.f32.mrf.mxu0
  %v5193 = vadd.f32 0.0, %v5192
  %5194 = vmatmul.bf16.gmra.mxu0 %v1299
  %v5195 = vpop.f32.mrf.mxu0
  %v5196 = vadd.f32 0.0, %v5195
  %v5197 = vpop.f32.mrf.mxu0
  %v5198 = vadd.f32 0.0, %v5197
  %5199 = vdwg.mxu0
  %v5202 = vunpack.c.l.b16 %v4776
  %v5203 = vunpack.c.l.b16 %v4777
  %v5204 = vpack.c.b16 %v5203, %v5202
  %5206 = vmatpush.bf16.msra.mxu0 0
  %5207 = vmatpush.bf16.msra.mxu0 0
  %5208 = vmatpush.bf16.msra.mxu0 0
  %5209 = vmatpush.bf16.msra.mxu0 0
  %5210 = vmatpush.bf16.msra.mxu0 0
  %5211 = vmatpush.bf16.msra.mxu0 0
  %5212 = vmatpush.bf16.msra.mxu0 0
  %5213 = vmatpush.bf16.msra.mxu0 %v5204
  %5214 = vmatmul.bf16.gmra.mxu0 %v1293
  %v5215 = vpop.f32.mrf.mxu0
  %v5216 = vadd.f32 0.0, %v5215
  %v5217 = vpop.f32.mrf.mxu0
  %v5218 = vadd.f32 0.0, %v5217
  %5219 = vmatmul.bf16.gmra.mxu0 %v1296
  %v5220 = vpop.f32.mrf.mxu0
  %v5221 = vadd.f32 0.0, %v5220
  %v5222 = vpop.f32.mrf.mxu0
  %v5223 = vadd.f32 0.0, %v5222
  %5224 = vmatmul.bf16.gmra.mxu0 %v1299
  %v5225 = vpop.f32.mrf.mxu0
  %v5226 = vadd.f32 0.0, %v5225
  %v5227 = vpop.f32.mrf.mxu0
  %v5228 = vadd.f32 0.0, %v5227
  %5229 = vdwg.mxu0
  %v5232 = vunpack.c.l.b16 %v4778
  %v5233 = vunpack.c.l.b16 %v4779
  %v5234 = vpack.c.b16 %v5233, %v5232
  %5236 = vmatpush.bf16.msra.mxu0 0
  %5237 = vmatpush.bf16.msra.mxu0 0
  %5238 = vmatpush.bf16.msra.mxu0 0
  %5239 = vmatpush.bf16.msra.mxu0 0
  %5240 = vmatpush.bf16.msra.mxu0 0
  %5241 = vmatpush.bf16.msra.mxu0 0
  %5242 = vmatpush.bf16.msra.mxu0 0
  %5243 = vmatpush.bf16.msra.mxu0 %v5234
  %5244 = vmatmul.bf16.gmra.mxu0 %v1293
  %v5245 = vpop.f32.mrf.mxu0
  %v5246 = vadd.f32 0.0, %v5245
  %v5247 = vpop.f32.mrf.mxu0
  %v5248 = vadd.f32 0.0, %v5247
  %5249 = vmatmul.bf16.gmra.mxu0 %v1296
  %v5250 = vpop.f32.mrf.mxu0
  %v5251 = vadd.f32 0.0, %v5250
  %v5252 = vpop.f32.mrf.mxu0
  %v5253 = vadd.f32 0.0, %v5252
  %5254 = vmatmul.bf16.gmra.mxu0 %v1299
  %v5255 = vpop.f32.mrf.mxu0
  %v5256 = vadd.f32 0.0, %v5255
  %v5257 = vpop.f32.mrf.mxu0
  %v5258 = vadd.f32 0.0, %v5257
  %5259 = vdwg.mxu0
  %5292 = vrot.lane.b32.xlu0 %v4801, 32
  %v5293 = vpop.permute.xlu0 %5292
  %5294 = vrot.lane.b32.xlu0 %v4803, 32
  %v5295 = vpop.permute.xlu0 %5294
  %5296 = vrot.lane.b32.xlu0 %v4831, 32
  %v5297 = vpop.permute.xlu0 %5296
  %5298 = vrot.lane.b32.xlu0 %v4833, 32
  %v5299 = vpop.permute.xlu0 %5298
  %5300 = vrot.lane.b32.xlu0 %v4861, 32
  %v5301 = vpop.permute.xlu0 %5300
  %5302 = vrot.lane.b32.xlu0 %v4863, 32
  %v5303 = vpop.permute.xlu0 %5302
  %5304 = vrot.lane.b32.xlu0 %v4891, 32
  %v5305 = vpop.permute.xlu0 %5304
  %5306 = vrot.lane.b32.xlu0 %v4893, 32
  %v5307 = vpop.permute.xlu0 %5306
  %5308 = vrot.lane.b32.xlu0 %v4921, 32
  %v5309 = vpop.permute.xlu0 %5308
  %5310 = vrot.lane.b32.xlu0 %v4923, 32
  %v5311 = vpop.permute.xlu0 %5310
  %5312 = vrot.lane.b32.xlu0 %v4951, 32
  %v5313 = vpop.permute.xlu0 %5312
  %5314 = vrot.lane.b32.xlu0 %v4953, 32
  %v5315 = vpop.permute.xlu0 %5314
  %5316 = vrot.lane.b32.xlu0 %v4981, 32
  %v5317 = vpop.permute.xlu0 %5316
  %5318 = vrot.lane.b32.xlu0 %v4983, 32
  %v5319 = vpop.permute.xlu0 %5318
  %5320 = vrot.lane.b32.xlu0 %v5011, 32
  %v5321 = vpop.permute.xlu0 %5320
  %5322 = vrot.lane.b32.xlu0 %v5013, 32
  %v5323 = vpop.permute.xlu0 %5322
  %5324 = vrot.lane.b32.xlu0 %v5041, 32
  %v5325 = vpop.permute.xlu0 %5324
  %5326 = vrot.lane.b32.xlu0 %v5043, 32
  %v5327 = vpop.permute.xlu0 %5326
  %5328 = vrot.lane.b32.xlu0 %v5071, 32
  %v5329 = vpop.permute.xlu0 %5328
  %5330 = vrot.lane.b32.xlu0 %v5073, 32
  %v5331 = vpop.permute.xlu0 %5330
  %5332 = vrot.lane.b32.xlu0 %v5101, 32
  %v5333 = vpop.permute.xlu0 %5332
  %5334 = vrot.lane.b32.xlu0 %v5103, 32
  %v5335 = vpop.permute.xlu0 %5334
  %5336 = vrot.lane.b32.xlu0 %v5131, 32
  %v5337 = vpop.permute.xlu0 %5336
  %5338 = vrot.lane.b32.xlu0 %v5133, 32
  %v5339 = vpop.permute.xlu0 %5338
  %5340 = vrot.lane.b32.xlu0 %v5161, 32
  %v5341 = vpop.permute.xlu0 %5340
  %5342 = vrot.lane.b32.xlu0 %v5163, 32
  %v5343 = vpop.permute.xlu0 %5342
  %5344 = vrot.lane.b32.xlu0 %v5191, 32
  %v5345 = vpop.permute.xlu0 %5344
  %5346 = vrot.lane.b32.xlu0 %v5193, 32
  %v5347 = vpop.permute.xlu0 %5346
  %5348 = vrot.lane.b32.xlu0 %v5221, 32
  %v5349 = vpop.permute.xlu0 %5348
  %5350 = vrot.lane.b32.xlu0 %v5223, 32
  %v5351 = vpop.permute.xlu0 %5350
  %5352 = vrot.lane.b32.xlu0 %v5251, 32
  %v5353 = vpop.permute.xlu0 %5352
  %5354 = vrot.lane.b32.xlu0 %v5253, 32
  %v5355 = vpop.permute.xlu0 %5354
  %5420 = vrot.lane.b32.xlu0 %v4806, 64
  %v5421 = vpop.permute.xlu0 %5420
  %5422 = vrot.lane.b32.xlu0 %v4808, 64
  %v5423 = vpop.permute.xlu0 %5422
  %5424 = vrot.lane.b32.xlu0 %v4836, 64
  %v5425 = vpop.permute.xlu0 %5424
  %5426 = vrot.lane.b32.xlu0 %v4838, 64
  %v5427 = vpop.permute.xlu0 %5426
  %5428 = vrot.lane.b32.xlu0 %v4866, 64
  %v5429 = vpop.permute.xlu0 %5428
  %5430 = vrot.lane.b32.xlu0 %v4868, 64
  %v5431 = vpop.permute.xlu0 %5430
  %5432 = vrot.lane.b32.xlu0 %v4896, 64
  %v5433 = vpop.permute.xlu0 %5432
  %5434 = vrot.lane.b32.xlu0 %v4898, 64
  %v5435 = vpop.permute.xlu0 %5434
  %5436 = vrot.lane.b32.xlu0 %v4926, 64
  %v5437 = vpop.permute.xlu0 %5436
  %5438 = vrot.lane.b32.xlu0 %v4928, 64
  %v5439 = vpop.permute.xlu0 %5438
  %5440 = vrot.lane.b32.xlu0 %v4956, 64
  %v5441 = vpop.permute.xlu0 %5440
  %5442 = vrot.lane.b32.xlu0 %v4958, 64
  %v5443 = vpop.permute.xlu0 %5442
  %5444 = vrot.lane.b32.xlu0 %v4986, 64
  %v5445 = vpop.permute.xlu0 %5444
  %5446 = vrot.lane.b32.xlu0 %v4988, 64
  %v5447 = vpop.permute.xlu0 %5446
  %5448 = vrot.lane.b32.xlu0 %v5016, 64
  %v5449 = vpop.permute.xlu0 %5448
  %5450 = vrot.lane.b32.xlu0 %v5018, 64
  %v5451 = vpop.permute.xlu0 %5450
  %5452 = vrot.lane.b32.xlu0 %v5046, 64
  %v5453 = vpop.permute.xlu0 %5452
  %5454 = vrot.lane.b32.xlu0 %v5048, 64
  %v5455 = vpop.permute.xlu0 %5454
  %5456 = vrot.lane.b32.xlu0 %v5076, 64
  %v5457 = vpop.permute.xlu0 %5456
  %5458 = vrot.lane.b32.xlu0 %v5078, 64
  %v5459 = vpop.permute.xlu0 %5458
  %5460 = vrot.lane.b32.xlu0 %v5106, 64
  %v5461 = vpop.permute.xlu0 %5460
  %5462 = vrot.lane.b32.xlu0 %v5108, 64
  %v5463 = vpop.permute.xlu0 %5462
  %5464 = vrot.lane.b32.xlu0 %v5136, 64
  %v5465 = vpop.permute.xlu0 %5464
  %5466 = vrot.lane.b32.xlu0 %v5138, 64
  %v5467 = vpop.permute.xlu0 %5466
  %5468 = vrot.lane.b32.xlu0 %v5166, 64
  %v5469 = vpop.permute.xlu0 %5468
  %5470 = vrot.lane.b32.xlu0 %v5168, 64
  %v5471 = vpop.permute.xlu0 %5470
  %5472 = vrot.lane.b32.xlu0 %v5196, 64
  %v5473 = vpop.permute.xlu0 %5472
  %5474 = vrot.lane.b32.xlu0 %v5198, 64
  %v5475 = vpop.permute.xlu0 %5474
  %5476 = vrot.lane.b32.xlu0 %v5226, 64
  %v5477 = vpop.permute.xlu0 %5476
  %5478 = vrot.lane.b32.xlu0 %v5228, 64
  %v5479 = vpop.permute.xlu0 %5478
  %5480 = vrot.lane.b32.xlu0 %v5256, 64
  %v5481 = vpop.permute.xlu0 %5480
  %5482 = vrot.lane.b32.xlu0 %v5258, 64
  %v5483 = vpop.permute.xlu0 %5482
  %v5516 = vsel %vm2031, %v4796, %v5293
  %v5517 = vsel %vm2031, %v4798, %v5295
  %v5518 = vsel %vm2031, %v4826, %v5297
  %v5519 = vsel %vm2031, %v4828, %v5299
  %v5520 = vsel %vm2031, %v4856, %v5301
  %v5521 = vsel %vm2031, %v4858, %v5303
  %v5522 = vsel %vm2031, %v4886, %v5305
  %v5523 = vsel %vm2031, %v4888, %v5307
  %v5524 = vsel %vm2031, %v4916, %v5309
  %v5525 = vsel %vm2031, %v4918, %v5311
  %v5526 = vsel %vm2031, %v4946, %v5313
  %v5527 = vsel %vm2031, %v4948, %v5315
  %v5528 = vsel %vm2031, %v4976, %v5317
  %v5529 = vsel %vm2031, %v4978, %v5319
  %v5530 = vsel %vm2031, %v5006, %v5321
  %v5531 = vsel %vm2031, %v5008, %v5323
  %v5532 = vsel %vm2031, %v5036, %v5325
  %v5533 = vsel %vm2031, %v5038, %v5327
  %v5534 = vsel %vm2031, %v5066, %v5329
  %v5535 = vsel %vm2031, %v5068, %v5331
  %v5536 = vsel %vm2031, %v5096, %v5333
  %v5537 = vsel %vm2031, %v5098, %v5335
  %v5538 = vsel %vm2031, %v5126, %v5337
  %v5539 = vsel %vm2031, %v5128, %v5339
  %v5540 = vsel %vm2031, %v5156, %v5341
  %v5541 = vsel %vm2031, %v5158, %v5343
  %v5542 = vsel %vm2031, %v5186, %v5345
  %v5543 = vsel %vm2031, %v5188, %v5347
  %v5544 = vsel %vm2031, %v5216, %v5349
  %v5545 = vsel %vm2031, %v5218, %v5351
  %v5546 = vsel %vm2031, %v5246, %v5353
  %v5547 = vsel %vm2031, %v5248, %v5355
  %v5548 = vsel %vm2064, %v5516, %v5421
  %v5549 = vsel %vm2064, %v5517, %v5423
  %v5550 = vsel %vm2064, %v5518, %v5425
  %v5551 = vsel %vm2064, %v5519, %v5427
  %v5552 = vsel %vm2064, %v5520, %v5429
  %v5553 = vsel %vm2064, %v5521, %v5431
  %v5554 = vsel %vm2064, %v5522, %v5433
  %v5555 = vsel %vm2064, %v5523, %v5435
  %v5556 = vsel %vm2064, %v5524, %v5437
  %v5557 = vsel %vm2064, %v5525, %v5439
  %v5558 = vsel %vm2064, %v5526, %v5441
  %v5559 = vsel %vm2064, %v5527, %v5443
  %v5560 = vsel %vm2064, %v5528, %v5445
  %v5561 = vsel %vm2064, %v5529, %v5447
  %v5562 = vsel %vm2064, %v5530, %v5449
  %v5563 = vsel %vm2064, %v5531, %v5451
  %v5564 = vsel %vm2064, %v5532, %v5453
  %v5565 = vsel %vm2064, %v5533, %v5455
  %v5566 = vsel %vm2064, %v5534, %v5457
  %v5567 = vsel %vm2064, %v5535, %v5459
  %v5568 = vsel %vm2064, %v5536, %v5461
  %v5569 = vsel %vm2064, %v5537, %v5463
  %v5570 = vsel %vm2064, %v5538, %v5465
  %v5571 = vsel %vm2064, %v5539, %v5467
  %v5572 = vsel %vm2064, %v5540, %v5469
  %v5573 = vsel %vm2064, %v5541, %v5471
  %v5574 = vsel %vm2064, %v5542, %v5473
  %v5575 = vsel %vm2064, %v5543, %v5475
  %v5576 = vsel %vm2064, %v5544, %v5477
  %v5577 = vsel %vm2064, %v5545, %v5479
  %v5578 = vsel %vm2064, %v5546, %v5481
  %v5579 = vsel %vm2064, %v5547, %v5483
  %v5580 = vld [vmem:[%s10] sm:$0xf]
  %v5581 = vld [vmem:[%s10 + $0x4] sm:$0xf]
  %v5582 = vld [vmem:[%s10 + $0x8] sm:$0xf]
  %v5583 = vld [vmem:[%s10 + $0xc] sm:$0xf]
  %v5584 = vld [vmem:[%s10 + $0x10] sm:$0xf]
  %v5585 = vld [vmem:[%s10 + $0x14] sm:$0xf]
  %v5586 = vld [vmem:[%s10 + $0x18] sm:$0xf]
  %v5587 = vld [vmem:[%s10 + $0x1c] sm:$0xf]
  %v5588 = vld [vmem:[%s10 + $0x20] sm:$0xf]
  %v5589 = vld [vmem:[%s10 + $0x24] sm:$0xf]
  %v5590 = vld [vmem:[%s10 + $0x28] sm:$0xf]
  %v5591 = vld [vmem:[%s10 + $0x2c] sm:$0xf]
  %v5592 = vunpack.c.l.bf16 %v5580
  %v5593 = vunpack.c.l.bf16 %v5581
  %v5594 = vunpack.c.l.bf16 %v5582
  %v5595 = vunpack.c.l.bf16 %v5583
  %v5596 = vunpack.c.l.bf16 %v5584
  %v5597 = vunpack.c.l.bf16 %v5585
  %v5598 = vunpack.c.l.bf16 %v5586
  %v5599 = vunpack.c.l.bf16 %v5587
  %v5600 = vunpack.c.l.bf16 %v5588
  %v5601 = vunpack.c.l.bf16 %v5589
  %v5602 = vunpack.c.l.bf16 %v5590
  %v5603 = vunpack.c.l.bf16 %v5591
  %v5604 = vld [vmem:[%s11] sm:$0x1]
  %v5606 = vperm.slane %v5604, 0
  %v5609 = vsel %vm2125, %v5548, 0
  %v5612 = vsel %vm2125, %v5549, 0
  %v5615 = vsel %vm2125, %v5550, 0
  %v5618 = vsel %vm2125, %v5551, 0
  %v5621 = vsel %vm2125, %v5552, 0
  %v5624 = vsel %vm2125, %v5553, 0
  %v5627 = vsel %vm2125, %v5554, 0
  %v5630 = vsel %vm2125, %v5555, 0
  %v5633 = vsel %vm2125, %v5556, 0
  %v5636 = vsel %vm2125, %v5557, 0
  %v5639 = vsel %vm2125, %v5558, 0
  %v5642 = vsel %vm2125, %v5559, 0
  %v5645 = vsel %vm2125, %v5560, 0
  %v5648 = vsel %vm2125, %v5561, 0
  %v5651 = vsel %vm2125, %v5562, 0
  %v5654 = vsel %vm2125, %v5563, 0
  %v5657 = vsel %vm2125, %v5564, 0
  %v5660 = vsel %vm2125, %v5565, 0
  %v5663 = vsel %vm2125, %v5566, 0
  %v5666 = vsel %vm2125, %v5567, 0
  %v5669 = vsel %vm2125, %v5568, 0
  %v5672 = vsel %vm2125, %v5569, 0
  %v5675 = vsel %vm2125, %v5570, 0
  %v5678 = vsel %vm2125, %v5571, 0
  %v5681 = vsel %vm2125, %v5572, 0
  %v5684 = vsel %vm2125, %v5573, 0
  %v5687 = vsel %vm2125, %v5574, 0
  %v5690 = vsel %vm2125, %v5575, 0
  %v5693 = vsel %vm2125, %v5576, 0
  %v5696 = vsel %vm2125, %v5577, 0
  %v5699 = vsel %vm2125, %v5578, 0
  %v5702 = vsel %vm2125, %v5579, 0
  %5704 = vmatpush.msra.mxu0 0.0
  %5705 = vmatpush.msra.mxu0 0.0
  %5706 = vmatpush.msra.mxu0 0.0
  %5707 = vmatpush.msra.mxu0 0.0
  %5708 = vmatpush.msra.mxu0 %v5603
  %5709 = vmatpush.msra.mxu0 %v5602
  %5710 = vmatpush.msra.mxu0 %v5601
  %5711 = vmatpush.msra.mxu0 %v5600
  %5712 = vmatpush.msra.mxu0 %v5599
  %5713 = vmatpush.msra.mxu0 %v5598
  %5714 = vmatpush.msra.mxu0 %v5597
  %5715 = vmatpush.msra.mxu0 %v5596
  %5716 = vmatpush.msra.mxu0 %v5595
  %5717 = vmatpush.msra.mxu0 %v5594
  %5718 = vmatpush.msra.mxu0 %v5593
  %5719 = vmatpush.msra.mxu0 %v5592
  %5720 = vmatmul.f32.gmra.mxu0 %v5609
  %v5721 = vpop.f32.mrf.mxu0
  %v5722 = vadd.f32 %v5606, %v5721
  %5723 = vmatmul.f32.gmra.mxu0 %v5612
  %v5724 = vpop.f32.mrf.mxu0
  %v5725 = vadd.f32 %v5606, %v5724
  %5726 = vmatmul.f32.gmra.mxu0 %v5615
  %v5727 = vpop.f32.mrf.mxu0
  %v5728 = vadd.f32 %v5606, %v5727
  %5729 = vmatmul.f32.gmra.mxu0 %v5618
  %v5730 = vpop.f32.mrf.mxu0
  %v5731 = vadd.f32 %v5606, %v5730
  %5732 = vmatmul.f32.gmra.mxu0 %v5621
  %v5733 = vpop.f32.mrf.mxu0
  %v5734 = vadd.f32 %v5606, %v5733
  %5735 = vmatmul.f32.gmra.mxu0 %v5624
  %v5736 = vpop.f32.mrf.mxu0
  %v5737 = vadd.f32 %v5606, %v5736
  %5738 = vmatmul.f32.gmra.mxu0 %v5627
  %v5739 = vpop.f32.mrf.mxu0
  %v5740 = vadd.f32 %v5606, %v5739
  %5741 = vmatmul.f32.gmra.mxu0 %v5630
  %v5742 = vpop.f32.mrf.mxu0
  %v5743 = vadd.f32 %v5606, %v5742
  %5744 = vmatmul.f32.gmra.mxu0 %v5633
  %v5745 = vpop.f32.mrf.mxu0
  %v5746 = vadd.f32 %v5606, %v5745
  %5747 = vmatmul.f32.gmra.mxu0 %v5636
  %v5748 = vpop.f32.mrf.mxu0
  %v5749 = vadd.f32 %v5606, %v5748
  %5750 = vmatmul.f32.gmra.mxu0 %v5639
  %v5751 = vpop.f32.mrf.mxu0
  %v5752 = vadd.f32 %v5606, %v5751
  %5753 = vmatmul.f32.gmra.mxu0 %v5642
  %v5754 = vpop.f32.mrf.mxu0
  %v5755 = vadd.f32 %v5606, %v5754
  %5756 = vmatmul.f32.gmra.mxu0 %v5645
  %v5757 = vpop.f32.mrf.mxu0
  %v5758 = vadd.f32 %v5606, %v5757
  %5759 = vmatmul.f32.gmra.mxu0 %v5648
  %v5760 = vpop.f32.mrf.mxu0
  %v5761 = vadd.f32 %v5606, %v5760
  %5762 = vmatmul.f32.gmra.mxu0 %v5651
  %v5763 = vpop.f32.mrf.mxu0
  %v5764 = vadd.f32 %v5606, %v5763
  %5765 = vmatmul.f32.gmra.mxu0 %v5654
  %v5766 = vpop.f32.mrf.mxu0
  %v5767 = vadd.f32 %v5606, %v5766
  %5768 = vmatmul.f32.gmra.mxu0 %v5657
  %v5769 = vpop.f32.mrf.mxu0
  %v5770 = vadd.f32 %v5606, %v5769
  %5771 = vmatmul.f32.gmra.mxu0 %v5660
  %v5772 = vpop.f32.mrf.mxu0
  %v5773 = vadd.f32 %v5606, %v5772
  %5774 = vmatmul.f32.gmra.mxu0 %v5663
  %v5775 = vpop.f32.mrf.mxu0
  %v5776 = vadd.f32 %v5606, %v5775
  %5777 = vmatmul.f32.gmra.mxu0 %v5666
  %v5778 = vpop.f32.mrf.mxu0
  %v5779 = vadd.f32 %v5606, %v5778
  %5780 = vmatmul.f32.gmra.mxu0 %v5669
  %v5781 = vpop.f32.mrf.mxu0
  %v5782 = vadd.f32 %v5606, %v5781
  %5783 = vmatmul.f32.gmra.mxu0 %v5672
  %v5784 = vpop.f32.mrf.mxu0
  %v5785 = vadd.f32 %v5606, %v5784
  %5786 = vmatmul.f32.gmra.mxu0 %v5675
  %v5787 = vpop.f32.mrf.mxu0
  %v5788 = vadd.f32 %v5606, %v5787
  %5789 = vmatmul.f32.gmra.mxu0 %v5678
  %v5790 = vpop.f32.mrf.mxu0
  %v5791 = vadd.f32 %v5606, %v5790
  %5792 = vmatmul.f32.gmra.mxu0 %v5681
  %v5793 = vpop.f32.mrf.mxu0
  %v5794 = vadd.f32 %v5606, %v5793
  %5795 = vmatmul.f32.gmra.mxu0 %v5684
  %v5796 = vpop.f32.mrf.mxu0
  %v5797 = vadd.f32 %v5606, %v5796
  %5798 = vmatmul.f32.gmra.mxu0 %v5687
  %v5799 = vpop.f32.mrf.mxu0
  %v5800 = vadd.f32 %v5606, %v5799
  %5801 = vmatmul.f32.gmra.mxu0 %v5690
  %v5802 = vpop.f32.mrf.mxu0
  %v5803 = vadd.f32 %v5606, %v5802
  %5804 = vmatmul.f32.gmra.mxu0 %v5693
  %v5805 = vpop.f32.mrf.mxu0
  %v5806 = vadd.f32 %v5606, %v5805
  %5807 = vmatmul.f32.gmra.mxu0 %v5696
  %v5808 = vpop.f32.mrf.mxu0
  %v5809 = vadd.f32 %v5606, %v5808
  %5810 = vmatmul.f32.gmra.mxu0 %v5699
  %v5811 = vpop.f32.mrf.mxu0
  %v5812 = vadd.f32 %v5606, %v5811
  %5813 = vmatmul.f32.gmra.mxu0 %v5702
  %v5814 = vpop.f32.mrf.mxu0
  %v5815 = vadd.f32 %v5606, %v5814
  %5816 = vdwg.mxu0
  %v5817 = vmax.f32 %v5722, 0.0
  %v5818 = vmax.f32 %v5725, 0.0
  %v5819 = vmax.f32 %v5728, 0.0
  %v5820 = vmax.f32 %v5731, 0.0
  %v5821 = vmax.f32 %v5734, 0.0
  %v5822 = vmax.f32 %v5737, 0.0
  %v5823 = vmax.f32 %v5740, 0.0
  %v5824 = vmax.f32 %v5743, 0.0
  %v5825 = vmax.f32 %v5746, 0.0
  %v5826 = vmax.f32 %v5749, 0.0
  %v5827 = vmax.f32 %v5752, 0.0
  %v5828 = vmax.f32 %v5755, 0.0
  %v5829 = vmax.f32 %v5758, 0.0
  %v5830 = vmax.f32 %v5761, 0.0
  %v5831 = vmax.f32 %v5764, 0.0
  %v5832 = vmax.f32 %v5767, 0.0
  %v5833 = vmax.f32 %v5770, 0.0
  %v5834 = vmax.f32 %v5773, 0.0
  %v5835 = vmax.f32 %v5776, 0.0
  %v5836 = vmax.f32 %v5779, 0.0
  %v5837 = vmax.f32 %v5782, 0.0
  %v5838 = vmax.f32 %v5785, 0.0
  %v5839 = vmax.f32 %v5788, 0.0
  %v5840 = vmax.f32 %v5791, 0.0
  %v5841 = vmax.f32 %v5794, 0.0
  %v5842 = vmax.f32 %v5797, 0.0
  %v5843 = vmax.f32 %v5800, 0.0
  %v5844 = vmax.f32 %v5803, 0.0
  %v5845 = vmax.f32 %v5806, 0.0
  %v5846 = vmax.f32 %v5809, 0.0
  %v5847 = vmax.f32 %v5812, 0.0
  %v5848 = vmax.f32 %v5815, 0.0
  %v5849 = vpack.c.bf16 %v5817, %v5817
  %v5850 = vpack.c.bf16 %v5818, %v5818
  %v5851 = vpack.c.bf16 %v5819, %v5819
  %v5852 = vpack.c.bf16 %v5820, %v5820
  %v5853 = vpack.c.bf16 %v5821, %v5821
  %v5854 = vpack.c.bf16 %v5822, %v5822
  %v5855 = vpack.c.bf16 %v5823, %v5823
  %v5856 = vpack.c.bf16 %v5824, %v5824
  %v5857 = vpack.c.bf16 %v5825, %v5825
  %v5858 = vpack.c.bf16 %v5826, %v5826
  %v5859 = vpack.c.bf16 %v5827, %v5827
  %v5860 = vpack.c.bf16 %v5828, %v5828
  %v5861 = vpack.c.bf16 %v5829, %v5829
  %v5862 = vpack.c.bf16 %v5830, %v5830
  %v5863 = vpack.c.bf16 %v5831, %v5831
  %v5864 = vpack.c.bf16 %v5832, %v5832
  %v5865 = vpack.c.bf16 %v5833, %v5833
  %v5866 = vpack.c.bf16 %v5834, %v5834
  %v5867 = vpack.c.bf16 %v5835, %v5835
  %v5868 = vpack.c.bf16 %v5836, %v5836
  %v5869 = vpack.c.bf16 %v5837, %v5837
  %v5870 = vpack.c.bf16 %v5838, %v5838
  %v5871 = vpack.c.bf16 %v5839, %v5839
  %v5872 = vpack.c.bf16 %v5840, %v5840
  %v5873 = vpack.c.bf16 %v5841, %v5841
  %v5874 = vpack.c.bf16 %v5842, %v5842
  %v5875 = vpack.c.bf16 %v5843, %v5843
  %v5876 = vpack.c.bf16 %v5844, %v5844
  %v5877 = vpack.c.bf16 %v5845, %v5845
  %v5878 = vpack.c.bf16 %v5846, %v5846
  %v5879 = vpack.c.bf16 %v5847, %v5847
  %v5880 = vpack.c.bf16 %v5848, %v5848
  %v5913 = vunpack.c.l.b16 %v5849
  %v5914 = vunpack.c.l.b16 %v5850
  %v5915 = vunpack.c.l.b16 %v5851
  %v5916 = vunpack.c.l.b16 %v5852
  %v5917 = vunpack.c.l.b16 %v5853
  %v5918 = vunpack.c.l.b16 %v5854
  %v5919 = vunpack.c.l.b16 %v5855
  %v5920 = vunpack.c.l.b16 %v5856
  %v5921 = vunpack.c.l.b16 %v5857
  %v5922 = vunpack.c.l.b16 %v5858
  %v5923 = vunpack.c.l.b16 %v5859
  %v5924 = vunpack.c.l.b16 %v5860
  %v5925 = vunpack.c.l.b16 %v5861
  %v5926 = vunpack.c.l.b16 %v5862
  %v5927 = vunpack.c.l.b16 %v5863
  %v5928 = vunpack.c.l.b16 %v5864
  %v5929 = vunpack.c.l.b16 %v5865
  %v5930 = vunpack.c.l.b16 %v5866
  %v5931 = vunpack.c.l.b16 %v5867
  %v5932 = vunpack.c.l.b16 %v5868
  %v5933 = vunpack.c.l.b16 %v5869
  %v5934 = vunpack.c.l.b16 %v5870
  %v5935 = vunpack.c.l.b16 %v5871
  %v5936 = vunpack.c.l.b16 %v5872
  %v5937 = vunpack.c.l.b16 %v5873
  %v5938 = vunpack.c.l.b16 %v5874
  %v5939 = vunpack.c.l.b16 %v5875
  %v5940 = vunpack.c.l.b16 %v5876
  %v5941 = vunpack.c.l.b16 %v5877
  %v5942 = vunpack.c.l.b16 %v5878
  %v5943 = vunpack.c.l.b16 %v5879
  %v5944 = vunpack.c.l.b16 %v5880
  %v5945 = vpack.c.b16 %v5914, %v5913
  %v5946 = vpack.c.b16 %v5916, %v5915
  %v5947 = vpack.c.b16 %v5918, %v5917
  %v5948 = vpack.c.b16 %v5920, %v5919
  %v5949 = vpack.c.b16 %v5922, %v5921
  %v5950 = vpack.c.b16 %v5924, %v5923
  %v5951 = vpack.c.b16 %v5926, %v5925
  %v5952 = vpack.c.b16 %v5928, %v5927
  %v5953 = vpack.c.b16 %v5930, %v5929
  %v5954 = vpack.c.b16 %v5932, %v5931
  %v5955 = vpack.c.b16 %v5934, %v5933
  %v5956 = vpack.c.b16 %v5936, %v5935
  %v5957 = vpack.c.b16 %v5938, %v5937
  %v5958 = vpack.c.b16 %v5940, %v5939
  %v5959 = vpack.c.b16 %v5942, %v5941
  %v5960 = vpack.c.b16 %v5944, %v5943
  %5961 = vrot.lane.b32.xlu0 %v5945, 32
  %v5962 = vpop.permute.xlu0 %5961
  %5963 = vrot.lane.b32.xlu0 %v5946, 32
  %v5964 = vpop.permute.xlu0 %5963
  %5965 = vrot.lane.b32.xlu0 %v5947, 32
  %v5966 = vpop.permute.xlu0 %5965
  %5967 = vrot.lane.b32.xlu0 %v5948, 32
  %v5968 = vpop.permute.xlu0 %5967
  %5969 = vrot.lane.b32.xlu0 %v5949, 32
  %v5970 = vpop.permute.xlu0 %5969
  %5971 = vrot.lane.b32.xlu0 %v5950, 32
  %v5972 = vpop.permute.xlu0 %5971
  %5973 = vrot.lane.b32.xlu0 %v5951, 32
  %v5974 = vpop.permute.xlu0 %5973
  %5975 = vrot.lane.b32.xlu0 %v5952, 32
  %v5976 = vpop.permute.xlu0 %5975
  %5977 = vrot.lane.b32.xlu0 %v5953, 32
  %v5978 = vpop.permute.xlu0 %5977
  %5979 = vrot.lane.b32.xlu0 %v5954, 32
  %v5980 = vpop.permute.xlu0 %5979
  %5981 = vrot.lane.b32.xlu0 %v5955, 32
  %v5982 = vpop.permute.xlu0 %5981
  %5983 = vrot.lane.b32.xlu0 %v5956, 32
  %v5984 = vpop.permute.xlu0 %5983
  %5985 = vrot.lane.b32.xlu0 %v5957, 32
  %v5986 = vpop.permute.xlu0 %5985
  %5987 = vrot.lane.b32.xlu0 %v5958, 32
  %v5988 = vpop.permute.xlu0 %5987
  %5989 = vrot.lane.b32.xlu0 %v5959, 32
  %v5990 = vpop.permute.xlu0 %5989
  %5991 = vrot.lane.b32.xlu0 %v5960, 32
  %v5992 = vpop.permute.xlu0 %5991
  %5993 = vrot.lane.b32.xlu0 %v5947, 64
  %v5994 = vpop.permute.xlu0 %5993
  %5995 = vrot.lane.b32.xlu0 %v5948, 64
  %v5996 = vpop.permute.xlu0 %5995
  %5997 = vrot.lane.b32.xlu0 %v5949, 64
  %v5998 = vpop.permute.xlu0 %5997
  %5999 = vrot.lane.b32.xlu0 %v5950, 64
  %v6000 = vpop.permute.xlu0 %5999
  %6001 = vrot.lane.b32.xlu0 %v5951, 64
  %v6002 = vpop.permute.xlu0 %6001
  %6003 = vrot.lane.b32.xlu0 %v5952, 64
  %v6004 = vpop.permute.xlu0 %6003
  %6005 = vrot.lane.b32.xlu0 %v5953, 64
  %v6006 = vpop.permute.xlu0 %6005
  %6007 = vrot.lane.b32.xlu0 %v5954, 64
  %v6008 = vpop.permute.xlu0 %6007
  %6009 = vrot.lane.b32.xlu0 %v5955, 64
  %v6010 = vpop.permute.xlu0 %6009
  %6011 = vrot.lane.b32.xlu0 %v5956, 64
  %v6012 = vpop.permute.xlu0 %6011
  %6013 = vrot.lane.b32.xlu0 %v5957, 64
  %v6014 = vpop.permute.xlu0 %6013
  %6015 = vrot.lane.b32.xlu0 %v5958, 64
  %v6016 = vpop.permute.xlu0 %6015
  %6017 = vrot.lane.b32.xlu0 %v5959, 64
  %v6018 = vpop.permute.xlu0 %6017
  %6019 = vrot.lane.b32.xlu0 %v5960, 64
  %v6020 = vpop.permute.xlu0 %6019
  %v6022 = vsel %vm2031, 0, %v5962
  %v6024 = vsel %vm2031, 0, %v5964
  %v6027 = vsel %vm2031, %v5945, %v5966
  %v6030 = vsel %vm2031, %v5946, %v5968
  %v6033 = vsel %vm2031, %v5947, %v5970
  %v6036 = vsel %vm2031, %v5948, %v5972
  %v6039 = vsel %vm2031, %v5949, %v5974
  %v6042 = vsel %vm2031, %v5950, %v5976
  %v6045 = vsel %vm2031, %v5951, %v5978
  %v6048 = vsel %vm2031, %v5952, %v5980
  %v6051 = vsel %vm2031, %v5953, %v5982
  %v6054 = vsel %vm2031, %v5954, %v5984
  %v6057 = vsel %vm2031, %v5955, %v5986
  %v6060 = vsel %vm2031, %v5956, %v5988
  %v6063 = vsel %vm2031, %v5957, %v5990
  %v6066 = vsel %vm2031, %v5958, %v5992
  %v6068 = vsel %vm2064, %v6022, %v5994
  %v6070 = vsel %vm2064, %v6024, %v5996
  %v6072 = vsel %vm2064, %v6027, %v5998
  %v6074 = vsel %vm2064, %v6030, %v6000
  %v6076 = vsel %vm2064, %v6033, %v6002
  %v6078 = vsel %vm2064, %v6036, %v6004
  %v6080 = vsel %vm2064, %v6039, %v6006
  %v6082 = vsel %vm2064, %v6042, %v6008
  %v6084 = vsel %vm2064, %v6045, %v6010
  %v6086 = vsel %vm2064, %v6048, %v6012
  %v6088 = vsel %vm2064, %v6051, %v6014
  %v6090 = vsel %vm2064, %v6054, %v6016
  %v6092 = vsel %vm2064, %v6057, %v6018
  %v6094 = vsel %vm2064, %v6060, %v6020
  %v6095 = vsel %vm2064, %v6063, %v2540
  %v6096 = vsel %vm2064, %v6066, %v2540
  %v6097 = vld [vmem:[%s12] sm:$0xf]
  %v6098 = vld [vmem:[%s12 + $0x4] sm:$0xf]
  %v6099 = vld [vmem:[%s12 + $0x8] sm:$0xf]
  %v6100 = vld [vmem:[%s12 + $0xc] sm:$0xf]
  %v6101 = vld [vmem:[%s12 + $0x10] sm:$0xf]
  %v6102 = vld [vmem:[%s12 + $0x14] sm:$0xf]
  %v6103 = vld [vmem:[%s12 + $0x18] sm:$0xf]
  %v6104 = vld [vmem:[%s12 + $0x1c] sm:$0xf]
  %v6105 = vld [vmem:[%s12 + $0x20] sm:$0xf]
  %v6106 = vld [vmem:[%s12 + $0x24] sm:$0xf]
  %v6107 = vld [vmem:[%s12 + $0x28] sm:$0xf]
  %v6108 = vld [vmem:[%s12 + $0x2c] sm:$0xf]
  %v6109 = vld [vmem:[%s13] sm:$0x1]
  %v6111 = vperm.slane %v6109, 0
  %v6125 = vunpack.c.l.b16 %v6097
  %v6126 = vunpack.c.l.b16 %v6098
  %v6127 = vunpack.c.l.b16 %v6099
  %v6128 = vunpack.c.l.b16 %v6100
  %v6129 = vunpack.c.l.b16 %v6101
  %v6130 = vunpack.c.l.b16 %v6102
  %v6131 = vunpack.c.l.b16 %v6103
  %v6132 = vunpack.c.l.b16 %v6104
  %v6133 = vunpack.c.l.b16 %v6105
  %v6134 = vunpack.c.l.b16 %v6106
  %v6135 = vunpack.c.l.b16 %v6107
  %v6136 = vunpack.c.l.b16 %v6108
  %v6137 = vpack.c.b16 %v6126, %v6125
  %v6138 = vpack.c.b16 %v6128, %v6127
  %v6139 = vpack.c.b16 %v6130, %v6129
  %v6140 = vpack.c.b16 %v6132, %v6131
  %v6141 = vpack.c.b16 %v6134, %v6133
  %v6142 = vpack.c.b16 %v6136, %v6135
  %v6149 = vsel %vm2125, %v6068, 0
  %v6151 = vsel %vm2125, %v6070, 0
  %v6153 = vsel %vm2125, %v6072, 0
  %v6155 = vsel %vm2125, %v6074, 0
  %v6157 = vsel %vm2125, %v6076, 0
  %v6159 = vsel %vm2125, %v6078, 0
  %v6161 = vsel %vm2125, %v6080, 0
  %v6163 = vsel %vm2125, %v6082, 0
  %v6165 = vsel %vm2125, %v6084, 0
  %v6167 = vsel %vm2125, %v6086, 0
  %v6169 = vsel %vm2125, %v6088, 0
  %v6171 = vsel %vm2125, %v6090, 0
  %v6173 = vsel %vm2125, %v6092, 0
  %v6175 = vsel %vm2125, %v6094, 0
  %v6177 = vsel %vm2125, %v6095, 0
  %v6179 = vsel %vm2125, %v6096, 0
  %6181 = vmatpush.bf16.msra.mxu0 0
  %6182 = vmatpush.bf16.msra.mxu0 0
  %6183 = vmatpush.bf16.msra.mxu0 %v6142
  %6184 = vmatpush.bf16.msra.mxu0 %v6141
  %6185 = vmatpush.bf16.msra.mxu0 %v6140
  %6186 = vmatpush.bf16.msra.mxu0 %v6139
  %6187 = vmatpush.bf16.msra.mxu0 %v6138
  %6188 = vmatpush.bf16.msra.mxu0 %v6137
  %6189 = vmatmul.bf16.gmra.mxu0 %v6149
  %v6190 = vpop.f32.mrf.mxu0
  %v6191 = vadd.f32 %v6111, %v6190
  %v6192 = vpop.f32.mrf.mxu0
  %v6193 = vadd.f32 %v6111, %v6192
  %6194 = vmatmul.bf16.gmra.mxu0 %v6151
  %v6195 = vpop.f32.mrf.mxu0
  %v6196 = vadd.f32 %v6111, %v6195
  %v6197 = vpop.f32.mrf.mxu0
  %v6198 = vadd.f32 %v6111, %v6197
  %6199 = vmatmul.bf16.gmra.mxu0 %v6153
  %v6200 = vpop.f32.mrf.mxu0
  %v6201 = vadd.f32 %v6111, %v6200
  %v6202 = vpop.f32.mrf.mxu0
  %v6203 = vadd.f32 %v6111, %v6202
  %6204 = vmatmul.bf16.gmra.mxu0 %v6155
  %v6205 = vpop.f32.mrf.mxu0
  %v6206 = vadd.f32 %v6111, %v6205
  %v6207 = vpop.f32.mrf.mxu0
  %v6208 = vadd.f32 %v6111, %v6207
  %6209 = vmatmul.bf16.gmra.mxu0 %v6157
  %v6210 = vpop.f32.mrf.mxu0
  %v6211 = vadd.f32 %v6111, %v6210
  %v6212 = vpop.f32.mrf.mxu0
  %v6213 = vadd.f32 %v6111, %v6212
  %6214 = vmatmul.bf16.gmra.mxu0 %v6159
  %v6215 = vpop.f32.mrf.mxu0
  %v6216 = vadd.f32 %v6111, %v6215
  %v6217 = vpop.f32.mrf.mxu0
  %v6218 = vadd.f32 %v6111, %v6217
  %6219 = vmatmul.bf16.gmra.mxu0 %v6161
  %v6220 = vpop.f32.mrf.mxu0
  %v6221 = vadd.f32 %v6111, %v6220
  %v6222 = vpop.f32.mrf.mxu0
  %v6223 = vadd.f32 %v6111, %v6222
  %6224 = vmatmul.bf16.gmra.mxu0 %v6163
  %v6225 = vpop.f32.mrf.mxu0
  %v6226 = vadd.f32 %v6111, %v6225
  %v6227 = vpop.f32.mrf.mxu0
  %v6228 = vadd.f32 %v6111, %v6227
  %6229 = vmatmul.bf16.gmra.mxu0 %v6165
  %v6230 = vpop.f32.mrf.mxu0
  %v6231 = vadd.f32 %v6111, %v6230
  %v6232 = vpop.f32.mrf.mxu0
  %v6233 = vadd.f32 %v6111, %v6232
  %6234 = vmatmul.bf16.gmra.mxu0 %v6167
  %v6235 = vpop.f32.mrf.mxu0
  %v6236 = vadd.f32 %v6111, %v6235
  %v6237 = vpop.f32.mrf.mxu0
  %v6238 = vadd.f32 %v6111, %v6237
  %6239 = vmatmul.bf16.gmra.mxu0 %v6169
  %v6240 = vpop.f32.mrf.mxu0
  %v6241 = vadd.f32 %v6111, %v6240
  %v6242 = vpop.f32.mrf.mxu0
  %v6243 = vadd.f32 %v6111, %v6242
  %6244 = vmatmul.bf16.gmra.mxu0 %v6171
  %v6245 = vpop.f32.mrf.mxu0
  %v6246 = vadd.f32 %v6111, %v6245
  %v6247 = vpop.f32.mrf.mxu0
  %v6248 = vadd.f32 %v6111, %v6247
  %6249 = vmatmul.bf16.gmra.mxu0 %v6173
  %v6250 = vpop.f32.mrf.mxu0
  %v6251 = vadd.f32 %v6111, %v6250
  %v6252 = vpop.f32.mrf.mxu0
  %v6253 = vadd.f32 %v6111, %v6252
  %6254 = vmatmul.bf16.gmra.mxu0 %v6175
  %v6255 = vpop.f32.mrf.mxu0
  %v6256 = vadd.f32 %v6111, %v6255
  %v6257 = vpop.f32.mrf.mxu0
  %v6258 = vadd.f32 %v6111, %v6257
  %6259 = vmatmul.bf16.gmra.mxu0 %v6177
  %v6260 = vpop.f32.mrf.mxu0
  %v6261 = vadd.f32 %v6111, %v6260
  %v6262 = vpop.f32.mrf.mxu0
  %v6263 = vadd.f32 %v6111, %v6262
  %6264 = vmatmul.bf16.gmra.mxu0 %v6179
  %v6265 = vpop.f32.mrf.mxu0
  %v6266 = vadd.f32 %v6111, %v6265
  %v6267 = vpop.f32.mrf.mxu0
  %v6268 = vadd.f32 %v6111, %v6267
  %6269 = vdwg.mxu0
  %v6270 = vxor.u32 %v6191, 2147483648
  %v6271 = vxor.u32 %v6193, 2147483648
  %v6272 = vxor.u32 %v6196, 2147483648
  %v6273 = vxor.u32 %v6198, 2147483648
  %v6274 = vxor.u32 %v6201, 2147483648
  %v6275 = vxor.u32 %v6203, 2147483648
  %v6276 = vxor.u32 %v6206, 2147483648
  %v6277 = vxor.u32 %v6208, 2147483648
  %v6278 = vxor.u32 %v6211, 2147483648
  %v6279 = vxor.u32 %v6213, 2147483648
  %v6280 = vxor.u32 %v6216, 2147483648
  %v6281 = vxor.u32 %v6218, 2147483648
  %v6282 = vxor.u32 %v6221, 2147483648
  %v6283 = vxor.u32 %v6223, 2147483648
  %v6284 = vxor.u32 %v6226, 2147483648
  %v6285 = vxor.u32 %v6228, 2147483648
  %v6286 = vxor.u32 %v6231, 2147483648
  %v6287 = vxor.u32 %v6233, 2147483648
  %v6288 = vxor.u32 %v6236, 2147483648
  %v6289 = vxor.u32 %v6238, 2147483648
  %v6290 = vxor.u32 %v6241, 2147483648
  %v6291 = vxor.u32 %v6243, 2147483648
  %v6292 = vxor.u32 %v6246, 2147483648
  %v6293 = vxor.u32 %v6248, 2147483648
  %v6294 = vxor.u32 %v6251, 2147483648
  %v6295 = vxor.u32 %v6253, 2147483648
  %v6296 = vxor.u32 %v6256, 2147483648
  %v6297 = vxor.u32 %v6258, 2147483648
  %v6298 = vxor.u32 %v6261, 2147483648
  %v6299 = vxor.u32 %v6263, 2147483648
  %v6300 = vxor.u32 %v6266, 2147483648
  %v6301 = vxor.u32 %v6268, 2147483648
  %v6302 = vmul.f32 %v6270, 1.442695
  %v6303 = vpow.pop %v6302
  %v6304 = vmul.f32 %v6271, 1.442695
  %v6305 = vpow.pop %v6304
  %v6306 = vmul.f32 %v6272, 1.442695
  %v6307 = vpow.pop %v6306
  %v6308 = vmul.f32 %v6273, 1.442695
  %v6309 = vpow.pop %v6308
  %v6310 = vmul.f32 %v6274, 1.442695
  %v6311 = vpow.pop %v6310
  %v6312 = vmul.f32 %v6275, 1.442695
  %v6313 = vpow.pop %v6312
  %v6314 = vmul.f32 %v6276, 1.442695
  %v6315 = vpow.pop %v6314
  %v6316 = vmul.f32 %v6277, 1.442695
  %v6317 = vpow.pop %v6316
  %v6318 = vmul.f32 %v6278, 1.442695
  %v6319 = vpow.pop %v6318
  %v6320 = vmul.f32 %v6279, 1.442695
  %v6321 = vpow.pop %v6320
  %v6322 = vmul.f32 %v6280, 1.442695
  %v6323 = vpow.pop %v6322
  %v6324 = vmul.f32 %v6281, 1.442695
  %v6325 = vpow.pop %v6324
  %v6326 = vmul.f32 %v6282, 1.442695
  %v6327 = vpow.pop %v6326
  %v6328 = vmul.f32 %v6283, 1.442695
  %v6329 = vpow.pop %v6328
  %v6330 = vmul.f32 %v6284, 1.442695
  %v6331 = vpow.pop %v6330
  %v6332 = vmul.f32 %v6285, 1.442695
  %v6333 = vpow.pop %v6332
  %v6334 = vmul.f32 %v6286, 1.442695
  %v6335 = vpow.pop %v6334
  %v6336 = vmul.f32 %v6287, 1.442695
  %v6337 = vpow.pop %v6336
  %v6338 = vmul.f32 %v6288, 1.442695
  %v6339 = vpow.pop %v6338
  %v6340 = vmul.f32 %v6289, 1.442695
  %v6341 = vpow.pop %v6340
  %v6342 = vmul.f32 %v6290, 1.442695
  %v6343 = vpow.pop %v6342
  %v6344 = vmul.f32 %v6291, 1.442695
  %v6345 = vpow.pop %v6344
  %v6346 = vmul.f32 %v6292, 1.442695
  %v6347 = vpow.pop %v6346
  %v6348 = vmul.f32 %v6293, 1.442695
  %v6349 = vpow.pop %v6348
  %v6350 = vmul.f32 %v6294, 1.442695
  %v6351 = vpow.pop %v6350
  %v6352 = vmul.f32 %v6295, 1.442695
  %v6353 = vpow.pop %v6352
  %v6354 = vmul.f32 %v6296, 1.442695
  %v6355 = vpow.pop %v6354
  %v6356 = vmul.f32 %v6297, 1.442695
  %v6357 = vpow.pop %v6356
  %v6358 = vmul.f32 %v6298, 1.442695
  %v6359 = vpow.pop %v6358
  %v6360 = vmul.f32 %v6299, 1.442695
  %v6361 = vpow.pop %v6360
  %v6362 = vmul.f32 %v6300, 1.442695
  %v6363 = vpow.pop %v6362
  %v6364 = vmul.f32 %v6301, 1.442695
  %v6365 = vpow.pop %v6364
  %v6366 = vadd.f32 %v6303, 1.0
  %v6367 = vadd.f32 %v6305, 1.0
  %v6368 = vadd.f32 %v6307, 1.0
  %v6369 = vadd.f32 %v6309, 1.0
  %v6370 = vadd.f32 %v6311, 1.0
  %v6371 = vadd.f32 %v6313, 1.0
  %v6372 = vadd.f32 %v6315, 1.0
  %v6373 = vadd.f32 %v6317, 1.0
  %v6374 = vadd.f32 %v6319, 1.0
  %v6375 = vadd.f32 %v6321, 1.0
  %v6376 = vadd.f32 %v6323, 1.0
  %v6377 = vadd.f32 %v6325, 1.0
  %v6378 = vadd.f32 %v6327, 1.0
  %v6379 = vadd.f32 %v6329, 1.0
  %v6380 = vadd.f32 %v6331, 1.0
  %v6381 = vadd.f32 %v6333, 1.0
  %v6382 = vadd.f32 %v6335, 1.0
  %v6383 = vadd.f32 %v6337, 1.0
  %v6384 = vadd.f32 %v6339, 1.0
  %v6385 = vadd.f32 %v6341, 1.0
  %v6386 = vadd.f32 %v6343, 1.0
  %v6387 = vadd.f32 %v6345, 1.0
  %v6388 = vadd.f32 %v6347, 1.0
  %v6389 = vadd.f32 %v6349, 1.0
  %v6390 = vadd.f32 %v6351, 1.0
  %v6391 = vadd.f32 %v6353, 1.0
  %v6392 = vadd.f32 %v6355, 1.0
  %v6393 = vadd.f32 %v6357, 1.0
  %v6394 = vadd.f32 %v6359, 1.0
  %v6395 = vadd.f32 %v6361, 1.0
  %v6396 = vadd.f32 %v6363, 1.0
  %v6397 = vadd.f32 %v6365, 1.0
  %v6398 = vrcp.pop %v6366
  %v6399 = vmul.f32 %v6366, %v6398
  %v6400 = vsub.f32 1.0, %v6399
  %v6401 = vmul.f32 %v6398, %v6400
  %v6402 = vadd.f32 %v6398, %v6401
  %vm6403 = vweird.f32 %v6366
  %vm6404 = vweird.f32 %v6398
  %vm6405 = vmor %vm6403, %vm6404
  %v6406 = vsel %vm6405, %v6398, %v6402
  %v6407 = vand.u32 2147483647, %v6366
  %vm6408 = vcmp.eq.f32.partialorder %v6407, 8.507059e+37
  %v6409 = vand.u32 %v6366, 2147483648
  %v6410 = vor.u32 1.1754944e-38, %v6409
  %v6411 = vsel %vm6408, %v6410, %v6406
  %v6412 = vmul.f32 1.0, %v6411
  %v6413 = vrcp.pop %v6367
  %v6414 = vmul.f32 %v6367, %v6413
  %v6415 = vsub.f32 1.0, %v6414
  %v6416 = vmul.f32 %v6413, %v6415
  %v6417 = vadd.f32 %v6413, %v6416
  %vm6418 = vweird.f32 %v6367
  %vm6419 = vweird.f32 %v6413
  %vm6420 = vmor %vm6418, %vm6419
  %v6421 = vsel %vm6420, %v6413, %v6417
  %v6422 = vand.u32 2147483647, %v6367
  %vm6423 = vcmp.eq.f32.partialorder %v6422, 8.507059e+37
  %v6424 = vand.u32 %v6367, 2147483648
  %v6425 = vor.u32 1.1754944e-38, %v6424
  %v6426 = vsel %vm6423, %v6425, %v6421
  %v6427 = vmul.f32 1.0, %v6426
  %v6428 = vrcp.pop %v6368
  %v6429 = vmul.f32 %v6368, %v6428
  %v6430 = vsub.f32 1.0, %v6429
  %v6431 = vmul.f32 %v6428, %v6430
  %v6432 = vadd.f32 %v6428, %v6431
  %vm6433 = vweird.f32 %v6368
  %vm6434 = vweird.f32 %v6428
  %vm6435 = vmor %vm6433, %vm6434
  %v6436 = vsel %vm6435, %v6428, %v6432
  %v6437 = vand.u32 2147483647, %v6368
  %vm6438 = vcmp.eq.f32.partialorder %v6437, 8.507059e+37
  %v6439 = vand.u32 %v6368, 2147483648
  %v6440 = vor.u32 1.1754944e-38, %v6439
  %v6441 = vsel %vm6438, %v6440, %v6436
  %v6442 = vmul.f32 1.0, %v6441
  %v6443 = vrcp.pop %v6369
  %v6444 = vmul.f32 %v6369, %v6443
  %v6445 = vsub.f32 1.0, %v6444
  %v6446 = vmul.f32 %v6443, %v6445
  %v6447 = vadd.f32 %v6443, %v6446
  %vm6448 = vweird.f32 %v6369
  %vm6449 = vweird.f32 %v6443
  %vm6450 = vmor %vm6448, %vm6449
  %v6451 = vsel %vm6450, %v6443, %v6447
  %v6452 = vand.u32 2147483647, %v6369
  %vm6453 = vcmp.eq.f32.partialorder %v6452, 8.507059e+37
  %v6454 = vand.u32 %v6369, 2147483648
  %v6455 = vor.u32 1.1754944e-38, %v6454
  %v6456 = vsel %vm6453, %v6455, %v6451
  %v6457 = vmul.f32 1.0, %v6456
  %v6458 = vrcp.pop %v6370
  %v6459 = vmul.f32 %v6370, %v6458
  %v6460 = vsub.f32 1.0, %v6459
  %v6461 = vmul.f32 %v6458, %v6460
  %v6462 = vadd.f32 %v6458, %v6461
  %vm6463 = vweird.f32 %v6370
  %vm6464 = vweird.f32 %v6458
  %vm6465 = vmor %vm6463, %vm6464
  %v6466 = vsel %vm6465, %v6458, %v6462
  %v6467 = vand.u32 2147483647, %v6370
  %vm6468 = vcmp.eq.f32.partialorder %v6467, 8.507059e+37
  %v6469 = vand.u32 %v6370, 2147483648
  %v6470 = vor.u32 1.1754944e-38, %v6469
  %v6471 = vsel %vm6468, %v6470, %v6466
  %v6472 = vmul.f32 1.0, %v6471
  %v6473 = vrcp.pop %v6371
  %v6474 = vmul.f32 %v6371, %v6473
  %v6475 = vsub.f32 1.0, %v6474
  %v6476 = vmul.f32 %v6473, %v6475
  %v6477 = vadd.f32 %v6473, %v6476
  %vm6478 = vweird.f32 %v6371
  %vm6479 = vweird.f32 %v6473
  %vm6480 = vmor %vm6478, %vm6479
  %v6481 = vsel %vm6480, %v6473, %v6477
  %v6482 = vand.u32 2147483647, %v6371
  %vm6483 = vcmp.eq.f32.partialorder %v6482, 8.507059e+37
  %v6484 = vand.u32 %v6371, 2147483648
  %v6485 = vor.u32 1.1754944e-38, %v6484
  %v6486 = vsel %vm6483, %v6485, %v6481
  %v6487 = vmul.f32 1.0, %v6486
  %v6488 = vrcp.pop %v6372
  %v6489 = vmul.f32 %v6372, %v6488
  %v6490 = vsub.f32 1.0, %v6489
  %v6491 = vmul.f32 %v6488, %v6490
  %v6492 = vadd.f32 %v6488, %v6491
  %vm6493 = vweird.f32 %v6372
  %vm6494 = vweird.f32 %v6488
  %vm6495 = vmor %vm6493, %vm6494
  %v6496 = vsel %vm6495, %v6488, %v6492
  %v6497 = vand.u32 2147483647, %v6372
  %vm6498 = vcmp.eq.f32.partialorder %v6497, 8.507059e+37
  %v6499 = vand.u32 %v6372, 2147483648
  %v6500 = vor.u32 1.1754944e-38, %v6499
  %v6501 = vsel %vm6498, %v6500, %v6496
  %v6502 = vmul.f32 1.0, %v6501
  %v6503 = vrcp.pop %v6373
  %v6504 = vmul.f32 %v6373, %v6503
  %v6505 = vsub.f32 1.0, %v6504
  %v6506 = vmul.f32 %v6503, %v6505
  %v6507 = vadd.f32 %v6503, %v6506
  %vm6508 = vweird.f32 %v6373
  %vm6509 = vweird.f32 %v6503
  %vm6510 = vmor %vm6508, %vm6509
  %v6511 = vsel %vm6510, %v6503, %v6507
  %v6512 = vand.u32 2147483647, %v6373
  %vm6513 = vcmp.eq.f32.partialorder %v6512, 8.507059e+37
  %v6514 = vand.u32 %v6373, 2147483648
  %v6515 = vor.u32 1.1754944e-38, %v6514
  %v6516 = vsel %vm6513, %v6515, %v6511
  %v6517 = vmul.f32 1.0, %v6516
  %v6518 = vrcp.pop %v6374
  %v6519 = vmul.f32 %v6374, %v6518
  %v6520 = vsub.f32 1.0, %v6519
  %v6521 = vmul.f32 %v6518, %v6520
  %v6522 = vadd.f32 %v6518, %v6521
  %vm6523 = vweird.f32 %v6374
  %vm6524 = vweird.f32 %v6518
  %vm6525 = vmor %vm6523, %vm6524
  %v6526 = vsel %vm6525, %v6518, %v6522
  %v6527 = vand.u32 2147483647, %v6374
  %vm6528 = vcmp.eq.f32.partialorder %v6527, 8.507059e+37
  %v6529 = vand.u32 %v6374, 2147483648
  %v6530 = vor.u32 1.1754944e-38, %v6529
  %v6531 = vsel %vm6528, %v6530, %v6526
  %v6532 = vmul.f32 1.0, %v6531
  %v6533 = vrcp.pop %v6375
  %v6534 = vmul.f32 %v6375, %v6533
  %v6535 = vsub.f32 1.0, %v6534
  %v6536 = vmul.f32 %v6533, %v6535
  %v6537 = vadd.f32 %v6533, %v6536
  %vm6538 = vweird.f32 %v6375
  %vm6539 = vweird.f32 %v6533
  %vm6540 = vmor %vm6538, %vm6539
  %v6541 = vsel %vm6540, %v6533, %v6537
  %v6542 = vand.u32 2147483647, %v6375
  %vm6543 = vcmp.eq.f32.partialorder %v6542, 8.507059e+37
  %v6544 = vand.u32 %v6375, 2147483648
  %v6545 = vor.u32 1.1754944e-38, %v6544
  %v6546 = vsel %vm6543, %v6545, %v6541
  %v6547 = vmul.f32 1.0, %v6546
  %v6548 = vrcp.pop %v6376
  %v6549 = vmul.f32 %v6376, %v6548
  %v6550 = vsub.f32 1.0, %v6549
  %v6551 = vmul.f32 %v6548, %v6550
  %v6552 = vadd.f32 %v6548, %v6551
  %vm6553 = vweird.f32 %v6376
  %vm6554 = vweird.f32 %v6548
  %vm6555 = vmor %vm6553, %vm6554
  %v6556 = vsel %vm6555, %v6548, %v6552
  %v6557 = vand.u32 2147483647, %v6376
  %vm6558 = vcmp.eq.f32.partialorder %v6557, 8.507059e+37
  %v6559 = vand.u32 %v6376, 2147483648
  %v6560 = vor.u32 1.1754944e-38, %v6559
  %v6561 = vsel %vm6558, %v6560, %v6556
  %v6562 = vmul.f32 1.0, %v6561
  %v6563 = vrcp.pop %v6377
  %v6564 = vmul.f32 %v6377, %v6563
  %v6565 = vsub.f32 1.0, %v6564
  %v6566 = vmul.f32 %v6563, %v6565
  %v6567 = vadd.f32 %v6563, %v6566
  %vm6568 = vweird.f32 %v6377
  %vm6569 = vweird.f32 %v6563
  %vm6570 = vmor %vm6568, %vm6569
  %v6571 = vsel %vm6570, %v6563, %v6567
  %v6572 = vand.u32 2147483647, %v6377
  %vm6573 = vcmp.eq.f32.partialorder %v6572, 8.507059e+37
  %v6574 = vand.u32 %v6377, 2147483648
  %v6575 = vor.u32 1.1754944e-38, %v6574
  %v6576 = vsel %vm6573, %v6575, %v6571
  %v6577 = vmul.f32 1.0, %v6576
  %v6578 = vrcp.pop %v6378
  %v6579 = vmul.f32 %v6378, %v6578
  %v6580 = vsub.f32 1.0, %v6579
  %v6581 = vmul.f32 %v6578, %v6580
  %v6582 = vadd.f32 %v6578, %v6581
  %vm6583 = vweird.f32 %v6378
  %vm6584 = vweird.f32 %v6578
  %vm6585 = vmor %vm6583, %vm6584
  %v6586 = vsel %vm6585, %v6578, %v6582
  %v6587 = vand.u32 2147483647, %v6378
  %vm6588 = vcmp.eq.f32.partialorder %v6587, 8.507059e+37
  %v6589 = vand.u32 %v6378, 2147483648
  %v6590 = vor.u32 1.1754944e-38, %v6589
  %v6591 = vsel %vm6588, %v6590, %v6586
  %v6592 = vmul.f32 1.0, %v6591
  %v6593 = vrcp.pop %v6379
  %v6594 = vmul.f32 %v6379, %v6593
  %v6595 = vsub.f32 1.0, %v6594
  %v6596 = vmul.f32 %v6593, %v6595
  %v6597 = vadd.f32 %v6593, %v6596
  %vm6598 = vweird.f32 %v6379
  %vm6599 = vweird.f32 %v6593
  %vm6600 = vmor %vm6598, %vm6599
  %v6601 = vsel %vm6600, %v6593, %v6597
  %v6602 = vand.u32 2147483647, %v6379
  %vm6603 = vcmp.eq.f32.partialorder %v6602, 8.507059e+37
  %v6604 = vand.u32 %v6379, 2147483648
  %v6605 = vor.u32 1.1754944e-38, %v6604
  %v6606 = vsel %vm6603, %v6605, %v6601
  %v6607 = vmul.f32 1.0, %v6606
  %v6608 = vrcp.pop %v6380
  %v6609 = vmul.f32 %v6380, %v6608
  %v6610 = vsub.f32 1.0, %v6609
  %v6611 = vmul.f32 %v6608, %v6610
  %v6612 = vadd.f32 %v6608, %v6611
  %vm6613 = vweird.f32 %v6380
  %vm6614 = vweird.f32 %v6608
  %vm6615 = vmor %vm6613, %vm6614
  %v6616 = vsel %vm6615, %v6608, %v6612
  %v6617 = vand.u32 2147483647, %v6380
  %vm6618 = vcmp.eq.f32.partialorder %v6617, 8.507059e+37
  %v6619 = vand.u32 %v6380, 2147483648
  %v6620 = vor.u32 1.1754944e-38, %v6619
  %v6621 = vsel %vm6618, %v6620, %v6616
  %v6622 = vmul.f32 1.0, %v6621
  %v6623 = vrcp.pop %v6381
  %v6624 = vmul.f32 %v6381, %v6623
  %v6625 = vsub.f32 1.0, %v6624
  %v6626 = vmul.f32 %v6623, %v6625
  %v6627 = vadd.f32 %v6623, %v6626
  %vm6628 = vweird.f32 %v6381
  %vm6629 = vweird.f32 %v6623
  %vm6630 = vmor %vm6628, %vm6629
  %v6631 = vsel %vm6630, %v6623, %v6627
  %v6632 = vand.u32 2147483647, %v6381
  %vm6633 = vcmp.eq.f32.partialorder %v6632, 8.507059e+37
  %v6634 = vand.u32 %v6381, 2147483648
  %v6635 = vor.u32 1.1754944e-38, %v6634
  %v6636 = vsel %vm6633, %v6635, %v6631
  %v6637 = vmul.f32 1.0, %v6636
  %v6638 = vrcp.pop %v6382
  %v6639 = vmul.f32 %v6382, %v6638
  %v6640 = vsub.f32 1.0, %v6639
  %v6641 = vmul.f32 %v6638, %v6640
  %v6642 = vadd.f32 %v6638, %v6641
  %vm6643 = vweird.f32 %v6382
  %vm6644 = vweird.f32 %v6638
  %vm6645 = vmor %vm6643, %vm6644
  %v6646 = vsel %vm6645, %v6638, %v6642
  %v6647 = vand.u32 2147483647, %v6382
  %vm6648 = vcmp.eq.f32.partialorder %v6647, 8.507059e+37
  %v6649 = vand.u32 %v6382, 2147483648
  %v6650 = vor.u32 1.1754944e-38, %v6649
  %v6651 = vsel %vm6648, %v6650, %v6646
  %v6652 = vmul.f32 1.0, %v6651
  %v6653 = vrcp.pop %v6383
  %v6654 = vmul.f32 %v6383, %v6653
  %v6655 = vsub.f32 1.0, %v6654
  %v6656 = vmul.f32 %v6653, %v6655
  %v6657 = vadd.f32 %v6653, %v6656
  %vm6658 = vweird.f32 %v6383
  %vm6659 = vweird.f32 %v6653
  %vm6660 = vmor %vm6658, %vm6659
  %v6661 = vsel %vm6660, %v6653, %v6657
  %v6662 = vand.u32 2147483647, %v6383
  %vm6663 = vcmp.eq.f32.partialorder %v6662, 8.507059e+37
  %v6664 = vand.u32 %v6383, 2147483648
  %v6665 = vor.u32 1.1754944e-38, %v6664
  %v6666 = vsel %vm6663, %v6665, %v6661
  %v6667 = vmul.f32 1.0, %v6666
  %v6668 = vrcp.pop %v6384
  %v6669 = vmul.f32 %v6384, %v6668
  %v6670 = vsub.f32 1.0, %v6669
  %v6671 = vmul.f32 %v6668, %v6670
  %v6672 = vadd.f32 %v6668, %v6671
  %vm6673 = vweird.f32 %v6384
  %vm6674 = vweird.f32 %v6668
  %vm6675 = vmor %vm6673, %vm6674
  %v6676 = vsel %vm6675, %v6668, %v6672
  %v6677 = vand.u32 2147483647, %v6384
  %vm6678 = vcmp.eq.f32.partialorder %v6677, 8.507059e+37
  %v6679 = vand.u32 %v6384, 2147483648
  %v6680 = vor.u32 1.1754944e-38, %v6679
  %v6681 = vsel %vm6678, %v6680, %v6676
  %v6682 = vmul.f32 1.0, %v6681
  %v6683 = vrcp.pop %v6385
  %v6684 = vmul.f32 %v6385, %v6683
  %v6685 = vsub.f32 1.0, %v6684
  %v6686 = vmul.f32 %v6683, %v6685
  %v6687 = vadd.f32 %v6683, %v6686
  %vm6688 = vweird.f32 %v6385
  %vm6689 = vweird.f32 %v6683
  %vm6690 = vmor %vm6688, %vm6689
  %v6691 = vsel %vm6690, %v6683, %v6687
  %v6692 = vand.u32 2147483647, %v6385
  %vm6693 = vcmp.eq.f32.partialorder %v6692, 8.507059e+37
  %v6694 = vand.u32 %v6385, 2147483648
  %v6695 = vor.u32 1.1754944e-38, %v6694
  %v6696 = vsel %vm6693, %v6695, %v6691
  %v6697 = vmul.f32 1.0, %v6696
  %v6698 = vrcp.pop %v6386
  %v6699 = vmul.f32 %v6386, %v6698
  %v6700 = vsub.f32 1.0, %v6699
  %v6701 = vmul.f32 %v6698, %v6700
  %v6702 = vadd.f32 %v6698, %v6701
  %vm6703 = vweird.f32 %v6386
  %vm6704 = vweird.f32 %v6698
  %vm6705 = vmor %vm6703, %vm6704
  %v6706 = vsel %vm6705, %v6698, %v6702
  %v6707 = vand.u32 2147483647, %v6386
  %vm6708 = vcmp.eq.f32.partialorder %v6707, 8.507059e+37
  %v6709 = vand.u32 %v6386, 2147483648
  %v6710 = vor.u32 1.1754944e-38, %v6709
  %v6711 = vsel %vm6708, %v6710, %v6706
  %v6712 = vmul.f32 1.0, %v6711
  %v6713 = vrcp.pop %v6387
  %v6714 = vmul.f32 %v6387, %v6713
  %v6715 = vsub.f32 1.0, %v6714
  %v6716 = vmul.f32 %v6713, %v6715
  %v6717 = vadd.f32 %v6713, %v6716
  %vm6718 = vweird.f32 %v6387
  %vm6719 = vweird.f32 %v6713
  %vm6720 = vmor %vm6718, %vm6719
  %v6721 = vsel %vm6720, %v6713, %v6717
  %v6722 = vand.u32 2147483647, %v6387
  %vm6723 = vcmp.eq.f32.partialorder %v6722, 8.507059e+37
  %v6724 = vand.u32 %v6387, 2147483648
  %v6725 = vor.u32 1.1754944e-38, %v6724
  %v6726 = vsel %vm6723, %v6725, %v6721
  %v6727 = vmul.f32 1.0, %v6726
  %v6728 = vrcp.pop %v6388
  %v6729 = vmul.f32 %v6388, %v6728
  %v6730 = vsub.f32 1.0, %v6729
  %v6731 = vmul.f32 %v6728, %v6730
  %v6732 = vadd.f32 %v6728, %v6731
  %vm6733 = vweird.f32 %v6388
  %vm6734 = vweird.f32 %v6728
  %vm6735 = vmor %vm6733, %vm6734
  %v6736 = vsel %vm6735, %v6728, %v6732
  %v6737 = vand.u32 2147483647, %v6388
  %vm6738 = vcmp.eq.f32.partialorder %v6737, 8.507059e+37
  %v6739 = vand.u32 %v6388, 2147483648
  %v6740 = vor.u32 1.1754944e-38, %v6739
  %v6741 = vsel %vm6738, %v6740, %v6736
  %v6742 = vmul.f32 1.0, %v6741
  %v6743 = vrcp.pop %v6389
  %v6744 = vmul.f32 %v6389, %v6743
  %v6745 = vsub.f32 1.0, %v6744
  %v6746 = vmul.f32 %v6743, %v6745
  %v6747 = vadd.f32 %v6743, %v6746
  %vm6748 = vweird.f32 %v6389
  %vm6749 = vweird.f32 %v6743
  %vm6750 = vmor %vm6748, %vm6749
  %v6751 = vsel %vm6750, %v6743, %v6747
  %v6752 = vand.u32 2147483647, %v6389
  %vm6753 = vcmp.eq.f32.partialorder %v6752, 8.507059e+37
  %v6754 = vand.u32 %v6389, 2147483648
  %v6755 = vor.u32 1.1754944e-38, %v6754
  %v6756 = vsel %vm6753, %v6755, %v6751
  %v6757 = vmul.f32 1.0, %v6756
  %v6758 = vrcp.pop %v6390
  %v6759 = vmul.f32 %v6390, %v6758
  %v6760 = vsub.f32 1.0, %v6759
  %v6761 = vmul.f32 %v6758, %v6760
  %v6762 = vadd.f32 %v6758, %v6761
  %vm6763 = vweird.f32 %v6390
  %vm6764 = vweird.f32 %v6758
  %vm6765 = vmor %vm6763, %vm6764
  %v6766 = vsel %vm6765, %v6758, %v6762
  %v6767 = vand.u32 2147483647, %v6390
  %vm6768 = vcmp.eq.f32.partialorder %v6767, 8.507059e+37
  %v6769 = vand.u32 %v6390, 2147483648
  %v6770 = vor.u32 1.1754944e-38, %v6769
  %v6771 = vsel %vm6768, %v6770, %v6766
  %v6772 = vmul.f32 1.0, %v6771
  %v6773 = vrcp.pop %v6391
  %v6774 = vmul.f32 %v6391, %v6773
  %v6775 = vsub.f32 1.0, %v6774
  %v6776 = vmul.f32 %v6773, %v6775
  %v6777 = vadd.f32 %v6773, %v6776
  %vm6778 = vweird.f32 %v6391
  %vm6779 = vweird.f32 %v6773
  %vm6780 = vmor %vm6778, %vm6779
  %v6781 = vsel %vm6780, %v6773, %v6777
  %v6782 = vand.u32 2147483647, %v6391
  %vm6783 = vcmp.eq.f32.partialorder %v6782, 8.507059e+37
  %v6784 = vand.u32 %v6391, 2147483648
  %v6785 = vor.u32 1.1754944e-38, %v6784
  %v6786 = vsel %vm6783, %v6785, %v6781
  %v6787 = vmul.f32 1.0, %v6786
  %v6788 = vrcp.pop %v6392
  %v6789 = vmul.f32 %v6392, %v6788
  %v6790 = vsub.f32 1.0, %v6789
  %v6791 = vmul.f32 %v6788, %v6790
  %v6792 = vadd.f32 %v6788, %v6791
  %vm6793 = vweird.f32 %v6392
  %vm6794 = vweird.f32 %v6788
  %vm6795 = vmor %vm6793, %vm6794
  %v6796 = vsel %vm6795, %v6788, %v6792
  %v6797 = vand.u32 2147483647, %v6392
  %vm6798 = vcmp.eq.f32.partialorder %v6797, 8.507059e+37
  %v6799 = vand.u32 %v6392, 2147483648
  %v6800 = vor.u32 1.1754944e-38, %v6799
  %v6801 = vsel %vm6798, %v6800, %v6796
  %v6802 = vmul.f32 1.0, %v6801
  %v6803 = vrcp.pop %v6393
  %v6804 = vmul.f32 %v6393, %v6803
  %v6805 = vsub.f32 1.0, %v6804
  %v6806 = vmul.f32 %v6803, %v6805
  %v6807 = vadd.f32 %v6803, %v6806
  %vm6808 = vweird.f32 %v6393
  %vm6809 = vweird.f32 %v6803
  %vm6810 = vmor %vm6808, %vm6809
  %v6811 = vsel %vm6810, %v6803, %v6807
  %v6812 = vand.u32 2147483647, %v6393
  %vm6813 = vcmp.eq.f32.partialorder %v6812, 8.507059e+37
  %v6814 = vand.u32 %v6393, 2147483648
  %v6815 = vor.u32 1.1754944e-38, %v6814
  %v6816 = vsel %vm6813, %v6815, %v6811
  %v6817 = vmul.f32 1.0, %v6816
  %v6818 = vrcp.pop %v6394
  %v6819 = vmul.f32 %v6394, %v6818
  %v6820 = vsub.f32 1.0, %v6819
  %v6821 = vmul.f32 %v6818, %v6820
  %v6822 = vadd.f32 %v6818, %v6821
  %vm6823 = vweird.f32 %v6394
  %vm6824 = vweird.f32 %v6818
  %vm6825 = vmor %vm6823, %vm6824
  %v6826 = vsel %vm6825, %v6818, %v6822
  %v6827 = vand.u32 2147483647, %v6394
  %vm6828 = vcmp.eq.f32.partialorder %v6827, 8.507059e+37
  %v6829 = vand.u32 %v6394, 2147483648
  %v6830 = vor.u32 1.1754944e-38, %v6829
  %v6831 = vsel %vm6828, %v6830, %v6826
  %v6832 = vmul.f32 1.0, %v6831
  %v6833 = vrcp.pop %v6395
  %v6834 = vmul.f32 %v6395, %v6833
  %v6835 = vsub.f32 1.0, %v6834
  %v6836 = vmul.f32 %v6833, %v6835
  %v6837 = vadd.f32 %v6833, %v6836
  %vm6838 = vweird.f32 %v6395
  %vm6839 = vweird.f32 %v6833
  %vm6840 = vmor %vm6838, %vm6839
  %v6841 = vsel %vm6840, %v6833, %v6837
  %v6842 = vand.u32 2147483647, %v6395
  %vm6843 = vcmp.eq.f32.partialorder %v6842, 8.507059e+37
  %v6844 = vand.u32 %v6395, 2147483648
  %v6845 = vor.u32 1.1754944e-38, %v6844
  %v6846 = vsel %vm6843, %v6845, %v6841
  %v6847 = vmul.f32 1.0, %v6846
  %v6848 = vrcp.pop %v6396
  %v6849 = vmul.f32 %v6396, %v6848
  %v6850 = vsub.f32 1.0, %v6849
  %v6851 = vmul.f32 %v6848, %v6850
  %v6852 = vadd.f32 %v6848, %v6851
  %vm6853 = vweird.f32 %v6396
  %vm6854 = vweird.f32 %v6848
  %vm6855 = vmor %vm6853, %vm6854
  %v6856 = vsel %vm6855, %v6848, %v6852
  %v6857 = vand.u32 2147483647, %v6396
  %vm6858 = vcmp.eq.f32.partialorder %v6857, 8.507059e+37
  %v6859 = vand.u32 %v6396, 2147483648
  %v6860 = vor.u32 1.1754944e-38, %v6859
  %v6861 = vsel %vm6858, %v6860, %v6856
  %v6862 = vmul.f32 1.0, %v6861
  %v6863 = vrcp.pop %v6397
  %v6864 = vmul.f32 %v6397, %v6863
  %v6865 = vsub.f32 1.0, %v6864
  %v6866 = vmul.f32 %v6863, %v6865
  %v6867 = vadd.f32 %v6863, %v6866
  %vm6868 = vweird.f32 %v6397
  %vm6869 = vweird.f32 %v6863
  %vm6870 = vmor %vm6868, %vm6869
  %v6871 = vsel %vm6870, %v6863, %v6867
  %v6872 = vand.u32 2147483647, %v6397
  %vm6873 = vcmp.eq.f32.partialorder %v6872, 8.507059e+37
  %v6874 = vand.u32 %v6397, 2147483648
  %v6875 = vor.u32 1.1754944e-38, %v6874
  %v6876 = vsel %vm6873, %v6875, %v6871
  %v6877 = vmul.f32 1.0, %v6876
  %6910 = vrot.lane.b32.xlu0 %v6412, 96
  %v6911 = vpop.permute.xlu0 %6910
  %6912 = vrot.lane.b32.xlu0 %v6427, 96
  %v6913 = vpop.permute.xlu0 %6912
  %6914 = vrot.lane.b32.xlu0 %v6442, 96
  %v6915 = vpop.permute.xlu0 %6914
  %6916 = vrot.lane.b32.xlu0 %v6457, 96
  %v6917 = vpop.permute.xlu0 %6916
  %6918 = vrot.lane.b32.xlu0 %v6472, 96
  %v6919 = vpop.permute.xlu0 %6918
  %6920 = vrot.lane.b32.xlu0 %v6487, 96
  %v6921 = vpop.permute.xlu0 %6920
  %6922 = vrot.lane.b32.xlu0 %v6502, 96
  %v6923 = vpop.permute.xlu0 %6922
  %6924 = vrot.lane.b32.xlu0 %v6517, 96
  %v6925 = vpop.permute.xlu0 %6924
  %6926 = vrot.lane.b32.xlu0 %v6532, 96
  %v6927 = vpop.permute.xlu0 %6926
  %6928 = vrot.lane.b32.xlu0 %v6547, 96
  %v6929 = vpop.permute.xlu0 %6928
  %6930 = vrot.lane.b32.xlu0 %v6562, 96
  %v6931 = vpop.permute.xlu0 %6930
  %6932 = vrot.lane.b32.xlu0 %v6577, 96
  %v6933 = vpop.permute.xlu0 %6932
  %6934 = vrot.lane.b32.xlu0 %v6592, 96
  %v6935 = vpop.permute.xlu0 %6934
  %6936 = vrot.lane.b32.xlu0 %v6607, 96
  %v6937 = vpop.permute.xlu0 %6936
  %6938 = vrot.lane.b32.xlu0 %v6622, 96
  %v6939 = vpop.permute.xlu0 %6938
  %6940 = vrot.lane.b32.xlu0 %v6637, 96
  %v6941 = vpop.permute.xlu0 %6940
  %6942 = vrot.lane.b32.xlu0 %v6652, 96
  %v6943 = vpop.permute.xlu0 %6942
  %6944 = vrot.lane.b32.xlu0 %v6667, 96
  %v6945 = vpop.permute.xlu0 %6944
  %6946 = vrot.lane.b32.xlu0 %v6682, 96
  %v6947 = vpop.permute.xlu0 %6946
  %6948 = vrot.lane.b32.xlu0 %v6697, 96
  %v6949 = vpop.permute.xlu0 %6948
  %6950 = vrot.lane.b32.xlu0 %v6712, 96
  %v6951 = vpop.permute.xlu0 %6950
  %6952 = vrot.lane.b32.xlu0 %v6727, 96
  %v6953 = vpop.permute.xlu0 %6952
  %6954 = vrot.lane.b32.xlu0 %v6742, 96
  %v6955 = vpop.permute.xlu0 %6954
  %6956 = vrot.lane.b32.xlu0 %v6757, 96
  %v6957 = vpop.permute.xlu0 %6956
  %6958 = vrot.lane.b32.xlu0 %v6772, 96
  %v6959 = vpop.permute.xlu0 %6958
  %6960 = vrot.lane.b32.xlu0 %v6787, 96
  %v6961 = vpop.permute.xlu0 %6960
  %6962 = vrot.lane.b32.xlu0 %v6802, 96
  %v6963 = vpop.permute.xlu0 %6962
  %6964 = vrot.lane.b32.xlu0 %v6817, 96
  %v6965 = vpop.permute.xlu0 %6964
  %6966 = vrot.lane.b32.xlu0 %v6832, 96
  %v6967 = vpop.permute.xlu0 %6966
  %6968 = vrot.lane.b32.xlu0 %v6847, 96
  %v6969 = vpop.permute.xlu0 %6968
  %6970 = vrot.lane.b32.xlu0 %v6862, 96
  %v6971 = vpop.permute.xlu0 %6970
  %6972 = vrot.lane.b32.xlu0 %v6877, 96
  %v6973 = vpop.permute.xlu0 %6972
  %v7006 = vmul.f32 %v6191, %v6911
  %v7007 = vmul.f32 %v6193, %v6913
  %v7008 = vmul.f32 %v6196, %v6915
  %v7009 = vmul.f32 %v6198, %v6917
  %v7010 = vmul.f32 %v6201, %v6919
  %v7011 = vmul.f32 %v6203, %v6921
  %v7012 = vmul.f32 %v6206, %v6923
  %v7013 = vmul.f32 %v6208, %v6925
  %v7014 = vmul.f32 %v6211, %v6927
  %v7015 = vmul.f32 %v6213, %v6929
  %v7016 = vmul.f32 %v6216, %v6931
  %v7017 = vmul.f32 %v6218, %v6933
  %v7018 = vmul.f32 %v6221, %v6935
  %v7019 = vmul.f32 %v6223, %v6937
  %v7020 = vmul.f32 %v6226, %v6939
  %v7021 = vmul.f32 %v6228, %v6941
  %v7022 = vmul.f32 %v6231, %v6943
  %v7023 = vmul.f32 %v6233, %v6945
  %v7024 = vmul.f32 %v6236, %v6947
  %v7025 = vmul.f32 %v6238, %v6949
  %v7026 = vmul.f32 %v6241, %v6951
  %v7027 = vmul.f32 %v6243, %v6953
  %v7028 = vmul.f32 %v6246, %v6955
  %v7029 = vmul.f32 %v6248, %v6957
  %v7030 = vmul.f32 %v6251, %v6959
  %v7031 = vmul.f32 %v6253, %v6961
  %v7032 = vmul.f32 %v6256, %v6963
  %v7033 = vmul.f32 %v6258, %v6965
  %v7034 = vmul.f32 %v6261, %v6967
  %v7035 = vmul.f32 %v6263, %v6969
  %v7036 = vmul.f32 %v6266, %v6971
  %v7037 = vmul.f32 %v6268, %v6973
  %v7038 = vpack.c.bf16 %v7006, %v7006
  %v7039 = vpack.c.bf16 %v7007, %v7007
  %v7040 = vpack.c.bf16 %v7008, %v7008
  %v7041 = vpack.c.bf16 %v7009, %v7009
  %v7042 = vpack.c.bf16 %v7010, %v7010
  %v7043 = vpack.c.bf16 %v7011, %v7011
  %v7044 = vpack.c.bf16 %v7012, %v7012
  %v7045 = vpack.c.bf16 %v7013, %v7013
  %v7046 = vpack.c.bf16 %v7014, %v7014
  %v7047 = vpack.c.bf16 %v7015, %v7015
  %v7048 = vpack.c.bf16 %v7016, %v7016
  %v7049 = vpack.c.bf16 %v7017, %v7017
  %v7050 = vpack.c.bf16 %v7018, %v7018
  %v7051 = vpack.c.bf16 %v7019, %v7019
  %v7052 = vpack.c.bf16 %v7020, %v7020
  %v7053 = vpack.c.bf16 %v7021, %v7021
  %v7054 = vpack.c.bf16 %v7022, %v7022
  %v7055 = vpack.c.bf16 %v7023, %v7023
  %v7056 = vpack.c.bf16 %v7024, %v7024
  %v7057 = vpack.c.bf16 %v7025, %v7025
  %v7058 = vpack.c.bf16 %v7026, %v7026
  %v7059 = vpack.c.bf16 %v7027, %v7027
  %v7060 = vpack.c.bf16 %v7028, %v7028
  %v7061 = vpack.c.bf16 %v7029, %v7029
  %v7062 = vpack.c.bf16 %v7030, %v7030
  %v7063 = vpack.c.bf16 %v7031, %v7031
  %v7064 = vpack.c.bf16 %v7032, %v7032
  %v7065 = vpack.c.bf16 %v7033, %v7033
  %v7066 = vpack.c.bf16 %v7034, %v7034
  %v7067 = vpack.c.bf16 %v7035, %v7035
  %v7068 = vpack.c.bf16 %v7036, %v7036
  %v7069 = vpack.c.bf16 %v7037, %v7037
  %v7102 = vunpack.c.l.b16 %v7038
  %v7103 = vunpack.c.l.b16 %v7039
  %v7104 = vunpack.c.l.b16 %v7040
  %v7105 = vunpack.c.l.b16 %v7041
  %v7106 = vunpack.c.l.b16 %v7042
  %v7107 = vunpack.c.l.b16 %v7043
  %v7108 = vunpack.c.l.b16 %v7044
  %v7109 = vunpack.c.l.b16 %v7045
  %v7110 = vunpack.c.l.b16 %v7046
  %v7111 = vunpack.c.l.b16 %v7047
  %v7112 = vunpack.c.l.b16 %v7048
  %v7113 = vunpack.c.l.b16 %v7049
  %v7114 = vunpack.c.l.b16 %v7050
  %v7115 = vunpack.c.l.b16 %v7051
  %v7116 = vunpack.c.l.b16 %v7052
  %v7117 = vunpack.c.l.b16 %v7053
  %v7118 = vunpack.c.l.b16 %v7054
  %v7119 = vunpack.c.l.b16 %v7055
  %v7120 = vunpack.c.l.b16 %v7056
  %v7121 = vunpack.c.l.b16 %v7057
  %v7122 = vunpack.c.l.b16 %v7058
  %v7123 = vunpack.c.l.b16 %v7059
  %v7124 = vunpack.c.l.b16 %v7060
  %v7125 = vunpack.c.l.b16 %v7061
  %v7126 = vunpack.c.l.b16 %v7062
  %v7127 = vunpack.c.l.b16 %v7063
  %v7128 = vunpack.c.l.b16 %v7064
  %v7129 = vunpack.c.l.b16 %v7065
  %v7130 = vunpack.c.l.b16 %v7066
  %v7131 = vunpack.c.l.b16 %v7067
  %v7132 = vunpack.c.l.b16 %v7068
  %v7133 = vunpack.c.l.b16 %v7069
  %v7134 = vpack.c.b16 %v7103, %v7102
  %v7135 = vpack.c.b16 %v7105, %v7104
  %v7136 = vpack.c.b16 %v7107, %v7106
  %v7137 = vpack.c.b16 %v7109, %v7108
  %v7138 = vpack.c.b16 %v7111, %v7110
  %v7139 = vpack.c.b16 %v7113, %v7112
  %v7140 = vpack.c.b16 %v7115, %v7114
  %v7141 = vpack.c.b16 %v7117, %v7116
  %v7142 = vpack.c.b16 %v7119, %v7118
  %v7143 = vpack.c.b16 %v7121, %v7120
  %v7144 = vpack.c.b16 %v7123, %v7122
  %v7145 = vpack.c.b16 %v7125, %v7124
  %v7146 = vpack.c.b16 %v7127, %v7126
  %v7147 = vpack.c.b16 %v7129, %v7128
  %v7148 = vpack.c.b16 %v7131, %v7130
  %v7149 = vpack.c.b16 %v7133, %v7132
  %7150 = vrot.lane.b32.xlu0 %v7134, 32
  %v7151 = vpop.permute.xlu0 %7150
  %7152 = vrot.lane.b32.xlu0 %v7135, 32
  %v7153 = vpop.permute.xlu0 %7152
  %7154 = vrot.lane.b32.xlu0 %v7136, 32
  %v7155 = vpop.permute.xlu0 %7154
  %7156 = vrot.lane.b32.xlu0 %v7137, 32
  %v7157 = vpop.permute.xlu0 %7156
  %7158 = vrot.lane.b32.xlu0 %v7138, 32
  %v7159 = vpop.permute.xlu0 %7158
  %7160 = vrot.lane.b32.xlu0 %v7139, 32
  %v7161 = vpop.permute.xlu0 %7160
  %7162 = vrot.lane.b32.xlu0 %v7140, 32
  %v7163 = vpop.permute.xlu0 %7162
  %7164 = vrot.lane.b32.xlu0 %v7141, 32
  %v7165 = vpop.permute.xlu0 %7164
  %7166 = vrot.lane.b32.xlu0 %v7142, 32
  %v7167 = vpop.permute.xlu0 %7166
  %7168 = vrot.lane.b32.xlu0 %v7143, 32
  %v7169 = vpop.permute.xlu0 %7168
  %7170 = vrot.lane.b32.xlu0 %v7144, 32
  %v7171 = vpop.permute.xlu0 %7170
  %7172 = vrot.lane.b32.xlu0 %v7145, 32
  %v7173 = vpop.permute.xlu0 %7172
  %7174 = vrot.lane.b32.xlu0 %v7146, 32
  %v7175 = vpop.permute.xlu0 %7174
  %7176 = vrot.lane.b32.xlu0 %v7147, 32
  %v7177 = vpop.permute.xlu0 %7176
  %7178 = vrot.lane.b32.xlu0 %v7148, 32
  %v7179 = vpop.permute.xlu0 %7178
  %7180 = vrot.lane.b32.xlu0 %v7149, 32
  %v7181 = vpop.permute.xlu0 %7180
  %7182 = vrot.lane.b32.xlu0 %v7136, 64
  %v7183 = vpop.permute.xlu0 %7182
  %7184 = vrot.lane.b32.xlu0 %v7137, 64
  %v7185 = vpop.permute.xlu0 %7184
  %7186 = vrot.lane.b32.xlu0 %v7138, 64
  %v7187 = vpop.permute.xlu0 %7186
  %7188 = vrot.lane.b32.xlu0 %v7139, 64
  %v7189 = vpop.permute.xlu0 %7188
  %7190 = vrot.lane.b32.xlu0 %v7140, 64
  %v7191 = vpop.permute.xlu0 %7190
  %7192 = vrot.lane.b32.xlu0 %v7141, 64
  %v7193 = vpop.permute.xlu0 %7192
  %7194 = vrot.lane.b32.xlu0 %v7142, 64
  %v7195 = vpop.permute.xlu0 %7194
  %7196 = vrot.lane.b32.xlu0 %v7143, 64
  %v7197 = vpop.permute.xlu0 %7196
  %7198 = vrot.lane.b32.xlu0 %v7144, 64
  %v7199 = vpop.permute.xlu0 %7198
  %7200 = vrot.lane.b32.xlu0 %v7145, 64
  %v7201 = vpop.permute.xlu0 %7200
  %7202 = vrot.lane.b32.xlu0 %v7146, 64
  %v7203 = vpop.permute.xlu0 %7202
  %7204 = vrot.lane.b32.xlu0 %v7147, 64
  %v7205 = vpop.permute.xlu0 %7204
  %7206 = vrot.lane.b32.xlu0 %v7148, 64
  %v7207 = vpop.permute.xlu0 %7206
  %7208 = vrot.lane.b32.xlu0 %v7149, 64
  %v7209 = vpop.permute.xlu0 %7208
  %v7211 = vsel %vm2031, 0, %v7151
  %v7213 = vsel %vm2031, 0, %v7153
  %v7216 = vsel %vm2031, %v7134, %v7155
  %v7219 = vsel %vm2031, %v7135, %v7157
  %v7222 = vsel %vm2031, %v7136, %v7159
  %v7225 = vsel %vm2031, %v7137, %v7161
  %v7228 = vsel %vm2031, %v7138, %v7163
  %v7231 = vsel %vm2031, %v7139, %v7165
  %v7234 = vsel %vm2031, %v7140, %v7167
  %v7237 = vsel %vm2031, %v7141, %v7169
  %v7240 = vsel %vm2031, %v7142, %v7171
  %v7243 = vsel %vm2031, %v7143, %v7173
  %v7246 = vsel %vm2031, %v7144, %v7175
  %v7249 = vsel %vm2031, %v7145, %v7177
  %v7252 = vsel %vm2031, %v7146, %v7179
  %v7255 = vsel %vm2031, %v7147, %v7181
  %v7257 = vsel %vm2064, %v7211, %v7183
  %v7259 = vsel %vm2064, %v7213, %v7185
  %v7261 = vsel %vm2064, %v7216, %v7187
  %v7263 = vsel %vm2064, %v7219, %v7189
  %v7265 = vsel %vm2064, %v7222, %v7191
  %v7267 = vsel %vm2064, %v7225, %v7193
  %v7269 = vsel %vm2064, %v7228, %v7195
  %v7271 = vsel %vm2064, %v7231, %v7197
  %v7273 = vsel %vm2064, %v7234, %v7199
  %v7275 = vsel %vm2064, %v7237, %v7201
  %v7277 = vsel %vm2064, %v7240, %v7203
  %v7279 = vsel %vm2064, %v7243, %v7205
  %v7281 = vsel %vm2064, %v7246, %v7207
  %v7283 = vsel %vm2064, %v7249, %v7209
  %v7284 = vsel %vm2064, %v7252, %v2540
  %v7285 = vsel %vm2064, %v7255, %v2540
  %v7286 = vld [vmem:[%s14] sm:$0xf]
  %v7287 = vld [vmem:[%s14 + $0x4] sm:$0xf]
  %v7288 = vld [vmem:[%s14 + $0x8] sm:$0xf]
  %v7289 = vld [vmem:[%s14 + $0xc] sm:$0xf]
  %v7290 = vld [vmem:[%s14 + $0x10] sm:$0xf]
  %v7291 = vld [vmem:[%s14 + $0x14] sm:$0xf]
  %v7292 = vld [vmem:[%s14 + $0x18] sm:$0xf]
  %v7293 = vld [vmem:[%s14 + $0x1c] sm:$0xf]
  %v7294 = vld [vmem:[%s14 + $0x20] sm:$0xf]
  %v7295 = vld [vmem:[%s14 + $0x24] sm:$0xf]
  %v7296 = vld [vmem:[%s14 + $0x28] sm:$0xf]
  %v7297 = vld [vmem:[%s14 + $0x2c] sm:$0xf]
  %v7298 = vld [vmem:[%s15] sm:$0x1]
  %v7300 = vperm.slane %v7298, 0
  %v7314 = vunpack.c.l.b16 %v7286
  %v7315 = vunpack.c.l.b16 %v7287
  %v7316 = vunpack.c.l.b16 %v7288
  %v7317 = vunpack.c.l.b16 %v7289
  %v7318 = vunpack.c.l.b16 %v7290
  %v7319 = vunpack.c.l.b16 %v7291
  %v7320 = vunpack.c.l.b16 %v7292
  %v7321 = vunpack.c.l.b16 %v7293
  %v7322 = vunpack.c.l.b16 %v7294
  %v7323 = vunpack.c.l.b16 %v7295
  %v7324 = vunpack.c.l.b16 %v7296
  %v7325 = vunpack.c.l.b16 %v7297
  %v7326 = vpack.c.b16 %v7315, %v7314
  %v7327 = vpack.c.b16 %v7317, %v7316
  %v7328 = vpack.c.b16 %v7319, %v7318
  %v7329 = vpack.c.b16 %v7321, %v7320
  %v7330 = vpack.c.b16 %v7323, %v7322
  %v7331 = vpack.c.b16 %v7325, %v7324
  %v7338 = vsel %vm2125, %v7257, 0
  %v7340 = vsel %vm2125, %v7259, 0
  %v7342 = vsel %vm2125, %v7261, 0
  %v7344 = vsel %vm2125, %v7263, 0
  %v7346 = vsel %vm2125, %v7265, 0
  %v7348 = vsel %vm2125, %v7267, 0
  %v7350 = vsel %vm2125, %v7269, 0
  %v7352 = vsel %vm2125, %v7271, 0
  %v7354 = vsel %vm2125, %v7273, 0
  %v7356 = vsel %vm2125, %v7275, 0
  %v7358 = vsel %vm2125, %v7277, 0
  %v7360 = vsel %vm2125, %v7279, 0
  %v7362 = vsel %vm2125, %v7281, 0
  %v7364 = vsel %vm2125, %v7283, 0
  %v7366 = vsel %vm2125, %v7284, 0
  %v7368 = vsel %vm2125, %v7285, 0
  %7370 = vmatpush.bf16.msra.mxu0 0
  %7371 = vmatpush.bf16.msra.mxu0 0
  %7372 = vmatpush.bf16.msra.mxu0 %v7331
  %7373 = vmatpush.bf16.msra.mxu0 %v7330
  %7374 = vmatpush.bf16.msra.mxu0 %v7329
  %7375 = vmatpush.bf16.msra.mxu0 %v7328
  %7376 = vmatpush.bf16.msra.mxu0 %v7327
  %7377 = vmatpush.bf16.msra.mxu0 %v7326
  %7378 = vmatmul.bf16.gmra.mxu0 %v7338
  %v7379 = vpop.f32.mrf.mxu0
  %v7380 = vadd.f32 %v7300, %v7379
  %v7381 = vpop.f32.mrf.mxu0
  %v7382 = vadd.f32 %v7300, %v7381
  %7383 = vmatmul.bf16.gmra.mxu0 %v7340
  %v7384 = vpop.f32.mrf.mxu0
  %v7385 = vadd.f32 %v7300, %v7384
  %v7386 = vpop.f32.mrf.mxu0
  %v7387 = vadd.f32 %v7300, %v7386
  %7388 = vmatmul.bf16.gmra.mxu0 %v7342
  %v7389 = vpop.f32.mrf.mxu0
  %v7390 = vadd.f32 %v7300, %v7389
  %v7391 = vpop.f32.mrf.mxu0
  %v7392 = vadd.f32 %v7300, %v7391
  %7393 = vmatmul.bf16.gmra.mxu0 %v7344
  %v7394 = vpop.f32.mrf.mxu0
  %v7395 = vadd.f32 %v7300, %v7394
  %v7396 = vpop.f32.mrf.mxu0
  %v7397 = vadd.f32 %v7300, %v7396
  %7398 = vmatmul.bf16.gmra.mxu0 %v7346
  %v7399 = vpop.f32.mrf.mxu0
  %v7400 = vadd.f32 %v7300, %v7399
  %v7401 = vpop.f32.mrf.mxu0
  %v7402 = vadd.f32 %v7300, %v7401
  %7403 = vmatmul.bf16.gmra.mxu0 %v7348
  %v7404 = vpop.f32.mrf.mxu0
  %v7405 = vadd.f32 %v7300, %v7404
  %v7406 = vpop.f32.mrf.mxu0
  %v7407 = vadd.f32 %v7300, %v7406
  %7408 = vmatmul.bf16.gmra.mxu0 %v7350
  %v7409 = vpop.f32.mrf.mxu0
  %v7410 = vadd.f32 %v7300, %v7409
  %v7411 = vpop.f32.mrf.mxu0
  %v7412 = vadd.f32 %v7300, %v7411
  %7413 = vmatmul.bf16.gmra.mxu0 %v7352
  %v7414 = vpop.f32.mrf.mxu0
  %v7415 = vadd.f32 %v7300, %v7414
  %v7416 = vpop.f32.mrf.mxu0
  %v7417 = vadd.f32 %v7300, %v7416
  %7418 = vmatmul.bf16.gmra.mxu0 %v7354
  %v7419 = vpop.f32.mrf.mxu0
  %v7420 = vadd.f32 %v7300, %v7419
  %v7421 = vpop.f32.mrf.mxu0
  %v7422 = vadd.f32 %v7300, %v7421
  %7423 = vmatmul.bf16.gmra.mxu0 %v7356
  %v7424 = vpop.f32.mrf.mxu0
  %v7425 = vadd.f32 %v7300, %v7424
  %v7426 = vpop.f32.mrf.mxu0
  %v7427 = vadd.f32 %v7300, %v7426
  %7428 = vmatmul.bf16.gmra.mxu0 %v7358
  %v7429 = vpop.f32.mrf.mxu0
  %v7430 = vadd.f32 %v7300, %v7429
  %v7431 = vpop.f32.mrf.mxu0
  %v7432 = vadd.f32 %v7300, %v7431
  %7433 = vmatmul.bf16.gmra.mxu0 %v7360
  %v7434 = vpop.f32.mrf.mxu0
  %v7435 = vadd.f32 %v7300, %v7434
  %v7436 = vpop.f32.mrf.mxu0
  %v7437 = vadd.f32 %v7300, %v7436
  %7438 = vmatmul.bf16.gmra.mxu0 %v7362
  %v7439 = vpop.f32.mrf.mxu0
  %v7440 = vadd.f32 %v7300, %v7439
  %v7441 = vpop.f32.mrf.mxu0
  %v7442 = vadd.f32 %v7300, %v7441
  %7443 = vmatmul.bf16.gmra.mxu0 %v7364
  %v7444 = vpop.f32.mrf.mxu0
  %v7445 = vadd.f32 %v7300, %v7444
  %v7446 = vpop.f32.mrf.mxu0
  %v7447 = vadd.f32 %v7300, %v7446
  %7448 = vmatmul.bf16.gmra.mxu0 %v7366
  %v7449 = vpop.f32.mrf.mxu0
  %v7450 = vadd.f32 %v7300, %v7449
  %v7451 = vpop.f32.mrf.mxu0
  %v7452 = vadd.f32 %v7300, %v7451
  %7453 = vmatmul.bf16.gmra.mxu0 %v7368
  %v7454 = vpop.f32.mrf.mxu0
  %v7455 = vadd.f32 %v7300, %v7454
  %v7456 = vpop.f32.mrf.mxu0
  %v7457 = vadd.f32 %v7300, %v7456
  %7458 = vdwg.mxu0
  %v7459 = vxor.u32 %v7380, 2147483648
  %v7460 = vxor.u32 %v7382, 2147483648
  %v7461 = vxor.u32 %v7385, 2147483648
  %v7462 = vxor.u32 %v7387, 2147483648
  %v7463 = vxor.u32 %v7390, 2147483648
  %v7464 = vxor.u32 %v7392, 2147483648
  %v7465 = vxor.u32 %v7395, 2147483648
  %v7466 = vxor.u32 %v7397, 2147483648
  %v7467 = vxor.u32 %v7400, 2147483648
  %v7468 = vxor.u32 %v7402, 2147483648
  %v7469 = vxor.u32 %v7405, 2147483648
  %v7470 = vxor.u32 %v7407, 2147483648
  %v7471 = vxor.u32 %v7410, 2147483648
  %v7472 = vxor.u32 %v7412, 2147483648
  %v7473 = vxor.u32 %v7415, 2147483648
  %v7474 = vxor.u32 %v7417, 2147483648
  %v7475 = vxor.u32 %v7420, 2147483648
  %v7476 = vxor.u32 %v7422, 2147483648
  %v7477 = vxor.u32 %v7425, 2147483648
  %v7478 = vxor.u32 %v7427, 2147483648
  %v7479 = vxor.u32 %v7430, 2147483648
  %v7480 = vxor.u32 %v7432, 2147483648
  %v7481 = vxor.u32 %v7435, 2147483648
  %v7482 = vxor.u32 %v7437, 2147483648
  %v7483 = vxor.u32 %v7440, 2147483648
  %v7484 = vxor.u32 %v7442, 2147483648
  %v7485 = vxor.u32 %v7445, 2147483648
  %v7486 = vxor.u32 %v7447, 2147483648
  %v7487 = vxor.u32 %v7450, 2147483648
  %v7488 = vxor.u32 %v7452, 2147483648
  %v7489 = vxor.u32 %v7455, 2147483648
  %v7490 = vxor.u32 %v7457, 2147483648
  %v7491 = vmul.f32 %v7459, 1.442695
  %v7492 = vpow.pop %v7491
  %v7493 = vmul.f32 %v7460, 1.442695
  %v7494 = vpow.pop %v7493
  %v7495 = vmul.f32 %v7461, 1.442695
  %v7496 = vpow.pop %v7495
  %v7497 = vmul.f32 %v7462, 1.442695
  %v7498 = vpow.pop %v7497
  %v7499 = vmul.f32 %v7463, 1.442695
  %v7500 = vpow.pop %v7499
  %v7501 = vmul.f32 %v7464, 1.442695
  %v7502 = vpow.pop %v7501
  %v7503 = vmul.f32 %v7465, 1.442695
  %v7504 = vpow.pop %v7503
  %v7505 = vmul.f32 %v7466, 1.442695
  %v7506 = vpow.pop %v7505
  %v7507 = vmul.f32 %v7467, 1.442695
  %v7508 = vpow.pop %v7507
  %v7509 = vmul.f32 %v7468, 1.442695
  %v7510 = vpow.pop %v7509
  %v7511 = vmul.f32 %v7469, 1.442695
  %v7512 = vpow.pop %v7511
  %v7513 = vmul.f32 %v7470, 1.442695
  %v7514 = vpow.pop %v7513
  %v7515 = vmul.f32 %v7471, 1.442695
  %v7516 = vpow.pop %v7515
  %v7517 = vmul.f32 %v7472, 1.442695
  %v7518 = vpow.pop %v7517
  %v7519 = vmul.f32 %v7473, 1.442695
  %v7520 = vpow.pop %v7519
  %v7521 = vmul.f32 %v7474, 1.442695
  %v7522 = vpow.pop %v7521
  %v7523 = vmul.f32 %v7475, 1.442695
  %v7524 = vpow.pop %v7523
  %v7525 = vmul.f32 %v7476, 1.442695
  %v7526 = vpow.pop %v7525
  %v7527 = vmul.f32 %v7477, 1.442695
  %v7528 = vpow.pop %v7527
  %v7529 = vmul.f32 %v7478, 1.442695
  %v7530 = vpow.pop %v7529
  %v7531 = vmul.f32 %v7479, 1.442695
  %v7532 = vpow.pop %v7531
  %v7533 = vmul.f32 %v7480, 1.442695
  %v7534 = vpow.pop %v7533
  %v7535 = vmul.f32 %v7481, 1.442695
  %v7536 = vpow.pop %v7535
  %v7537 = vmul.f32 %v7482, 1.442695
  %v7538 = vpow.pop %v7537
  %v7539 = vmul.f32 %v7483, 1.442695
  %v7540 = vpow.pop %v7539
  %v7541 = vmul.f32 %v7484, 1.442695
  %v7542 = vpow.pop %v7541
  %v7543 = vmul.f32 %v7485, 1.442695
  %v7544 = vpow.pop %v7543
  %v7545 = vmul.f32 %v7486, 1.442695
  %v7546 = vpow.pop %v7545
  %v7547 = vmul.f32 %v7487, 1.442695
  %v7548 = vpow.pop %v7547
  %v7549 = vmul.f32 %v7488, 1.442695
  %v7550 = vpow.pop %v7549
  %v7551 = vmul.f32 %v7489, 1.442695
  %v7552 = vpow.pop %v7551
  %v7553 = vmul.f32 %v7490, 1.442695
  %v7554 = vpow.pop %v7553
  %v7555 = vadd.f32 %v7492, 1.0
  %v7556 = vadd.f32 %v7494, 1.0
  %v7557 = vadd.f32 %v7496, 1.0
  %v7558 = vadd.f32 %v7498, 1.0
  %v7559 = vadd.f32 %v7500, 1.0
  %v7560 = vadd.f32 %v7502, 1.0
  %v7561 = vadd.f32 %v7504, 1.0
  %v7562 = vadd.f32 %v7506, 1.0
  %v7563 = vadd.f32 %v7508, 1.0
  %v7564 = vadd.f32 %v7510, 1.0
  %v7565 = vadd.f32 %v7512, 1.0
  %v7566 = vadd.f32 %v7514, 1.0
  %v7567 = vadd.f32 %v7516, 1.0
  %v7568 = vadd.f32 %v7518, 1.0
  %v7569 = vadd.f32 %v7520, 1.0
  %v7570 = vadd.f32 %v7522, 1.0
  %v7571 = vadd.f32 %v7524, 1.0
  %v7572 = vadd.f32 %v7526, 1.0
  %v7573 = vadd.f32 %v7528, 1.0
  %v7574 = vadd.f32 %v7530, 1.0
  %v7575 = vadd.f32 %v7532, 1.0
  %v7576 = vadd.f32 %v7534, 1.0
  %v7577 = vadd.f32 %v7536, 1.0
  %v7578 = vadd.f32 %v7538, 1.0
  %v7579 = vadd.f32 %v7540, 1.0
  %v7580 = vadd.f32 %v7542, 1.0
  %v7581 = vadd.f32 %v7544, 1.0
  %v7582 = vadd.f32 %v7546, 1.0
  %v7583 = vadd.f32 %v7548, 1.0
  %v7584 = vadd.f32 %v7550, 1.0
  %v7585 = vadd.f32 %v7552, 1.0
  %v7586 = vadd.f32 %v7554, 1.0
  %v7587 = vrcp.pop %v7555
  %v7588 = vmul.f32 %v7555, %v7587
  %v7589 = vsub.f32 1.0, %v7588
  %v7590 = vmul.f32 %v7587, %v7589
  %v7591 = vadd.f32 %v7587, %v7590
  %vm7592 = vweird.f32 %v7555
  %vm7593 = vweird.f32 %v7587
  %vm7594 = vmor %vm7592, %vm7593
  %v7595 = vsel %vm7594, %v7587, %v7591
  %v7596 = vand.u32 2147483647, %v7555
  %vm7597 = vcmp.eq.f32.partialorder %v7596, 8.507059e+37
  %v7598 = vand.u32 %v7555, 2147483648
  %v7599 = vor.u32 1.1754944e-38, %v7598
  %v7600 = vsel %vm7597, %v7599, %v7595
  %v7601 = vmul.f32 1.0, %v7600
  %v7602 = vrcp.pop %v7556
  %v7603 = vmul.f32 %v7556, %v7602
  %v7604 = vsub.f32 1.0, %v7603
  %v7605 = vmul.f32 %v7602, %v7604
  %v7606 = vadd.f32 %v7602, %v7605
  %vm7607 = vweird.f32 %v7556
  %vm7608 = vweird.f32 %v7602
  %vm7609 = vmor %vm7607, %vm7608
  %v7610 = vsel %vm7609, %v7602, %v7606
  %v7611 = vand.u32 2147483647, %v7556
  %vm7612 = vcmp.eq.f32.partialorder %v7611, 8.507059e+37
  %v7613 = vand.u32 %v7556, 2147483648
  %v7614 = vor.u32 1.1754944e-38, %v7613
  %v7615 = vsel %vm7612, %v7614, %v7610
  %v7616 = vmul.f32 1.0, %v7615
  %v7617 = vrcp.pop %v7557
  %v7618 = vmul.f32 %v7557, %v7617
  %v7619 = vsub.f32 1.0, %v7618
  %v7620 = vmul.f32 %v7617, %v7619
  %v7621 = vadd.f32 %v7617, %v7620
  %vm7622 = vweird.f32 %v7557
  %vm7623 = vweird.f32 %v7617
  %vm7624 = vmor %vm7622, %vm7623
  %v7625 = vsel %vm7624, %v7617, %v7621
  %v7626 = vand.u32 2147483647, %v7557
  %vm7627 = vcmp.eq.f32.partialorder %v7626, 8.507059e+37
  %v7628 = vand.u32 %v7557, 2147483648
  %v7629 = vor.u32 1.1754944e-38, %v7628
  %v7630 = vsel %vm7627, %v7629, %v7625
  %v7631 = vmul.f32 1.0, %v7630
  %v7632 = vrcp.pop %v7558
  %v7633 = vmul.f32 %v7558, %v7632
  %v7634 = vsub.f32 1.0, %v7633
  %v7635 = vmul.f32 %v7632, %v7634
  %v7636 = vadd.f32 %v7632, %v7635
  %vm7637 = vweird.f32 %v7558
  %vm7638 = vweird.f32 %v7632
  %vm7639 = vmor %vm7637, %vm7638
  %v7640 = vsel %vm7639, %v7632, %v7636
  %v7641 = vand.u32 2147483647, %v7558
  %vm7642 = vcmp.eq.f32.partialorder %v7641, 8.507059e+37
  %v7643 = vand.u32 %v7558, 2147483648
  %v7644 = vor.u32 1.1754944e-38, %v7643
  %v7645 = vsel %vm7642, %v7644, %v7640
  %v7646 = vmul.f32 1.0, %v7645
  %v7647 = vrcp.pop %v7559
  %v7648 = vmul.f32 %v7559, %v7647
  %v7649 = vsub.f32 1.0, %v7648
  %v7650 = vmul.f32 %v7647, %v7649
  %v7651 = vadd.f32 %v7647, %v7650
  %vm7652 = vweird.f32 %v7559
  %vm7653 = vweird.f32 %v7647
  %vm7654 = vmor %vm7652, %vm7653
  %v7655 = vsel %vm7654, %v7647, %v7651
  %v7656 = vand.u32 2147483647, %v7559
  %vm7657 = vcmp.eq.f32.partialorder %v7656, 8.507059e+37
  %v7658 = vand.u32 %v7559, 2147483648
  %v7659 = vor.u32 1.1754944e-38, %v7658
  %v7660 = vsel %vm7657, %v7659, %v7655
  %v7661 = vmul.f32 1.0, %v7660
  %v7662 = vrcp.pop %v7560
  %v7663 = vmul.f32 %v7560, %v7662
  %v7664 = vsub.f32 1.0, %v7663
  %v7665 = vmul.f32 %v7662, %v7664
  %v7666 = vadd.f32 %v7662, %v7665
  %vm7667 = vweird.f32 %v7560
  %vm7668 = vweird.f32 %v7662
  %vm7669 = vmor %vm7667, %vm7668
  %v7670 = vsel %vm7669, %v7662, %v7666
  %v7671 = vand.u32 2147483647, %v7560
  %vm7672 = vcmp.eq.f32.partialorder %v7671, 8.507059e+37
  %v7673 = vand.u32 %v7560, 2147483648
  %v7674 = vor.u32 1.1754944e-38, %v7673
  %v7675 = vsel %vm7672, %v7674, %v7670
  %v7676 = vmul.f32 1.0, %v7675
  %v7677 = vrcp.pop %v7561
  %v7678 = vmul.f32 %v7561, %v7677
  %v7679 = vsub.f32 1.0, %v7678
  %v7680 = vmul.f32 %v7677, %v7679
  %v7681 = vadd.f32 %v7677, %v7680
  %vm7682 = vweird.f32 %v7561
  %vm7683 = vweird.f32 %v7677
  %vm7684 = vmor %vm7682, %vm7683
  %v7685 = vsel %vm7684, %v7677, %v7681
  %v7686 = vand.u32 2147483647, %v7561
  %vm7687 = vcmp.eq.f32.partialorder %v7686, 8.507059e+37
  %v7688 = vand.u32 %v7561, 2147483648
  %v7689 = vor.u32 1.1754944e-38, %v7688
  %v7690 = vsel %vm7687, %v7689, %v7685
  %v7691 = vmul.f32 1.0, %v7690
  %v7692 = vrcp.pop %v7562
  %v7693 = vmul.f32 %v7562, %v7692
  %v7694 = vsub.f32 1.0, %v7693
  %v7695 = vmul.f32 %v7692, %v7694
  %v7696 = vadd.f32 %v7692, %v7695
  %vm7697 = vweird.f32 %v7562
  %vm7698 = vweird.f32 %v7692
  %vm7699 = vmor %vm7697, %vm7698
  %v7700 = vsel %vm7699, %v7692, %v7696
  %v7701 = vand.u32 2147483647, %v7562
  %vm7702 = vcmp.eq.f32.partialorder %v7701, 8.507059e+37
  %v7703 = vand.u32 %v7562, 2147483648
  %v7704 = vor.u32 1.1754944e-38, %v7703
  %v7705 = vsel %vm7702, %v7704, %v7700
  %v7706 = vmul.f32 1.0, %v7705
  %v7707 = vrcp.pop %v7563
  %v7708 = vmul.f32 %v7563, %v7707
  %v7709 = vsub.f32 1.0, %v7708
  %v7710 = vmul.f32 %v7707, %v7709
  %v7711 = vadd.f32 %v7707, %v7710
  %vm7712 = vweird.f32 %v7563
  %vm7713 = vweird.f32 %v7707
  %vm7714 = vmor %vm7712, %vm7713
  %v7715 = vsel %vm7714, %v7707, %v7711
  %v7716 = vand.u32 2147483647, %v7563
  %vm7717 = vcmp.eq.f32.partialorder %v7716, 8.507059e+37
  %v7718 = vand.u32 %v7563, 2147483648
  %v7719 = vor.u32 1.1754944e-38, %v7718
  %v7720 = vsel %vm7717, %v7719, %v7715
  %v7721 = vmul.f32 1.0, %v7720
  %v7722 = vrcp.pop %v7564
  %v7723 = vmul.f32 %v7564, %v7722
  %v7724 = vsub.f32 1.0, %v7723
  %v7725 = vmul.f32 %v7722, %v7724
  %v7726 = vadd.f32 %v7722, %v7725
  %vm7727 = vweird.f32 %v7564
  %vm7728 = vweird.f32 %v7722
  %vm7729 = vmor %vm7727, %vm7728
  %v7730 = vsel %vm7729, %v7722, %v7726
  %v7731 = vand.u32 2147483647, %v7564
  %vm7732 = vcmp.eq.f32.partialorder %v7731, 8.507059e+37
  %v7733 = vand.u32 %v7564, 2147483648
  %v7734 = vor.u32 1.1754944e-38, %v7733
  %v7735 = vsel %vm7732, %v7734, %v7730
  %v7736 = vmul.f32 1.0, %v7735
  %v7737 = vrcp.pop %v7565
  %v7738 = vmul.f32 %v7565, %v7737
  %v7739 = vsub.f32 1.0, %v7738
  %v7740 = vmul.f32 %v7737, %v7739
  %v7741 = vadd.f32 %v7737, %v7740
  %vm7742 = vweird.f32 %v7565
  %vm7743 = vweird.f32 %v7737
  %vm7744 = vmor %vm7742, %vm7743
  %v7745 = vsel %vm7744, %v7737, %v7741
  %v7746 = vand.u32 2147483647, %v7565
  %vm7747 = vcmp.eq.f32.partialorder %v7746, 8.507059e+37
  %v7748 = vand.u32 %v7565, 2147483648
  %v7749 = vor.u32 1.1754944e-38, %v7748
  %v7750 = vsel %vm7747, %v7749, %v7745
  %v7751 = vmul.f32 1.0, %v7750
  %v7752 = vrcp.pop %v7566
  %v7753 = vmul.f32 %v7566, %v7752
  %v7754 = vsub.f32 1.0, %v7753
  %v7755 = vmul.f32 %v7752, %v7754
  %v7756 = vadd.f32 %v7752, %v7755
  %vm7757 = vweird.f32 %v7566
  %vm7758 = vweird.f32 %v7752
  %vm7759 = vmor %vm7757, %vm7758
  %v7760 = vsel %vm7759, %v7752, %v7756
  %v7761 = vand.u32 2147483647, %v7566
  %vm7762 = vcmp.eq.f32.partialorder %v7761, 8.507059e+37
  %v7763 = vand.u32 %v7566, 2147483648
  %v7764 = vor.u32 1.1754944e-38, %v7763
  %v7765 = vsel %vm7762, %v7764, %v7760
  %v7766 = vmul.f32 1.0, %v7765
  %v7767 = vrcp.pop %v7567
  %v7768 = vmul.f32 %v7567, %v7767
  %v7769 = vsub.f32 1.0, %v7768
  %v7770 = vmul.f32 %v7767, %v7769
  %v7771 = vadd.f32 %v7767, %v7770
  %vm7772 = vweird.f32 %v7567
  %vm7773 = vweird.f32 %v7767
  %vm7774 = vmor %vm7772, %vm7773
  %v7775 = vsel %vm7774, %v7767, %v7771
  %v7776 = vand.u32 2147483647, %v7567
  %vm7777 = vcmp.eq.f32.partialorder %v7776, 8.507059e+37
  %v7778 = vand.u32 %v7567, 2147483648
  %v7779 = vor.u32 1.1754944e-38, %v7778
  %v7780 = vsel %vm7777, %v7779, %v7775
  %v7781 = vmul.f32 1.0, %v7780
  %v7782 = vrcp.pop %v7568
  %v7783 = vmul.f32 %v7568, %v7782
  %v7784 = vsub.f32 1.0, %v7783
  %v7785 = vmul.f32 %v7782, %v7784
  %v7786 = vadd.f32 %v7782, %v7785
  %vm7787 = vweird.f32 %v7568
  %vm7788 = vweird.f32 %v7782
  %vm7789 = vmor %vm7787, %vm7788
  %v7790 = vsel %vm7789, %v7782, %v7786
  %v7791 = vand.u32 2147483647, %v7568
  %vm7792 = vcmp.eq.f32.partialorder %v7791, 8.507059e+37
  %v7793 = vand.u32 %v7568, 2147483648
  %v7794 = vor.u32 1.1754944e-38, %v7793
  %v7795 = vsel %vm7792, %v7794, %v7790
  %v7796 = vmul.f32 1.0, %v7795
  %v7797 = vrcp.pop %v7569
  %v7798 = vmul.f32 %v7569, %v7797
  %v7799 = vsub.f32 1.0, %v7798
  %v7800 = vmul.f32 %v7797, %v7799
  %v7801 = vadd.f32 %v7797, %v7800
  %vm7802 = vweird.f32 %v7569
  %vm7803 = vweird.f32 %v7797
  %vm7804 = vmor %vm7802, %vm7803
  %v7805 = vsel %vm7804, %v7797, %v7801
  %v7806 = vand.u32 2147483647, %v7569
  %vm7807 = vcmp.eq.f32.partialorder %v7806, 8.507059e+37
  %v7808 = vand.u32 %v7569, 2147483648
  %v7809 = vor.u32 1.1754944e-38, %v7808
  %v7810 = vsel %vm7807, %v7809, %v7805
  %v7811 = vmul.f32 1.0, %v7810
  %v7812 = vrcp.pop %v7570
  %v7813 = vmul.f32 %v7570, %v7812
  %v7814 = vsub.f32 1.0, %v7813
  %v7815 = vmul.f32 %v7812, %v7814
  %v7816 = vadd.f32 %v7812, %v7815
  %vm7817 = vweird.f32 %v7570
  %vm7818 = vweird.f32 %v7812
  %vm7819 = vmor %vm7817, %vm7818
  %v7820 = vsel %vm7819, %v7812, %v7816
  %v7821 = vand.u32 2147483647, %v7570
  %vm7822 = vcmp.eq.f32.partialorder %v7821, 8.507059e+37
  %v7823 = vand.u32 %v7570, 2147483648
  %v7824 = vor.u32 1.1754944e-38, %v7823
  %v7825 = vsel %vm7822, %v7824, %v7820
  %v7826 = vmul.f32 1.0, %v7825
  %v7827 = vrcp.pop %v7571
  %v7828 = vmul.f32 %v7571, %v7827
  %v7829 = vsub.f32 1.0, %v7828
  %v7830 = vmul.f32 %v7827, %v7829
  %v7831 = vadd.f32 %v7827, %v7830
  %vm7832 = vweird.f32 %v7571
  %vm7833 = vweird.f32 %v7827
  %vm7834 = vmor %vm7832, %vm7833
  %v7835 = vsel %vm7834, %v7827, %v7831
  %v7836 = vand.u32 2147483647, %v7571
  %vm7837 = vcmp.eq.f32.partialorder %v7836, 8.507059e+37
  %v7838 = vand.u32 %v7571, 2147483648
  %v7839 = vor.u32 1.1754944e-38, %v7838
  %v7840 = vsel %vm7837, %v7839, %v7835
  %v7841 = vmul.f32 1.0, %v7840
  %v7842 = vrcp.pop %v7572
  %v7843 = vmul.f32 %v7572, %v7842
  %v7844 = vsub.f32 1.0, %v7843
  %v7845 = vmul.f32 %v7842, %v7844
  %v7846 = vadd.f32 %v7842, %v7845
  %vm7847 = vweird.f32 %v7572
  %vm7848 = vweird.f32 %v7842
  %vm7849 = vmor %vm7847, %vm7848
  %v7850 = vsel %vm7849, %v7842, %v7846
  %v7851 = vand.u32 2147483647, %v7572
  %vm7852 = vcmp.eq.f32.partialorder %v7851, 8.507059e+37
  %v7853 = vand.u32 %v7572, 2147483648
  %v7854 = vor.u32 1.1754944e-38, %v7853
  %v7855 = vsel %vm7852, %v7854, %v7850
  %v7856 = vmul.f32 1.0, %v7855
  %v7857 = vrcp.pop %v7573
  %v7858 = vmul.f32 %v7573, %v7857
  %v7859 = vsub.f32 1.0, %v7858
  %v7860 = vmul.f32 %v7857, %v7859
  %v7861 = vadd.f32 %v7857, %v7860
  %vm7862 = vweird.f32 %v7573
  %vm7863 = vweird.f32 %v7857
  %vm7864 = vmor %vm7862, %vm7863
  %v7865 = vsel %vm7864, %v7857, %v7861
  %v7866 = vand.u32 2147483647, %v7573
  %vm7867 = vcmp.eq.f32.partialorder %v7866, 8.507059e+37
  %v7868 = vand.u32 %v7573, 2147483648
  %v7869 = vor.u32 1.1754944e-38, %v7868
  %v7870 = vsel %vm7867, %v7869, %v7865
  %v7871 = vmul.f32 1.0, %v7870
  %v7872 = vrcp.pop %v7574
  %v7873 = vmul.f32 %v7574, %v7872
  %v7874 = vsub.f32 1.0, %v7873
  %v7875 = vmul.f32 %v7872, %v7874
  %v7876 = vadd.f32 %v7872, %v7875
  %vm7877 = vweird.f32 %v7574
  %vm7878 = vweird.f32 %v7872
  %vm7879 = vmor %vm7877, %vm7878
  %v7880 = vsel %vm7879, %v7872, %v7876
  %v7881 = vand.u32 2147483647, %v7574
  %vm7882 = vcmp.eq.f32.partialorder %v7881, 8.507059e+37
  %v7883 = vand.u32 %v7574, 2147483648
  %v7884 = vor.u32 1.1754944e-38, %v7883
  %v7885 = vsel %vm7882, %v7884, %v7880
  %v7886 = vmul.f32 1.0, %v7885
  %v7887 = vrcp.pop %v7575
  %v7888 = vmul.f32 %v7575, %v7887
  %v7889 = vsub.f32 1.0, %v7888
  %v7890 = vmul.f32 %v7887, %v7889
  %v7891 = vadd.f32 %v7887, %v7890
  %vm7892 = vweird.f32 %v7575
  %vm7893 = vweird.f32 %v7887
  %vm7894 = vmor %vm7892, %vm7893
  %v7895 = vsel %vm7894, %v7887, %v7891
  %v7896 = vand.u32 2147483647, %v7575
  %vm7897 = vcmp.eq.f32.partialorder %v7896, 8.507059e+37
  %v7898 = vand.u32 %v7575, 2147483648
  %v7899 = vor.u32 1.1754944e-38, %v7898
  %v7900 = vsel %vm7897, %v7899, %v7895
  %v7901 = vmul.f32 1.0, %v7900
  %v7902 = vrcp.pop %v7576
  %v7903 = vmul.f32 %v7576, %v7902
  %v7904 = vsub.f32 1.0, %v7903
  %v7905 = vmul.f32 %v7902, %v7904
  %v7906 = vadd.f32 %v7902, %v7905
  %vm7907 = vweird.f32 %v7576
  %vm7908 = vweird.f32 %v7902
  %vm7909 = vmor %vm7907, %vm7908
  %v7910 = vsel %vm7909, %v7902, %v7906
  %v7911 = vand.u32 2147483647, %v7576
  %vm7912 = vcmp.eq.f32.partialorder %v7911, 8.507059e+37
  %v7913 = vand.u32 %v7576, 2147483648
  %v7914 = vor.u32 1.1754944e-38, %v7913
  %v7915 = vsel %vm7912, %v7914, %v7910
  %v7916 = vmul.f32 1.0, %v7915
  %v7917 = vrcp.pop %v7577
  %v7918 = vmul.f32 %v7577, %v7917
  %v7919 = vsub.f32 1.0, %v7918
  %v7920 = vmul.f32 %v7917, %v7919
  %v7921 = vadd.f32 %v7917, %v7920
  %vm7922 = vweird.f32 %v7577
  %vm7923 = vweird.f32 %v7917
  %vm7924 = vmor %vm7922, %vm7923
  %v7925 = vsel %vm7924, %v7917, %v7921
  %v7926 = vand.u32 2147483647, %v7577
  %vm7927 = vcmp.eq.f32.partialorder %v7926, 8.507059e+37
  %v7928 = vand.u32 %v7577, 2147483648
  %v7929 = vor.u32 1.1754944e-38, %v7928
  %v7930 = vsel %vm7927, %v7929, %v7925
  %v7931 = vmul.f32 1.0, %v7930
  %v7932 = vrcp.pop %v7578
  %v7933 = vmul.f32 %v7578, %v7932
  %v7934 = vsub.f32 1.0, %v7933
  %v7935 = vmul.f32 %v7932, %v7934
  %v7936 = vadd.f32 %v7932, %v7935
  %vm7937 = vweird.f32 %v7578
  %vm7938 = vweird.f32 %v7932
  %vm7939 = vmor %vm7937, %vm7938
  %v7940 = vsel %vm7939, %v7932, %v7936
  %v7941 = vand.u32 2147483647, %v7578
  %vm7942 = vcmp.eq.f32.partialorder %v7941, 8.507059e+37
  %v7943 = vand.u32 %v7578, 2147483648
  %v7944 = vor.u32 1.1754944e-38, %v7943
  %v7945 = vsel %vm7942, %v7944, %v7940
  %v7946 = vmul.f32 1.0, %v7945
  %v7947 = vrcp.pop %v7579
  %v7948 = vmul.f32 %v7579, %v7947
  %v7949 = vsub.f32 1.0, %v7948
  %v7950 = vmul.f32 %v7947, %v7949
  %v7951 = vadd.f32 %v7947, %v7950
  %vm7952 = vweird.f32 %v7579
  %vm7953 = vweird.f32 %v7947
  %vm7954 = vmor %vm7952, %vm7953
  %v7955 = vsel %vm7954, %v7947, %v7951
  %v7956 = vand.u32 2147483647, %v7579
  %vm7957 = vcmp.eq.f32.partialorder %v7956, 8.507059e+37
  %v7958 = vand.u32 %v7579, 2147483648
  %v7959 = vor.u32 1.1754944e-38, %v7958
  %v7960 = vsel %vm7957, %v7959, %v7955
  %v7961 = vmul.f32 1.0, %v7960
  %v7962 = vrcp.pop %v7580
  %v7963 = vmul.f32 %v7580, %v7962
  %v7964 = vsub.f32 1.0, %v7963
  %v7965 = vmul.f32 %v7962, %v7964
  %v7966 = vadd.f32 %v7962, %v7965
  %vm7967 = vweird.f32 %v7580
  %vm7968 = vweird.f32 %v7962
  %vm7969 = vmor %vm7967, %vm7968
  %v7970 = vsel %vm7969, %v7962, %v7966
  %v7971 = vand.u32 2147483647, %v7580
  %vm7972 = vcmp.eq.f32.partialorder %v7971, 8.507059e+37
  %v7973 = vand.u32 %v7580, 2147483648
  %v7974 = vor.u32 1.1754944e-38, %v7973
  %v7975 = vsel %vm7972, %v7974, %v7970
  %v7976 = vmul.f32 1.0, %v7975
  %v7977 = vrcp.pop %v7581
  %v7978 = vmul.f32 %v7581, %v7977
  %v7979 = vsub.f32 1.0, %v7978
  %v7980 = vmul.f32 %v7977, %v7979
  %v7981 = vadd.f32 %v7977, %v7980
  %vm7982 = vweird.f32 %v7581
  %vm7983 = vweird.f32 %v7977
  %vm7984 = vmor %vm7982, %vm7983
  %v7985 = vsel %vm7984, %v7977, %v7981
  %v7986 = vand.u32 2147483647, %v7581
  %vm7987 = vcmp.eq.f32.partialorder %v7986, 8.507059e+37
  %v7988 = vand.u32 %v7581, 2147483648
  %v7989 = vor.u32 1.1754944e-38, %v7988
  %v7990 = vsel %vm7987, %v7989, %v7985
  %v7991 = vmul.f32 1.0, %v7990
  %v7992 = vrcp.pop %v7582
  %v7993 = vmul.f32 %v7582, %v7992
  %v7994 = vsub.f32 1.0, %v7993
  %v7995 = vmul.f32 %v7992, %v7994
  %v7996 = vadd.f32 %v7992, %v7995
  %vm7997 = vweird.f32 %v7582
  %vm7998 = vweird.f32 %v7992
  %vm7999 = vmor %vm7997, %vm7998
  %v8000 = vsel %vm7999, %v7992, %v7996
  %v8001 = vand.u32 2147483647, %v7582
  %vm8002 = vcmp.eq.f32.partialorder %v8001, 8.507059e+37
  %v8003 = vand.u32 %v7582, 2147483648
  %v8004 = vor.u32 1.1754944e-38, %v8003
  %v8005 = vsel %vm8002, %v8004, %v8000
  %v8006 = vmul.f32 1.0, %v8005
  %v8007 = vrcp.pop %v7583
  %v8008 = vmul.f32 %v7583, %v8007
  %v8009 = vsub.f32 1.0, %v8008
  %v8010 = vmul.f32 %v8007, %v8009
  %v8011 = vadd.f32 %v8007, %v8010
  %vm8012 = vweird.f32 %v7583
  %vm8013 = vweird.f32 %v8007
  %vm8014 = vmor %vm8012, %vm8013
  %v8015 = vsel %vm8014, %v8007, %v8011
  %v8016 = vand.u32 2147483647, %v7583
  %vm8017 = vcmp.eq.f32.partialorder %v8016, 8.507059e+37
  %v8018 = vand.u32 %v7583, 2147483648
  %v8019 = vor.u32 1.1754944e-38, %v8018
  %v8020 = vsel %vm8017, %v8019, %v8015
  %v8021 = vmul.f32 1.0, %v8020
  %v8022 = vrcp.pop %v7584
  %v8023 = vmul.f32 %v7584, %v8022
  %v8024 = vsub.f32 1.0, %v8023
  %v8025 = vmul.f32 %v8022, %v8024
  %v8026 = vadd.f32 %v8022, %v8025
  %vm8027 = vweird.f32 %v7584
  %vm8028 = vweird.f32 %v8022
  %vm8029 = vmor %vm8027, %vm8028
  %v8030 = vsel %vm8029, %v8022, %v8026
  %v8031 = vand.u32 2147483647, %v7584
  %vm8032 = vcmp.eq.f32.partialorder %v8031, 8.507059e+37
  %v8033 = vand.u32 %v7584, 2147483648
  %v8034 = vor.u32 1.1754944e-38, %v8033
  %v8035 = vsel %vm8032, %v8034, %v8030
  %v8036 = vmul.f32 1.0, %v8035
  %v8037 = vrcp.pop %v7585
  %v8038 = vmul.f32 %v7585, %v8037
  %v8039 = vsub.f32 1.0, %v8038
  %v8040 = vmul.f32 %v8037, %v8039
  %v8041 = vadd.f32 %v8037, %v8040
  %vm8042 = vweird.f32 %v7585
  %vm8043 = vweird.f32 %v8037
  %vm8044 = vmor %vm8042, %vm8043
  %v8045 = vsel %vm8044, %v8037, %v8041
  %v8046 = vand.u32 2147483647, %v7585
  %vm8047 = vcmp.eq.f32.partialorder %v8046, 8.507059e+37
  %v8048 = vand.u32 %v7585, 2147483648
  %v8049 = vor.u32 1.1754944e-38, %v8048
  %v8050 = vsel %vm8047, %v8049, %v8045
  %v8051 = vmul.f32 1.0, %v8050
  %v8052 = vrcp.pop %v7586
  %v8053 = vmul.f32 %v7586, %v8052
  %v8054 = vsub.f32 1.0, %v8053
  %v8055 = vmul.f32 %v8052, %v8054
  %v8056 = vadd.f32 %v8052, %v8055
  %vm8057 = vweird.f32 %v7586
  %vm8058 = vweird.f32 %v8052
  %vm8059 = vmor %vm8057, %vm8058
  %v8060 = vsel %vm8059, %v8052, %v8056
  %v8061 = vand.u32 2147483647, %v7586
  %vm8062 = vcmp.eq.f32.partialorder %v8061, 8.507059e+37
  %v8063 = vand.u32 %v7586, 2147483648
  %v8064 = vor.u32 1.1754944e-38, %v8063
  %v8065 = vsel %vm8062, %v8064, %v8060
  %v8066 = vmul.f32 1.0, %v8065
  %8099 = vrot.lane.b32.xlu0 %v7601, 96
  %v8100 = vpop.permute.xlu0 %8099
  %8101 = vrot.lane.b32.xlu0 %v7616, 96
  %v8102 = vpop.permute.xlu0 %8101
  %8103 = vrot.lane.b32.xlu0 %v7631, 96
  %v8104 = vpop.permute.xlu0 %8103
  %8105 = vrot.lane.b32.xlu0 %v7646, 96
  %v8106 = vpop.permute.xlu0 %8105
  %8107 = vrot.lane.b32.xlu0 %v7661, 96
  %v8108 = vpop.permute.xlu0 %8107
  %8109 = vrot.lane.b32.xlu0 %v7676, 96
  %v8110 = vpop.permute.xlu0 %8109
  %8111 = vrot.lane.b32.xlu0 %v7691, 96
  %v8112 = vpop.permute.xlu0 %8111
  %8113 = vrot.lane.b32.xlu0 %v7706, 96
  %v8114 = vpop.permute.xlu0 %8113
  %8115 = vrot.lane.b32.xlu0 %v7721, 96
  %v8116 = vpop.permute.xlu0 %8115
  %8117 = vrot.lane.b32.xlu0 %v7736, 96
  %v8118 = vpop.permute.xlu0 %8117
  %8119 = vrot.lane.b32.xlu0 %v7751, 96
  %v8120 = vpop.permute.xlu0 %8119
  %8121 = vrot.lane.b32.xlu0 %v7766, 96
  %v8122 = vpop.permute.xlu0 %8121
  %8123 = vrot.lane.b32.xlu0 %v7781, 96
  %v8124 = vpop.permute.xlu0 %8123
  %8125 = vrot.lane.b32.xlu0 %v7796, 96
  %v8126 = vpop.permute.xlu0 %8125
  %8127 = vrot.lane.b32.xlu0 %v7811, 96
  %v8128 = vpop.permute.xlu0 %8127
  %8129 = vrot.lane.b32.xlu0 %v7826, 96
  %v8130 = vpop.permute.xlu0 %8129
  %8131 = vrot.lane.b32.xlu0 %v7841, 96
  %v8132 = vpop.permute.xlu0 %8131
  %8133 = vrot.lane.b32.xlu0 %v7856, 96
  %v8134 = vpop.permute.xlu0 %8133
  %8135 = vrot.lane.b32.xlu0 %v7871, 96
  %v8136 = vpop.permute.xlu0 %8135
  %8137 = vrot.lane.b32.xlu0 %v7886, 96
  %v8138 = vpop.permute.xlu0 %8137
  %8139 = vrot.lane.b32.xlu0 %v7901, 96
  %v8140 = vpop.permute.xlu0 %8139
  %8141 = vrot.lane.b32.xlu0 %v7916, 96
  %v8142 = vpop.permute.xlu0 %8141
  %8143 = vrot.lane.b32.xlu0 %v7931, 96
  %v8144 = vpop.permute.xlu0 %8143
  %8145 = vrot.lane.b32.xlu0 %v7946, 96
  %v8146 = vpop.permute.xlu0 %8145
  %8147 = vrot.lane.b32.xlu0 %v7961, 96
  %v8148 = vpop.permute.xlu0 %8147
  %8149 = vrot.lane.b32.xlu0 %v7976, 96
  %v8150 = vpop.permute.xlu0 %8149
  %8151 = vrot.lane.b32.xlu0 %v7991, 96
  %v8152 = vpop.permute.xlu0 %8151
  %8153 = vrot.lane.b32.xlu0 %v8006, 96
  %v8154 = vpop.permute.xlu0 %8153
  %8155 = vrot.lane.b32.xlu0 %v8021, 96
  %v8156 = vpop.permute.xlu0 %8155
  %8157 = vrot.lane.b32.xlu0 %v8036, 96
  %v8158 = vpop.permute.xlu0 %8157
  %8159 = vrot.lane.b32.xlu0 %v8051, 96
  %v8160 = vpop.permute.xlu0 %8159
  %8161 = vrot.lane.b32.xlu0 %v8066, 96
  %v8162 = vpop.permute.xlu0 %8161
  %v8195 = vmul.f32 %v7380, %v8100
  %v8196 = vmul.f32 %v7382, %v8102
  %v8197 = vmul.f32 %v7385, %v8104
  %v8198 = vmul.f32 %v7387, %v8106
  %v8199 = vmul.f32 %v7390, %v8108
  %v8200 = vmul.f32 %v7392, %v8110
  %v8201 = vmul.f32 %v7395, %v8112
  %v8202 = vmul.f32 %v7397, %v8114
  %v8203 = vmul.f32 %v7400, %v8116
  %v8204 = vmul.f32 %v7402, %v8118
  %v8205 = vmul.f32 %v7405, %v8120
  %v8206 = vmul.f32 %v7407, %v8122
  %v8207 = vmul.f32 %v7410, %v8124
  %v8208 = vmul.f32 %v7412, %v8126
  %v8209 = vmul.f32 %v7415, %v8128
  %v8210 = vmul.f32 %v7417, %v8130
  %v8211 = vmul.f32 %v7420, %v8132
  %v8212 = vmul.f32 %v7422, %v8134
  %v8213 = vmul.f32 %v7425, %v8136
  %v8214 = vmul.f32 %v7427, %v8138
  %v8215 = vmul.f32 %v7430, %v8140
  %v8216 = vmul.f32 %v7432, %v8142
  %v8217 = vmul.f32 %v7435, %v8144
  %v8218 = vmul.f32 %v7437, %v8146
  %v8219 = vmul.f32 %v7440, %v8148
  %v8220 = vmul.f32 %v7442, %v8150
  %v8221 = vmul.f32 %v7445, %v8152
  %v8222 = vmul.f32 %v7447, %v8154
  %v8223 = vmul.f32 %v7450, %v8156
  %v8224 = vmul.f32 %v7452, %v8158
  %v8225 = vmul.f32 %v7455, %v8160
  %v8226 = vmul.f32 %v7457, %v8162
  %v8227 = vpack.c.bf16 %v8195, %v8195
  %v8228 = vpack.c.bf16 %v8196, %v8196
  %v8229 = vpack.c.bf16 %v8197, %v8197
  %v8230 = vpack.c.bf16 %v8198, %v8198
  %v8231 = vpack.c.bf16 %v8199, %v8199
  %v8232 = vpack.c.bf16 %v8200, %v8200
  %v8233 = vpack.c.bf16 %v8201, %v8201
  %v8234 = vpack.c.bf16 %v8202, %v8202
  %v8235 = vpack.c.bf16 %v8203, %v8203
  %v8236 = vpack.c.bf16 %v8204, %v8204
  %v8237 = vpack.c.bf16 %v8205, %v8205
  %v8238 = vpack.c.bf16 %v8206, %v8206
  %v8239 = vpack.c.bf16 %v8207, %v8207
  %v8240 = vpack.c.bf16 %v8208, %v8208
  %v8241 = vpack.c.bf16 %v8209, %v8209
  %v8242 = vpack.c.bf16 %v8210, %v8210
  %v8243 = vpack.c.bf16 %v8211, %v8211
  %v8244 = vpack.c.bf16 %v8212, %v8212
  %v8245 = vpack.c.bf16 %v8213, %v8213
  %v8246 = vpack.c.bf16 %v8214, %v8214
  %v8247 = vpack.c.bf16 %v8215, %v8215
  %v8248 = vpack.c.bf16 %v8216, %v8216
  %v8249 = vpack.c.bf16 %v8217, %v8217
  %v8250 = vpack.c.bf16 %v8218, %v8218
  %v8251 = vpack.c.bf16 %v8219, %v8219
  %v8252 = vpack.c.bf16 %v8220, %v8220
  %v8253 = vpack.c.bf16 %v8221, %v8221
  %v8254 = vpack.c.bf16 %v8222, %v8222
  %v8255 = vpack.c.bf16 %v8223, %v8223
  %v8256 = vpack.c.bf16 %v8224, %v8224
  %v8257 = vpack.c.bf16 %v8225, %v8225
  %v8258 = vpack.c.bf16 %v8226, %v8226
  %v8261 = vunpack.c.l.b16 %v8227
  %v8262 = vunpack.c.l.b16 %v8228
  %v8263 = vpack.c.b16 %v8262, %v8261
  %8265 = vmatpush.bf16.msra.mxu0 0
  %8266 = vmatpush.bf16.msra.mxu0 0
  %8267 = vmatpush.bf16.msra.mxu0 0
  %8268 = vmatpush.bf16.msra.mxu0 0
  %8269 = vmatpush.bf16.msra.mxu0 0
  %8270 = vmatpush.bf16.msra.mxu0 0
  %8271 = vmatpush.bf16.msra.mxu0 0
  %8272 = vmatpush.bf16.msra.mxu0 %v8263
  %8273 = vmatmul.bf16.gmra.mxu0 %v1293
  %v8274 = vpop.f32.mrf.mxu0
  %v8275 = vadd.f32 0.0, %v8274
  %v8276 = vpop.f32.mrf.mxu0
  %v8277 = vadd.f32 0.0, %v8276
  %8278 = vmatmul.bf16.gmra.mxu0 %v1296
  %v8279 = vpop.f32.mrf.mxu0
  %v8280 = vadd.f32 0.0, %v8279
  %v8281 = vpop.f32.mrf.mxu0
  %v8282 = vadd.f32 0.0, %v8281
  %8283 = vmatmul.bf16.gmra.mxu0 %v1299
  %v8284 = vpop.f32.mrf.mxu0
  %v8285 = vadd.f32 0.0, %v8284
  %v8286 = vpop.f32.mrf.mxu0
  %v8287 = vadd.f32 0.0, %v8286
  %8288 = vdwg.mxu0
  %v8291 = vunpack.c.l.b16 %v8229
  %v8292 = vunpack.c.l.b16 %v8230
  %v8293 = vpack.c.b16 %v8292, %v8291
  %8295 = vmatpush.bf16.msra.mxu0 0
  %8296 = vmatpush.bf16.msra.mxu0 0
  %8297 = vmatpush.bf16.msra.mxu0 0
  %8298 = vmatpush.bf16.msra.mxu0 0
  %8299 = vmatpush.bf16.msra.mxu0 0
  %8300 = vmatpush.bf16.msra.mxu0 0
  %8301 = vmatpush.bf16.msra.mxu0 0
  %8302 = vmatpush.bf16.msra.mxu0 %v8293
  %8303 = vmatmul.bf16.gmra.mxu0 %v1293
  %v8304 = vpop.f32.mrf.mxu0
  %v8305 = vadd.f32 0.0, %v8304
  %v8306 = vpop.f32.mrf.mxu0
  %v8307 = vadd.f32 0.0, %v8306
  %8308 = vmatmul.bf16.gmra.mxu0 %v1296
  %v8309 = vpop.f32.mrf.mxu0
  %v8310 = vadd.f32 0.0, %v8309
  %v8311 = vpop.f32.mrf.mxu0
  %v8312 = vadd.f32 0.0, %v8311
  %8313 = vmatmul.bf16.gmra.mxu0 %v1299
  %v8314 = vpop.f32.mrf.mxu0
  %v8315 = vadd.f32 0.0, %v8314
  %v8316 = vpop.f32.mrf.mxu0
  %v8317 = vadd.f32 0.0, %v8316
  %8318 = vdwg.mxu0
  %v8321 = vunpack.c.l.b16 %v8231
  %v8322 = vunpack.c.l.b16 %v8232
  %v8323 = vpack.c.b16 %v8322, %v8321
  %8325 = vmatpush.bf16.msra.mxu0 0
  %8326 = vmatpush.bf16.msra.mxu0 0
  %8327 = vmatpush.bf16.msra.mxu0 0
  %8328 = vmatpush.bf16.msra.mxu0 0
  %8329 = vmatpush.bf16.msra.mxu0 0
  %8330 = vmatpush.bf16.msra.mxu0 0
  %8331 = vmatpush.bf16.msra.mxu0 0
  %8332 = vmatpush.bf16.msra.mxu0 %v8323
  %8333 = vmatmul.bf16.gmra.mxu0 %v1293
  %v8334 = vpop.f32.mrf.mxu0
  %v8335 = vadd.f32 0.0, %v8334
  %v8336 = vpop.f32.mrf.mxu0
  %v8337 = vadd.f32 0.0, %v8336
  %8338 = vmatmul.bf16.gmra.mxu0 %v1296
  %v8339 = vpop.f32.mrf.mxu0
  %v8340 = vadd.f32 0.0, %v8339
  %v8341 = vpop.f32.mrf.mxu0
  %v8342 = vadd.f32 0.0, %v8341
  %8343 = vmatmul.bf16.gmra.mxu0 %v1299
  %v8344 = vpop.f32.mrf.mxu0
  %v8345 = vadd.f32 0.0, %v8344
  %v8346 = vpop.f32.mrf.mxu0
  %v8347 = vadd.f32 0.0, %v8346
  %8348 = vdwg.mxu0
  %v8351 = vunpack.c.l.b16 %v8233
  %v8352 = vunpack.c.l.b16 %v8234
  %v8353 = vpack.c.b16 %v8352, %v8351
  %8355 = vmatpush.bf16.msra.mxu0 0
  %8356 = vmatpush.bf16.msra.mxu0 0
  %8357 = vmatpush.bf16.msra.mxu0 0
  %8358 = vmatpush.bf16.msra.mxu0 0
  %8359 = vmatpush.bf16.msra.mxu0 0
  %8360 = vmatpush.bf16.msra.mxu0 0
  %8361 = vmatpush.bf16.msra.mxu0 0
  %8362 = vmatpush.bf16.msra.mxu0 %v8353
  %8363 = vmatmul.bf16.gmra.mxu0 %v1293
  %v8364 = vpop.f32.mrf.mxu0
  %v8365 = vadd.f32 0.0, %v8364
  %v8366 = vpop.f32.mrf.mxu0
  %v8367 = vadd.f32 0.0, %v8366
  %8368 = vmatmul.bf16.gmra.mxu0 %v1296
  %v8369 = vpop.f32.mrf.mxu0
  %v8370 = vadd.f32 0.0, %v8369
  %v8371 = vpop.f32.mrf.mxu0
  %v8372 = vadd.f32 0.0, %v8371
  %8373 = vmatmul.bf16.gmra.mxu0 %v1299
  %v8374 = vpop.f32.mrf.mxu0
  %v8375 = vadd.f32 0.0, %v8374
  %v8376 = vpop.f32.mrf.mxu0
  %v8377 = vadd.f32 0.0, %v8376
  %8378 = vdwg.mxu0
  %v8381 = vunpack.c.l.b16 %v8235
  %v8382 = vunpack.c.l.b16 %v8236
  %v8383 = vpack.c.b16 %v8382, %v8381
  %8385 = vmatpush.bf16.msra.mxu0 0
  %8386 = vmatpush.bf16.msra.mxu0 0
  %8387 = vmatpush.bf16.msra.mxu0 0
  %8388 = vmatpush.bf16.msra.mxu0 0
  %8389 = vmatpush.bf16.msra.mxu0 0
  %8390 = vmatpush.bf16.msra.mxu0 0
  %8391 = vmatpush.bf16.msra.mxu0 0
  %8392 = vmatpush.bf16.msra.mxu0 %v8383
  %8393 = vmatmul.bf16.gmra.mxu0 %v1293
  %v8394 = vpop.f32.mrf.mxu0
  %v8395 = vadd.f32 0.0, %v8394
  %v8396 = vpop.f32.mrf.mxu0
  %v8397 = vadd.f32 0.0, %v8396
  %8398 = vmatmul.bf16.gmra.mxu0 %v1296
  %v8399 = vpop.f32.mrf.mxu0
  %v8400 = vadd.f32 0.0, %v8399
  %v8401 = vpop.f32.mrf.mxu0
  %v8402 = vadd.f32 0.0, %v8401
  %8403 = vmatmul.bf16.gmra.mxu0 %v1299
  %v8404 = vpop.f32.mrf.mxu0
  %v8405 = vadd.f32 0.0, %v8404
  %v8406 = vpop.f32.mrf.mxu0
  %v8407 = vadd.f32 0.0, %v8406
  %8408 = vdwg.mxu0
  %v8411 = vunpack.c.l.b16 %v8237
  %v8412 = vunpack.c.l.b16 %v8238
  %v8413 = vpack.c.b16 %v8412, %v8411
  %8415 = vmatpush.bf16.msra.mxu0 0
  %8416 = vmatpush.bf16.msra.mxu0 0
  %8417 = vmatpush.bf16.msra.mxu0 0
  %8418 = vmatpush.bf16.msra.mxu0 0
  %8419 = vmatpush.bf16.msra.mxu0 0
  %8420 = vmatpush.bf16.msra.mxu0 0
  %8421 = vmatpush.bf16.msra.mxu0 0
  %8422 = vmatpush.bf16.msra.mxu0 %v8413
  %8423 = vmatmul.bf16.gmra.mxu0 %v1293
  %v8424 = vpop.f32.mrf.mxu0
  %v8425 = vadd.f32 0.0, %v8424
  %v8426 = vpop.f32.mrf.mxu0
  %v8427 = vadd.f32 0.0, %v8426
  %8428 = vmatmul.bf16.gmra.mxu0 %v1296
  %v8429 = vpop.f32.mrf.mxu0
  %v8430 = vadd.f32 0.0, %v8429
  %v8431 = vpop.f32.mrf.mxu0
  %v8432 = vadd.f32 0.0, %v8431
  %8433 = vmatmul.bf16.gmra.mxu0 %v1299
  %v8434 = vpop.f32.mrf.mxu0
  %v8435 = vadd.f32 0.0, %v8434
  %v8436 = vpop.f32.mrf.mxu0
  %v8437 = vadd.f32 0.0, %v8436
  %8438 = vdwg.mxu0
  %v8441 = vunpack.c.l.b16 %v8239
  %v8442 = vunpack.c.l.b16 %v8240
  %v8443 = vpack.c.b16 %v8442, %v8441
  %8445 = vmatpush.bf16.msra.mxu0 0
  %8446 = vmatpush.bf16.msra.mxu0 0
  %8447 = vmatpush.bf16.msra.mxu0 0
  %8448 = vmatpush.bf16.msra.mxu0 0
  %8449 = vmatpush.bf16.msra.mxu0 0
  %8450 = vmatpush.bf16.msra.mxu0 0
  %8451 = vmatpush.bf16.msra.mxu0 0
  %8452 = vmatpush.bf16.msra.mxu0 %v8443
  %8453 = vmatmul.bf16.gmra.mxu0 %v1293
  %v8454 = vpop.f32.mrf.mxu0
  %v8455 = vadd.f32 0.0, %v8454
  %v8456 = vpop.f32.mrf.mxu0
  %v8457 = vadd.f32 0.0, %v8456
  %8458 = vmatmul.bf16.gmra.mxu0 %v1296
  %v8459 = vpop.f32.mrf.mxu0
  %v8460 = vadd.f32 0.0, %v8459
  %v8461 = vpop.f32.mrf.mxu0
  %v8462 = vadd.f32 0.0, %v8461
  %8463 = vmatmul.bf16.gmra.mxu0 %v1299
  %v8464 = vpop.f32.mrf.mxu0
  %v8465 = vadd.f32 0.0, %v8464
  %v8466 = vpop.f32.mrf.mxu0
  %v8467 = vadd.f32 0.0, %v8466
  %8468 = vdwg.mxu0
  %v8471 = vunpack.c.l.b16 %v8241
  %v8472 = vunpack.c.l.b16 %v8242
  %v8473 = vpack.c.b16 %v8472, %v8471
  %8475 = vmatpush.bf16.msra.mxu0 0
  %8476 = vmatpush.bf16.msra.mxu0 0
  %8477 = vmatpush.bf16.msra.mxu0 0
  %8478 = vmatpush.bf16.msra.mxu0 0
  %8479 = vmatpush.bf16.msra.mxu0 0
  %8480 = vmatpush.bf16.msra.mxu0 0
  %8481 = vmatpush.bf16.msra.mxu0 0
  %8482 = vmatpush.bf16.msra.mxu0 %v8473
  %8483 = vmatmul.bf16.gmra.mxu0 %v1293
  %v8484 = vpop.f32.mrf.mxu0
  %v8485 = vadd.f32 0.0, %v8484
  %v8486 = vpop.f32.mrf.mxu0
  %v8487 = vadd.f32 0.0, %v8486
  %8488 = vmatmul.bf16.gmra.mxu0 %v1296
  %v8489 = vpop.f32.mrf.mxu0
  %v8490 = vadd.f32 0.0, %v8489
  %v8491 = vpop.f32.mrf.mxu0
  %v8492 = vadd.f32 0.0, %v8491
  %8493 = vmatmul.bf16.gmra.mxu0 %v1299
  %v8494 = vpop.f32.mrf.mxu0
  %v8495 = vadd.f32 0.0, %v8494
  %v8496 = vpop.f32.mrf.mxu0
  %v8497 = vadd.f32 0.0, %v8496
  %8498 = vdwg.mxu0
  %v8501 = vunpack.c.l.b16 %v8243
  %v8502 = vunpack.c.l.b16 %v8244
  %v8503 = vpack.c.b16 %v8502, %v8501
  %8505 = vmatpush.bf16.msra.mxu0 0
  %8506 = vmatpush.bf16.msra.mxu0 0
  %8507 = vmatpush.bf16.msra.mxu0 0
  %8508 = vmatpush.bf16.msra.mxu0 0
  %8509 = vmatpush.bf16.msra.mxu0 0
  %8510 = vmatpush.bf16.msra.mxu0 0
  %8511 = vmatpush.bf16.msra.mxu0 0
  %8512 = vmatpush.bf16.msra.mxu0 %v8503
  %8513 = vmatmul.bf16.gmra.mxu0 %v1293
  %v8514 = vpop.f32.mrf.mxu0
  %v8515 = vadd.f32 0.0, %v8514
  %v8516 = vpop.f32.mrf.mxu0
  %v8517 = vadd.f32 0.0, %v8516
  %8518 = vmatmul.bf16.gmra.mxu0 %v1296
  %v8519 = vpop.f32.mrf.mxu0
  %v8520 = vadd.f32 0.0, %v8519
  %v8521 = vpop.f32.mrf.mxu0
  %v8522 = vadd.f32 0.0, %v8521
  %8523 = vmatmul.bf16.gmra.mxu0 %v1299
  %v8524 = vpop.f32.mrf.mxu0
  %v8525 = vadd.f32 0.0, %v8524
  %v8526 = vpop.f32.mrf.mxu0
  %v8527 = vadd.f32 0.0, %v8526
  %8528 = vdwg.mxu0
  %v8531 = vunpack.c.l.b16 %v8245
  %v8532 = vunpack.c.l.b16 %v8246
  %v8533 = vpack.c.b16 %v8532, %v8531
  %8535 = vmatpush.bf16.msra.mxu0 0
  %8536 = vmatpush.bf16.msra.mxu0 0
  %8537 = vmatpush.bf16.msra.mxu0 0
  %8538 = vmatpush.bf16.msra.mxu0 0
  %8539 = vmatpush.bf16.msra.mxu0 0
  %8540 = vmatpush.bf16.msra.mxu0 0
  %8541 = vmatpush.bf16.msra.mxu0 0
  %8542 = vmatpush.bf16.msra.mxu0 %v8533
  %8543 = vmatmul.bf16.gmra.mxu0 %v1293
  %v8544 = vpop.f32.mrf.mxu0
  %v8545 = vadd.f32 0.0, %v8544
  %v8546 = vpop.f32.mrf.mxu0
  %v8547 = vadd.f32 0.0, %v8546
  %8548 = vmatmul.bf16.gmra.mxu0 %v1296
  %v8549 = vpop.f32.mrf.mxu0
  %v8550 = vadd.f32 0.0, %v8549
  %v8551 = vpop.f32.mrf.mxu0
  %v8552 = vadd.f32 0.0, %v8551
  %8553 = vmatmul.bf16.gmra.mxu0 %v1299
  %v8554 = vpop.f32.mrf.mxu0
  %v8555 = vadd.f32 0.0, %v8554
  %v8556 = vpop.f32.mrf.mxu0
  %v8557 = vadd.f32 0.0, %v8556
  %8558 = vdwg.mxu0
  %v8561 = vunpack.c.l.b16 %v8247
  %v8562 = vunpack.c.l.b16 %v8248
  %v8563 = vpack.c.b16 %v8562, %v8561
  %8565 = vmatpush.bf16.msra.mxu0 0
  %8566 = vmatpush.bf16.msra.mxu0 0
  %8567 = vmatpush.bf16.msra.mxu0 0
  %8568 = vmatpush.bf16.msra.mxu0 0
  %8569 = vmatpush.bf16.msra.mxu0 0
  %8570 = vmatpush.bf16.msra.mxu0 0
  %8571 = vmatpush.bf16.msra.mxu0 0
  %8572 = vmatpush.bf16.msra.mxu0 %v8563
  %8573 = vmatmul.bf16.gmra.mxu0 %v1293
  %v8574 = vpop.f32.mrf.mxu0
  %v8575 = vadd.f32 0.0, %v8574
  %v8576 = vpop.f32.mrf.mxu0
  %v8577 = vadd.f32 0.0, %v8576
  %8578 = vmatmul.bf16.gmra.mxu0 %v1296
  %v8579 = vpop.f32.mrf.mxu0
  %v8580 = vadd.f32 0.0, %v8579
  %v8581 = vpop.f32.mrf.mxu0
  %v8582 = vadd.f32 0.0, %v8581
  %8583 = vmatmul.bf16.gmra.mxu0 %v1299
  %v8584 = vpop.f32.mrf.mxu0
  %v8585 = vadd.f32 0.0, %v8584
  %v8586 = vpop.f32.mrf.mxu0
  %v8587 = vadd.f32 0.0, %v8586
  %8588 = vdwg.mxu0
  %v8591 = vunpack.c.l.b16 %v8249
  %v8592 = vunpack.c.l.b16 %v8250
  %v8593 = vpack.c.b16 %v8592, %v8591
  %8595 = vmatpush.bf16.msra.mxu0 0
  %8596 = vmatpush.bf16.msra.mxu0 0
  %8597 = vmatpush.bf16.msra.mxu0 0
  %8598 = vmatpush.bf16.msra.mxu0 0
  %8599 = vmatpush.bf16.msra.mxu0 0
  %8600 = vmatpush.bf16.msra.mxu0 0
  %8601 = vmatpush.bf16.msra.mxu0 0
  %8602 = vmatpush.bf16.msra.mxu0 %v8593
  %8603 = vmatmul.bf16.gmra.mxu0 %v1293
  %v8604 = vpop.f32.mrf.mxu0
  %v8605 = vadd.f32 0.0, %v8604
  %v8606 = vpop.f32.mrf.mxu0
  %v8607 = vadd.f32 0.0, %v8606
  %8608 = vmatmul.bf16.gmra.mxu0 %v1296
  %v8609 = vpop.f32.mrf.mxu0
  %v8610 = vadd.f32 0.0, %v8609
  %v8611 = vpop.f32.mrf.mxu0
  %v8612 = vadd.f32 0.0, %v8611
  %8613 = vmatmul.bf16.gmra.mxu0 %v1299
  %v8614 = vpop.f32.mrf.mxu0
  %v8615 = vadd.f32 0.0, %v8614
  %v8616 = vpop.f32.mrf.mxu0
  %v8617 = vadd.f32 0.0, %v8616
  %8618 = vdwg.mxu0
  %v8621 = vunpack.c.l.b16 %v8251
  %v8622 = vunpack.c.l.b16 %v8252
  %v8623 = vpack.c.b16 %v8622, %v8621
  %8625 = vmatpush.bf16.msra.mxu0 0
  %8626 = vmatpush.bf16.msra.mxu0 0
  %8627 = vmatpush.bf16.msra.mxu0 0
  %8628 = vmatpush.bf16.msra.mxu0 0
  %8629 = vmatpush.bf16.msra.mxu0 0
  %8630 = vmatpush.bf16.msra.mxu0 0
  %8631 = vmatpush.bf16.msra.mxu0 0
  %8632 = vmatpush.bf16.msra.mxu0 %v8623
  %8633 = vmatmul.bf16.gmra.mxu0 %v1293
  %v8634 = vpop.f32.mrf.mxu0
  %v8635 = vadd.f32 0.0, %v8634
  %v8636 = vpop.f32.mrf.mxu0
  %v8637 = vadd.f32 0.0, %v8636
  %8638 = vmatmul.bf16.gmra.mxu0 %v1296
  %v8639 = vpop.f32.mrf.mxu0
  %v8640 = vadd.f32 0.0, %v8639
  %v8641 = vpop.f32.mrf.mxu0
  %v8642 = vadd.f32 0.0, %v8641
  %8643 = vmatmul.bf16.gmra.mxu0 %v1299
  %v8644 = vpop.f32.mrf.mxu0
  %v8645 = vadd.f32 0.0, %v8644
  %v8646 = vpop.f32.mrf.mxu0
  %v8647 = vadd.f32 0.0, %v8646
  %8648 = vdwg.mxu0
  %v8651 = vunpack.c.l.b16 %v8253
  %v8652 = vunpack.c.l.b16 %v8254
  %v8653 = vpack.c.b16 %v8652, %v8651
  %8655 = vmatpush.bf16.msra.mxu0 0
  %8656 = vmatpush.bf16.msra.mxu0 0
  %8657 = vmatpush.bf16.msra.mxu0 0
  %8658 = vmatpush.bf16.msra.mxu0 0
  %8659 = vmatpush.bf16.msra.mxu0 0
  %8660 = vmatpush.bf16.msra.mxu0 0
  %8661 = vmatpush.bf16.msra.mxu0 0
  %8662 = vmatpush.bf16.msra.mxu0 %v8653
  %8663 = vmatmul.bf16.gmra.mxu0 %v1293
  %v8664 = vpop.f32.mrf.mxu0
  %v8665 = vadd.f32 0.0, %v8664
  %v8666 = vpop.f32.mrf.mxu0
  %v8667 = vadd.f32 0.0, %v8666
  %8668 = vmatmul.bf16.gmra.mxu0 %v1296
  %v8669 = vpop.f32.mrf.mxu0
  %v8670 = vadd.f32 0.0, %v8669
  %v8671 = vpop.f32.mrf.mxu0
  %v8672 = vadd.f32 0.0, %v8671
  %8673 = vmatmul.bf16.gmra.mxu0 %v1299
  %v8674 = vpop.f32.mrf.mxu0
  %v8675 = vadd.f32 0.0, %v8674
  %v8676 = vpop.f32.mrf.mxu0
  %v8677 = vadd.f32 0.0, %v8676
  %8678 = vdwg.mxu0
  %v8681 = vunpack.c.l.b16 %v8255
  %v8682 = vunpack.c.l.b16 %v8256
  %v8683 = vpack.c.b16 %v8682, %v8681
  %8685 = vmatpush.bf16.msra.mxu0 0
  %8686 = vmatpush.bf16.msra.mxu0 0
  %8687 = vmatpush.bf16.msra.mxu0 0
  %8688 = vmatpush.bf16.msra.mxu0 0
  %8689 = vmatpush.bf16.msra.mxu0 0
  %8690 = vmatpush.bf16.msra.mxu0 0
  %8691 = vmatpush.bf16.msra.mxu0 0
  %8692 = vmatpush.bf16.msra.mxu0 %v8683
  %8693 = vmatmul.bf16.gmra.mxu0 %v1293
  %v8694 = vpop.f32.mrf.mxu0
  %v8695 = vadd.f32 0.0, %v8694
  %v8696 = vpop.f32.mrf.mxu0
  %v8697 = vadd.f32 0.0, %v8696
  %8698 = vmatmul.bf16.gmra.mxu0 %v1296
  %v8699 = vpop.f32.mrf.mxu0
  %v8700 = vadd.f32 0.0, %v8699
  %v8701 = vpop.f32.mrf.mxu0
  %v8702 = vadd.f32 0.0, %v8701
  %8703 = vmatmul.bf16.gmra.mxu0 %v1299
  %v8704 = vpop.f32.mrf.mxu0
  %v8705 = vadd.f32 0.0, %v8704
  %v8706 = vpop.f32.mrf.mxu0
  %v8707 = vadd.f32 0.0, %v8706
  %8708 = vdwg.mxu0
  %v8711 = vunpack.c.l.b16 %v8257
  %v8712 = vunpack.c.l.b16 %v8258
  %v8713 = vpack.c.b16 %v8712, %v8711
  %8715 = vmatpush.bf16.msra.mxu0 0
  %8716 = vmatpush.bf16.msra.mxu0 0
  %8717 = vmatpush.bf16.msra.mxu0 0
  %8718 = vmatpush.bf16.msra.mxu0 0
  %8719 = vmatpush.bf16.msra.mxu0 0
  %8720 = vmatpush.bf16.msra.mxu0 0
  %8721 = vmatpush.bf16.msra.mxu0 0
  %8722 = vmatpush.bf16.msra.mxu0 %v8713
  %8723 = vmatmul.bf16.gmra.mxu0 %v1293
  %v8724 = vpop.f32.mrf.mxu0
  %v8725 = vadd.f32 0.0, %v8724
  %v8726 = vpop.f32.mrf.mxu0
  %v8727 = vadd.f32 0.0, %v8726
  %8728 = vmatmul.bf16.gmra.mxu0 %v1296
  %v8729 = vpop.f32.mrf.mxu0
  %v8730 = vadd.f32 0.0, %v8729
  %v8731 = vpop.f32.mrf.mxu0
  %v8732 = vadd.f32 0.0, %v8731
  %8733 = vmatmul.bf16.gmra.mxu0 %v1299
  %v8734 = vpop.f32.mrf.mxu0
  %v8735 = vadd.f32 0.0, %v8734
  %v8736 = vpop.f32.mrf.mxu0
  %v8737 = vadd.f32 0.0, %v8736
  %8738 = vdwg.mxu0
  %8771 = vrot.lane.b32.xlu0 %v8280, 32
  %v8772 = vpop.permute.xlu0 %8771
  %8773 = vrot.lane.b32.xlu0 %v8282, 32
  %v8774 = vpop.permute.xlu0 %8773
  %8775 = vrot.lane.b32.xlu0 %v8310, 32
  %v8776 = vpop.permute.xlu0 %8775
  %8777 = vrot.lane.b32.xlu0 %v8312, 32
  %v8778 = vpop.permute.xlu0 %8777
  %8779 = vrot.lane.b32.xlu0 %v8340, 32
  %v8780 = vpop.permute.xlu0 %8779
  %8781 = vrot.lane.b32.xlu0 %v8342, 32
  %v8782 = vpop.permute.xlu0 %8781
  %8783 = vrot.lane.b32.xlu0 %v8370, 32
  %v8784 = vpop.permute.xlu0 %8783
  %8785 = vrot.lane.b32.xlu0 %v8372, 32
  %v8786 = vpop.permute.xlu0 %8785
  %8787 = vrot.lane.b32.xlu0 %v8400, 32
  %v8788 = vpop.permute.xlu0 %8787
  %8789 = vrot.lane.b32.xlu0 %v8402, 32
  %v8790 = vpop.permute.xlu0 %8789
  %8791 = vrot.lane.b32.xlu0 %v8430, 32
  %v8792 = vpop.permute.xlu0 %8791
  %8793 = vrot.lane.b32.xlu0 %v8432, 32
  %v8794 = vpop.permute.xlu0 %8793
  %8795 = vrot.lane.b32.xlu0 %v8460, 32
  %v8796 = vpop.permute.xlu0 %8795
  %8797 = vrot.lane.b32.xlu0 %v8462, 32
  %v8798 = vpop.permute.xlu0 %8797
  %8799 = vrot.lane.b32.xlu0 %v8490, 32
  %v8800 = vpop.permute.xlu0 %8799
  %8801 = vrot.lane.b32.xlu0 %v8492, 32
  %v8802 = vpop.permute.xlu0 %8801
  %8803 = vrot.lane.b32.xlu0 %v8520, 32
  %v8804 = vpop.permute.xlu0 %8803
  %8805 = vrot.lane.b32.xlu0 %v8522, 32
  %v8806 = vpop.permute.xlu0 %8805
  %8807 = vrot.lane.b32.xlu0 %v8550, 32
  %v8808 = vpop.permute.xlu0 %8807
  %8809 = vrot.lane.b32.xlu0 %v8552, 32
  %v8810 = vpop.permute.xlu0 %8809
  %8811 = vrot.lane.b32.xlu0 %v8580, 32
  %v8812 = vpop.permute.xlu0 %8811
  %8813 = vrot.lane.b32.xlu0 %v8582, 32
  %v8814 = vpop.permute.xlu0 %8813
  %8815 = vrot.lane.b32.xlu0 %v8610, 32
  %v8816 = vpop.permute.xlu0 %8815
  %8817 = vrot.lane.b32.xlu0 %v8612, 32
  %v8818 = vpop.permute.xlu0 %8817
  %8819 = vrot.lane.b32.xlu0 %v8640, 32
  %v8820 = vpop.permute.xlu0 %8819
  %8821 = vrot.lane.b32.xlu0 %v8642, 32
  %v8822 = vpop.permute.xlu0 %8821
  %8823 = vrot.lane.b32.xlu0 %v8670, 32
  %v8824 = vpop.permute.xlu0 %8823
  %8825 = vrot.lane.b32.xlu0 %v8672, 32
  %v8826 = vpop.permute.xlu0 %8825
  %8827 = vrot.lane.b32.xlu0 %v8700, 32
  %v8828 = vpop.permute.xlu0 %8827
  %8829 = vrot.lane.b32.xlu0 %v8702, 32
  %v8830 = vpop.permute.xlu0 %8829
  %8831 = vrot.lane.b32.xlu0 %v8730, 32
  %v8832 = vpop.permute.xlu0 %8831
  %8833 = vrot.lane.b32.xlu0 %v8732, 32
  %v8834 = vpop.permute.xlu0 %8833
  %8899 = vrot.lane.b32.xlu0 %v8285, 64
  %v8900 = vpop.permute.xlu0 %8899
  %8901 = vrot.lane.b32.xlu0 %v8287, 64
  %v8902 = vpop.permute.xlu0 %8901
  %8903 = vrot.lane.b32.xlu0 %v8315, 64
  %v8904 = vpop.permute.xlu0 %8903
  %8905 = vrot.lane.b32.xlu0 %v8317, 64
  %v8906 = vpop.permute.xlu0 %8905
  %8907 = vrot.lane.b32.xlu0 %v8345, 64
  %v8908 = vpop.permute.xlu0 %8907
  %8909 = vrot.lane.b32.xlu0 %v8347, 64
  %v8910 = vpop.permute.xlu0 %8909
  %8911 = vrot.lane.b32.xlu0 %v8375, 64
  %v8912 = vpop.permute.xlu0 %8911
  %8913 = vrot.lane.b32.xlu0 %v8377, 64
  %v8914 = vpop.permute.xlu0 %8913
  %8915 = vrot.lane.b32.xlu0 %v8405, 64
  %v8916 = vpop.permute.xlu0 %8915
  %8917 = vrot.lane.b32.xlu0 %v8407, 64
  %v8918 = vpop.permute.xlu0 %8917
  %8919 = vrot.lane.b32.xlu0 %v8435, 64
  %v8920 = vpop.permute.xlu0 %8919
  %8921 = vrot.lane.b32.xlu0 %v8437, 64
  %v8922 = vpop.permute.xlu0 %8921
  %8923 = vrot.lane.b32.xlu0 %v8465, 64
  %v8924 = vpop.permute.xlu0 %8923
  %8925 = vrot.lane.b32.xlu0 %v8467, 64
  %v8926 = vpop.permute.xlu0 %8925
  %8927 = vrot.lane.b32.xlu0 %v8495, 64
  %v8928 = vpop.permute.xlu0 %8927
  %8929 = vrot.lane.b32.xlu0 %v8497, 64
  %v8930 = vpop.permute.xlu0 %8929
  %8931 = vrot.lane.b32.xlu0 %v8525, 64
  %v8932 = vpop.permute.xlu0 %8931
  %8933 = vrot.lane.b32.xlu0 %v8527, 64
  %v8934 = vpop.permute.xlu0 %8933
  %8935 = vrot.lane.b32.xlu0 %v8555, 64
  %v8936 = vpop.permute.xlu0 %8935
  %8937 = vrot.lane.b32.xlu0 %v8557, 64
  %v8938 = vpop.permute.xlu0 %8937
  %8939 = vrot.lane.b32.xlu0 %v8585, 64
  %v8940 = vpop.permute.xlu0 %8939
  %8941 = vrot.lane.b32.xlu0 %v8587, 64
  %v8942 = vpop.permute.xlu0 %8941
  %8943 = vrot.lane.b32.xlu0 %v8615, 64
  %v8944 = vpop.permute.xlu0 %8943
  %8945 = vrot.lane.b32.xlu0 %v8617, 64
  %v8946 = vpop.permute.xlu0 %8945
  %8947 = vrot.lane.b32.xlu0 %v8645, 64
  %v8948 = vpop.permute.xlu0 %8947
  %8949 = vrot.lane.b32.xlu0 %v8647, 64
  %v8950 = vpop.permute.xlu0 %8949
  %8951 = vrot.lane.b32.xlu0 %v8675, 64
  %v8952 = vpop.permute.xlu0 %8951
  %8953 = vrot.lane.b32.xlu0 %v8677, 64
  %v8954 = vpop.permute.xlu0 %8953
  %8955 = vrot.lane.b32.xlu0 %v8705, 64
  %v8956 = vpop.permute.xlu0 %8955
  %8957 = vrot.lane.b32.xlu0 %v8707, 64
  %v8958 = vpop.permute.xlu0 %8957
  %8959 = vrot.lane.b32.xlu0 %v8735, 64
  %v8960 = vpop.permute.xlu0 %8959
  %8961 = vrot.lane.b32.xlu0 %v8737, 64
  %v8962 = vpop.permute.xlu0 %8961
  %v8995 = vsel %vm2031, %v8275, %v8772
  %v8996 = vsel %vm2031, %v8277, %v8774
  %v8997 = vsel %vm2031, %v8305, %v8776
  %v8998 = vsel %vm2031, %v8307, %v8778
  %v8999 = vsel %vm2031, %v8335, %v8780
  %v9000 = vsel %vm2031, %v8337, %v8782
  %v9001 = vsel %vm2031, %v8365, %v8784
  %v9002 = vsel %vm2031, %v8367, %v8786
  %v9003 = vsel %vm2031, %v8395, %v8788
  %v9004 = vsel %vm2031, %v8397, %v8790
  %v9005 = vsel %vm2031, %v8425, %v8792
  %v9006 = vsel %vm2031, %v8427, %v8794
  %v9007 = vsel %vm2031, %v8455, %v8796
  %v9008 = vsel %vm2031, %v8457, %v8798
  %v9009 = vsel %vm2031, %v8485, %v8800
  %v9010 = vsel %vm2031, %v8487, %v8802
  %v9011 = vsel %vm2031, %v8515, %v8804
  %v9012 = vsel %vm2031, %v8517, %v8806
  %v9013 = vsel %vm2031, %v8545, %v8808
  %v9014 = vsel %vm2031, %v8547, %v8810
  %v9015 = vsel %vm2031, %v8575, %v8812
  %v9016 = vsel %vm2031, %v8577, %v8814
  %v9017 = vsel %vm2031, %v8605, %v8816
  %v9018 = vsel %vm2031, %v8607, %v8818
  %v9019 = vsel %vm2031, %v8635, %v8820
  %v9020 = vsel %vm2031, %v8637, %v8822
  %v9021 = vsel %vm2031, %v8665, %v8824
  %v9022 = vsel %vm2031, %v8667, %v8826
  %v9023 = vsel %vm2031, %v8695, %v8828
  %v9024 = vsel %vm2031, %v8697, %v8830
  %v9025 = vsel %vm2031, %v8725, %v8832
  %v9026 = vsel %vm2031, %v8727, %v8834
  %v9027 = vsel %vm2064, %v8995, %v8900
  %v9028 = vsel %vm2064, %v8996, %v8902
  %v9029 = vsel %vm2064, %v8997, %v8904
  %v9030 = vsel %vm2064, %v8998, %v8906
  %v9031 = vsel %vm2064, %v8999, %v8908
  %v9032 = vsel %vm2064, %v9000, %v8910
  %v9033 = vsel %vm2064, %v9001, %v8912
  %v9034 = vsel %vm2064, %v9002, %v8914
  %v9035 = vsel %vm2064, %v9003, %v8916
  %v9036 = vsel %vm2064, %v9004, %v8918
  %v9037 = vsel %vm2064, %v9005, %v8920
  %v9038 = vsel %vm2064, %v9006, %v8922
  %v9039 = vsel %vm2064, %v9007, %v8924
  %v9040 = vsel %vm2064, %v9008, %v8926
  %v9041 = vsel %vm2064, %v9009, %v8928
  %v9042 = vsel %vm2064, %v9010, %v8930
  %v9043 = vsel %vm2064, %v9011, %v8932
  %v9044 = vsel %vm2064, %v9012, %v8934
  %v9045 = vsel %vm2064, %v9013, %v8936
  %v9046 = vsel %vm2064, %v9014, %v8938
  %v9047 = vsel %vm2064, %v9015, %v8940
  %v9048 = vsel %vm2064, %v9016, %v8942
  %v9049 = vsel %vm2064, %v9017, %v8944
  %v9050 = vsel %vm2064, %v9018, %v8946
  %v9051 = vsel %vm2064, %v9019, %v8948
  %v9052 = vsel %vm2064, %v9020, %v8950
  %v9053 = vsel %vm2064, %v9021, %v8952
  %v9054 = vsel %vm2064, %v9022, %v8954
  %v9055 = vsel %vm2064, %v9023, %v8956
  %v9056 = vsel %vm2064, %v9024, %v8958
  %v9057 = vsel %vm2064, %v9025, %v8960
  %v9058 = vsel %vm2064, %v9026, %v8962
  %v9059 = vld [vmem:[%s16] sm:$0xf]
  %v9060 = vld [vmem:[%s16 + $0x4] sm:$0xf]
  %v9061 = vld [vmem:[%s16 + $0x8] sm:$0xf]
  %v9062 = vld [vmem:[%s16 + $0xc] sm:$0xf]
  %v9063 = vld [vmem:[%s16 + $0x10] sm:$0xf]
  %v9064 = vld [vmem:[%s16 + $0x14] sm:$0xf]
  %v9065 = vld [vmem:[%s16 + $0x18] sm:$0xf]
  %v9066 = vld [vmem:[%s16 + $0x1c] sm:$0xf]
  %v9067 = vld [vmem:[%s16 + $0x20] sm:$0xf]
  %v9068 = vld [vmem:[%s16 + $0x24] sm:$0xf]
  %v9069 = vld [vmem:[%s16 + $0x28] sm:$0xf]
  %v9070 = vld [vmem:[%s16 + $0x2c] sm:$0xf]
  %v9071 = vunpack.c.l.bf16 %v9059
  %v9072 = vunpack.c.l.bf16 %v9060
  %v9073 = vunpack.c.l.bf16 %v9061
  %v9074 = vunpack.c.l.bf16 %v9062
  %v9075 = vunpack.c.l.bf16 %v9063
  %v9076 = vunpack.c.l.bf16 %v9064
  %v9077 = vunpack.c.l.bf16 %v9065
  %v9078 = vunpack.c.l.bf16 %v9066
  %v9079 = vunpack.c.l.bf16 %v9067
  %v9080 = vunpack.c.l.bf16 %v9068
  %v9081 = vunpack.c.l.bf16 %v9069
  %v9082 = vunpack.c.l.bf16 %v9070
  %v9083 = vld [vmem:[%s17] sm:$0x1]
  %v9085 = vperm.slane %v9083, 0
  %v9088 = vsel %vm2125, %v9027, 0
  %v9091 = vsel %vm2125, %v9028, 0
  %v9094 = vsel %vm2125, %v9029, 0
  %v9097 = vsel %vm2125, %v9030, 0
  %v9100 = vsel %vm2125, %v9031, 0
  %v9103 = vsel %vm2125, %v9032, 0
  %v9106 = vsel %vm2125, %v9033, 0
  %v9109 = vsel %vm2125, %v9034, 0
  %v9112 = vsel %vm2125, %v9035, 0
  %v9115 = vsel %vm2125, %v9036, 0
  %v9118 = vsel %vm2125, %v9037, 0
  %v9121 = vsel %vm2125, %v9038, 0
  %v9124 = vsel %vm2125, %v9039, 0
  %v9127 = vsel %vm2125, %v9040, 0
  %v9130 = vsel %vm2125, %v9041, 0
  %v9133 = vsel %vm2125, %v9042, 0
  %v9136 = vsel %vm2125, %v9043, 0
  %v9139 = vsel %vm2125, %v9044, 0
  %v9142 = vsel %vm2125, %v9045, 0
  %v9145 = vsel %vm2125, %v9046, 0
  %v9148 = vsel %vm2125, %v9047, 0
  %v9151 = vsel %vm2125, %v9048, 0
  %v9154 = vsel %vm2125, %v9049, 0
  %v9157 = vsel %vm2125, %v9050, 0
  %v9160 = vsel %vm2125, %v9051, 0
  %v9163 = vsel %vm2125, %v9052, 0
  %v9166 = vsel %vm2125, %v9053, 0
  %v9169 = vsel %vm2125, %v9054, 0
  %v9172 = vsel %vm2125, %v9055, 0
  %v9175 = vsel %vm2125, %v9056, 0
  %v9178 = vsel %vm2125, %v9057, 0
  %v9181 = vsel %vm2125, %v9058, 0
  %9183 = vmatpush.msra.mxu0 0.0
  %9184 = vmatpush.msra.mxu0 0.0
  %9185 = vmatpush.msra.mxu0 0.0
  %9186 = vmatpush.msra.mxu0 0.0
  %9187 = vmatpush.msra.mxu0 %v9082
  %9188 = vmatpush.msra.mxu0 %v9081
  %9189 = vmatpush.msra.mxu0 %v9080
  %9190 = vmatpush.msra.mxu0 %v9079
  %9191 = vmatpush.msra.mxu0 %v9078
  %9192 = vmatpush.msra.mxu0 %v9077
  %9193 = vmatpush.msra.mxu0 %v9076
  %9194 = vmatpush.msra.mxu0 %v9075
  %9195 = vmatpush.msra.mxu0 %v9074
  %9196 = vmatpush.msra.mxu0 %v9073
  %9197 = vmatpush.msra.mxu0 %v9072
  %9198 = vmatpush.msra.mxu0 %v9071
  %9199 = vmatmul.f32.gmra.mxu0 %v9088
  %v9200 = vpop.f32.mrf.mxu0
  %v9201 = vadd.f32 %v9085, %v9200
  %9202 = vmatmul.f32.gmra.mxu0 %v9091
  %v9203 = vpop.f32.mrf.mxu0
  %v9204 = vadd.f32 %v9085, %v9203
  %9205 = vmatmul.f32.gmra.mxu0 %v9094
  %v9206 = vpop.f32.mrf.mxu0
  %v9207 = vadd.f32 %v9085, %v9206
  %9208 = vmatmul.f32.gmra.mxu0 %v9097
  %v9209 = vpop.f32.mrf.mxu0
  %v9210 = vadd.f32 %v9085, %v9209
  %9211 = vmatmul.f32.gmra.mxu0 %v9100
  %v9212 = vpop.f32.mrf.mxu0
  %v9213 = vadd.f32 %v9085, %v9212
  %9214 = vmatmul.f32.gmra.mxu0 %v9103
  %v9215 = vpop.f32.mrf.mxu0
  %v9216 = vadd.f32 %v9085, %v9215
  %9217 = vmatmul.f32.gmra.mxu0 %v9106
  %v9218 = vpop.f32.mrf.mxu0
  %v9219 = vadd.f32 %v9085, %v9218
  %9220 = vmatmul.f32.gmra.mxu0 %v9109
  %v9221 = vpop.f32.mrf.mxu0
  %v9222 = vadd.f32 %v9085, %v9221
  %9223 = vmatmul.f32.gmra.mxu0 %v9112
  %v9224 = vpop.f32.mrf.mxu0
  %v9225 = vadd.f32 %v9085, %v9224
  %9226 = vmatmul.f32.gmra.mxu0 %v9115
  %v9227 = vpop.f32.mrf.mxu0
  %v9228 = vadd.f32 %v9085, %v9227
  %9229 = vmatmul.f32.gmra.mxu0 %v9118
  %v9230 = vpop.f32.mrf.mxu0
  %v9231 = vadd.f32 %v9085, %v9230
  %9232 = vmatmul.f32.gmra.mxu0 %v9121
  %v9233 = vpop.f32.mrf.mxu0
  %v9234 = vadd.f32 %v9085, %v9233
  %9235 = vmatmul.f32.gmra.mxu0 %v9124
  %v9236 = vpop.f32.mrf.mxu0
  %v9237 = vadd.f32 %v9085, %v9236
  %9238 = vmatmul.f32.gmra.mxu0 %v9127
  %v9239 = vpop.f32.mrf.mxu0
  %v9240 = vadd.f32 %v9085, %v9239
  %9241 = vmatmul.f32.gmra.mxu0 %v9130
  %v9242 = vpop.f32.mrf.mxu0
  %v9243 = vadd.f32 %v9085, %v9242
  %9244 = vmatmul.f32.gmra.mxu0 %v9133
  %v9245 = vpop.f32.mrf.mxu0
  %v9246 = vadd.f32 %v9085, %v9245
  %9247 = vmatmul.f32.gmra.mxu0 %v9136
  %v9248 = vpop.f32.mrf.mxu0
  %v9249 = vadd.f32 %v9085, %v9248
  %9250 = vmatmul.f32.gmra.mxu0 %v9139
  %v9251 = vpop.f32.mrf.mxu0
  %v9252 = vadd.f32 %v9085, %v9251
  %9253 = vmatmul.f32.gmra.mxu0 %v9142
  %v9254 = vpop.f32.mrf.mxu0
  %v9255 = vadd.f32 %v9085, %v9254
  %9256 = vmatmul.f32.gmra.mxu0 %v9145
  %v9257 = vpop.f32.mrf.mxu0
  %v9258 = vadd.f32 %v9085, %v9257
  %9259 = vmatmul.f32.gmra.mxu0 %v9148
  %v9260 = vpop.f32.mrf.mxu0
  %v9261 = vadd.f32 %v9085, %v9260
  %9262 = vmatmul.f32.gmra.mxu0 %v9151
  %v9263 = vpop.f32.mrf.mxu0
  %v9264 = vadd.f32 %v9085, %v9263
  %9265 = vmatmul.f32.gmra.mxu0 %v9154
  %v9266 = vpop.f32.mrf.mxu0
  %v9267 = vadd.f32 %v9085, %v9266
  %9268 = vmatmul.f32.gmra.mxu0 %v9157
  %v9269 = vpop.f32.mrf.mxu0
  %v9270 = vadd.f32 %v9085, %v9269
  %9271 = vmatmul.f32.gmra.mxu0 %v9160
  %v9272 = vpop.f32.mrf.mxu0
  %v9273 = vadd.f32 %v9085, %v9272
  %9274 = vmatmul.f32.gmra.mxu0 %v9163
  %v9275 = vpop.f32.mrf.mxu0
  %v9276 = vadd.f32 %v9085, %v9275
  %9277 = vmatmul.f32.gmra.mxu0 %v9166
  %v9278 = vpop.f32.mrf.mxu0
  %v9279 = vadd.f32 %v9085, %v9278
  %9280 = vmatmul.f32.gmra.mxu0 %v9169
  %v9281 = vpop.f32.mrf.mxu0
  %v9282 = vadd.f32 %v9085, %v9281
  %9283 = vmatmul.f32.gmra.mxu0 %v9172
  %v9284 = vpop.f32.mrf.mxu0
  %v9285 = vadd.f32 %v9085, %v9284
  %9286 = vmatmul.f32.gmra.mxu0 %v9175
  %v9287 = vpop.f32.mrf.mxu0
  %v9288 = vadd.f32 %v9085, %v9287
  %9289 = vmatmul.f32.gmra.mxu0 %v9178
  %v9290 = vpop.f32.mrf.mxu0
  %v9291 = vadd.f32 %v9085, %v9290
  %9292 = vmatmul.f32.gmra.mxu0 %v9181
  %v9293 = vpop.f32.mrf.mxu0
  %v9294 = vadd.f32 %v9085, %v9293
  %9295 = vdwg.mxu0
  %v9296 = vmax.f32 %v9201, 0.0
  %v9297 = vmax.f32 %v9204, 0.0
  %v9298 = vmax.f32 %v9207, 0.0
  %v9299 = vmax.f32 %v9210, 0.0
  %v9300 = vmax.f32 %v9213, 0.0
  %v9301 = vmax.f32 %v9216, 0.0
  %v9302 = vmax.f32 %v9219, 0.0
  %v9303 = vmax.f32 %v9222, 0.0
  %v9304 = vmax.f32 %v9225, 0.0
  %v9305 = vmax.f32 %v9228, 0.0
  %v9306 = vmax.f32 %v9231, 0.0
  %v9307 = vmax.f32 %v9234, 0.0
  %v9308 = vmax.f32 %v9237, 0.0
  %v9309 = vmax.f32 %v9240, 0.0
  %v9310 = vmax.f32 %v9243, 0.0
  %v9311 = vmax.f32 %v9246, 0.0
  %v9312 = vmax.f32 %v9249, 0.0
  %v9313 = vmax.f32 %v9252, 0.0
  %v9314 = vmax.f32 %v9255, 0.0
  %v9315 = vmax.f32 %v9258, 0.0
  %v9316 = vmax.f32 %v9261, 0.0
  %v9317 = vmax.f32 %v9264, 0.0
  %v9318 = vmax.f32 %v9267, 0.0
  %v9319 = vmax.f32 %v9270, 0.0
  %v9320 = vmax.f32 %v9273, 0.0
  %v9321 = vmax.f32 %v9276, 0.0
  %v9322 = vmax.f32 %v9279, 0.0
  %v9323 = vmax.f32 %v9282, 0.0
  %v9324 = vmax.f32 %v9285, 0.0
  %v9325 = vmax.f32 %v9288, 0.0
  %v9326 = vmax.f32 %v9291, 0.0
  %v9327 = vmax.f32 %v9294, 0.0
  %v9328 = vpack.c.bf16 %v9296, %v9296
  %v9329 = vpack.c.bf16 %v9297, %v9297
  %v9330 = vpack.c.bf16 %v9298, %v9298
  %v9331 = vpack.c.bf16 %v9299, %v9299
  %v9332 = vpack.c.bf16 %v9300, %v9300
  %v9333 = vpack.c.bf16 %v9301, %v9301
  %v9334 = vpack.c.bf16 %v9302, %v9302
  %v9335 = vpack.c.bf16 %v9303, %v9303
  %v9336 = vpack.c.bf16 %v9304, %v9304
  %v9337 = vpack.c.bf16 %v9305, %v9305
  %v9338 = vpack.c.bf16 %v9306, %v9306
  %v9339 = vpack.c.bf16 %v9307, %v9307
  %v9340 = vpack.c.bf16 %v9308, %v9308
  %v9341 = vpack.c.bf16 %v9309, %v9309
  %v9342 = vpack.c.bf16 %v9310, %v9310
  %v9343 = vpack.c.bf16 %v9311, %v9311
  %v9344 = vpack.c.bf16 %v9312, %v9312
  %v9345 = vpack.c.bf16 %v9313, %v9313
  %v9346 = vpack.c.bf16 %v9314, %v9314
  %v9347 = vpack.c.bf16 %v9315, %v9315
  %v9348 = vpack.c.bf16 %v9316, %v9316
  %v9349 = vpack.c.bf16 %v9317, %v9317
  %v9350 = vpack.c.bf16 %v9318, %v9318
  %v9351 = vpack.c.bf16 %v9319, %v9319
  %v9352 = vpack.c.bf16 %v9320, %v9320
  %v9353 = vpack.c.bf16 %v9321, %v9321
  %v9354 = vpack.c.bf16 %v9322, %v9322
  %v9355 = vpack.c.bf16 %v9323, %v9323
  %v9356 = vpack.c.bf16 %v9324, %v9324
  %v9357 = vpack.c.bf16 %v9325, %v9325
  %v9358 = vpack.c.bf16 %v9326, %v9326
  %v9359 = vpack.c.bf16 %v9327, %v9327
  %v9392 = vunpack.c.l.b16 %v9328
  %v9393 = vunpack.c.l.b16 %v9329
  %v9394 = vunpack.c.l.b16 %v9330
  %v9395 = vunpack.c.l.b16 %v9331
  %v9396 = vunpack.c.l.b16 %v9332
  %v9397 = vunpack.c.l.b16 %v9333
  %v9398 = vunpack.c.l.b16 %v9334
  %v9399 = vunpack.c.l.b16 %v9335
  %v9400 = vunpack.c.l.b16 %v9336
  %v9401 = vunpack.c.l.b16 %v9337
  %v9402 = vunpack.c.l.b16 %v9338
  %v9403 = vunpack.c.l.b16 %v9339
  %v9404 = vunpack.c.l.b16 %v9340
  %v9405 = vunpack.c.l.b16 %v9341
  %v9406 = vunpack.c.l.b16 %v9342
  %v9407 = vunpack.c.l.b16 %v9343
  %v9408 = vunpack.c.l.b16 %v9344
  %v9409 = vunpack.c.l.b16 %v9345
  %v9410 = vunpack.c.l.b16 %v9346
  %v9411 = vunpack.c.l.b16 %v9347
  %v9412 = vunpack.c.l.b16 %v9348
  %v9413 = vunpack.c.l.b16 %v9349
  %v9414 = vunpack.c.l.b16 %v9350
  %v9415 = vunpack.c.l.b16 %v9351
  %v9416 = vunpack.c.l.b16 %v9352
  %v9417 = vunpack.c.l.b16 %v9353
  %v9418 = vunpack.c.l.b16 %v9354
  %v9419 = vunpack.c.l.b16 %v9355
  %v9420 = vunpack.c.l.b16 %v9356
  %v9421 = vunpack.c.l.b16 %v9357
  %v9422 = vunpack.c.l.b16 %v9358
  %v9423 = vunpack.c.l.b16 %v9359
  %v9424 = vpack.c.b16 %v9393, %v9392
  %v9425 = vpack.c.b16 %v9395, %v9394
  %v9426 = vpack.c.b16 %v9397, %v9396
  %v9427 = vpack.c.b16 %v9399, %v9398
  %v9428 = vpack.c.b16 %v9401, %v9400
  %v9429 = vpack.c.b16 %v9403, %v9402
  %v9430 = vpack.c.b16 %v9405, %v9404
  %v9431 = vpack.c.b16 %v9407, %v9406
  %v9432 = vpack.c.b16 %v9409, %v9408
  %v9433 = vpack.c.b16 %v9411, %v9410
  %v9434 = vpack.c.b16 %v9413, %v9412
  %v9435 = vpack.c.b16 %v9415, %v9414
  %v9436 = vpack.c.b16 %v9417, %v9416
  %v9437 = vpack.c.b16 %v9419, %v9418
  %v9438 = vpack.c.b16 %v9421, %v9420
  %v9439 = vpack.c.b16 %v9423, %v9422
  %9440 = vrot.lane.b32.xlu0 %v9424, 32
  %v9441 = vpop.permute.xlu0 %9440
  %9442 = vrot.lane.b32.xlu0 %v9425, 32
  %v9443 = vpop.permute.xlu0 %9442
  %9444 = vrot.lane.b32.xlu0 %v9426, 32
  %v9445 = vpop.permute.xlu0 %9444
  %9446 = vrot.lane.b32.xlu0 %v9427, 32
  %v9447 = vpop.permute.xlu0 %9446
  %9448 = vrot.lane.b32.xlu0 %v9428, 32
  %v9449 = vpop.permute.xlu0 %9448
  %9450 = vrot.lane.b32.xlu0 %v9429, 32
  %v9451 = vpop.permute.xlu0 %9450
  %9452 = vrot.lane.b32.xlu0 %v9430, 32
  %v9453 = vpop.permute.xlu0 %9452
  %9454 = vrot.lane.b32.xlu0 %v9431, 32
  %v9455 = vpop.permute.xlu0 %9454
  %9456 = vrot.lane.b32.xlu0 %v9432, 32
  %v9457 = vpop.permute.xlu0 %9456
  %9458 = vrot.lane.b32.xlu0 %v9433, 32
  %v9459 = vpop.permute.xlu0 %9458
  %9460 = vrot.lane.b32.xlu0 %v9434, 32
  %v9461 = vpop.permute.xlu0 %9460
  %9462 = vrot.lane.b32.xlu0 %v9435, 32
  %v9463 = vpop.permute.xlu0 %9462
  %9464 = vrot.lane.b32.xlu0 %v9436, 32
  %v9465 = vpop.permute.xlu0 %9464
  %9466 = vrot.lane.b32.xlu0 %v9437, 32
  %v9467 = vpop.permute.xlu0 %9466
  %9468 = vrot.lane.b32.xlu0 %v9438, 32
  %v9469 = vpop.permute.xlu0 %9468
  %9470 = vrot.lane.b32.xlu0 %v9439, 32
  %v9471 = vpop.permute.xlu0 %9470
  %9472 = vrot.lane.b32.xlu0 %v9426, 64
  %v9473 = vpop.permute.xlu0 %9472
  %9474 = vrot.lane.b32.xlu0 %v9427, 64
  %v9475 = vpop.permute.xlu0 %9474
  %9476 = vrot.lane.b32.xlu0 %v9428, 64
  %v9477 = vpop.permute.xlu0 %9476
  %9478 = vrot.lane.b32.xlu0 %v9429, 64
  %v9479 = vpop.permute.xlu0 %9478
  %9480 = vrot.lane.b32.xlu0 %v9430, 64
  %v9481 = vpop.permute.xlu0 %9480
  %9482 = vrot.lane.b32.xlu0 %v9431, 64
  %v9483 = vpop.permute.xlu0 %9482
  %9484 = vrot.lane.b32.xlu0 %v9432, 64
  %v9485 = vpop.permute.xlu0 %9484
  %9486 = vrot.lane.b32.xlu0 %v9433, 64
  %v9487 = vpop.permute.xlu0 %9486
  %9488 = vrot.lane.b32.xlu0 %v9434, 64
  %v9489 = vpop.permute.xlu0 %9488
  %9490 = vrot.lane.b32.xlu0 %v9435, 64
  %v9491 = vpop.permute.xlu0 %9490
  %9492 = vrot.lane.b32.xlu0 %v9436, 64
  %v9493 = vpop.permute.xlu0 %9492
  %9494 = vrot.lane.b32.xlu0 %v9437, 64
  %v9495 = vpop.permute.xlu0 %9494
  %9496 = vrot.lane.b32.xlu0 %v9438, 64
  %v9497 = vpop.permute.xlu0 %9496
  %9498 = vrot.lane.b32.xlu0 %v9439, 64
  %v9499 = vpop.permute.xlu0 %9498
  %v9501 = vsel %vm2031, 0, %v9441
  %v9503 = vsel %vm2031, 0, %v9443
  %v9506 = vsel %vm2031, %v9424, %v9445
  %v9509 = vsel %vm2031, %v9425, %v9447
  %v9512 = vsel %vm2031, %v9426, %v9449
  %v9515 = vsel %vm2031, %v9427, %v9451
  %v9518 = vsel %vm2031, %v9428, %v9453
  %v9521 = vsel %vm2031, %v9429, %v9455
  %v9524 = vsel %vm2031, %v9430, %v9457
  %v9527 = vsel %vm2031, %v9431, %v9459
  %v9530 = vsel %vm2031, %v9432, %v9461
  %v9533 = vsel %vm2031, %v9433, %v9463
  %v9536 = vsel %vm2031, %v9434, %v9465
  %v9539 = vsel %vm2031, %v9435, %v9467
  %v9542 = vsel %vm2031, %v9436, %v9469
  %v9545 = vsel %vm2031, %v9437, %v9471
  %v9547 = vsel %vm2064, %v9501, %v9473
  %v9549 = vsel %vm2064, %v9503, %v9475
  %v9551 = vsel %vm2064, %v9506, %v9477
  %v9553 = vsel %vm2064, %v9509, %v9479
  %v9555 = vsel %vm2064, %v9512, %v9481
  %v9557 = vsel %vm2064, %v9515, %v9483
  %v9559 = vsel %vm2064, %v9518, %v9485
  %v9561 = vsel %vm2064, %v9521, %v9487
  %v9563 = vsel %vm2064, %v9524, %v9489
  %v9565 = vsel %vm2064, %v9527, %v9491
  %v9567 = vsel %vm2064, %v9530, %v9493
  %v9569 = vsel %vm2064, %v9533, %v9495
  %v9571 = vsel %vm2064, %v9536, %v9497
  %v9573 = vsel %vm2064, %v9539, %v9499
  %v9574 = vsel %vm2064, %v9542, %v2540
  %v9575 = vsel %vm2064, %v9545, %v2540
  %v9576 = vld [vmem:[%s18] sm:$0xf]
  %v9577 = vld [vmem:[%s18 + $0x4] sm:$0xf]
  %v9578 = vld [vmem:[%s18 + $0x8] sm:$0xf]
  %v9579 = vld [vmem:[%s18 + $0xc] sm:$0xf]
  %v9580 = vld [vmem:[%s18 + $0x10] sm:$0xf]
  %v9581 = vld [vmem:[%s18 + $0x14] sm:$0xf]
  %v9582 = vld [vmem:[%s18 + $0x18] sm:$0xf]
  %v9583 = vld [vmem:[%s18 + $0x1c] sm:$0xf]
  %v9584 = vld [vmem:[%s18 + $0x20] sm:$0xf]
  %v9585 = vld [vmem:[%s18 + $0x24] sm:$0xf]
  %v9586 = vld [vmem:[%s18 + $0x28] sm:$0xf]
  %v9587 = vld [vmem:[%s18 + $0x2c] sm:$0xf]
  %v9588 = vld [vmem:[%s19] sm:$0x1]
  %v9590 = vperm.slane %v9588, 0
  %v9604 = vunpack.c.l.b16 %v9576
  %v9605 = vunpack.c.l.b16 %v9577
  %v9606 = vunpack.c.l.b16 %v9578
  %v9607 = vunpack.c.l.b16 %v9579
  %v9608 = vunpack.c.l.b16 %v9580
  %v9609 = vunpack.c.l.b16 %v9581
  %v9610 = vunpack.c.l.b16 %v9582
  %v9611 = vunpack.c.l.b16 %v9583
  %v9612 = vunpack.c.l.b16 %v9584
  %v9613 = vunpack.c.l.b16 %v9585
  %v9614 = vunpack.c.l.b16 %v9586
  %v9615 = vunpack.c.l.b16 %v9587
  %v9616 = vpack.c.b16 %v9605, %v9604
  %v9617 = vpack.c.b16 %v9607, %v9606
  %v9618 = vpack.c.b16 %v9609, %v9608
  %v9619 = vpack.c.b16 %v9611, %v9610
  %v9620 = vpack.c.b16 %v9613, %v9612
  %v9621 = vpack.c.b16 %v9615, %v9614
  %v9628 = vsel %vm2125, %v9547, 0
  %v9630 = vsel %vm2125, %v9549, 0
  %v9632 = vsel %vm2125, %v9551, 0
  %v9634 = vsel %vm2125, %v9553, 0
  %v9636 = vsel %vm2125, %v9555, 0
  %v9638 = vsel %vm2125, %v9557, 0
  %v9640 = vsel %vm2125, %v9559, 0
  %v9642 = vsel %vm2125, %v9561, 0
  %v9644 = vsel %vm2125, %v9563, 0
  %v9646 = vsel %vm2125, %v9565, 0
  %v9648 = vsel %vm2125, %v9567, 0
  %v9650 = vsel %vm2125, %v9569, 0
  %v9652 = vsel %vm2125, %v9571, 0
  %v9654 = vsel %vm2125, %v9573, 0
  %v9656 = vsel %vm2125, %v9574, 0
  %v9658 = vsel %vm2125, %v9575, 0
  %9660 = vmatpush.bf16.msra.mxu0 0
  %9661 = vmatpush.bf16.msra.mxu0 0
  %9662 = vmatpush.bf16.msra.mxu0 %v9621
  %9663 = vmatpush.bf16.msra.mxu0 %v9620
  %9664 = vmatpush.bf16.msra.mxu0 %v9619
  %9665 = vmatpush.bf16.msra.mxu0 %v9618
  %9666 = vmatpush.bf16.msra.mxu0 %v9617
  %9667 = vmatpush.bf16.msra.mxu0 %v9616
  %9668 = vmatmul.bf16.gmra.mxu0 %v9628
  %v9669 = vpop.f32.mrf.mxu0
  %v9670 = vadd.f32 %v9590, %v9669
  %v9671 = vpop.f32.mrf.mxu0
  %v9672 = vadd.f32 %v9590, %v9671
  %9673 = vmatmul.bf16.gmra.mxu0 %v9630
  %v9674 = vpop.f32.mrf.mxu0
  %v9675 = vadd.f32 %v9590, %v9674
  %v9676 = vpop.f32.mrf.mxu0
  %v9677 = vadd.f32 %v9590, %v9676
  %9678 = vmatmul.bf16.gmra.mxu0 %v9632
  %v9679 = vpop.f32.mrf.mxu0
  %v9680 = vadd.f32 %v9590, %v9679
  %v9681 = vpop.f32.mrf.mxu0
  %v9682 = vadd.f32 %v9590, %v9681
  %9683 = vmatmul.bf16.gmra.mxu0 %v9634
  %v9684 = vpop.f32.mrf.mxu0
  %v9685 = vadd.f32 %v9590, %v9684
  %v9686 = vpop.f32.mrf.mxu0
  %v9687 = vadd.f32 %v9590, %v9686
  %9688 = vmatmul.bf16.gmra.mxu0 %v9636
  %v9689 = vpop.f32.mrf.mxu0
  %v9690 = vadd.f32 %v9590, %v9689
  %v9691 = vpop.f32.mrf.mxu0
  %v9692 = vadd.f32 %v9590, %v9691
  %9693 = vmatmul.bf16.gmra.mxu0 %v9638
  %v9694 = vpop.f32.mrf.mxu0
  %v9695 = vadd.f32 %v9590, %v9694
  %v9696 = vpop.f32.mrf.mxu0
  %v9697 = vadd.f32 %v9590, %v9696
  %9698 = vmatmul.bf16.gmra.mxu0 %v9640
  %v9699 = vpop.f32.mrf.mxu0
  %v9700 = vadd.f32 %v9590, %v9699
  %v9701 = vpop.f32.mrf.mxu0
  %v9702 = vadd.f32 %v9590, %v9701
  %9703 = vmatmul.bf16.gmra.mxu0 %v9642
  %v9704 = vpop.f32.mrf.mxu0
  %v9705 = vadd.f32 %v9590, %v9704
  %v9706 = vpop.f32.mrf.mxu0
  %v9707 = vadd.f32 %v9590, %v9706
  %9708 = vmatmul.bf16.gmra.mxu0 %v9644
  %v9709 = vpop.f32.mrf.mxu0
  %v9710 = vadd.f32 %v9590, %v9709
  %v9711 = vpop.f32.mrf.mxu0
  %v9712 = vadd.f32 %v9590, %v9711
  %9713 = vmatmul.bf16.gmra.mxu0 %v9646
  %v9714 = vpop.f32.mrf.mxu0
  %v9715 = vadd.f32 %v9590, %v9714
  %v9716 = vpop.f32.mrf.mxu0
  %v9717 = vadd.f32 %v9590, %v9716
  %9718 = vmatmul.bf16.gmra.mxu0 %v9648
  %v9719 = vpop.f32.mrf.mxu0
  %v9720 = vadd.f32 %v9590, %v9719
  %v9721 = vpop.f32.mrf.mxu0
  %v9722 = vadd.f32 %v9590, %v9721
  %9723 = vmatmul.bf16.gmra.mxu0 %v9650
  %v9724 = vpop.f32.mrf.mxu0
  %v9725 = vadd.f32 %v9590, %v9724
  %v9726 = vpop.f32.mrf.mxu0
  %v9727 = vadd.f32 %v9590, %v9726
  %9728 = vmatmul.bf16.gmra.mxu0 %v9652
  %v9729 = vpop.f32.mrf.mxu0
  %v9730 = vadd.f32 %v9590, %v9729
  %v9731 = vpop.f32.mrf.mxu0
  %v9732 = vadd.f32 %v9590, %v9731
  %9733 = vmatmul.bf16.gmra.mxu0 %v9654
  %v9734 = vpop.f32.mrf.mxu0
  %v9735 = vadd.f32 %v9590, %v9734
  %v9736 = vpop.f32.mrf.mxu0
  %v9737 = vadd.f32 %v9590, %v9736
  %9738 = vmatmul.bf16.gmra.mxu0 %v9656
  %v9739 = vpop.f32.mrf.mxu0
  %v9740 = vadd.f32 %v9590, %v9739
  %v9741 = vpop.f32.mrf.mxu0
  %v9742 = vadd.f32 %v9590, %v9741
  %9743 = vmatmul.bf16.gmra.mxu0 %v9658
  %v9744 = vpop.f32.mrf.mxu0
  %v9745 = vadd.f32 %v9590, %v9744
  %v9746 = vpop.f32.mrf.mxu0
  %v9747 = vadd.f32 %v9590, %v9746
  %9748 = vdwg.mxu0
  %v9749 = vxor.u32 %v9670, 2147483648
  %v9750 = vxor.u32 %v9672, 2147483648
  %v9751 = vxor.u32 %v9675, 2147483648
  %v9752 = vxor.u32 %v9677, 2147483648
  %v9753 = vxor.u32 %v9680, 2147483648
  %v9754 = vxor.u32 %v9682, 2147483648
  %v9755 = vxor.u32 %v9685, 2147483648
  %v9756 = vxor.u32 %v9687, 2147483648
  %v9757 = vxor.u32 %v9690, 2147483648
  %v9758 = vxor.u32 %v9692, 2147483648
  %v9759 = vxor.u32 %v9695, 2147483648
  %v9760 = vxor.u32 %v9697, 2147483648
  %v9761 = vxor.u32 %v9700, 2147483648
  %v9762 = vxor.u32 %v9702, 2147483648
  %v9763 = vxor.u32 %v9705, 2147483648
  %v9764 = vxor.u32 %v9707, 2147483648
  %v9765 = vxor.u32 %v9710, 2147483648
  %v9766 = vxor.u32 %v9712, 2147483648
  %v9767 = vxor.u32 %v9715, 2147483648
  %v9768 = vxor.u32 %v9717, 2147483648
  %v9769 = vxor.u32 %v9720, 2147483648
  %v9770 = vxor.u32 %v9722, 2147483648
  %v9771 = vxor.u32 %v9725, 2147483648
  %v9772 = vxor.u32 %v9727, 2147483648
  %v9773 = vxor.u32 %v9730, 2147483648
  %v9774 = vxor.u32 %v9732, 2147483648
  %v9775 = vxor.u32 %v9735, 2147483648
  %v9776 = vxor.u32 %v9737, 2147483648
  %v9777 = vxor.u32 %v9740, 2147483648
  %v9778 = vxor.u32 %v9742, 2147483648
  %v9779 = vxor.u32 %v9745, 2147483648
  %v9780 = vxor.u32 %v9747, 2147483648
  %v9781 = vmul.f32 %v9749, 1.442695
  %v9782 = vpow.pop %v9781
  %v9783 = vmul.f32 %v9750, 1.442695
  %v9784 = vpow.pop %v9783
  %v9785 = vmul.f32 %v9751, 1.442695
  %v9786 = vpow.pop %v9785
  %v9787 = vmul.f32 %v9752, 1.442695
  %v9788 = vpow.pop %v9787
  %v9789 = vmul.f32 %v9753, 1.442695
  %v9790 = vpow.pop %v9789
  %v9791 = vmul.f32 %v9754, 1.442695
  %v9792 = vpow.pop %v9791
  %v9793 = vmul.f32 %v9755, 1.442695
  %v9794 = vpow.pop %v9793
  %v9795 = vmul.f32 %v9756, 1.442695
  %v9796 = vpow.pop %v9795
  %v9797 = vmul.f32 %v9757, 1.442695
  %v9798 = vpow.pop %v9797
  %v9799 = vmul.f32 %v9758, 1.442695
  %v9800 = vpow.pop %v9799
  %v9801 = vmul.f32 %v9759, 1.442695
  %v9802 = vpow.pop %v9801
  %v9803 = vmul.f32 %v9760, 1.442695
  %v9804 = vpow.pop %v9803
  %v9805 = vmul.f32 %v9761, 1.442695
  %v9806 = vpow.pop %v9805
  %v9807 = vmul.f32 %v9762, 1.442695
  %v9808 = vpow.pop %v9807
  %v9809 = vmul.f32 %v9763, 1.442695
  %v9810 = vpow.pop %v9809
  %v9811 = vmul.f32 %v9764, 1.442695
  %v9812 = vpow.pop %v9811
  %v9813 = vmul.f32 %v9765, 1.442695
  %v9814 = vpow.pop %v9813
  %v9815 = vmul.f32 %v9766, 1.442695
  %v9816 = vpow.pop %v9815
  %v9817 = vmul.f32 %v9767, 1.442695
  %v9818 = vpow.pop %v9817
  %v9819 = vmul.f32 %v9768, 1.442695
  %v9820 = vpow.pop %v9819
  %v9821 = vmul.f32 %v9769, 1.442695
  %v9822 = vpow.pop %v9821
  %v9823 = vmul.f32 %v9770, 1.442695
  %v9824 = vpow.pop %v9823
  %v9825 = vmul.f32 %v9771, 1.442695
  %v9826 = vpow.pop %v9825
  %v9827 = vmul.f32 %v9772, 1.442695
  %v9828 = vpow.pop %v9827
  %v9829 = vmul.f32 %v9773, 1.442695
  %v9830 = vpow.pop %v9829
  %v9831 = vmul.f32 %v9774, 1.442695
  %v9832 = vpow.pop %v9831
  %v9833 = vmul.f32 %v9775, 1.442695
  %v9834 = vpow.pop %v9833
  %v9835 = vmul.f32 %v9776, 1.442695
  %v9836 = vpow.pop %v9835
  %v9837 = vmul.f32 %v9777, 1.442695
  %v9838 = vpow.pop %v9837
  %v9839 = vmul.f32 %v9778, 1.442695
  %v9840 = vpow.pop %v9839
  %v9841 = vmul.f32 %v9779, 1.442695
  %v9842 = vpow.pop %v9841
  %v9843 = vmul.f32 %v9780, 1.442695
  %v9844 = vpow.pop %v9843
  %v9845 = vadd.f32 %v9782, 1.0
  %v9846 = vadd.f32 %v9784, 1.0
  %v9847 = vadd.f32 %v9786, 1.0
  %v9848 = vadd.f32 %v9788, 1.0
  %v9849 = vadd.f32 %v9790, 1.0
  %v9850 = vadd.f32 %v9792, 1.0
  %v9851 = vadd.f32 %v9794, 1.0
  %v9852 = vadd.f32 %v9796, 1.0
  %v9853 = vadd.f32 %v9798, 1.0
  %v9854 = vadd.f32 %v9800, 1.0
  %v9855 = vadd.f32 %v9802, 1.0
  %v9856 = vadd.f32 %v9804, 1.0
  %v9857 = vadd.f32 %v9806, 1.0
  %v9858 = vadd.f32 %v9808, 1.0
  %v9859 = vadd.f32 %v9810, 1.0
  %v9860 = vadd.f32 %v9812, 1.0
  %v9861 = vadd.f32 %v9814, 1.0
  %v9862 = vadd.f32 %v9816, 1.0
  %v9863 = vadd.f32 %v9818, 1.0
  %v9864 = vadd.f32 %v9820, 1.0
  %v9865 = vadd.f32 %v9822, 1.0
  %v9866 = vadd.f32 %v9824, 1.0
  %v9867 = vadd.f32 %v9826, 1.0
  %v9868 = vadd.f32 %v9828, 1.0
  %v9869 = vadd.f32 %v9830, 1.0
  %v9870 = vadd.f32 %v9832, 1.0
  %v9871 = vadd.f32 %v9834, 1.0
  %v9872 = vadd.f32 %v9836, 1.0
  %v9873 = vadd.f32 %v9838, 1.0
  %v9874 = vadd.f32 %v9840, 1.0
  %v9875 = vadd.f32 %v9842, 1.0
  %v9876 = vadd.f32 %v9844, 1.0
  %v9877 = vrcp.pop %v9845
  %v9878 = vmul.f32 %v9845, %v9877
  %v9879 = vsub.f32 1.0, %v9878
  %v9880 = vmul.f32 %v9877, %v9879
  %v9881 = vadd.f32 %v9877, %v9880
  %vm9882 = vweird.f32 %v9845
  %vm9883 = vweird.f32 %v9877
  %vm9884 = vmor %vm9882, %vm9883
  %v9885 = vsel %vm9884, %v9877, %v9881
  %v9886 = vand.u32 2147483647, %v9845
  %vm9887 = vcmp.eq.f32.partialorder %v9886, 8.507059e+37
  %v9888 = vand.u32 %v9845, 2147483648
  %v9889 = vor.u32 1.1754944e-38, %v9888
  %v9890 = vsel %vm9887, %v9889, %v9885
  %v9891 = vmul.f32 1.0, %v9890
  %v9892 = vrcp.pop %v9846
  %v9893 = vmul.f32 %v9846, %v9892
  %v9894 = vsub.f32 1.0, %v9893
  %v9895 = vmul.f32 %v9892, %v9894
  %v9896 = vadd.f32 %v9892, %v9895
  %vm9897 = vweird.f32 %v9846
  %vm9898 = vweird.f32 %v9892
  %vm9899 = vmor %vm9897, %vm9898
  %v9900 = vsel %vm9899, %v9892, %v9896
  %v9901 = vand.u32 2147483647, %v9846
  %vm9902 = vcmp.eq.f32.partialorder %v9901, 8.507059e+37
  %v9903 = vand.u32 %v9846, 2147483648
  %v9904 = vor.u32 1.1754944e-38, %v9903
  %v9905 = vsel %vm9902, %v9904, %v9900
  %v9906 = vmul.f32 1.0, %v9905
  %v9907 = vrcp.pop %v9847
  %v9908 = vmul.f32 %v9847, %v9907
  %v9909 = vsub.f32 1.0, %v9908
  %v9910 = vmul.f32 %v9907, %v9909
  %v9911 = vadd.f32 %v9907, %v9910
  %vm9912 = vweird.f32 %v9847
  %vm9913 = vweird.f32 %v9907
  %vm9914 = vmor %vm9912, %vm9913
  %v9915 = vsel %vm9914, %v9907, %v9911
  %v9916 = vand.u32 2147483647, %v9847
  %vm9917 = vcmp.eq.f32.partialorder %v9916, 8.507059e+37
  %v9918 = vand.u32 %v9847, 2147483648
  %v9919 = vor.u32 1.1754944e-38, %v9918
  %v9920 = vsel %vm9917, %v9919, %v9915
  %v9921 = vmul.f32 1.0, %v9920
  %v9922 = vrcp.pop %v9848
  %v9923 = vmul.f32 %v9848, %v9922
  %v9924 = vsub.f32 1.0, %v9923
  %v9925 = vmul.f32 %v9922, %v9924
  %v9926 = vadd.f32 %v9922, %v9925
  %vm9927 = vweird.f32 %v9848
  %vm9928 = vweird.f32 %v9922
  %vm9929 = vmor %vm9927, %vm9928
  %v9930 = vsel %vm9929, %v9922, %v9926
  %v9931 = vand.u32 2147483647, %v9848
  %vm9932 = vcmp.eq.f32.partialorder %v9931, 8.507059e+37
  %v9933 = vand.u32 %v9848, 2147483648
  %v9934 = vor.u32 1.1754944e-38, %v9933
  %v9935 = vsel %vm9932, %v9934, %v9930
  %v9936 = vmul.f32 1.0, %v9935
  %v9937 = vrcp.pop %v9849
  %v9938 = vmul.f32 %v9849, %v9937
  %v9939 = vsub.f32 1.0, %v9938
  %v9940 = vmul.f32 %v9937, %v9939
  %v9941 = vadd.f32 %v9937, %v9940
  %vm9942 = vweird.f32 %v9849
  %vm9943 = vweird.f32 %v9937
  %vm9944 = vmor %vm9942, %vm9943
  %v9945 = vsel %vm9944, %v9937, %v9941
  %v9946 = vand.u32 2147483647, %v9849
  %vm9947 = vcmp.eq.f32.partialorder %v9946, 8.507059e+37
  %v9948 = vand.u32 %v9849, 2147483648
  %v9949 = vor.u32 1.1754944e-38, %v9948
  %v9950 = vsel %vm9947, %v9949, %v9945
  %v9951 = vmul.f32 1.0, %v9950
  %v9952 = vrcp.pop %v9850
  %v9953 = vmul.f32 %v9850, %v9952
  %v9954 = vsub.f32 1.0, %v9953
  %v9955 = vmul.f32 %v9952, %v9954
  %v9956 = vadd.f32 %v9952, %v9955
  %vm9957 = vweird.f32 %v9850
  %vm9958 = vweird.f32 %v9952
  %vm9959 = vmor %vm9957, %vm9958
  %v9960 = vsel %vm9959, %v9952, %v9956
  %v9961 = vand.u32 2147483647, %v9850
  %vm9962 = vcmp.eq.f32.partialorder %v9961, 8.507059e+37
  %v9963 = vand.u32 %v9850, 2147483648
  %v9964 = vor.u32 1.1754944e-38, %v9963
  %v9965 = vsel %vm9962, %v9964, %v9960
  %v9966 = vmul.f32 1.0, %v9965
  %v9967 = vrcp.pop %v9851
  %v9968 = vmul.f32 %v9851, %v9967
  %v9969 = vsub.f32 1.0, %v9968
  %v9970 = vmul.f32 %v9967, %v9969
  %v9971 = vadd.f32 %v9967, %v9970
  %vm9972 = vweird.f32 %v9851
  %vm9973 = vweird.f32 %v9967
  %vm9974 = vmor %vm9972, %vm9973
  %v9975 = vsel %vm9974, %v9967, %v9971
  %v9976 = vand.u32 2147483647, %v9851
  %vm9977 = vcmp.eq.f32.partialorder %v9976, 8.507059e+37
  %v9978 = vand.u32 %v9851, 2147483648
  %v9979 = vor.u32 1.1754944e-38, %v9978
  %v9980 = vsel %vm9977, %v9979, %v9975
  %v9981 = vmul.f32 1.0, %v9980
  %v9982 = vrcp.pop %v9852
  %v9983 = vmul.f32 %v9852, %v9982
  %v9984 = vsub.f32 1.0, %v9983
  %v9985 = vmul.f32 %v9982, %v9984
  %v9986 = vadd.f32 %v9982, %v9985
  %vm9987 = vweird.f32 %v9852
  %vm9988 = vweird.f32 %v9982
  %vm9989 = vmor %vm9987, %vm9988
  %v9990 = vsel %vm9989, %v9982, %v9986
  %v9991 = vand.u32 2147483647, %v9852
  %vm9992 = vcmp.eq.f32.partialorder %v9991, 8.507059e+37
  %v9993 = vand.u32 %v9852, 2147483648
  %v9994 = vor.u32 1.1754944e-38, %v9993
  %v9995 = vsel %vm9992, %v9994, %v9990
  %v9996 = vmul.f32 1.0, %v9995
  %v9997 = vrcp.pop %v9853
  %v9998 = vmul.f32 %v9853, %v9997
  %v9999 = vsub.f32 1.0, %v9998
  %v10000 = vmul.f32 %v9997, %v9999
  %v10001 = vadd.f32 %v9997, %v10000
  %vm10002 = vweird.f32 %v9853
  %vm10003 = vweird.f32 %v9997
  %vm10004 = vmor %vm10002, %vm10003
  %v10005 = vsel %vm10004, %v9997, %v10001
  %v10006 = vand.u32 2147483647, %v9853
  %vm10007 = vcmp.eq.f32.partialorder %v10006, 8.507059e+37
  %v10008 = vand.u32 %v9853, 2147483648
  %v10009 = vor.u32 1.1754944e-38, %v10008
  %v10010 = vsel %vm10007, %v10009, %v10005
  %v10011 = vmul.f32 1.0, %v10010
  %v10012 = vrcp.pop %v9854
  %v10013 = vmul.f32 %v9854, %v10012
  %v10014 = vsub.f32 1.0, %v10013
  %v10015 = vmul.f32 %v10012, %v10014
  %v10016 = vadd.f32 %v10012, %v10015
  %vm10017 = vweird.f32 %v9854
  %vm10018 = vweird.f32 %v10012
  %vm10019 = vmor %vm10017, %vm10018
  %v10020 = vsel %vm10019, %v10012, %v10016
  %v10021 = vand.u32 2147483647, %v9854
  %vm10022 = vcmp.eq.f32.partialorder %v10021, 8.507059e+37
  %v10023 = vand.u32 %v9854, 2147483648
  %v10024 = vor.u32 1.1754944e-38, %v10023
  %v10025 = vsel %vm10022, %v10024, %v10020
  %v10026 = vmul.f32 1.0, %v10025
  %v10027 = vrcp.pop %v9855
  %v10028 = vmul.f32 %v9855, %v10027
  %v10029 = vsub.f32 1.0, %v10028
  %v10030 = vmul.f32 %v10027, %v10029
  %v10031 = vadd.f32 %v10027, %v10030
  %vm10032 = vweird.f32 %v9855
  %vm10033 = vweird.f32 %v10027
  %vm10034 = vmor %vm10032, %vm10033
  %v10035 = vsel %vm10034, %v10027, %v10031
  %v10036 = vand.u32 2147483647, %v9855
  %vm10037 = vcmp.eq.f32.partialorder %v10036, 8.507059e+37
  %v10038 = vand.u32 %v9855, 2147483648
  %v10039 = vor.u32 1.1754944e-38, %v10038
  %v10040 = vsel %vm10037, %v10039, %v10035
  %v10041 = vmul.f32 1.0, %v10040
  %v10042 = vrcp.pop %v9856
  %v10043 = vmul.f32 %v9856, %v10042
  %v10044 = vsub.f32 1.0, %v10043
  %v10045 = vmul.f32 %v10042, %v10044
  %v10046 = vadd.f32 %v10042, %v10045
  %vm10047 = vweird.f32 %v9856
  %vm10048 = vweird.f32 %v10042
  %vm10049 = vmor %vm10047, %vm10048
  %v10050 = vsel %vm10049, %v10042, %v10046
  %v10051 = vand.u32 2147483647, %v9856
  %vm10052 = vcmp.eq.f32.partialorder %v10051, 8.507059e+37
  %v10053 = vand.u32 %v9856, 2147483648
  %v10054 = vor.u32 1.1754944e-38, %v10053
  %v10055 = vsel %vm10052, %v10054, %v10050
  %v10056 = vmul.f32 1.0, %v10055
  %v10057 = vrcp.pop %v9857
  %v10058 = vmul.f32 %v9857, %v10057
  %v10059 = vsub.f32 1.0, %v10058
  %v10060 = vmul.f32 %v10057, %v10059
  %v10061 = vadd.f32 %v10057, %v10060
  %vm10062 = vweird.f32 %v9857
  %vm10063 = vweird.f32 %v10057
  %vm10064 = vmor %vm10062, %vm10063
  %v10065 = vsel %vm10064, %v10057, %v10061
  %v10066 = vand.u32 2147483647, %v9857
  %vm10067 = vcmp.eq.f32.partialorder %v10066, 8.507059e+37
  %v10068 = vand.u32 %v9857, 2147483648
  %v10069 = vor.u32 1.1754944e-38, %v10068
  %v10070 = vsel %vm10067, %v10069, %v10065
  %v10071 = vmul.f32 1.0, %v10070
  %v10072 = vrcp.pop %v9858
  %v10073 = vmul.f32 %v9858, %v10072
  %v10074 = vsub.f32 1.0, %v10073
  %v10075 = vmul.f32 %v10072, %v10074
  %v10076 = vadd.f32 %v10072, %v10075
  %vm10077 = vweird.f32 %v9858
  %vm10078 = vweird.f32 %v10072
  %vm10079 = vmor %vm10077, %vm10078
  %v10080 = vsel %vm10079, %v10072, %v10076
  %v10081 = vand.u32 2147483647, %v9858
  %vm10082 = vcmp.eq.f32.partialorder %v10081, 8.507059e+37
  %v10083 = vand.u32 %v9858, 2147483648
  %v10084 = vor.u32 1.1754944e-38, %v10083
  %v10085 = vsel %vm10082, %v10084, %v10080
  %v10086 = vmul.f32 1.0, %v10085
  %v10087 = vrcp.pop %v9859
  %v10088 = vmul.f32 %v9859, %v10087
  %v10089 = vsub.f32 1.0, %v10088
  %v10090 = vmul.f32 %v10087, %v10089
  %v10091 = vadd.f32 %v10087, %v10090
  %vm10092 = vweird.f32 %v9859
  %vm10093 = vweird.f32 %v10087
  %vm10094 = vmor %vm10092, %vm10093
  %v10095 = vsel %vm10094, %v10087, %v10091
  %v10096 = vand.u32 2147483647, %v9859
  %vm10097 = vcmp.eq.f32.partialorder %v10096, 8.507059e+37
  %v10098 = vand.u32 %v9859, 2147483648
  %v10099 = vor.u32 1.1754944e-38, %v10098
  %v10100 = vsel %vm10097, %v10099, %v10095
  %v10101 = vmul.f32 1.0, %v10100
  %v10102 = vrcp.pop %v9860
  %v10103 = vmul.f32 %v9860, %v10102
  %v10104 = vsub.f32 1.0, %v10103
  %v10105 = vmul.f32 %v10102, %v10104
  %v10106 = vadd.f32 %v10102, %v10105
  %vm10107 = vweird.f32 %v9860
  %vm10108 = vweird.f32 %v10102
  %vm10109 = vmor %vm10107, %vm10108
  %v10110 = vsel %vm10109, %v10102, %v10106
  %v10111 = vand.u32 2147483647, %v9860
  %vm10112 = vcmp.eq.f32.partialorder %v10111, 8.507059e+37
  %v10113 = vand.u32 %v9860, 2147483648
  %v10114 = vor.u32 1.1754944e-38, %v10113
  %v10115 = vsel %vm10112, %v10114, %v10110
  %v10116 = vmul.f32 1.0, %v10115
  %v10117 = vrcp.pop %v9861
  %v10118 = vmul.f32 %v9861, %v10117
  %v10119 = vsub.f32 1.0, %v10118
  %v10120 = vmul.f32 %v10117, %v10119
  %v10121 = vadd.f32 %v10117, %v10120
  %vm10122 = vweird.f32 %v9861
  %vm10123 = vweird.f32 %v10117
  %vm10124 = vmor %vm10122, %vm10123
  %v10125 = vsel %vm10124, %v10117, %v10121
  %v10126 = vand.u32 2147483647, %v9861
  %vm10127 = vcmp.eq.f32.partialorder %v10126, 8.507059e+37
  %v10128 = vand.u32 %v9861, 2147483648
  %v10129 = vor.u32 1.1754944e-38, %v10128
  %v10130 = vsel %vm10127, %v10129, %v10125
  %v10131 = vmul.f32 1.0, %v10130
  %v10132 = vrcp.pop %v9862
  %v10133 = vmul.f32 %v9862, %v10132
  %v10134 = vsub.f32 1.0, %v10133
  %v10135 = vmul.f32 %v10132, %v10134
  %v10136 = vadd.f32 %v10132, %v10135
  %vm10137 = vweird.f32 %v9862
  %vm10138 = vweird.f32 %v10132
  %vm10139 = vmor %vm10137, %vm10138
  %v10140 = vsel %vm10139, %v10132, %v10136
  %v10141 = vand.u32 2147483647, %v9862
  %vm10142 = vcmp.eq.f32.partialorder %v10141, 8.507059e+37
  %v10143 = vand.u32 %v9862, 2147483648
  %v10144 = vor.u32 1.1754944e-38, %v10143
  %v10145 = vsel %vm10142, %v10144, %v10140
  %v10146 = vmul.f32 1.0, %v10145
  %v10147 = vrcp.pop %v9863
  %v10148 = vmul.f32 %v9863, %v10147
  %v10149 = vsub.f32 1.0, %v10148
  %v10150 = vmul.f32 %v10147, %v10149
  %v10151 = vadd.f32 %v10147, %v10150
  %vm10152 = vweird.f32 %v9863
  %vm10153 = vweird.f32 %v10147
  %vm10154 = vmor %vm10152, %vm10153
  %v10155 = vsel %vm10154, %v10147, %v10151
  %v10156 = vand.u32 2147483647, %v9863
  %vm10157 = vcmp.eq.f32.partialorder %v10156, 8.507059e+37
  %v10158 = vand.u32 %v9863, 2147483648
  %v10159 = vor.u32 1.1754944e-38, %v10158
  %v10160 = vsel %vm10157, %v10159, %v10155
  %v10161 = vmul.f32 1.0, %v10160
  %v10162 = vrcp.pop %v9864
  %v10163 = vmul.f32 %v9864, %v10162
  %v10164 = vsub.f32 1.0, %v10163
  %v10165 = vmul.f32 %v10162, %v10164
  %v10166 = vadd.f32 %v10162, %v10165
  %vm10167 = vweird.f32 %v9864
  %vm10168 = vweird.f32 %v10162
  %vm10169 = vmor %vm10167, %vm10168
  %v10170 = vsel %vm10169, %v10162, %v10166
  %v10171 = vand.u32 2147483647, %v9864
  %vm10172 = vcmp.eq.f32.partialorder %v10171, 8.507059e+37
  %v10173 = vand.u32 %v9864, 2147483648
  %v10174 = vor.u32 1.1754944e-38, %v10173
  %v10175 = vsel %vm10172, %v10174, %v10170
  %v10176 = vmul.f32 1.0, %v10175
  %v10177 = vrcp.pop %v9865
  %v10178 = vmul.f32 %v9865, %v10177
  %v10179 = vsub.f32 1.0, %v10178
  %v10180 = vmul.f32 %v10177, %v10179
  %v10181 = vadd.f32 %v10177, %v10180
  %vm10182 = vweird.f32 %v9865
  %vm10183 = vweird.f32 %v10177
  %vm10184 = vmor %vm10182, %vm10183
  %v10185 = vsel %vm10184, %v10177, %v10181
  %v10186 = vand.u32 2147483647, %v9865
  %vm10187 = vcmp.eq.f32.partialorder %v10186, 8.507059e+37
  %v10188 = vand.u32 %v9865, 2147483648
  %v10189 = vor.u32 1.1754944e-38, %v10188
  %v10190 = vsel %vm10187, %v10189, %v10185
  %v10191 = vmul.f32 1.0, %v10190
  %v10192 = vrcp.pop %v9866
  %v10193 = vmul.f32 %v9866, %v10192
  %v10194 = vsub.f32 1.0, %v10193
  %v10195 = vmul.f32 %v10192, %v10194
  %v10196 = vadd.f32 %v10192, %v10195
  %vm10197 = vweird.f32 %v9866
  %vm10198 = vweird.f32 %v10192
  %vm10199 = vmor %vm10197, %vm10198
  %v10200 = vsel %vm10199, %v10192, %v10196
  %v10201 = vand.u32 2147483647, %v9866
  %vm10202 = vcmp.eq.f32.partialorder %v10201, 8.507059e+37
  %v10203 = vand.u32 %v9866, 2147483648
  %v10204 = vor.u32 1.1754944e-38, %v10203
  %v10205 = vsel %vm10202, %v10204, %v10200
  %v10206 = vmul.f32 1.0, %v10205
  %v10207 = vrcp.pop %v9867
  %v10208 = vmul.f32 %v9867, %v10207
  %v10209 = vsub.f32 1.0, %v10208
  %v10210 = vmul.f32 %v10207, %v10209
  %v10211 = vadd.f32 %v10207, %v10210
  %vm10212 = vweird.f32 %v9867
  %vm10213 = vweird.f32 %v10207
  %vm10214 = vmor %vm10212, %vm10213
  %v10215 = vsel %vm10214, %v10207, %v10211
  %v10216 = vand.u32 2147483647, %v9867
  %vm10217 = vcmp.eq.f32.partialorder %v10216, 8.507059e+37
  %v10218 = vand.u32 %v9867, 2147483648
  %v10219 = vor.u32 1.1754944e-38, %v10218
  %v10220 = vsel %vm10217, %v10219, %v10215
  %v10221 = vmul.f32 1.0, %v10220
  %v10222 = vrcp.pop %v9868
  %v10223 = vmul.f32 %v9868, %v10222
  %v10224 = vsub.f32 1.0, %v10223
  %v10225 = vmul.f32 %v10222, %v10224
  %v10226 = vadd.f32 %v10222, %v10225
  %vm10227 = vweird.f32 %v9868
  %vm10228 = vweird.f32 %v10222
  %vm10229 = vmor %vm10227, %vm10228
  %v10230 = vsel %vm10229, %v10222, %v10226
  %v10231 = vand.u32 2147483647, %v9868
  %vm10232 = vcmp.eq.f32.partialorder %v10231, 8.507059e+37
  %v10233 = vand.u32 %v9868, 2147483648
  %v10234 = vor.u32 1.1754944e-38, %v10233
  %v10235 = vsel %vm10232, %v10234, %v10230
  %v10236 = vmul.f32 1.0, %v10235
  %v10237 = vrcp.pop %v9869
  %v10238 = vmul.f32 %v9869, %v10237
  %v10239 = vsub.f32 1.0, %v10238
  %v10240 = vmul.f32 %v10237, %v10239
  %v10241 = vadd.f32 %v10237, %v10240
  %vm10242 = vweird.f32 %v9869
  %vm10243 = vweird.f32 %v10237
  %vm10244 = vmor %vm10242, %vm10243
  %v10245 = vsel %vm10244, %v10237, %v10241
  %v10246 = vand.u32 2147483647, %v9869
  %vm10247 = vcmp.eq.f32.partialorder %v10246, 8.507059e+37
  %v10248 = vand.u32 %v9869, 2147483648
  %v10249 = vor.u32 1.1754944e-38, %v10248
  %v10250 = vsel %vm10247, %v10249, %v10245
  %v10251 = vmul.f32 1.0, %v10250
  %v10252 = vrcp.pop %v9870
  %v10253 = vmul.f32 %v9870, %v10252
  %v10254 = vsub.f32 1.0, %v10253
  %v10255 = vmul.f32 %v10252, %v10254
  %v10256 = vadd.f32 %v10252, %v10255
  %vm10257 = vweird.f32 %v9870
  %vm10258 = vweird.f32 %v10252
  %vm10259 = vmor %vm10257, %vm10258
  %v10260 = vsel %vm10259, %v10252, %v10256
  %v10261 = vand.u32 2147483647, %v9870
  %vm10262 = vcmp.eq.f32.partialorder %v10261, 8.507059e+37
  %v10263 = vand.u32 %v9870, 2147483648
  %v10264 = vor.u32 1.1754944e-38, %v10263
  %v10265 = vsel %vm10262, %v10264, %v10260
  %v10266 = vmul.f32 1.0, %v10265
  %v10267 = vrcp.pop %v9871
  %v10268 = vmul.f32 %v9871, %v10267
  %v10269 = vsub.f32 1.0, %v10268
  %v10270 = vmul.f32 %v10267, %v10269
  %v10271 = vadd.f32 %v10267, %v10270
  %vm10272 = vweird.f32 %v9871
  %vm10273 = vweird.f32 %v10267
  %vm10274 = vmor %vm10272, %vm10273
  %v10275 = vsel %vm10274, %v10267, %v10271
  %v10276 = vand.u32 2147483647, %v9871
  %vm10277 = vcmp.eq.f32.partialorder %v10276, 8.507059e+37
  %v10278 = vand.u32 %v9871, 2147483648
  %v10279 = vor.u32 1.1754944e-38, %v10278
  %v10280 = vsel %vm10277, %v10279, %v10275
  %v10281 = vmul.f32 1.0, %v10280
  %v10282 = vrcp.pop %v9872
  %v10283 = vmul.f32 %v9872, %v10282
  %v10284 = vsub.f32 1.0, %v10283
  %v10285 = vmul.f32 %v10282, %v10284
  %v10286 = vadd.f32 %v10282, %v10285
  %vm10287 = vweird.f32 %v9872
  %vm10288 = vweird.f32 %v10282
  %vm10289 = vmor %vm10287, %vm10288
  %v10290 = vsel %vm10289, %v10282, %v10286
  %v10291 = vand.u32 2147483647, %v9872
  %vm10292 = vcmp.eq.f32.partialorder %v10291, 8.507059e+37
  %v10293 = vand.u32 %v9872, 2147483648
  %v10294 = vor.u32 1.1754944e-38, %v10293
  %v10295 = vsel %vm10292, %v10294, %v10290
  %v10296 = vmul.f32 1.0, %v10295
  %v10297 = vrcp.pop %v9873
  %v10298 = vmul.f32 %v9873, %v10297
  %v10299 = vsub.f32 1.0, %v10298
  %v10300 = vmul.f32 %v10297, %v10299
  %v10301 = vadd.f32 %v10297, %v10300
  %vm10302 = vweird.f32 %v9873
  %vm10303 = vweird.f32 %v10297
  %vm10304 = vmor %vm10302, %vm10303
  %v10305 = vsel %vm10304, %v10297, %v10301
  %v10306 = vand.u32 2147483647, %v9873
  %vm10307 = vcmp.eq.f32.partialorder %v10306, 8.507059e+37
  %v10308 = vand.u32 %v9873, 2147483648
  %v10309 = vor.u32 1.1754944e-38, %v10308
  %v10310 = vsel %vm10307, %v10309, %v10305
  %v10311 = vmul.f32 1.0, %v10310
  %v10312 = vrcp.pop %v9874
  %v10313 = vmul.f32 %v9874, %v10312
  %v10314 = vsub.f32 1.0, %v10313
  %v10315 = vmul.f32 %v10312, %v10314
  %v10316 = vadd.f32 %v10312, %v10315
  %vm10317 = vweird.f32 %v9874
  %vm10318 = vweird.f32 %v10312
  %vm10319 = vmor %vm10317, %vm10318
  %v10320 = vsel %vm10319, %v10312, %v10316
  %v10321 = vand.u32 2147483647, %v9874
  %vm10322 = vcmp.eq.f32.partialorder %v10321, 8.507059e+37
  %v10323 = vand.u32 %v9874, 2147483648
  %v10324 = vor.u32 1.1754944e-38, %v10323
  %v10325 = vsel %vm10322, %v10324, %v10320
  %v10326 = vmul.f32 1.0, %v10325
  %v10327 = vrcp.pop %v9875
  %v10328 = vmul.f32 %v9875, %v10327
  %v10329 = vsub.f32 1.0, %v10328
  %v10330 = vmul.f32 %v10327, %v10329
  %v10331 = vadd.f32 %v10327, %v10330
  %vm10332 = vweird.f32 %v9875
  %vm10333 = vweird.f32 %v10327
  %vm10334 = vmor %vm10332, %vm10333
  %v10335 = vsel %vm10334, %v10327, %v10331
  %v10336 = vand.u32 2147483647, %v9875
  %vm10337 = vcmp.eq.f32.partialorder %v10336, 8.507059e+37
  %v10338 = vand.u32 %v9875, 2147483648
  %v10339 = vor.u32 1.1754944e-38, %v10338
  %v10340 = vsel %vm10337, %v10339, %v10335
  %v10341 = vmul.f32 1.0, %v10340
  %v10342 = vrcp.pop %v9876
  %v10343 = vmul.f32 %v9876, %v10342
  %v10344 = vsub.f32 1.0, %v10343
  %v10345 = vmul.f32 %v10342, %v10344
  %v10346 = vadd.f32 %v10342, %v10345
  %vm10347 = vweird.f32 %v9876
  %vm10348 = vweird.f32 %v10342
  %vm10349 = vmor %vm10347, %vm10348
  %v10350 = vsel %vm10349, %v10342, %v10346
  %v10351 = vand.u32 2147483647, %v9876
  %vm10352 = vcmp.eq.f32.partialorder %v10351, 8.507059e+37
  %v10353 = vand.u32 %v9876, 2147483648
  %v10354 = vor.u32 1.1754944e-38, %v10353
  %v10355 = vsel %vm10352, %v10354, %v10350
  %v10356 = vmul.f32 1.0, %v10355
  %10389 = vrot.lane.b32.xlu0 %v9891, 96
  %v10390 = vpop.permute.xlu0 %10389
  %10391 = vrot.lane.b32.xlu0 %v9906, 96
  %v10392 = vpop.permute.xlu0 %10391
  %10393 = vrot.lane.b32.xlu0 %v9921, 96
  %v10394 = vpop.permute.xlu0 %10393
  %10395 = vrot.lane.b32.xlu0 %v9936, 96
  %v10396 = vpop.permute.xlu0 %10395
  %10397 = vrot.lane.b32.xlu0 %v9951, 96
  %v10398 = vpop.permute.xlu0 %10397
  %10399 = vrot.lane.b32.xlu0 %v9966, 96
  %v10400 = vpop.permute.xlu0 %10399
  %10401 = vrot.lane.b32.xlu0 %v9981, 96
  %v10402 = vpop.permute.xlu0 %10401
  %10403 = vrot.lane.b32.xlu0 %v9996, 96
  %v10404 = vpop.permute.xlu0 %10403
  %10405 = vrot.lane.b32.xlu0 %v10011, 96
  %v10406 = vpop.permute.xlu0 %10405
  %10407 = vrot.lane.b32.xlu0 %v10026, 96
  %v10408 = vpop.permute.xlu0 %10407
  %10409 = vrot.lane.b32.xlu0 %v10041, 96
  %v10410 = vpop.permute.xlu0 %10409
  %10411 = vrot.lane.b32.xlu0 %v10056, 96
  %v10412 = vpop.permute.xlu0 %10411
  %10413 = vrot.lane.b32.xlu0 %v10071, 96
  %v10414 = vpop.permute.xlu0 %10413
  %10415 = vrot.lane.b32.xlu0 %v10086, 96
  %v10416 = vpop.permute.xlu0 %10415
  %10417 = vrot.lane.b32.xlu0 %v10101, 96
  %v10418 = vpop.permute.xlu0 %10417
  %10419 = vrot.lane.b32.xlu0 %v10116, 96
  %v10420 = vpop.permute.xlu0 %10419
  %10421 = vrot.lane.b32.xlu0 %v10131, 96
  %v10422 = vpop.permute.xlu0 %10421
  %10423 = vrot.lane.b32.xlu0 %v10146, 96
  %v10424 = vpop.permute.xlu0 %10423
  %10425 = vrot.lane.b32.xlu0 %v10161, 96
  %v10426 = vpop.permute.xlu0 %10425
  %10427 = vrot.lane.b32.xlu0 %v10176, 96
  %v10428 = vpop.permute.xlu0 %10427
  %10429 = vrot.lane.b32.xlu0 %v10191, 96
  %v10430 = vpop.permute.xlu0 %10429
  %10431 = vrot.lane.b32.xlu0 %v10206, 96
  %v10432 = vpop.permute.xlu0 %10431
  %10433 = vrot.lane.b32.xlu0 %v10221, 96
  %v10434 = vpop.permute.xlu0 %10433
  %10435 = vrot.lane.b32.xlu0 %v10236, 96
  %v10436 = vpop.permute.xlu0 %10435
  %10437 = vrot.lane.b32.xlu0 %v10251, 96
  %v10438 = vpop.permute.xlu0 %10437
  %10439 = vrot.lane.b32.xlu0 %v10266, 96
  %v10440 = vpop.permute.xlu0 %10439
  %10441 = vrot.lane.b32.xlu0 %v10281, 96
  %v10442 = vpop.permute.xlu0 %10441
  %10443 = vrot.lane.b32.xlu0 %v10296, 96
  %v10444 = vpop.permute.xlu0 %10443
  %10445 = vrot.lane.b32.xlu0 %v10311, 96
  %v10446 = vpop.permute.xlu0 %10445
  %10447 = vrot.lane.b32.xlu0 %v10326, 96
  %v10448 = vpop.permute.xlu0 %10447
  %10449 = vrot.lane.b32.xlu0 %v10341, 96
  %v10450 = vpop.permute.xlu0 %10449
  %10451 = vrot.lane.b32.xlu0 %v10356, 96
  %v10452 = vpop.permute.xlu0 %10451
  %v10485 = vmul.f32 %v9670, %v10390
  %v10486 = vmul.f32 %v9672, %v10392
  %v10487 = vmul.f32 %v9675, %v10394
  %v10488 = vmul.f32 %v9677, %v10396
  %v10489 = vmul.f32 %v9680, %v10398
  %v10490 = vmul.f32 %v9682, %v10400
  %v10491 = vmul.f32 %v9685, %v10402
  %v10492 = vmul.f32 %v9687, %v10404
  %v10493 = vmul.f32 %v9690, %v10406
  %v10494 = vmul.f32 %v9692, %v10408
  %v10495 = vmul.f32 %v9695, %v10410
  %v10496 = vmul.f32 %v9697, %v10412
  %v10497 = vmul.f32 %v9700, %v10414
  %v10498 = vmul.f32 %v9702, %v10416
  %v10499 = vmul.f32 %v9705, %v10418
  %v10500 = vmul.f32 %v9707, %v10420
  %v10501 = vmul.f32 %v9710, %v10422
  %v10502 = vmul.f32 %v9712, %v10424
  %v10503 = vmul.f32 %v9715, %v10426
  %v10504 = vmul.f32 %v9717, %v10428
  %v10505 = vmul.f32 %v9720, %v10430
  %v10506 = vmul.f32 %v9722, %v10432
  %v10507 = vmul.f32 %v9725, %v10434
  %v10508 = vmul.f32 %v9727, %v10436
  %v10509 = vmul.f32 %v9730, %v10438
  %v10510 = vmul.f32 %v9732, %v10440
  %v10511 = vmul.f32 %v9735, %v10442
  %v10512 = vmul.f32 %v9737, %v10444
  %v10513 = vmul.f32 %v9740, %v10446
  %v10514 = vmul.f32 %v9742, %v10448
  %v10515 = vmul.f32 %v9745, %v10450
  %v10516 = vmul.f32 %v9747, %v10452
  %v10517 = vpack.c.bf16 %v10485, %v10485
  %v10518 = vpack.c.bf16 %v10486, %v10486
  %v10519 = vpack.c.bf16 %v10487, %v10487
  %v10520 = vpack.c.bf16 %v10488, %v10488
  %v10521 = vpack.c.bf16 %v10489, %v10489
  %v10522 = vpack.c.bf16 %v10490, %v10490
  %v10523 = vpack.c.bf16 %v10491, %v10491
  %v10524 = vpack.c.bf16 %v10492, %v10492
  %v10525 = vpack.c.bf16 %v10493, %v10493
  %v10526 = vpack.c.bf16 %v10494, %v10494
  %v10527 = vpack.c.bf16 %v10495, %v10495
  %v10528 = vpack.c.bf16 %v10496, %v10496
  %v10529 = vpack.c.bf16 %v10497, %v10497
  %v10530 = vpack.c.bf16 %v10498, %v10498
  %v10531 = vpack.c.bf16 %v10499, %v10499
  %v10532 = vpack.c.bf16 %v10500, %v10500
  %v10533 = vpack.c.bf16 %v10501, %v10501
  %v10534 = vpack.c.bf16 %v10502, %v10502
  %v10535 = vpack.c.bf16 %v10503, %v10503
  %v10536 = vpack.c.bf16 %v10504, %v10504
  %v10537 = vpack.c.bf16 %v10505, %v10505
  %v10538 = vpack.c.bf16 %v10506, %v10506
  %v10539 = vpack.c.bf16 %v10507, %v10507
  %v10540 = vpack.c.bf16 %v10508, %v10508
  %v10541 = vpack.c.bf16 %v10509, %v10509
  %v10542 = vpack.c.bf16 %v10510, %v10510
  %v10543 = vpack.c.bf16 %v10511, %v10511
  %v10544 = vpack.c.bf16 %v10512, %v10512
  %v10545 = vpack.c.bf16 %v10513, %v10513
  %v10546 = vpack.c.bf16 %v10514, %v10514
  %v10547 = vpack.c.bf16 %v10515, %v10515
  %v10548 = vpack.c.bf16 %v10516, %v10516
  %v10553 = vunpack.c.l.b16 %v10517
  %v10554 = vunpack.c.l.b16 %v10518
  %v10555 = vunpack.c.l.b16 %v10519
  %v10556 = vunpack.c.l.b16 %v10520
  %v10557 = vpack.c.b16 %v10554, %v10553
  %v10558 = vpack.c.b16 %v10556, %v10555
  %v10563 = vunpack.c.l.b16 %v10521
  %v10564 = vunpack.c.l.b16 %v10522
  %v10565 = vunpack.c.l.b16 %v10523
  %v10566 = vunpack.c.l.b16 %v10524
  %v10567 = vpack.c.b16 %v10564, %v10563
  %v10568 = vpack.c.b16 %v10566, %v10565
  %10569 = vrot.lane.b32.xlu0 %v10567, 32
  %v10570 = vpop.permute.xlu0 %10569
  %10571 = vrot.lane.b32.xlu0 %v10568, 32
  %v10572 = vpop.permute.xlu0 %10571
  %v10577 = vunpack.c.l.b16 %v10525
  %v10578 = vunpack.c.l.b16 %v10526
  %v10579 = vunpack.c.l.b16 %v10527
  %v10580 = vunpack.c.l.b16 %v10528
  %v10581 = vpack.c.b16 %v10578, %v10577
  %v10582 = vpack.c.b16 %v10580, %v10579
  %10583 = vrot.lane.b32.xlu0 %v10581, 64
  %v10584 = vpop.permute.xlu0 %10583
  %10585 = vrot.lane.b32.xlu0 %v10582, 64
  %v10586 = vpop.permute.xlu0 %10585
  %v10591 = vunpack.c.l.b16 %v10529
  %v10592 = vunpack.c.l.b16 %v10530
  %v10593 = vunpack.c.l.b16 %v10531
  %v10594 = vunpack.c.l.b16 %v10532
  %v10595 = vpack.c.b16 %v10592, %v10591
  %v10596 = vpack.c.b16 %v10594, %v10593
  %10597 = vrot.lane.b32.xlu0 %v10595, 96
  %v10598 = vpop.permute.xlu0 %10597
  %10599 = vrot.lane.b32.xlu0 %v10596, 96
  %v10600 = vpop.permute.xlu0 %10599
  %v10605 = vunpack.c.l.b16 %v10533
  %v10606 = vunpack.c.l.b16 %v10534
  %v10607 = vunpack.c.l.b16 %v10535
  %v10608 = vunpack.c.l.b16 %v10536
  %v10609 = vpack.c.b16 %v10606, %v10605
  %v10610 = vpack.c.b16 %v10608, %v10607
  %v10615 = vunpack.c.l.b16 %v10537
  %v10616 = vunpack.c.l.b16 %v10538
  %v10617 = vunpack.c.l.b16 %v10539
  %v10618 = vunpack.c.l.b16 %v10540
  %v10619 = vpack.c.b16 %v10616, %v10615
  %v10620 = vpack.c.b16 %v10618, %v10617
  %10621 = vrot.lane.b32.xlu0 %v10619, 32
  %v10622 = vpop.permute.xlu0 %10621
  %10623 = vrot.lane.b32.xlu0 %v10620, 32
  %v10624 = vpop.permute.xlu0 %10623
  %v10629 = vunpack.c.l.b16 %v10541
  %v10630 = vunpack.c.l.b16 %v10542
  %v10631 = vunpack.c.l.b16 %v10543
  %v10632 = vunpack.c.l.b16 %v10544
  %v10633 = vpack.c.b16 %v10630, %v10629
  %v10634 = vpack.c.b16 %v10632, %v10631
  %10635 = vrot.lane.b32.xlu0 %v10633, 64
  %v10636 = vpop.permute.xlu0 %10635
  %10637 = vrot.lane.b32.xlu0 %v10634, 64
  %v10638 = vpop.permute.xlu0 %10637
  %v10643 = vunpack.c.l.b16 %v10545
  %v10644 = vunpack.c.l.b16 %v10546
  %v10645 = vunpack.c.l.b16 %v10547
  %v10646 = vunpack.c.l.b16 %v10548
  %v10647 = vpack.c.b16 %v10644, %v10643
  %v10648 = vpack.c.b16 %v10646, %v10645
  %10649 = vrot.lane.b32.xlu0 %v10647, 96
  %v10650 = vpop.permute.xlu0 %10649
  %10651 = vrot.lane.b32.xlu0 %v10648, 96
  %v10652 = vpop.permute.xlu0 %10651
  %v10655 = vsel %vm2031, %v10557, %v10570
  %v10658 = vsel %vm2031, %v10558, %v10572
  %v10660 = vsel %vm2064, %v10655, %v10584
  %v10662 = vsel %vm2064, %v10658, %v10586
  %v10664 = vsel %vm2125, %v10660, %v10598
  %v10667 = vsel %vm2125, %v10662, %v10600
  %v10671 = vsel %vm2031, %v10609, %v10622
  %v10674 = vsel %vm2031, %v10610, %v10624
  %v10676 = vsel %vm2064, %v10671, %v10636
  %v10678 = vsel %vm2064, %v10674, %v10638
  %v10680 = vsel %vm2125, %v10676, %v10650
  %v10683 = vsel %vm2125, %v10678, %v10652
  %v10685 = vld [vmem:[%s20] sm:$0xf]
  %v10686 = vld [vmem:[%s20 + $0x4] sm:$0xf]
  %v10687 = vld [vmem:[%s20 + $0x8] sm:$0xf]
  %v10688 = vld [vmem:[%s20 + $0xc] sm:$0xf]
  %v10689 = vld [vmem:[%s20 + $0x10] sm:$0xf]
  %v10690 = vld [vmem:[%s20 + $0x14] sm:$0xf]
  %v10691 = vld [vmem:[%s20 + $0x18] sm:$0xf]
  %v10692 = vld [vmem:[%s20 + $0x1c] sm:$0xf]
  %v10693 = vld [vmem:[%s20 + $0x20] sm:$0xf]
  %v10694 = vld [vmem:[%s20 + $0x24] sm:$0xf]
  %v10695 = vld [vmem:[%s20 + $0x28] sm:$0xf]
  %v10696 = vld [vmem:[%s20 + $0x2c] sm:$0xf]
  %v10697 = vld [vmem:[%s20 + $0x30] sm:$0xf]
  %v10698 = vld [vmem:[%s20 + $0x34] sm:$0xf]
  %v10699 = vld [vmem:[%s20 + $0x38] sm:$0xf]
  %v10700 = vld [vmem:[%s20 + $0x3c] sm:$0xf]
  %v10701 = vld [vmem:[%s20 + $0x40] sm:$0xf]
  %v10702 = vld [vmem:[%s20 + $0x44] sm:$0xf]
  %v10703 = vld [vmem:[%s20 + $0x48] sm:$0xf]
  %v10704 = vld [vmem:[%s20 + $0x4c] sm:$0xf]
  %v10705 = vld [vmem:[%s20 + $0x50] sm:$0xf]
  %v10706 = vld [vmem:[%s20 + $0x54] sm:$0xf]
  %v10707 = vld [vmem:[%s20 + $0x58] sm:$0xf]
  %v10708 = vld [vmem:[%s20 + $0x5c] sm:$0xf]
  %v10709 = vld [vmem:[%s20 + $0x60] sm:$0xf]
  %v10710 = vld [vmem:[%s20 + $0x64] sm:$0xf]
  %v10711 = vld [vmem:[%s20 + $0x68] sm:$0xf]
  %v10712 = vld [vmem:[%s20 + $0x6c] sm:$0xf]
  %v10713 = vld [vmem:[%s20 + $0x70] sm:$0xf]
  %v10714 = vld [vmem:[%s20 + $0x74] sm:$0xf]
  %v10715 = vld [vmem:[%s20 + $0x78] sm:$0xf]
  %v10716 = vld [vmem:[%s20 + $0x7c] sm:$0xf]
  %v10717 = vld [vmem:[%s21] sm:$0x1]
  %v10719 = vperm.slane %v10717, 0
  %v10753 = vunpack.c.l.b16 %v10685
  %v10754 = vunpack.c.l.b16 %v10686
  %v10755 = vunpack.c.l.b16 %v10687
  %v10756 = vunpack.c.l.b16 %v10688
  %v10757 = vunpack.c.l.b16 %v10689
  %v10758 = vunpack.c.l.b16 %v10690
  %v10759 = vunpack.c.l.b16 %v10691
  %v10760 = vunpack.c.l.b16 %v10692
  %v10761 = vunpack.c.l.b16 %v10693
  %v10762 = vunpack.c.l.b16 %v10694
  %v10763 = vunpack.c.l.b16 %v10695
  %v10764 = vunpack.c.l.b16 %v10696
  %v10765 = vunpack.c.l.b16 %v10697
  %v10766 = vunpack.c.l.b16 %v10698
  %v10767 = vunpack.c.l.b16 %v10699
  %v10768 = vunpack.c.l.b16 %v10700
  %v10769 = vunpack.c.l.b16 %v10701
  %v10770 = vunpack.c.l.b16 %v10702
  %v10771 = vunpack.c.l.b16 %v10703
  %v10772 = vunpack.c.l.b16 %v10704
  %v10773 = vunpack.c.l.b16 %v10705
  %v10774 = vunpack.c.l.b16 %v10706
  %v10775 = vunpack.c.l.b16 %v10707
  %v10776 = vunpack.c.l.b16 %v10708
  %v10777 = vunpack.c.l.b16 %v10709
  %v10778 = vunpack.c.l.b16 %v10710
  %v10779 = vunpack.c.l.b16 %v10711
  %v10780 = vunpack.c.l.b16 %v10712
  %v10781 = vunpack.c.l.b16 %v10713
  %v10782 = vunpack.c.l.b16 %v10714
  %v10783 = vunpack.c.l.b16 %v10715
  %v10784 = vunpack.c.l.b16 %v10716
  %v10785 = vpack.c.b16 %v10754, %v10753
  %v10786 = vpack.c.b16 %v10756, %v10755
  %v10787 = vpack.c.b16 %v10758, %v10757
  %v10788 = vpack.c.b16 %v10760, %v10759
  %v10789 = vpack.c.b16 %v10762, %v10761
  %v10790 = vpack.c.b16 %v10764, %v10763
  %v10791 = vpack.c.b16 %v10766, %v10765
  %v10792 = vpack.c.b16 %v10768, %v10767
  %v10793 = vpack.c.b16 %v10770, %v10769
  %v10794 = vpack.c.b16 %v10772, %v10771
  %v10795 = vpack.c.b16 %v10774, %v10773
  %v10796 = vpack.c.b16 %v10776, %v10775
  %v10797 = vpack.c.b16 %v10778, %v10777
  %v10798 = vpack.c.b16 %v10780, %v10779
  %v10799 = vpack.c.b16 %v10782, %v10781
  %v10800 = vpack.c.b16 %v10784, %v10783
  %10817 = vmatpush.bf16.msra.mxu0 %v10792
  %10818 = vmatpush.bf16.msra.mxu0 %v10791
  %10819 = vmatpush.bf16.msra.mxu0 %v10790
  %10820 = vmatpush.bf16.msra.mxu0 %v10789
  %10821 = vmatpush.bf16.msra.mxu0 %v10788
  %10822 = vmatpush.bf16.msra.mxu0 %v10787
  %10823 = vmatpush.bf16.msra.mxu0 %v10786
  %10824 = vmatpush.bf16.msra.mxu0 %v10785
  %10825 = vmatmul.bf16.gmra.mxu0 %v10664
  %v10826 = vpop.f32.mrf.mxu0
  %v10827 = vadd.f32 %v10719, %v10826
  %v10828 = vpop.f32.mrf.mxu0
  %v10829 = vadd.f32 %v10719, %v10828
  %10830 = vmatmul.bf16.gmra.mxu0 %v10667
  %v10831 = vpop.f32.mrf.mxu0
  %v10832 = vadd.f32 %v10719, %v10831
  %v10833 = vpop.f32.mrf.mxu0
  %v10834 = vadd.f32 %v10719, %v10833
  %10835 = vdwg.mxu0
  %10836 = vmatpush.bf16.msra.mxu0 %v10800
  %10837 = vmatpush.bf16.msra.mxu0 %v10799
  %10838 = vmatpush.bf16.msra.mxu0 %v10798
  %10839 = vmatpush.bf16.msra.mxu0 %v10797
  %10840 = vmatpush.bf16.msra.mxu0 %v10796
  %10841 = vmatpush.bf16.msra.mxu0 %v10795
  %10842 = vmatpush.bf16.msra.mxu0 %v10794
  %10843 = vmatpush.bf16.msra.mxu0 %v10793
  %10844 = vmatmul.bf16.gmra.mxu0 %v10680
  %v10845 = vpop.f32.mrf.mxu0
  %v10846 = vadd.f32 %v10827, %v10845
  %v10847 = vpop.f32.mrf.mxu0
  %v10848 = vadd.f32 %v10829, %v10847
  %10849 = vmatmul.bf16.gmra.mxu0 %v10683
  %v10850 = vpop.f32.mrf.mxu0
  %v10851 = vadd.f32 %v10832, %v10850
  %v10852 = vpop.f32.mrf.mxu0
  %v10853 = vadd.f32 %v10834, %v10852
  %10854 = vdwg.mxu0
  %10855 = vst.msk [vmem:[%s22] sm:$0xff] %vm344, %v10846
  %10856 = vst.msk [vmem:[%s22 + $0x8] sm:$0xff] %vm344, %v10848
  %10857 = vst.msk [vmem:[%s22 + $0x10] sm:$0xff] %vm344, %v10851
  %10858 = vst.msk [vmem:[%s22 + $0x18] sm:$0xff] %vm344, %v10853
  // Predicated region
  $region90: #{gated_stgcn_forward.1} parent=0 // pred_check
    _
  $region91: #{gated_stgcn_forward.1} parent=0 // pred_check_branch
    %10860 = sbr.rel (0) target = $region93
  $region92: #{gated_stgcn_forward.1} parent=0 // pred_region
    _
  $region93: #{gated_stgcn_forward.1} parent=0 // pred_fallthru
    _
  // Predicated region
  $region94: #{gated_stgcn_forward.1} parent=0 // pred_check
    _
  $region95: #{gated_stgcn_forward.1} parent=0 // pred_check_branch
    %10862 = sbr.rel (0) target = $region97
  $region96: #{gated_stgcn_forward.1} parent=0 // pred_region
    _
  $region97: #{gated_stgcn_forward.1} parent=0 // pred_fallthru
    _

</llo_original>
